<compile_context>
chip_gen: v7x
topology: tpu7x:2x2x1
jax: 0.10.0
libtpu: 0.0.40
codegen_flags: <defaults>
</compile_context>

<pallas_src>
import jax
import jax.numpy as jnp
from jax import lax
from jax.experimental import pallas as pl
from jax.experimental.pallas import tpu as pltpu

C_OUT = 10              # conv output channels
S_REAL = 196            # 14*14 pooled spatial positions
S_PAD = 256             # spatial padded to 2 lane tiles
K_PAD = C_OUT * S_PAD   # 2560: contraction dim of the fused linear
N_PAD = 128             # linear out_features (10) padded to one lane tile
TAPS = [(dy, dx) for dy in range(3) for dx in range(3)]
POOL = [(a, b) for a in range(2) for b in range(2)]


# ----------------------------- Kernel ----------------------------------------


def fused_cnn_kernel(shifts_ref, cw_ref, cb_ref, w2_ref, b2_ref, out_ref):
    # shifts_ref: (16, TB, 256) VMEM  stride-2 shifted views of the padded image
    #             shifts[(oy*4+ox), b, i*14+j] = xpad[b, 2i+oy, 2j+ox]
    # cw_ref:     (90,)  SMEM  conv weight, index c*9 + dy*3 + dx
    # cb_ref:     (10,)  SMEM  conv bias
    # w2_ref:     (2560, 128) VMEM  padded linear weight (resident, const index)
    # b2_ref:     (1, 128)    VMEM  padded linear bias
    # out_ref:    (TB, 128)   lane-dense output block (doubles as accumulator)
    for c in range(C_OUT):
        # 2x2 max-pool as a running max over the 4 pool offsets; each offset's
        # conv value is a running sum over the 9 taps.  Planes are loaded from
        # VMEM at the point of use (3 vld/cycle co-issue with the VALU MACs),
        # so only ~3 (TB,256) slabs are live at a time -> no register spills.
        pooled = None
        for a, b in POOL:
            acc = None
            for t, (dy, dx) in enumerate(TAPS):
                term = shifts_ref[(a + dy) * 4 + (b + dx)] * cw_ref[c * 9 + t]
                acc = term if acc is None else acc + term
            pooled = acc if pooled is None else jnp.maximum(pooled, acc)
        # bias-after-pool + ReLU == reference order: the constant per-channel
        # bias commutes with max, and ReLU is monotone.
        slab = jnp.maximum(pooled + cb_ref[c], 0.0)           # (TB, 256)
        # Fused linear: per-channel (TB,256)x(256,128) MXU matmul accumulated
        # straight into the output block.  The MXU work hides under the next
        # channel's VALU conv work.  Zero rows of w2 (lanes >= 196 of each
        # channel slab) cancel the ReLU(bias) values in the padded lanes.
        contrib = jnp.dot(slab, w2_ref[c * S_PAD:(c + 1) * S_PAD, :],
                          preferred_element_type=jnp.float32)
        if c == 0:
            out_ref[...] = contrib + b2_ref[...]
        else:
            out_ref[...] += contrib


# ----------------------------- Param prep (outside jit) -----------------------


def prepare_params(conv_w, conv_b, lin_w, lin_b):
    """One-time repack of PyTorch-shaped parameters into kernel layout."""
    cw_flat = conv_w.reshape(C_OUT * 9).astype(jnp.float32)        # [c*9+dy*3+dx]
    cb = conv_b.astype(jnp.float32)                                 # (10,)
    # lin_w[o, c*196 + s] -> w2[c*256 + s, o]; zero rows for s>=196, cols o>=10.
    w3 = lin_w.reshape(C_OUT, C_OUT, S_REAL).transpose(1, 2, 0)     # (c, s, o)
    w2 = jnp.zeros((C_OUT, S_PAD, N_PAD), jnp.float32)
    w2 = w2.at[:, :S_REAL, :C_OUT].set(w3).reshape(K_PAD, N_PAD)
    b2 = jnp.zeros((1, N_PAD), jnp.float32).at[0, :C_OUT].set(lin_b)
    return cw_flat, cb, w2, b2


# ----------------------------- Forward ----------------------------------------


def cnn_forward(x, cw_flat, cb, w2, b2):
    """x: (B, 1, 28, 28) f32 -> (B, 10) f32 (matches PyTorch CNN.forward)."""
    B = x.shape[0]
    assert x.shape[1:] == (1, 28, 28)
    # Batch tile: >= 2 grid steps for B > 8 (v7x has 2 TensorCores and the
    # batch axis is "parallel"); multiple of 8; capped at 64 so the conv loop
    # stays within the 64-vreg file on every chip generation.
    if B <= 8:
        TB = 8
    else:
        TB = min(64, ((B + 15) // 16) * 8)
    Bp = -(-B // TB) * TB

    # Layout-only glue: conv zero-padding + batch round-up, then 16 stride-2
    # shifted views (space-to-depth); 196 spatial positions padded to 256 lanes.
    xpad = jnp.pad(x[:, 0], ((0, Bp - B), (1, 1), (1, 1)))            # (Bp, 30, 30)
    shifts = jnp.stack(
        [xpad[:, oy:oy + 28:2, ox:ox + 28:2].reshape(Bp, S_REAL)
         for oy in range(4) for ox in range(4)])                      # (16, Bp, 196)
    shifts = jnp.pad(shifts, ((0, 0), (0, 0), (0, S_PAD - S_REAL)))   # (16, Bp, 256)

    out = pl.pallas_call(
        fused_cnn_kernel,
        out_shape=jax.ShapeDtypeStruct((Bp, N_PAD), jnp.float32),
        grid=(Bp // TB,),
        in_specs=[
            pl.BlockSpec((16, TB, S_PAD), lambda i: (0, i, 0)),
            pl.BlockSpec(memory_space=pltpu.MemorySpace.SMEM),   # conv weights
            pl.BlockSpec(memory_space=pltpu.MemorySpace.SMEM),   # conv bias
            pl.BlockSpec((K_PAD, N_PAD), lambda i: (0, 0)),      # resident lin w
            pl.BlockSpec((1, N_PAD), lambda i: (0, 0)),          # resident lin b
        ],
        out_specs=pl.BlockSpec((TB, N_PAD), lambda i: (i, 0)),
        compiler_params=pltpu.CompilerParams(
            dimension_semantics=("parallel",)),
    )(shifts, cw_flat, cb, w2, b2)

    return out[:B, :C_OUT]


# ----------------------------- Reference (plain JAX) --------------------------


def cnn_reference(x, conv_w, conv_b, lin_w, lin_b):
    conv = lax.conv_general_dilated(
        x, conv_w, window_strides=(1, 1), padding=((1, 1), (1, 1)),
        dimension_numbers=("NCHW", "OIHW", "NCHW"),
    ) + conv_b[None, :, None, None]
    r = jnp.maximum(conv, 0.0)
    pooled = lax.reduce_window(
        r, -jnp.inf, lax.max, (1, 1, 2, 2), (1, 1, 2, 2), "VALID")
    flat = pooled.reshape(x.shape[0], 1960)
    return flat @ lin_w.T + lin_b


# ----------------------------- Main --------------------------------------------


if __name__ == "__main__":
    key = jax.random.PRNGKey(0)
    kx, k1, k2, k3, k4 = jax.random.split(key, 5)

    B = 2
    # Linear in_features=1960 = 10*14*14 forces a 28x28 single-channel input.
    x = jax.random.normal(kx, (B, 1, 28, 28), dtype=jnp.float32)

    conv_bound = 1.0 / (1 * 3 * 3) ** 0.5
    lin_bound = 1.0 / 1960.0 ** 0.5
    conv_w = jax.random.uniform(k1, (10, 1, 3, 3), jnp.float32, -conv_bound, conv_bound)
    conv_b = jax.random.uniform(k2, (10,), jnp.float32, -conv_bound, conv_bound)
    lin_w = jax.random.uniform(k3, (10, 1960), jnp.float32, -lin_bound, lin_bound)
    lin_b = jax.random.uniform(k4, (10,), jnp.float32, -lin_bound, lin_bound)

    # One-time parameter repack (outside the jitted forward).
    cw_flat, cb, w2, b2 = prepare_params(conv_w, conv_b, lin_w, lin_b)

    fwd = jax.jit(cnn_forward)
    out = jax.block_until_ready(fwd(x, cw_flat, cb, w2, b2))

    ref = cnn_reference(x, conv_w, conv_b, lin_w, lin_b)
    assert out.shape == (B, 10)
    assert jnp.allclose(out, ref, atol=1e-4, rtol=1e-4), "mismatch vs JAX reference"

    print("KERNEL_OK")
</pallas_src>

<mosaic_0001>
module attributes {stable_mosaic.version = 11 : i64} {
  func.func @fused_cnn_kernel(%arg0: i32, %arg1: memref<16x8x256xf32, #tpu.memory_space<vmem>>, %arg2: memref<90xf32, #tpu.memory_space<smem>>, %arg3: memref<10xf32, #tpu.memory_space<smem>>, %arg4: memref<2560x128xf32, #tpu.memory_space<vmem>>, %arg5: memref<1x128xf32, #tpu.memory_space<vmem>>, %arg6: memref<8x128xf32, #tpu.memory_space<vmem>>) attributes {dimension_semantics = [#tpu.dimension_semantics<parallel>], iteration_bounds = array<i64: 1>, scalar_prefetch = 0 : i64, scratch_operands = 0 : i64, tpu.core_type = #tpu.core_type<tc>, window_params = [{transform_indices = @transform_0, window_bounds = array<i64: 16, 8, 256>}, {transform_indices = @transform_1, window_bounds = array<i64: 90>}, {transform_indices = @transform_2, window_bounds = array<i64: 10>}, {pipeline_mode = #tpu.pipeline_mode<synchronous>, transform_indices = @transform_3, window_bounds = array<i64: 2560, 128>}, {pipeline_mode = #tpu.pipeline_mode<synchronous>, transform_indices = @transform_4, window_bounds = array<i64: 1, 128>}, {transform_indices = @transform_5, window_bounds = array<i64: 8, 128>}]} {
    %c0 = arith.constant 0 : index
    %c0_0 = arith.constant 0 : index
    %c0_1 = arith.constant 0 : index
    %0 = vector.load %arg1[%c0, %c0_0, %c0_1] : memref<16x8x256xf32, #tpu.memory_space<vmem>>, vector<1x8x256xf32>
    %1 = vector.shape_cast %0 : vector<1x8x256xf32> to vector<8x256xf32>
    %c0_2 = arith.constant 0 : index
    %2 = memref.load %arg2[%c0_2] : memref<90xf32, #tpu.memory_space<smem>>
    %3 = vector.broadcast %2 : f32 to vector<8x256xf32>
    %4 = arith.mulf %1, %3 : vector<8x256xf32>
    %c1 = arith.constant 1 : index
    %c0_3 = arith.constant 0 : index
    %c0_4 = arith.constant 0 : index
    %5 = vector.load %arg1[%c1, %c0_3, %c0_4] : memref<16x8x256xf32, #tpu.memory_space<vmem>>, vector<1x8x256xf32>
    %6 = vector.shape_cast %5 : vector<1x8x256xf32> to vector<8x256xf32>
    %c1_5 = arith.constant 1 : index
    %7 = memref.load %arg2[%c1_5] : memref<90xf32, #tpu.memory_space<smem>>
    %8 = vector.broadcast %7 : f32 to vector<8x256xf32>
    %9 = arith.mulf %6, %8 : vector<8x256xf32>
    %10 = arith.addf %4, %9 : vector<8x256xf32>
    %c2 = arith.constant 2 : index
    %c0_6 = arith.constant 0 : index
    %c0_7 = arith.constant 0 : index
    %11 = vector.load %arg1[%c2, %c0_6, %c0_7] : memref<16x8x256xf32, #tpu.memory_space<vmem>>, vector<1x8x256xf32>
    %12 = vector.shape_cast %11 : vector<1x8x256xf32> to vector<8x256xf32>
    %c2_8 = arith.constant 2 : index
    %13 = memref.load %arg2[%c2_8] : memref<90xf32, #tpu.memory_space<smem>>
    %14 = vector.broadcast %13 : f32 to vector<8x256xf32>
    %15 = arith.mulf %12, %14 : vector<8x256xf32>
    %16 = arith.addf %10, %15 : vector<8x256xf32>
    %c4 = arith.constant 4 : index
    %c0_9 = arith.constant 0 : index
    %c0_10 = arith.constant 0 : index
    %17 = vector.load %arg1[%c4, %c0_9, %c0_10] : memref<16x8x256xf32, #tpu.memory_space<vmem>>, vector<1x8x256xf32>
    %18 = vector.shape_cast %17 : vector<1x8x256xf32> to vector<8x256xf32>
    %c3 = arith.constant 3 : index
    %19 = memref.load %arg2[%c3] : memref<90xf32, #tpu.memory_space<smem>>
    %20 = vector.broadcast %19 : f32 to vector<8x256xf32>
    %21 = arith.mulf %18, %20 : vector<8x256xf32>
    %22 = arith.addf %16, %21 : vector<8x256xf32>
    %c5 = arith.constant 5 : index
    %c0_11 = arith.constant 0 : index
    %c0_12 = arith.constant 0 : index
    %23 = vector.load %arg1[%c5, %c0_11, %c0_12] : memref<16x8x256xf32, #tpu.memory_space<vmem>>, vector<1x8x256xf32>
    %24 = vector.shape_cast %23 : vector<1x8x256xf32> to vector<8x256xf32>
    %c4_13 = arith.constant 4 : index
    %25 = memref.load %arg2[%c4_13] : memref<90xf32, #tpu.memory_space<smem>>
    %26 = vector.broadcast %25 : f32 to vector<8x256xf32>
    %27 = arith.mulf %24, %26 : vector<8x256xf32>
    %28 = arith.addf %22, %27 : vector<8x256xf32>
    %c6 = arith.constant 6 : index
    %c0_14 = arith.constant 0 : index
    %c0_15 = arith.constant 0 : index
    %29 = vector.load %arg1[%c6, %c0_14, %c0_15] : memref<16x8x256xf32, #tpu.memory_space<vmem>>, vector<1x8x256xf32>
    %30 = vector.shape_cast %29 : vector<1x8x256xf32> to vector<8x256xf32>
    %c5_16 = arith.constant 5 : index
    %31 = memref.load %arg2[%c5_16] : memref<90xf32, #tpu.memory_space<smem>>
    %32 = vector.broadcast %31 : f32 to vector<8x256xf32>
    %33 = arith.mulf %30, %32 : vector<8x256xf32>
    %34 = arith.addf %28, %33 : vector<8x256xf32>
    %c8 = arith.constant 8 : index
    %c0_17 = arith.constant 0 : index
    %c0_18 = arith.constant 0 : index
    %35 = vector.load %arg1[%c8, %c0_17, %c0_18] : memref<16x8x256xf32, #tpu.memory_space<vmem>>, vector<1x8x256xf32>
    %36 = vector.shape_cast %35 : vector<1x8x256xf32> to vector<8x256xf32>
    %c6_19 = arith.constant 6 : index
    %37 = memref.load %arg2[%c6_19] : memref<90xf32, #tpu.memory_space<smem>>
    %38 = vector.broadcast %37 : f32 to vector<8x256xf32>
    %39 = arith.mulf %36, %38 : vector<8x256xf32>
    %40 = arith.addf %34, %39 : vector<8x256xf32>
    %c9 = arith.constant 9 : index
    %c0_20 = arith.constant 0 : index
    %c0_21 = arith.constant 0 : index
    %41 = vector.load %arg1[%c9, %c0_20, %c0_21] : memref<16x8x256xf32, #tpu.memory_space<vmem>>, vector<1x8x256xf32>
    %42 = vector.shape_cast %41 : vector<1x8x256xf32> to vector<8x256xf32>
    %c7 = arith.constant 7 : index
    %43 = memref.load %arg2[%c7] : memref<90xf32, #tpu.memory_space<smem>>
    %44 = vector.broadcast %43 : f32 to vector<8x256xf32>
    %45 = arith.mulf %42, %44 : vector<8x256xf32>
    %46 = arith.addf %40, %45 : vector<8x256xf32>
    %c10 = arith.constant 10 : index
    %c0_22 = arith.constant 0 : index
    %c0_23 = arith.constant 0 : index
    %47 = vector.load %arg1[%c10, %c0_22, %c0_23] : memref<16x8x256xf32, #tpu.memory_space<vmem>>, vector<1x8x256xf32>
    %48 = vector.shape_cast %47 : vector<1x8x256xf32> to vector<8x256xf32>
    %c8_24 = arith.constant 8 : index
    %49 = memref.load %arg2[%c8_24] : memref<90xf32, #tpu.memory_space<smem>>
    %50 = vector.broadcast %49 : f32 to vector<8x256xf32>
    %51 = arith.mulf %48, %50 : vector<8x256xf32>
    %52 = arith.addf %46, %51 : vector<8x256xf32>
    %c1_25 = arith.constant 1 : index
    %c0_26 = arith.constant 0 : index
    %c0_27 = arith.constant 0 : index
    %53 = vector.load %arg1[%c1_25, %c0_26, %c0_27] : memref<16x8x256xf32, #tpu.memory_space<vmem>>, vector<1x8x256xf32>
    %54 = vector.shape_cast %53 : vector<1x8x256xf32> to vector<8x256xf32>
    %c0_28 = arith.constant 0 : index
    %55 = memref.load %arg2[%c0_28] : memref<90xf32, #tpu.memory_space<smem>>
    %56 = vector.broadcast %55 : f32 to vector<8x256xf32>
    %57 = arith.mulf %54, %56 : vector<8x256xf32>
    %c2_29 = arith.constant 2 : index
    %c0_30 = arith.constant 0 : index
    %c0_31 = arith.constant 0 : index
    %58 = vector.load %arg1[%c2_29, %c0_30, %c0_31] : memref<16x8x256xf32, #tpu.memory_space<vmem>>, vector<1x8x256xf32>
    %59 = vector.shape_cast %58 : vector<1x8x256xf32> to vector<8x256xf32>
    %c1_32 = arith.constant 1 : index
    %60 = memref.load %arg2[%c1_32] : memref<90xf32, #tpu.memory_space<smem>>
    %61 = vector.broadcast %60 : f32 to vector<8x256xf32>
    %62 = arith.mulf %59, %61 : vector<8x256xf32>
    %63 = arith.addf %57, %62 : vector<8x256xf32>
    %c3_33 = arith.constant 3 : index
    %c0_34 = arith.constant 0 : index
    %c0_35 = arith.constant 0 : index
    %64 = vector.load %arg1[%c3_33, %c0_34, %c0_35] : memref<16x8x256xf32, #tpu.memory_space<vmem>>, vector<1x8x256xf32>
    %65 = vector.shape_cast %64 : vector<1x8x256xf32> to vector<8x256xf32>
    %c2_36 = arith.constant 2 : index
    %66 = memref.load %arg2[%c2_36] : memref<90xf32, #tpu.memory_space<smem>>
    %67 = vector.broadcast %66 : f32 to vector<8x256xf32>
    %68 = arith.mulf %65, %67 : vector<8x256xf32>
    %69 = arith.addf %63, %68 : vector<8x256xf32>
    %c5_37 = arith.constant 5 : index
    %c0_38 = arith.constant 0 : index
    %c0_39 = arith.constant 0 : index
    %70 = vector.load %arg1[%c5_37, %c0_38, %c0_39] : memref<16x8x256xf32, #tpu.memory_space<vmem>>, vector<1x8x256xf32>
    %71 = vector.shape_cast %70 : vector<1x8x256xf32> to vector<8x256xf32>
    %c3_40 = arith.constant 3 : index
    %72 = memref.load %arg2[%c3_40] : memref<90xf32, #tpu.memory_space<smem>>
    %73 = vector.broadcast %72 : f32 to vector<8x256xf32>
    %74 = arith.mulf %71, %73 : vector<8x256xf32>
    %75 = arith.addf %69, %74 : vector<8x256xf32>
    %c6_41 = arith.constant 6 : index
    %c0_42 = arith.constant 0 : index
    %c0_43 = arith.constant 0 : index
    %76 = vector.load %arg1[%c6_41, %c0_42, %c0_43] : memref<16x8x256xf32, #tpu.memory_space<vmem>>, vector<1x8x256xf32>
    %77 = vector.shape_cast %76 : vector<1x8x256xf32> to vector<8x256xf32>
    %c4_44 = arith.constant 4 : index
    %78 = memref.load %arg2[%c4_44] : memref<90xf32, #tpu.memory_space<smem>>
    %79 = vector.broadcast %78 : f32 to vector<8x256xf32>
    %80 = arith.mulf %77, %79 : vector<8x256xf32>
    %81 = arith.addf %75, %80 : vector<8x256xf32>
    %c7_45 = arith.constant 7 : index
    %c0_46 = arith.constant 0 : index
    %c0_47 = arith.constant 0 : index
    %82 = vector.load %arg1[%c7_45, %c0_46, %c0_47] : memref<16x8x256xf32, #tpu.memory_space<vmem>>, vector<1x8x256xf32>
    %83 = vector.shape_cast %82 : vector<1x8x256xf32> to vector<8x256xf32>
    %c5_48 = arith.constant 5 : index
    %84 = memref.load %arg2[%c5_48] : memref<90xf32, #tpu.memory_space<smem>>
    %85 = vector.broadcast %84 : f32 to vector<8x256xf32>
    %86 = arith.mulf %83, %85 : vector<8x256xf32>
    %87 = arith.addf %81, %86 : vector<8x256xf32>
    %c9_49 = arith.constant 9 : index
    %c0_50 = arith.constant 0 : index
    %c0_51 = arith.constant 0 : index
    %88 = vector.load %arg1[%c9_49, %c0_50, %c0_51] : memref<16x8x256xf32, #tpu.memory_space<vmem>>, vector<1x8x256xf32>
    %89 = vector.shape_cast %88 : vector<1x8x256xf32> to vector<8x256xf32>
    %c6_52 = arith.constant 6 : index
    %90 = memref.load %arg2[%c6_52] : memref<90xf32, #tpu.memory_space<smem>>
    %91 = vector.broadcast %90 : f32 to vector<8x256xf32>
    %92 = arith.mulf %89, %91 : vector<8x256xf32>
    %93 = arith.addf %87, %92 : vector<8x256xf32>
    %c10_53 = arith.constant 10 : index
    %c0_54 = arith.constant 0 : index
    %c0_55 = arith.constant 0 : index
    %94 = vector.load %arg1[%c10_53, %c0_54, %c0_55] : memref<16x8x256xf32, #tpu.memory_space<vmem>>, vector<1x8x256xf32>
    %95 = vector.shape_cast %94 : vector<1x8x256xf32> to vector<8x256xf32>
    %c7_56 = arith.constant 7 : index
    %96 = memref.load %arg2[%c7_56] : memref<90xf32, #tpu.memory_space<smem>>
    %97 = vector.broadcast %96 : f32 to vector<8x256xf32>
    %98 = arith.mulf %95, %97 : vector<8x256xf32>
    %99 = arith.addf %93, %98 : vector<8x256xf32>
    %c11 = arith.constant 11 : index
    %c0_57 = arith.constant 0 : index
    %c0_58 = arith.constant 0 : index
    %100 = vector.load %arg1[%c11, %c0_57, %c0_58] : memref<16x8x256xf32, #tpu.memory_space<vmem>>, vector<1x8x256xf32>
    %101 = vector.shape_cast %100 : vector<1x8x256xf32> to vector<8x256xf32>
    %c8_59 = arith.constant 8 : index
    %102 = memref.load %arg2[%c8_59] : memref<90xf32, #tpu.memory_space<smem>>
    %103 = vector.broadcast %102 : f32 to vector<8x256xf32>
    %104 = arith.mulf %101, %103 : vector<8x256xf32>
    %105 = arith.addf %99, %104 : vector<8x256xf32>
    %106 = arith.maximumf %52, %105 : vector<8x256xf32>
    %c4_60 = arith.constant 4 : index
    %c0_61 = arith.constant 0 : index
    %c0_62 = arith.constant 0 : index
    %107 = vector.load %arg1[%c4_60, %c0_61, %c0_62] : memref<16x8x256xf32, #tpu.memory_space<vmem>>, vector<1x8x256xf32>
    %108 = vector.shape_cast %107 : vector<1x8x256xf32> to vector<8x256xf32>
    %c0_63 = arith.constant 0 : index
    %109 = memref.load %arg2[%c0_63] : memref<90xf32, #tpu.memory_space<smem>>
    %110 = vector.broadcast %109 : f32 to vector<8x256xf32>
    %111 = arith.mulf %108, %110 : vector<8x256xf32>
    %c5_64 = arith.constant 5 : index
    %c0_65 = arith.constant 0 : index
    %c0_66 = arith.constant 0 : index
    %112 = vector.load %arg1[%c5_64, %c0_65, %c0_66] : memref<16x8x256xf32, #tpu.memory_space<vmem>>, vector<1x8x256xf32>
    %113 = vector.shape_cast %112 : vector<1x8x256xf32> to vector<8x256xf32>
    %c1_67 = arith.constant 1 : index
    %114 = memref.load %arg2[%c1_67] : memref<90xf32, #tpu.memory_space<smem>>
    %115 = vector.broadcast %114 : f32 to vector<8x256xf32>
    %116 = arith.mulf %113, %115 : vector<8x256xf32>
    %117 = arith.addf %111, %116 : vector<8x256xf32>
    %c6_68 = arith.constant 6 : index
    %c0_69 = arith.constant 0 : index
    %c0_70 = arith.constant 0 : index
    %118 = vector.load %arg1[%c6_68, %c0_69, %c0_70] : memref<16x8x256xf32, #tpu.memory_space<vmem>>, vector<1x8x256xf32>
    %119 = vector.shape_cast %118 : vector<1x8x256xf32> to vector<8x256xf32>
    %c2_71 = arith.constant 2 : index
    %120 = memref.load %arg2[%c2_71] : memref<90xf32, #tpu.memory_space<smem>>
    %121 = vector.broadcast %120 : f32 to vector<8x256xf32>
    %122 = arith.mulf %119, %121 : vector<8x256xf32>
    %123 = arith.addf %117, %122 : vector<8x256xf32>
    %c8_72 = arith.constant 8 : index
    %c0_73 = arith.constant 0 : index
    %c0_74 = arith.constant 0 : index
    %124 = vector.load %arg1[%c8_72, %c0_73, %c0_74] : memref<16x8x256xf32, #tpu.memory_space<vmem>>, vector<1x8x256xf32>
    %125 = vector.shape_cast %124 : vector<1x8x256xf32> to vector<8x256xf32>
    %c3_75 = arith.constant 3 : index
    %126 = memref.load %arg2[%c3_75] : memref<90xf32, #tpu.memory_space<smem>>
    %127 = vector.broadcast %126 : f32 to vector<8x256xf32>
    %128 = arith.mulf %125, %127 : vector<8x256xf32>
    %129 = arith.addf %123, %128 : vector<8x256xf32>
    %c9_76 = arith.constant 9 : index
    %c0_77 = arith.constant 0 : index
    %c0_78 = arith.constant 0 : index
    %130 = vector.load %arg1[%c9_76, %c0_77, %c0_78] : memref<16x8x256xf32, #tpu.memory_space<vmem>>, vector<1x8x256xf32>
    %131 = vector.shape_cast %130 : vector<1x8x256xf32> to vector<8x256xf32>
    %c4_79 = arith.constant 4 : index
    %132 = memref.load %arg2[%c4_79] : memref<90xf32, #tpu.memory_space<smem>>
    %133 = vector.broadcast %132 : f32 to vector<8x256xf32>
    %134 = arith.mulf %131, %133 : vector<8x256xf32>
    %135 = arith.addf %129, %134 : vector<8x256xf32>
    %c10_80 = arith.constant 10 : index
    %c0_81 = arith.constant 0 : index
    %c0_82 = arith.constant 0 : index
    %136 = vector.load %arg1[%c10_80, %c0_81, %c0_82] : memref<16x8x256xf32, #tpu.memory_space<vmem>>, vector<1x8x256xf32>
    %137 = vector.shape_cast %136 : vector<1x8x256xf32> to vector<8x256xf32>
    %c5_83 = arith.constant 5 : index
    %138 = memref.load %arg2[%c5_83] : memref<90xf32, #tpu.memory_space<smem>>
    %139 = vector.broadcast %138 : f32 to vector<8x256xf32>
    %140 = arith.mulf %137, %139 : vector<8x256xf32>
    %141 = arith.addf %135, %140 : vector<8x256xf32>
    %c12 = arith.constant 12 : index
    %c0_84 = arith.constant 0 : index
    %c0_85 = arith.constant 0 : index
    %142 = vector.load %arg1[%c12, %c0_84, %c0_85] : memref<16x8x256xf32, #tpu.memory_space<vmem>>, vector<1x8x256xf32>
    %143 = vector.shape_cast %142 : vector<1x8x256xf32> to vector<8x256xf32>
    %c6_86 = arith.constant 6 : index
    %144 = memref.load %arg2[%c6_86] : memref<90xf32, #tpu.memory_space<smem>>
    %145 = vector.broadcast %144 : f32 to vector<8x256xf32>
    %146 = arith.mulf %143, %145 : vector<8x256xf32>
    %147 = arith.addf %141, %146 : vector<8x256xf32>
    %c13 = arith.constant 13 : index
    %c0_87 = arith.constant 0 : index
    %c0_88 = arith.constant 0 : index
    %148 = vector.load %arg1[%c13, %c0_87, %c0_88] : memref<16x8x256xf32, #tpu.memory_space<vmem>>, vector<1x8x256xf32>
    %149 = vector.shape_cast %148 : vector<1x8x256xf32> to vector<8x256xf32>
    %c7_89 = arith.constant 7 : index
    %150 = memref.load %arg2[%c7_89] : memref<90xf32, #tpu.memory_space<smem>>
    %151 = vector.broadcast %150 : f32 to vector<8x256xf32>
    %152 = arith.mulf %149, %151 : vector<8x256xf32>
    %153 = arith.addf %147, %152 : vector<8x256xf32>
    %c14 = arith.constant 14 : index
    %c0_90 = arith.constant 0 : index
    %c0_91 = arith.constant 0 : index
    %154 = vector.load %arg1[%c14, %c0_90, %c0_91] : memref<16x8x256xf32, #tpu.memory_space<vmem>>, vector<1x8x256xf32>
    %155 = vector.shape_cast %154 : vector<1x8x256xf32> to vector<8x256xf32>
    %c8_92 = arith.constant 8 : index
    %156 = memref.load %arg2[%c8_92] : memref<90xf32, #tpu.memory_space<smem>>
    %157 = vector.broadcast %156 : f32 to vector<8x256xf32>
    %158 = arith.mulf %155, %157 : vector<8x256xf32>
    %159 = arith.addf %153, %158 : vector<8x256xf32>
    %160 = arith.maximumf %106, %159 : vector<8x256xf32>
    %c5_93 = arith.constant 5 : index
    %c0_94 = arith.constant 0 : index
    %c0_95 = arith.constant 0 : index
    %161 = vector.load %arg1[%c5_93, %c0_94, %c0_95] : memref<16x8x256xf32, #tpu.memory_space<vmem>>, vector<1x8x256xf32>
    %162 = vector.shape_cast %161 : vector<1x8x256xf32> to vector<8x256xf32>
    %c0_96 = arith.constant 0 : index
    %163 = memref.load %arg2[%c0_96] : memref<90xf32, #tpu.memory_space<smem>>
    %164 = vector.broadcast %163 : f32 to vector<8x256xf32>
    %165 = arith.mulf %162, %164 : vector<8x256xf32>
    %c6_97 = arith.constant 6 : index
    %c0_98 = arith.constant 0 : index
    %c0_99 = arith.constant 0 : index
    %166 = vector.load %arg1[%c6_97, %c0_98, %c0_99] : memref<16x8x256xf32, #tpu.memory_space<vmem>>, vector<1x8x256xf32>
    %167 = vector.shape_cast %166 : vector<1x8x256xf32> to vector<8x256xf32>
    %c1_100 = arith.constant 1 : index
    %168 = memref.load %arg2[%c1_100] : memref<90xf32, #tpu.memory_space<smem>>
    %169 = vector.broadcast %168 : f32 to vector<8x256xf32>
    %170 = arith.mulf %167, %169 : vector<8x256xf32>
    %171 = arith.addf %165, %170 : vector<8x256xf32>
    %c7_101 = arith.constant 7 : index
    %c0_102 = arith.constant 0 : index
    %c0_103 = arith.constant 0 : index
    %172 = vector.load %arg1[%c7_101, %c0_102, %c0_103] : memref<16x8x256xf32, #tpu.memory_space<vmem>>, vector<1x8x256xf32>
    %173 = vector.shape_cast %172 : vector<1x8x256xf32> to vector<8x256xf32>
    %c2_104 = arith.constant 2 : index
    %174 = memref.load %arg2[%c2_104] : memref<90xf32, #tpu.memory_space<smem>>
    %175 = vector.broadcast %174 : f32 to vector<8x256xf32>
    %176 = arith.mulf %173, %175 : vector<8x256xf32>
    %177 = arith.addf %171, %176 : vector<8x256xf32>
    %c9_105 = arith.constant 9 : index
    %c0_106 = arith.constant 0 : index
    %c0_107 = arith.constant 0 : index
    %178 = vector.load %arg1[%c9_105, %c0_106, %c0_107] : memref<16x8x256xf32, #tpu.memory_space<vmem>>, vector<1x8x256xf32>
    %179 = vector.shape_cast %178 : vector<1x8x256xf32> to vector<8x256xf32>
    %c3_108 = arith.constant 3 : index
    %180 = memref.load %arg2[%c3_108] : memref<90xf32, #tpu.memory_space<smem>>
    %181 = vector.broadcast %180 : f32 to vector<8x256xf32>
    %182 = arith.mulf %179, %181 : vector<8x256xf32>
    %183 = arith.addf %177, %182 : vector<8x256xf32>
    %c10_109 = arith.constant 10 : index
    %c0_110 = arith.constant 0 : index
    %c0_111 = arith.constant 0 : index
    %184 = vector.load %arg1[%c10_109, %c0_110, %c0_111] : memref<16x8x256xf32, #tpu.memory_space<vmem>>, vector<1x8x256xf32>
    %185 = vector.shape_cast %184 : vector<1x8x256xf32> to vector<8x256xf32>
    %c4_112 = arith.constant 4 : index
    %186 = memref.load %arg2[%c4_112] : memref<90xf32, #tpu.memory_space<smem>>
    %187 = vector.broadcast %186 : f32 to vector<8x256xf32>
    %188 = arith.mulf %185, %187 : vector<8x256xf32>
    %189 = arith.addf %183, %188 : vector<8x256xf32>
    %c11_113 = arith.constant 11 : index
    %c0_114 = arith.constant 0 : index
    %c0_115 = arith.constant 0 : index
    %190 = vector.load %arg1[%c11_113, %c0_114, %c0_115] : memref<16x8x256xf32, #tpu.memory_space<vmem>>, vector<1x8x256xf32>
    %191 = vector.shape_cast %190 : vector<1x8x256xf32> to vector<8x256xf32>
    %c5_116 = arith.constant 5 : index
    %192 = memref.load %arg2[%c5_116] : memref<90xf32, #tpu.memory_space<smem>>
    %193 = vector.broadcast %192 : f32 to vector<8x256xf32>
    %194 = arith.mulf %191, %193 : vector<8x256xf32>
    %195 = arith.addf %189, %194 : vector<8x256xf32>
    %c13_117 = arith.constant 13 : index
    %c0_118 = arith.constant 0 : index
    %c0_119 = arith.constant 0 : index
    %196 = vector.load %arg1[%c13_117, %c0_118, %c0_119] : memref<16x8x256xf32, #tpu.memory_space<vmem>>, vector<1x8x256xf32>
    %197 = vector.shape_cast %196 : vector<1x8x256xf32> to vector<8x256xf32>
    %c6_120 = arith.constant 6 : index
    %198 = memref.load %arg2[%c6_120] : memref<90xf32, #tpu.memory_space<smem>>
    %199 = vector.broadcast %198 : f32 to vector<8x256xf32>
    %200 = arith.mulf %197, %199 : vector<8x256xf32>
    %201 = arith.addf %195, %200 : vector<8x256xf32>
    %c14_121 = arith.constant 14 : index
    %c0_122 = arith.constant 0 : index
    %c0_123 = arith.constant 0 : index
    %202 = vector.load %arg1[%c14_121, %c0_122, %c0_123] : memref<16x8x256xf32, #tpu.memory_space<vmem>>, vector<1x8x256xf32>
    %203 = vector.shape_cast %202 : vector<1x8x256xf32> to vector<8x256xf32>
    %c7_124 = arith.constant 7 : index
    %204 = memref.load %arg2[%c7_124] : memref<90xf32, #tpu.memory_space<smem>>
    %205 = vector.broadcast %204 : f32 to vector<8x256xf32>
    %206 = arith.mulf %203, %205 : vector<8x256xf32>
    %207 = arith.addf %201, %206 : vector<8x256xf32>
    %c15 = arith.constant 15 : index
    %c0_125 = arith.constant 0 : index
    %c0_126 = arith.constant 0 : index
    %208 = vector.load %arg1[%c15, %c0_125, %c0_126] : memref<16x8x256xf32, #tpu.memory_space<vmem>>, vector<1x8x256xf32>
    %209 = vector.shape_cast %208 : vector<1x8x256xf32> to vector<8x256xf32>
    %c8_127 = arith.constant 8 : index
    %210 = memref.load %arg2[%c8_127] : memref<90xf32, #tpu.memory_space<smem>>
    %211 = vector.broadcast %210 : f32 to vector<8x256xf32>
    %212 = arith.mulf %209, %211 : vector<8x256xf32>
    %213 = arith.addf %207, %212 : vector<8x256xf32>
    %214 = arith.maximumf %160, %213 : vector<8x256xf32>
    %c0_128 = arith.constant 0 : index
    %215 = memref.load %arg3[%c0_128] : memref<10xf32, #tpu.memory_space<smem>>
    %216 = vector.broadcast %215 : f32 to vector<8x256xf32>
    %217 = arith.addf %214, %216 : vector<8x256xf32>
    %cst = arith.constant 0.000000e+00 : f32
    %218 = vector.broadcast %cst : f32 to vector<8x256xf32>
    %219 = arith.maximumf %217, %218 : vector<8x256xf32>
    %c0_129 = arith.constant 0 : index
    %c0_130 = arith.constant 0 : index
    %220 = vector.load %arg4[%c0_129, %c0_130] : memref<2560x128xf32, #tpu.memory_space<vmem>>, vector<256x128xf32>
    %cst_131 = arith.constant dense<0.000000e+00> : vector<8x128xf32>
    %221 = tpu.matmul %219, %220, %cst_131 {dimension_numbers = #tpu.dot_dimension_numbers<[1], [0], [0], [1], [0, 0, 1, 1], [], []>} : vector<8x256xf32>, vector<256x128xf32>, vector<8x128xf32> -> vector<8x128xf32>
    %c0_132 = arith.constant 0 : index
    %c0_133 = arith.constant 0 : index
    %222 = vector.load %arg5[%c0_132, %c0_133] : memref<1x128xf32, #tpu.memory_space<vmem>>, vector<1x128xf32>
    %223 = vector.broadcast %222 : vector<1x128xf32> to vector<8x128xf32>
    %224 = arith.addf %221, %223 : vector<8x128xf32>
    %c0_134 = arith.constant 0 : index
    %c0_135 = arith.constant 0 : index
    %225 = vector.load %arg6[%c0_134, %c0_135] : memref<8x128xf32, #tpu.memory_space<vmem>>, vector<8x128xf32>
    tpu.vector_store %arg6[%c0_134, %c0_135], %224 {strides = array<i32>} : memref<8x128xf32, #tpu.memory_space<vmem>>, vector<8x128xf32>,
    %c0_136 = arith.constant 0 : index
    %c0_137 = arith.constant 0 : index
    %c0_138 = arith.constant 0 : index
    %226 = vector.load %arg1[%c0_136, %c0_137, %c0_138] : memref<16x8x256xf32, #tpu.memory_space<vmem>>, vector<1x8x256xf32>
    %227 = vector.shape_cast %226 : vector<1x8x256xf32> to vector<8x256xf32>
    %c9_139 = arith.constant 9 : index
    %228 = memref.load %arg2[%c9_139] : memref<90xf32, #tpu.memory_space<smem>>
    %229 = vector.broadcast %228 : f32 to vector<8x256xf32>
    %230 = arith.mulf %227, %229 : vector<8x256xf32>
    %c1_140 = arith.constant 1 : index
    %c0_141 = arith.constant 0 : index
    %c0_142 = arith.constant 0 : index
    %231 = vector.load %arg1[%c1_140, %c0_141, %c0_142] : memref<16x8x256xf32, #tpu.memory_space<vmem>>, vector<1x8x256xf32>
    %232 = vector.shape_cast %231 : vector<1x8x256xf32> to vector<8x256xf32>
    %c10_143 = arith.constant 10 : index
    %233 = memref.load %arg2[%c10_143] : memref<90xf32, #tpu.memory_space<smem>>
    %234 = vector.broadcast %233 : f32 to vector<8x256xf32>
    %235 = arith.mulf %232, %234 : vector<8x256xf32>
    %236 = arith.addf %230, %235 : vector<8x256xf32>
    %c2_144 = arith.constant 2 : index
    %c0_145 = arith.constant 0 : index
    %c0_146 = arith.constant 0 : index
    %237 = vector.load %arg1[%c2_144, %c0_145, %c0_146] : memref<16x8x256xf32, #tpu.memory_space<vmem>>, vector<1x8x256xf32>
    %238 = vector.shape_cast %237 : vector<1x8x256xf32> to vector<8x256xf32>
    %c11_147 = arith.constant 11 : index
    %239 = memref.load %arg2[%c11_147] : memref<90xf32, #tpu.memory_space<smem>>
    %240 = vector.broadcast %239 : f32 to vector<8x256xf32>
    %241 = arith.mulf %238, %240 : vector<8x256xf32>
    %242 = arith.addf %236, %241 : vector<8x256xf32>
    %c4_148 = arith.constant 4 : index
    %c0_149 = arith.constant 0 : index
    %c0_150 = arith.constant 0 : index
    %243 = vector.load %arg1[%c4_148, %c0_149, %c0_150] : memref<16x8x256xf32, #tpu.memory_space<vmem>>, vector<1x8x256xf32>
    %244 = vector.shape_cast %243 : vector<1x8x256xf32> to vector<8x256xf32>
    %c12_151 = arith.constant 12 : index
    %245 = memref.load %arg2[%c12_151] : memref<90xf32, #tpu.memory_space<smem>>
    %246 = vector.broadcast %245 : f32 to vector<8x256xf32>
    %247 = arith.mulf %244, %246 : vector<8x256xf32>
    %248 = arith.addf %242, %247 : vector<8x256xf32>
    %c5_152 = arith.constant 5 : index
    %c0_153 = arith.constant 0 : index
    %c0_154 = arith.constant 0 : index
    %249 = vector.load %arg1[%c5_152, %c0_153, %c0_154] : memref<16x8x256xf32, #tpu.memory_space<vmem>>, vector<1x8x256xf32>
    %250 = vector.shape_cast %249 : vector<1x8x256xf32> to vector<8x256xf32>
    %c13_155 = arith.constant 13 : index
    %251 = memref.load %arg2[%c13_155] : memref<90xf32, #tpu.memory_space<smem>>
    %252 = vector.broadcast %251 : f32 to vector<8x256xf32>
    %253 = arith.mulf %250, %252 : vector<8x256xf32>
    %254 = arith.addf %248, %253 : vector<8x256xf32>
    %c6_156 = arith.constant 6 : index
    %c0_157 = arith.constant 0 : index
    %c0_158 = arith.constant 0 : index
    %255 = vector.load %arg1[%c6_156, %c0_157, %c0_158] : memref<16x8x256xf32, #tpu.memory_space<vmem>>, vector<1x8x256xf32>
    %256 = vector.shape_cast %255 : vector<1x8x256xf32> to vector<8x256xf32>
    %c14_159 = arith.constant 14 : index
    %257 = memref.load %arg2[%c14_159] : memref<90xf32, #tpu.memory_space<smem>>
    %258 = vector.broadcast %257 : f32 to vector<8x256xf32>
    %259 = arith.mulf %256, %258 : vector<8x256xf32>
    %260 = arith.addf %254, %259 : vector<8x256xf32>
    %c8_160 = arith.constant 8 : index
    %c0_161 = arith.constant 0 : index
    %c0_162 = arith.constant 0 : index
    %261 = vector.load %arg1[%c8_160, %c0_161, %c0_162] : memref<16x8x256xf32, #tpu.memory_space<vmem>>, vector<1x8x256xf32>
    %262 = vector.shape_cast %261 : vector<1x8x256xf32> to vector<8x256xf32>
    %c15_163 = arith.constant 15 : index
    %263 = memref.load %arg2[%c15_163] : memref<90xf32, #tpu.memory_space<smem>>
    %264 = vector.broadcast %263 : f32 to vector<8x256xf32>
    %265 = arith.mulf %262, %264 : vector<8x256xf32>
    %266 = arith.addf %260, %265 : vector<8x256xf32>
    %c9_164 = arith.constant 9 : index
    %c0_165 = arith.constant 0 : index
    %c0_166 = arith.constant 0 : index
    %267 = vector.load %arg1[%c9_164, %c0_165, %c0_166] : memref<16x8x256xf32, #tpu.memory_space<vmem>>, vector<1x8x256xf32>
    %268 = vector.shape_cast %267 : vector<1x8x256xf32> to vector<8x256xf32>
    %c16 = arith.constant 16 : index
    %269 = memref.load %arg2[%c16] : memref<90xf32, #tpu.memory_space<smem>>
    %270 = vector.broadcast %269 : f32 to vector<8x256xf32>
    %271 = arith.mulf %268, %270 : vector<8x256xf32>
    %272 = arith.addf %266, %271 : vector<8x256xf32>
    %c10_167 = arith.constant 10 : index
    %c0_168 = arith.constant 0 : index
    %c0_169 = arith.constant 0 : index
    %273 = vector.load %arg1[%c10_167, %c0_168, %c0_169] : memref<16x8x256xf32, #tpu.memory_space<vmem>>, vector<1x8x256xf32>
    %274 = vector.shape_cast %273 : vector<1x8x256xf32> to vector<8x256xf32>
    %c17 = arith.constant 17 : index
    %275 = memref.load %arg2[%c17] : memref<90xf32, #tpu.memory_space<smem>>
    %276 = vector.broadcast %275 : f32 to vector<8x256xf32>
    %277 = arith.mulf %274, %276 : vector<8x256xf32>
    %278 = arith.addf %272, %277 : vector<8x256xf32>
    %c1_170 = arith.constant 1 : index
    %c0_171 = arith.constant 0 : index
    %c0_172 = arith.constant 0 : index
    %279 = vector.load %arg1[%c1_170, %c0_171, %c0_172] : memref<16x8x256xf32, #tpu.memory_space<vmem>>, vector<1x8x256xf32>
    %280 = vector.shape_cast %279 : vector<1x8x256xf32> to vector<8x256xf32>
    %c9_173 = arith.constant 9 : index
    %281 = memref.load %arg2[%c9_173] : memref<90xf32, #tpu.memory_space<smem>>
    %282 = vector.broadcast %281 : f32 to vector<8x256xf32>
    %283 = arith.mulf %280, %282 : vector<8x256xf32>
    %c2_174 = arith.constant 2 : index
    %c0_175 = arith.constant 0 : index
    %c0_176 = arith.constant 0 : index
    %284 = vector.load %arg1[%c2_174, %c0_175, %c0_176] : memref<16x8x256xf32, #tpu.memory_space<vmem>>, vector<1x8x256xf32>
    %285 = vector.shape_cast %284 : vector<1x8x256xf32> to vector<8x256xf32>
    %c10_177 = arith.constant 10 : index
    %286 = memref.load %arg2[%c10_177] : memref<90xf32, #tpu.memory_space<smem>>
    %287 = vector.broadcast %286 : f32 to vector<8x256xf32>
    %288 = arith.mulf %285, %287 : vector<8x256xf32>
    %289 = arith.addf %283, %288 : vector<8x256xf32>
    %c3_178 = arith.constant 3 : index
    %c0_179 = arith.constant 0 : index
    %c0_180 = arith.constant 0 : index
    %290 = vector.load %arg1[%c3_178, %c0_179, %c0_180] : memref<16x8x256xf32, #tpu.memory_space<vmem>>, vector<1x8x256xf32>
    %291 = vector.shape_cast %290 : vector<1x8x256xf32> to vector<8x256xf32>
    %c11_181 = arith.constant 11 : index
    %292 = memref.load %arg2[%c11_181] : memref<90xf32, #tpu.memory_space<smem>>
    %293 = vector.broadcast %292 : f32 to vector<8x256xf32>
    %294 = arith.mulf %291, %293 : vector<8x256xf32>
    %295 = arith.addf %289, %294 : vector<8x256xf32>
    %c5_182 = arith.constant 5 : index
    %c0_183 = arith.constant 0 : index
    %c0_184 = arith.constant 0 : index
    %296 = vector.load %arg1[%c5_182, %c0_183, %c0_184] : memref<16x8x256xf32, #tpu.memory_space<vmem>>, vector<1x8x256xf32>
    %297 = vector.shape_cast %296 : vector<1x8x256xf32> to vector<8x256xf32>
    %c12_185 = arith.constant 12 : index
    %298 = memref.load %arg2[%c12_185] : memref<90xf32, #tpu.memory_space<smem>>
    %299 = vector.broadcast %298 : f32 to vector<8x256xf32>
    %300 = arith.mulf %297, %299 : vector<8x256xf32>
    %301 = arith.addf %295, %300 : vector<8x256xf32>
    %c6_186 = arith.constant 6 : index
    %c0_187 = arith.constant 0 : index
    %c0_188 = arith.constant 0 : index
    %302 = vector.load %arg1[%c6_186, %c0_187, %c0_188] : memref<16x8x256xf32, #tpu.memory_space<vmem>>, vector<1x8x256xf32>
    %303 = vector.shape_cast %302 : vector<1x8x256xf32> to vector<8x256xf32>
    %c13_189 = arith.constant 13 : index
    %304 = memref.load %arg2[%c13_189] : memref<90xf32, #tpu.memory_space<smem>>
    %305 = vector.broadcast %304 : f32 to vector<8x256xf32>
    %306 = arith.mulf %303, %305 : vector<8x256xf32>
    %307 = arith.addf %301, %306 : vector<8x256xf32>
    %c7_190 = arith.constant 7 : index
    %c0_191 = arith.constant 0 : index
    %c0_192 = arith.constant 0 : index
    %308 = vector.load %arg1[%c7_190, %c0_191, %c0_192] : memref<16x8x256xf32, #tpu.memory_space<vmem>>, vector<1x8x256xf32>
    %309 = vector.shape_cast %308 : vector<1x8x256xf32> to vector<8x256xf32>
    %c14_193 = arith.constant 14 : index
    %310 = memref.load %arg2[%c14_193] : memref<90xf32, #tpu.memory_space<smem>>
    %311 = vector.broadcast %310 : f32 to vector<8x256xf32>
    %312 = arith.mulf %309, %311 : vector<8x256xf32>
    %313 = arith.addf %307, %312 : vector<8x256xf32>
    %c9_194 = arith.constant 9 : index
    %c0_195 = arith.constant 0 : index
    %c0_196 = arith.constant 0 : index
    %314 = vector.load %arg1[%c9_194, %c0_195, %c0_196] : memref<16x8x256xf32, #tpu.memory_space<vmem>>, vector<1x8x256xf32>
    %315 = vector.shape_cast %314 : vector<1x8x256xf32> to vector<8x256xf32>
    %c15_197 = arith.constant 15 : index
    %316 = memref.load %arg2[%c15_197] : memref<90xf32, #tpu.memory_space<smem>>
    %317 = vector.broadcast %316 : f32 to vector<8x256xf32>
    %318 = arith.mulf %315, %317 : vector<8x256xf32>
    %319 = arith.addf %313, %318 : vector<8x256xf32>
    %c10_198 = arith.constant 10 : index
    %c0_199 = arith.constant 0 : index
    %c0_200 = arith.constant 0 : index
    %320 = vector.load %arg1[%c10_198, %c0_199, %c0_200] : memref<16x8x256xf32, #tpu.memory_space<vmem>>, vector<1x8x256xf32>
    %321 = vector.shape_cast %320 : vector<1x8x256xf32> to vector<8x256xf32>
    %c16_201 = arith.constant 16 : index
    %322 = memref.load %arg2[%c16_201] : memref<90xf32, #tpu.memory_space<smem>>
    %323 = vector.broadcast %322 : f32 to vector<8x256xf32>
    %324 = arith.mulf %321, %323 : vector<8x256xf32>
    %325 = arith.addf %319, %324 : vector<8x256xf32>
    %c11_202 = arith.constant 11 : index
    %c0_203 = arith.constant 0 : index
    %c0_204 = arith.constant 0 : index
    %326 = vector.load %arg1[%c11_202, %c0_203, %c0_204] : memref<16x8x256xf32, #tpu.memory_space<vmem>>, vector<1x8x256xf32>
    %327 = vector.shape_cast %326 : vector<1x8x256xf32> to vector<8x256xf32>
    %c17_205 = arith.constant 17 : index
    %328 = memref.load %arg2[%c17_205] : memref<90xf32, #tpu.memory_space<smem>>
    %329 = vector.broadcast %328 : f32 to vector<8x256xf32>
    %330 = arith.mulf %327, %329 : vector<8x256xf32>
    %331 = arith.addf %325, %330 : vector<8x256xf32>
    %332 = arith.maximumf %278, %331 : vector<8x256xf32>
    %c4_206 = arith.constant 4 : index
    %c0_207 = arith.constant 0 : index
    %c0_208 = arith.constant 0 : index
    %333 = vector.load %arg1[%c4_206, %c0_207, %c0_208] : memref<16x8x256xf32, #tpu.memory_space<vmem>>, vector<1x8x256xf32>
    %334 = vector.shape_cast %333 : vector<1x8x256xf32> to vector<8x256xf32>
    %c9_209 = arith.constant 9 : index
    %335 = memref.load %arg2[%c9_209] : memref<90xf32, #tpu.memory_space<smem>>
    %336 = vector.broadcast %335 : f32 to vector<8x256xf32>
    %337 = arith.mulf %334, %336 : vector<8x256xf32>
    %c5_210 = arith.constant 5 : index
    %c0_211 = arith.constant 0 : index
    %c0_212 = arith.constant 0 : index
    %338 = vector.load %arg1[%c5_210, %c0_211, %c0_212] : memref<16x8x256xf32, #tpu.memory_space<vmem>>, vector<1x8x256xf32>
    %339 = vector.shape_cast %338 : vector<1x8x256xf32> to vector<8x256xf32>
    %c10_213 = arith.constant 10 : index
    %340 = memref.load %arg2[%c10_213] : memref<90xf32, #tpu.memory_space<smem>>
    %341 = vector.broadcast %340 : f32 to vector<8x256xf32>
    %342 = arith.mulf %339, %341 : vector<8x256xf32>
    %343 = arith.addf %337, %342 : vector<8x256xf32>
    %c6_214 = arith.constant 6 : index
    %c0_215 = arith.constant 0 : index
    %c0_216 = arith.constant 0 : index
    %344 = vector.load %arg1[%c6_214, %c0_215, %c0_216] : memref<16x8x256xf32, #tpu.memory_space<vmem>>, vector<1x8x256xf32>
    %345 = vector.shape_cast %344 : vector<1x8x256xf32> to vector<8x256xf32>
    %c11_217 = arith.constant 11 : index
    %346 = memref.load %arg2[%c11_217] : memref<90xf32, #tpu.memory_space<smem>>
    %347 = vector.broadcast %346 : f32 to vector<8x256xf32>
    %348 = arith.mulf %345, %347 : vector<8x256xf32>
    %349 = arith.addf %343, %348 : vector<8x256xf32>
    %c8_218 = arith.constant 8 : index
    %c0_219 = arith.constant 0 : index
    %c0_220 = arith.constant 0 : index
    %350 = vector.load %arg1[%c8_218, %c0_219, %c0_220] : memref<16x8x256xf32, #tpu.memory_space<vmem>>, vector<1x8x256xf32>
    %351 = vector.shape_cast %350 : vector<1x8x256xf32> to vector<8x256xf32>
    %c12_221 = arith.constant 12 : index
    %352 = memref.load %arg2[%c12_221] : memref<90xf32, #tpu.memory_space<smem>>
    %353 = vector.broadcast %352 : f32 to vector<8x256xf32>
    %354 = arith.mulf %351, %353 : vector<8x256xf32>
    %355 = arith.addf %349, %354 : vector<8x256xf32>
    %c9_222 = arith.constant 9 : index
    %c0_223 = arith.constant 0 : index
    %c0_224 = arith.constant 0 : index
    %356 = vector.load %arg1[%c9_222, %c0_223, %c0_224] : memref<16x8x256xf32, #tpu.memory_space<vmem>>, vector<1x8x256xf32>
    %357 = vector.shape_cast %356 : vector<1x8x256xf32> to vector<8x256xf32>
    %c13_225 = arith.constant 13 : index
    %358 = memref.load %arg2[%c13_225] : memref<90xf32, #tpu.memory_space<smem>>
    %359 = vector.broadcast %358 : f32 to vector<8x256xf32>
    %360 = arith.mulf %357, %359 : vector<8x256xf32>
    %361 = arith.addf %355, %360 : vector<8x256xf32>
    %c10_226 = arith.constant 10 : index
    %c0_227 = arith.constant 0 : index
    %c0_228 = arith.constant 0 : index
    %362 = vector.load %arg1[%c10_226, %c0_227, %c0_228] : memref<16x8x256xf32, #tpu.memory_space<vmem>>, vector<1x8x256xf32>
    %363 = vector.shape_cast %362 : vector<1x8x256xf32> to vector<8x256xf32>
    %c14_229 = arith.constant 14 : index
    %364 = memref.load %arg2[%c14_229] : memref<90xf32, #tpu.memory_space<smem>>
    %365 = vector.broadcast %364 : f32 to vector<8x256xf32>
    %366 = arith.mulf %363, %365 : vector<8x256xf32>
    %367 = arith.addf %361, %366 : vector<8x256xf32>
    %c12_230 = arith.constant 12 : index
    %c0_231 = arith.constant 0 : index
    %c0_232 = arith.constant 0 : index
    %368 = vector.load %arg1[%c12_230, %c0_231, %c0_232] : memref<16x8x256xf32, #tpu.memory_space<vmem>>, vector<1x8x256xf32>
    %369 = vector.shape_cast %368 : vector<1x8x256xf32> to vector<8x256xf32>
    %c15_233 = arith.constant 15 : index
    %370 = memref.load %arg2[%c15_233] : memref<90xf32, #tpu.memory_space<smem>>
    %371 = vector.broadcast %370 : f32 to vector<8x256xf32>
    %372 = arith.mulf %369, %371 : vector<8x256xf32>
    %373 = arith.addf %367, %372 : vector<8x256xf32>
    %c13_234 = arith.constant 13 : index
    %c0_235 = arith.constant 0 : index
    %c0_236 = arith.constant 0 : index
    %374 = vector.load %arg1[%c13_234, %c0_235, %c0_236] : memref<16x8x256xf32, #tpu.memory_space<vmem>>, vector<1x8x256xf32>
    %375 = vector.shape_cast %374 : vector<1x8x256xf32> to vector<8x256xf32>
    %c16_237 = arith.constant 16 : index
    %376 = memref.load %arg2[%c16_237] : memref<90xf32, #tpu.memory_space<smem>>
    %377 = vector.broadcast %376 : f32 to vector<8x256xf32>
    %378 = arith.mulf %375, %377 : vector<8x256xf32>
    %379 = arith.addf %373, %378 : vector<8x256xf32>
    %c14_238 = arith.constant 14 : index
    %c0_239 = arith.constant 0 : index
    %c0_240 = arith.constant 0 : index
    %380 = vector.load %arg1[%c14_238, %c0_239, %c0_240] : memref<16x8x256xf32, #tpu.memory_space<vmem>>, vector<1x8x256xf32>
    %381 = vector.shape_cast %380 : vector<1x8x256xf32> to vector<8x256xf32>
    %c17_241 = arith.constant 17 : index
    %382 = memref.load %arg2[%c17_241] : memref<90xf32, #tpu.memory_space<smem>>
    %383 = vector.broadcast %382 : f32 to vector<8x256xf32>
    %384 = arith.mulf %381, %383 : vector<8x256xf32>
    %385 = arith.addf %379, %384 : vector<8x256xf32>
    %386 = arith.maximumf %332, %385 : vector<8x256xf32>
    %c5_242 = arith.constant 5 : index
    %c0_243 = arith.constant 0 : index
    %c0_244 = arith.constant 0 : index
    %387 = vector.load %arg1[%c5_242, %c0_243, %c0_244] : memref<16x8x256xf32, #tpu.memory_space<vmem>>, vector<1x8x256xf32>
    %388 = vector.shape_cast %387 : vector<1x8x256xf32> to vector<8x256xf32>
    %c9_245 = arith.constant 9 : index
    %389 = memref.load %arg2[%c9_245] : memref<90xf32, #tpu.memory_space<smem>>
    %390 = vector.broadcast %389 : f32 to vector<8x256xf32>
    %391 = arith.mulf %388, %390 : vector<8x256xf32>
    %c6_246 = arith.constant 6 : index
    %c0_247 = arith.constant 0 : index
    %c0_248 = arith.constant 0 : index
    %392 = vector.load %arg1[%c6_246, %c0_247, %c0_248] : memref<16x8x256xf32, #tpu.memory_space<vmem>>, vector<1x8x256xf32>
    %393 = vector.shape_cast %392 : vector<1x8x256xf32> to vector<8x256xf32>
    %c10_249 = arith.constant 10 : index
    %394 = memref.load %arg2[%c10_249] : memref<90xf32, #tpu.memory_space<smem>>
    %395 = vector.broadcast %394 : f32 to vector<8x256xf32>
    %396 = arith.mulf %393, %395 : vector<8x256xf32>
    %397 = arith.addf %391, %396 : vector<8x256xf32>
    %c7_250 = arith.constant 7 : index
    %c0_251 = arith.constant 0 : index
    %c0_252 = arith.constant 0 : index
    %398 = vector.load %arg1[%c7_250, %c0_251, %c0_252] : memref<16x8x256xf32, #tpu.memory_space<vmem>>, vector<1x8x256xf32>
    %399 = vector.shape_cast %398 : vector<1x8x256xf32> to vector<8x256xf32>
    %c11_253 = arith.constant 11 : index
    %400 = memref.load %arg2[%c11_253] : memref<90xf32, #tpu.memory_space<smem>>
    %401 = vector.broadcast %400 : f32 to vector<8x256xf32>
    %402 = arith.mulf %399, %401 : vector<8x256xf32>
    %403 = arith.addf %397, %402 : vector<8x256xf32>
    %c9_254 = arith.constant 9 : index
    %c0_255 = arith.constant 0 : index
    %c0_256 = arith.constant 0 : index
    %404 = vector.load %arg1[%c9_254, %c0_255, %c0_256] : memref<16x8x256xf32, #tpu.memory_space<vmem>>, vector<1x8x256xf32>
    %405 = vector.shape_cast %404 : vector<1x8x256xf32> to vector<8x256xf32>
    %c12_257 = arith.constant 12 : index
    %406 = memref.load %arg2[%c12_257] : memref<90xf32, #tpu.memory_space<smem>>
    %407 = vector.broadcast %406 : f32 to vector<8x256xf32>
    %408 = arith.mulf %405, %407 : vector<8x256xf32>
    %409 = arith.addf %403, %408 : vector<8x256xf32>
    %c10_258 = arith.constant 10 : index
    %c0_259 = arith.constant 0 : index
    %c0_260 = arith.constant 0 : index
    %410 = vector.load %arg1[%c10_258, %c0_259, %c0_260] : memref<16x8x256xf32, #tpu.memory_space<vmem>>, vector<1x8x256xf32>
    %411 = vector.shape_cast %410 : vector<1x8x256xf32> to vector<8x256xf32>
    %c13_261 = arith.constant 13 : index
    %412 = memref.load %arg2[%c13_261] : memref<90xf32, #tpu.memory_space<smem>>
    %413 = vector.broadcast %412 : f32 to vector<8x256xf32>
    %414 = arith.mulf %411, %413 : vector<8x256xf32>
    %415 = arith.addf %409, %414 : vector<8x256xf32>
    %c11_262 = arith.constant 11 : index
    %c0_263 = arith.constant 0 : index
    %c0_264 = arith.constant 0 : index
    %416 = vector.load %arg1[%c11_262, %c0_263, %c0_264] : memref<16x8x256xf32, #tpu.memory_space<vmem>>, vector<1x8x256xf32>
    %417 = vector.shape_cast %416 : vector<1x8x256xf32> to vector<8x256xf32>
    %c14_265 = arith.constant 14 : index
    %418 = memref.load %arg2[%c14_265] : memref<90xf32, #tpu.memory_space<smem>>
    %419 = vector.broadcast %418 : f32 to vector<8x256xf32>
    %420 = arith.mulf %417, %419 : vector<8x256xf32>
    %421 = arith.addf %415, %420 : vector<8x256xf32>
    %c13_266 = arith.constant 13 : index
    %c0_267 = arith.constant 0 : index
    %c0_268 = arith.constant 0 : index
    %422 = vector.load %arg1[%c13_266, %c0_267, %c0_268] : memref<16x8x256xf32, #tpu.memory_space<vmem>>, vector<1x8x256xf32>
    %423 = vector.shape_cast %422 : vector<1x8x256xf32> to vector<8x256xf32>
    %c15_269 = arith.constant 15 : index
    %424 = memref.load %arg2[%c15_269] : memref<90xf32, #tpu.memory_space<smem>>
    %425 = vector.broadcast %424 : f32 to vector<8x256xf32>
    %426 = arith.mulf %423, %425 : vector<8x256xf32>
    %427 = arith.addf %421, %426 : vector<8x256xf32>
    %c14_270 = arith.constant 14 : index
    %c0_271 = arith.constant 0 : index
    %c0_272 = arith.constant 0 : index
    %428 = vector.load %arg1[%c14_270, %c0_271, %c0_272] : memref<16x8x256xf32, #tpu.memory_space<vmem>>, vector<1x8x256xf32>
    %429 = vector.shape_cast %428 : vector<1x8x256xf32> to vector<8x256xf32>
    %c16_273 = arith.constant 16 : index
    %430 = memref.load %arg2[%c16_273] : memref<90xf32, #tpu.memory_space<smem>>
    %431 = vector.broadcast %430 : f32 to vector<8x256xf32>
    %432 = arith.mulf %429, %431 : vector<8x256xf32>
    %433 = arith.addf %427, %432 : vector<8x256xf32>
    %c15_274 = arith.constant 15 : index
    %c0_275 = arith.constant 0 : index
    %c0_276 = arith.constant 0 : index
    %434 = vector.load %arg1[%c15_274, %c0_275, %c0_276] : memref<16x8x256xf32, #tpu.memory_space<vmem>>, vector<1x8x256xf32>
    %435 = vector.shape_cast %434 : vector<1x8x256xf32> to vector<8x256xf32>
    %c17_277 = arith.constant 17 : index
    %436 = memref.load %arg2[%c17_277] : memref<90xf32, #tpu.memory_space<smem>>
    %437 = vector.broadcast %436 : f32 to vector<8x256xf32>
    %438 = arith.mulf %435, %437 : vector<8x256xf32>
    %439 = arith.addf %433, %438 : vector<8x256xf32>
    %440 = arith.maximumf %386, %439 : vector<8x256xf32>
    %c1_278 = arith.constant 1 : index
    %441 = memref.load %arg3[%c1_278] : memref<10xf32, #tpu.memory_space<smem>>
    %442 = vector.broadcast %441 : f32 to vector<8x256xf32>
    %443 = arith.addf %440, %442 : vector<8x256xf32>
    %cst_279 = arith.constant 0.000000e+00 : f32
    %444 = vector.broadcast %cst_279 : f32 to vector<8x256xf32>
    %445 = arith.maximumf %443, %444 : vector<8x256xf32>
    %c256 = arith.constant 256 : index
    %c0_280 = arith.constant 0 : index
    %446 = vector.load %arg4[%c256, %c0_280] : memref<2560x128xf32, #tpu.memory_space<vmem>>, vector<256x128xf32>
    %cst_281 = arith.constant dense<0.000000e+00> : vector<8x128xf32>
    %447 = tpu.matmul %445, %446, %cst_281 {dimension_numbers = #tpu.dot_dimension_numbers<[1], [0], [0], [1], [0, 0, 1, 1], [], []>} : vector<8x256xf32>, vector<256x128xf32>, vector<8x128xf32> -> vector<8x128xf32>
    %c0_282 = arith.constant 0 : index
    %c0_283 = arith.constant 0 : index
    %448 = vector.load %arg6[%c0_282, %c0_283] : memref<8x128xf32, #tpu.memory_space<vmem>>, vector<8x128xf32>
    %449 = arith.addf %448, %447 : vector<8x128xf32>
    %c0_284 = arith.constant 0 : index
    %c0_285 = arith.constant 0 : index
    %450 = vector.load %arg6[%c0_284, %c0_285] : memref<8x128xf32, #tpu.memory_space<vmem>>, vector<8x128xf32>
    tpu.vector_store %arg6[%c0_284, %c0_285], %449 {strides = array<i32>} : memref<8x128xf32, #tpu.memory_space<vmem>>, vector<8x128xf32>,
    %c0_286 = arith.constant 0 : index
    %c0_287 = arith.constant 0 : index
    %c0_288 = arith.constant 0 : index
    %451 = vector.load %arg1[%c0_286, %c0_287, %c0_288] : memref<16x8x256xf32, #tpu.memory_space<vmem>>, vector<1x8x256xf32>
    %452 = vector.shape_cast %451 : vector<1x8x256xf32> to vector<8x256xf32>
    %c18 = arith.constant 18 : index
    %453 = memref.load %arg2[%c18] : memref<90xf32, #tpu.memory_space<smem>>
    %454 = vector.broadcast %453 : f32 to vector<8x256xf32>
    %455 = arith.mulf %452, %454 : vector<8x256xf32>
    %c1_289 = arith.constant 1 : index
    %c0_290 = arith.constant 0 : index
    %c0_291 = arith.constant 0 : index
    %456 = vector.load %arg1[%c1_289, %c0_290, %c0_291] : memref<16x8x256xf32, #tpu.memory_space<vmem>>, vector<1x8x256xf32>
    %457 = vector.shape_cast %456 : vector<1x8x256xf32> to vector<8x256xf32>
    %c19 = arith.constant 19 : index
    %458 = memref.load %arg2[%c19] : memref<90xf32, #tpu.memory_space<smem>>
    %459 = vector.broadcast %458 : f32 to vector<8x256xf32>
    %460 = arith.mulf %457, %459 : vector<8x256xf32>
    %461 = arith.addf %455, %460 : vector<8x256xf32>
    %c2_292 = arith.constant 2 : index
    %c0_293 = arith.constant 0 : index
    %c0_294 = arith.constant 0 : index
    %462 = vector.load %arg1[%c2_292, %c0_293, %c0_294] : memref<16x8x256xf32, #tpu.memory_space<vmem>>, vector<1x8x256xf32>
    %463 = vector.shape_cast %462 : vector<1x8x256xf32> to vector<8x256xf32>
    %c20 = arith.constant 20 : index
    %464 = memref.load %arg2[%c20] : memref<90xf32, #tpu.memory_space<smem>>
    %465 = vector.broadcast %464 : f32 to vector<8x256xf32>
    %466 = arith.mulf %463, %465 : vector<8x256xf32>
    %467 = arith.addf %461, %466 : vector<8x256xf32>
    %c4_295 = arith.constant 4 : index
    %c0_296 = arith.constant 0 : index
    %c0_297 = arith.constant 0 : index
    %468 = vector.load %arg1[%c4_295, %c0_296, %c0_297] : memref<16x8x256xf32, #tpu.memory_space<vmem>>, vector<1x8x256xf32>
    %469 = vector.shape_cast %468 : vector<1x8x256xf32> to vector<8x256xf32>
    %c21 = arith.constant 21 : index
    %470 = memref.load %arg2[%c21] : memref<90xf32, #tpu.memory_space<smem>>
    %471 = vector.broadcast %470 : f32 to vector<8x256xf32>
    %472 = arith.mulf %469, %471 : vector<8x256xf32>
    %473 = arith.addf %467, %472 : vector<8x256xf32>
    %c5_298 = arith.constant 5 : index
    %c0_299 = arith.constant 0 : index
    %c0_300 = arith.constant 0 : index
    %474 = vector.load %arg1[%c5_298, %c0_299, %c0_300] : memref<16x8x256xf32, #tpu.memory_space<vmem>>, vector<1x8x256xf32>
    %475 = vector.shape_cast %474 : vector<1x8x256xf32> to vector<8x256xf32>
    %c22 = arith.constant 22 : index
    %476 = memref.load %arg2[%c22] : memref<90xf32, #tpu.memory_space<smem>>
    %477 = vector.broadcast %476 : f32 to vector<8x256xf32>
    %478 = arith.mulf %475, %477 : vector<8x256xf32>
    %479 = arith.addf %473, %478 : vector<8x256xf32>
    %c6_301 = arith.constant 6 : index
    %c0_302 = arith.constant 0 : index
    %c0_303 = arith.constant 0 : index
    %480 = vector.load %arg1[%c6_301, %c0_302, %c0_303] : memref<16x8x256xf32, #tpu.memory_space<vmem>>, vector<1x8x256xf32>
    %481 = vector.shape_cast %480 : vector<1x8x256xf32> to vector<8x256xf32>
    %c23 = arith.constant 23 : index
    %482 = memref.load %arg2[%c23] : memref<90xf32, #tpu.memory_space<smem>>
    %483 = vector.broadcast %482 : f32 to vector<8x256xf32>
    %484 = arith.mulf %481, %483 : vector<8x256xf32>
    %485 = arith.addf %479, %484 : vector<8x256xf32>
    %c8_304 = arith.constant 8 : index
    %c0_305 = arith.constant 0 : index
    %c0_306 = arith.constant 0 : index
    %486 = vector.load %arg1[%c8_304, %c0_305, %c0_306] : memref<16x8x256xf32, #tpu.memory_space<vmem>>, vector<1x8x256xf32>
    %487 = vector.shape_cast %486 : vector<1x8x256xf32> to vector<8x256xf32>
    %c24 = arith.constant 24 : index
    %488 = memref.load %arg2[%c24] : memref<90xf32, #tpu.memory_space<smem>>
    %489 = vector.broadcast %488 : f32 to vector<8x256xf32>
    %490 = arith.mulf %487, %489 : vector<8x256xf32>
    %491 = arith.addf %485, %490 : vector<8x256xf32>
    %c9_307 = arith.constant 9 : index
    %c0_308 = arith.constant 0 : index
    %c0_309 = arith.constant 0 : index
    %492 = vector.load %arg1[%c9_307, %c0_308, %c0_309] : memref<16x8x256xf32, #tpu.memory_space<vmem>>, vector<1x8x256xf32>
    %493 = vector.shape_cast %492 : vector<1x8x256xf32> to vector<8x256xf32>
    %c25 = arith.constant 25 : index
    %494 = memref.load %arg2[%c25] : memref<90xf32, #tpu.memory_space<smem>>
    %495 = vector.broadcast %494 : f32 to vector<8x256xf32>
    %496 = arith.mulf %493, %495 : vector<8x256xf32>
    %497 = arith.addf %491, %496 : vector<8x256xf32>
    %c10_310 = arith.constant 10 : index
    %c0_311 = arith.constant 0 : index
    %c0_312 = arith.constant 0 : index
    %498 = vector.load %arg1[%c10_310, %c0_311, %c0_312] : memref<16x8x256xf32, #tpu.memory_space<vmem>>, vector<1x8x256xf32>
    %499 = vector.shape_cast %498 : vector<1x8x256xf32> to vector<8x256xf32>
    %c26 = arith.constant 26 : index
    %500 = memref.load %arg2[%c26] : memref<90xf32, #tpu.memory_space<smem>>
    %501 = vector.broadcast %500 : f32 to vector<8x256xf32>
    %502 = arith.mulf %499, %501 : vector<8x256xf32>
    %503 = arith.addf %497, %502 : vector<8x256xf32>
    %c1_313 = arith.constant 1 : index
    %c0_314 = arith.constant 0 : index
    %c0_315 = arith.constant 0 : index
    %504 = vector.load %arg1[%c1_313, %c0_314, %c0_315] : memref<16x8x256xf32, #tpu.memory_space<vmem>>, vector<1x8x256xf32>
    %505 = vector.shape_cast %504 : vector<1x8x256xf32> to vector<8x256xf32>
    %c18_316 = arith.constant 18 : index
    %506 = memref.load %arg2[%c18_316] : memref<90xf32, #tpu.memory_space<smem>>
    %507 = vector.broadcast %506 : f32 to vector<8x256xf32>
    %508 = arith.mulf %505, %507 : vector<8x256xf32>
    %c2_317 = arith.constant 2 : index
    %c0_318 = arith.constant 0 : index
    %c0_319 = arith.constant 0 : index
    %509 = vector.load %arg1[%c2_317, %c0_318, %c0_319] : memref<16x8x256xf32, #tpu.memory_space<vmem>>, vector<1x8x256xf32>
    %510 = vector.shape_cast %509 : vector<1x8x256xf32> to vector<8x256xf32>
    %c19_320 = arith.constant 19 : index
    %511 = memref.load %arg2[%c19_320] : memref<90xf32, #tpu.memory_space<smem>>
    %512 = vector.broadcast %511 : f32 to vector<8x256xf32>
    %513 = arith.mulf %510, %512 : vector<8x256xf32>
    %514 = arith.addf %508, %513 : vector<8x256xf32>
    %c3_321 = arith.constant 3 : index
    %c0_322 = arith.constant 0 : index
    %c0_323 = arith.constant 0 : index
    %515 = vector.load %arg1[%c3_321, %c0_322, %c0_323] : memref<16x8x256xf32, #tpu.memory_space<vmem>>, vector<1x8x256xf32>
    %516 = vector.shape_cast %515 : vector<1x8x256xf32> to vector<8x256xf32>
    %c20_324 = arith.constant 20 : index
    %517 = memref.load %arg2[%c20_324] : memref<90xf32, #tpu.memory_space<smem>>
    %518 = vector.broadcast %517 : f32 to vector<8x256xf32>
    %519 = arith.mulf %516, %518 : vector<8x256xf32>
    %520 = arith.addf %514, %519 : vector<8x256xf32>
    %c5_325 = arith.constant 5 : index
    %c0_326 = arith.constant 0 : index
    %c0_327 = arith.constant 0 : index
    %521 = vector.load %arg1[%c5_325, %c0_326, %c0_327] : memref<16x8x256xf32, #tpu.memory_space<vmem>>, vector<1x8x256xf32>
    %522 = vector.shape_cast %521 : vector<1x8x256xf32> to vector<8x256xf32>
    %c21_328 = arith.constant 21 : index
    %523 = memref.load %arg2[%c21_328] : memref<90xf32, #tpu.memory_space<smem>>
    %524 = vector.broadcast %523 : f32 to vector<8x256xf32>
    %525 = arith.mulf %522, %524 : vector<8x256xf32>
    %526 = arith.addf %520, %525 : vector<8x256xf32>
    %c6_329 = arith.constant 6 : index
    %c0_330 = arith.constant 0 : index
    %c0_331 = arith.constant 0 : index
    %527 = vector.load %arg1[%c6_329, %c0_330, %c0_331] : memref<16x8x256xf32, #tpu.memory_space<vmem>>, vector<1x8x256xf32>
    %528 = vector.shape_cast %527 : vector<1x8x256xf32> to vector<8x256xf32>
    %c22_332 = arith.constant 22 : index
    %529 = memref.load %arg2[%c22_332] : memref<90xf32, #tpu.memory_space<smem>>
    %530 = vector.broadcast %529 : f32 to vector<8x256xf32>
    %531 = arith.mulf %528, %530 : vector<8x256xf32>
    %532 = arith.addf %526, %531 : vector<8x256xf32>
    %c7_333 = arith.constant 7 : index
    %c0_334 = arith.constant 0 : index
    %c0_335 = arith.constant 0 : index
    %533 = vector.load %arg1[%c7_333, %c0_334, %c0_335] : memref<16x8x256xf32, #tpu.memory_space<vmem>>, vector<1x8x256xf32>
    %534 = vector.shape_cast %533 : vector<1x8x256xf32> to vector<8x256xf32>
    %c23_336 = arith.constant 23 : index
    %535 = memref.load %arg2[%c23_336] : memref<90xf32, #tpu.memory_space<smem>>
    %536 = vector.broadcast %535 : f32 to vector<8x256xf32>
    %537 = arith.mulf %534, %536 : vector<8x256xf32>
    %538 = arith.addf %532, %537 : vector<8x256xf32>
    %c9_337 = arith.constant 9 : index
    %c0_338 = arith.constant 0 : index
    %c0_339 = arith.constant 0 : index
    %539 = vector.load %arg1[%c9_337, %c0_338, %c0_339] : memref<16x8x256xf32, #tpu.memory_space<vmem>>, vector<1x8x256xf32>
    %540 = vector.shape_cast %539 : vector<1x8x256xf32> to vector<8x256xf32>
    %c24_340 = arith.constant 24 : index
    %541 = memref.load %arg2[%c24_340] : memref<90xf32, #tpu.memory_space<smem>>
    %542 = vector.broadcast %541 : f32 to vector<8x256xf32>
    %543 = arith.mulf %540, %542 : vector<8x256xf32>
    %544 = arith.addf %538, %543 : vector<8x256xf32>
    %c10_341 = arith.constant 10 : index
    %c0_342 = arith.constant 0 : index
    %c0_343 = arith.constant 0 : index
    %545 = vector.load %arg1[%c10_341, %c0_342, %c0_343] : memref<16x8x256xf32, #tpu.memory_space<vmem>>, vector<1x8x256xf32>
    %546 = vector.shape_cast %545 : vector<1x8x256xf32> to vector<8x256xf32>
    %c25_344 = arith.constant 25 : index
    %547 = memref.load %arg2[%c25_344] : memref<90xf32, #tpu.memory_space<smem>>
    %548 = vector.broadcast %547 : f32 to vector<8x256xf32>
    %549 = arith.mulf %546, %548 : vector<8x256xf32>
    %550 = arith.addf %544, %549 : vector<8x256xf32>
    %c11_345 = arith.constant 11 : index
    %c0_346 = arith.constant 0 : index
    %c0_347 = arith.constant 0 : index
    %551 = vector.load %arg1[%c11_345, %c0_346, %c0_347] : memref<16x8x256xf32, #tpu.memory_space<vmem>>, vector<1x8x256xf32>
    %552 = vector.shape_cast %551 : vector<1x8x256xf32> to vector<8x256xf32>
    %c26_348 = arith.constant 26 : index
    %553 = memref.load %arg2[%c26_348] : memref<90xf32, #tpu.memory_space<smem>>
    %554 = vector.broadcast %553 : f32 to vector<8x256xf32>
    %555 = arith.mulf %552, %554 : vector<8x256xf32>
    %556 = arith.addf %550, %555 : vector<8x256xf32>
    %557 = arith.maximumf %503, %556 : vector<8x256xf32>
    %c4_349 = arith.constant 4 : index
    %c0_350 = arith.constant 0 : index
    %c0_351 = arith.constant 0 : index
    %558 = vector.load %arg1[%c4_349, %c0_350, %c0_351] : memref<16x8x256xf32, #tpu.memory_space<vmem>>, vector<1x8x256xf32>
    %559 = vector.shape_cast %558 : vector<1x8x256xf32> to vector<8x256xf32>
    %c18_352 = arith.constant 18 : index
    %560 = memref.load %arg2[%c18_352] : memref<90xf32, #tpu.memory_space<smem>>
    %561 = vector.broadcast %560 : f32 to vector<8x256xf32>
    %562 = arith.mulf %559, %561 : vector<8x256xf32>
    %c5_353 = arith.constant 5 : index
    %c0_354 = arith.constant 0 : index
    %c0_355 = arith.constant 0 : index
    %563 = vector.load %arg1[%c5_353, %c0_354, %c0_355] : memref<16x8x256xf32, #tpu.memory_space<vmem>>, vector<1x8x256xf32>
    %564 = vector.shape_cast %563 : vector<1x8x256xf32> to vector<8x256xf32>
    %c19_356 = arith.constant 19 : index
    %565 = memref.load %arg2[%c19_356] : memref<90xf32, #tpu.memory_space<smem>>
    %566 = vector.broadcast %565 : f32 to vector<8x256xf32>
    %567 = arith.mulf %564, %566 : vector<8x256xf32>
    %568 = arith.addf %562, %567 : vector<8x256xf32>
    %c6_357 = arith.constant 6 : index
    %c0_358 = arith.constant 0 : index
    %c0_359 = arith.constant 0 : index
    %569 = vector.load %arg1[%c6_357, %c0_358, %c0_359] : memref<16x8x256xf32, #tpu.memory_space<vmem>>, vector<1x8x256xf32>
    %570 = vector.shape_cast %569 : vector<1x8x256xf32> to vector<8x256xf32>
    %c20_360 = arith.constant 20 : index
    %571 = memref.load %arg2[%c20_360] : memref<90xf32, #tpu.memory_space<smem>>
    %572 = vector.broadcast %571 : f32 to vector<8x256xf32>
    %573 = arith.mulf %570, %572 : vector<8x256xf32>
    %574 = arith.addf %568, %573 : vector<8x256xf32>
    %c8_361 = arith.constant 8 : index
    %c0_362 = arith.constant 0 : index
    %c0_363 = arith.constant 0 : index
    %575 = vector.load %arg1[%c8_361, %c0_362, %c0_363] : memref<16x8x256xf32, #tpu.memory_space<vmem>>, vector<1x8x256xf32>
    %576 = vector.shape_cast %575 : vector<1x8x256xf32> to vector<8x256xf32>
    %c21_364 = arith.constant 21 : index
    %577 = memref.load %arg2[%c21_364] : memref<90xf32, #tpu.memory_space<smem>>
    %578 = vector.broadcast %577 : f32 to vector<8x256xf32>
    %579 = arith.mulf %576, %578 : vector<8x256xf32>
    %580 = arith.addf %574, %579 : vector<8x256xf32>
    %c9_365 = arith.constant 9 : index
    %c0_366 = arith.constant 0 : index
    %c0_367 = arith.constant 0 : index
    %581 = vector.load %arg1[%c9_365, %c0_366, %c0_367] : memref<16x8x256xf32, #tpu.memory_space<vmem>>, vector<1x8x256xf32>
    %582 = vector.shape_cast %581 : vector<1x8x256xf32> to vector<8x256xf32>
    %c22_368 = arith.constant 22 : index
    %583 = memref.load %arg2[%c22_368] : memref<90xf32, #tpu.memory_space<smem>>
    %584 = vector.broadcast %583 : f32 to vector<8x256xf32>
    %585 = arith.mulf %582, %584 : vector<8x256xf32>
    %586 = arith.addf %580, %585 : vector<8x256xf32>
    %c10_369 = arith.constant 10 : index
    %c0_370 = arith.constant 0 : index
    %c0_371 = arith.constant 0 : index
    %587 = vector.load %arg1[%c10_369, %c0_370, %c0_371] : memref<16x8x256xf32, #tpu.memory_space<vmem>>, vector<1x8x256xf32>
    %588 = vector.shape_cast %587 : vector<1x8x256xf32> to vector<8x256xf32>
    %c23_372 = arith.constant 23 : index
    %589 = memref.load %arg2[%c23_372] : memref<90xf32, #tpu.memory_space<smem>>
    %590 = vector.broadcast %589 : f32 to vector<8x256xf32>
    %591 = arith.mulf %588, %590 : vector<8x256xf32>
    %592 = arith.addf %586, %591 : vector<8x256xf32>
    %c12_373 = arith.constant 12 : index
    %c0_374 = arith.constant 0 : index
    %c0_375 = arith.constant 0 : index
    %593 = vector.load %arg1[%c12_373, %c0_374, %c0_375] : memref<16x8x256xf32, #tpu.memory_space<vmem>>, vector<1x8x256xf32>
    %594 = vector.shape_cast %593 : vector<1x8x256xf32> to vector<8x256xf32>
    %c24_376 = arith.constant 24 : index
    %595 = memref.load %arg2[%c24_376] : memref<90xf32, #tpu.memory_space<smem>>
    %596 = vector.broadcast %595 : f32 to vector<8x256xf32>
    %597 = arith.mulf %594, %596 : vector<8x256xf32>
    %598 = arith.addf %592, %597 : vector<8x256xf32>
    %c13_377 = arith.constant 13 : index
    %c0_378 = arith.constant 0 : index
    %c0_379 = arith.constant 0 : index
    %599 = vector.load %arg1[%c13_377, %c0_378, %c0_379] : memref<16x8x256xf32, #tpu.memory_space<vmem>>, vector<1x8x256xf32>
    %600 = vector.shape_cast %599 : vector<1x8x256xf32> to vector<8x256xf32>
    %c25_380 = arith.constant 25 : index
    %601 = memref.load %arg2[%c25_380] : memref<90xf32, #tpu.memory_space<smem>>
    %602 = vector.broadcast %601 : f32 to vector<8x256xf32>
    %603 = arith.mulf %600, %602 : vector<8x256xf32>
    %604 = arith.addf %598, %603 : vector<8x256xf32>
    %c14_381 = arith.constant 14 : index
    %c0_382 = arith.constant 0 : index
    %c0_383 = arith.constant 0 : index
    %605 = vector.load %arg1[%c14_381, %c0_382, %c0_383] : memref<16x8x256xf32, #tpu.memory_space<vmem>>, vector<1x8x256xf32>
    %606 = vector.shape_cast %605 : vector<1x8x256xf32> to vector<8x256xf32>
    %c26_384 = arith.constant 26 : index
    %607 = memref.load %arg2[%c26_384] : memref<90xf32, #tpu.memory_space<smem>>
    %608 = vector.broadcast %607 : f32 to vector<8x256xf32>
    %609 = arith.mulf %606, %608 : vector<8x256xf32>
    %610 = arith.addf %604, %609 : vector<8x256xf32>
    %611 = arith.maximumf %557, %610 : vector<8x256xf32>
    %c5_385 = arith.constant 5 : index
    %c0_386 = arith.constant 0 : index
    %c0_387 = arith.constant 0 : index
    %612 = vector.load %arg1[%c5_385, %c0_386, %c0_387] : memref<16x8x256xf32, #tpu.memory_space<vmem>>, vector<1x8x256xf32>
    %613 = vector.shape_cast %612 : vector<1x8x256xf32> to vector<8x256xf32>
    %c18_388 = arith.constant 18 : index
    %614 = memref.load %arg2[%c18_388] : memref<90xf32, #tpu.memory_space<smem>>
    %615 = vector.broadcast %614 : f32 to vector<8x256xf32>
    %616 = arith.mulf %613, %615 : vector<8x256xf32>
    %c6_389 = arith.constant 6 : index
    %c0_390 = arith.constant 0 : index
    %c0_391 = arith.constant 0 : index
    %617 = vector.load %arg1[%c6_389, %c0_390, %c0_391] : memref<16x8x256xf32, #tpu.memory_space<vmem>>, vector<1x8x256xf32>
    %618 = vector.shape_cast %617 : vector<1x8x256xf32> to vector<8x256xf32>
    %c19_392 = arith.constant 19 : index
    %619 = memref.load %arg2[%c19_392] : memref<90xf32, #tpu.memory_space<smem>>
    %620 = vector.broadcast %619 : f32 to vector<8x256xf32>
    %621 = arith.mulf %618, %620 : vector<8x256xf32>
    %622 = arith.addf %616, %621 : vector<8x256xf32>
    %c7_393 = arith.constant 7 : index
    %c0_394 = arith.constant 0 : index
    %c0_395 = arith.constant 0 : index
    %623 = vector.load %arg1[%c7_393, %c0_394, %c0_395] : memref<16x8x256xf32, #tpu.memory_space<vmem>>, vector<1x8x256xf32>
    %624 = vector.shape_cast %623 : vector<1x8x256xf32> to vector<8x256xf32>
    %c20_396 = arith.constant 20 : index
    %625 = memref.load %arg2[%c20_396] : memref<90xf32, #tpu.memory_space<smem>>
    %626 = vector.broadcast %625 : f32 to vector<8x256xf32>
    %627 = arith.mulf %624, %626 : vector<8x256xf32>
    %628 = arith.addf %622, %627 : vector<8x256xf32>
    %c9_397 = arith.constant 9 : index
    %c0_398 = arith.constant 0 : index
    %c0_399 = arith.constant 0 : index
    %629 = vector.load %arg1[%c9_397, %c0_398, %c0_399] : memref<16x8x256xf32, #tpu.memory_space<vmem>>, vector<1x8x256xf32>
    %630 = vector.shape_cast %629 : vector<1x8x256xf32> to vector<8x256xf32>
    %c21_400 = arith.constant 21 : index
    %631 = memref.load %arg2[%c21_400] : memref<90xf32, #tpu.memory_space<smem>>
    %632 = vector.broadcast %631 : f32 to vector<8x256xf32>
    %633 = arith.mulf %630, %632 : vector<8x256xf32>
    %634 = arith.addf %628, %633 : vector<8x256xf32>
    %c10_401 = arith.constant 10 : index
    %c0_402 = arith.constant 0 : index
    %c0_403 = arith.constant 0 : index
    %635 = vector.load %arg1[%c10_401, %c0_402, %c0_403] : memref<16x8x256xf32, #tpu.memory_space<vmem>>, vector<1x8x256xf32>
    %636 = vector.shape_cast %635 : vector<1x8x256xf32> to vector<8x256xf32>
    %c22_404 = arith.constant 22 : index
    %637 = memref.load %arg2[%c22_404] : memref<90xf32, #tpu.memory_space<smem>>
    %638 = vector.broadcast %637 : f32 to vector<8x256xf32>
    %639 = arith.mulf %636, %638 : vector<8x256xf32>
    %640 = arith.addf %634, %639 : vector<8x256xf32>
    %c11_405 = arith.constant 11 : index
    %c0_406 = arith.constant 0 : index
    %c0_407 = arith.constant 0 : index
    %641 = vector.load %arg1[%c11_405, %c0_406, %c0_407] : memref<16x8x256xf32, #tpu.memory_space<vmem>>, vector<1x8x256xf32>
    %642 = vector.shape_cast %641 : vector<1x8x256xf32> to vector<8x256xf32>
    %c23_408 = arith.constant 23 : index
    %643 = memref.load %arg2[%c23_408] : memref<90xf32, #tpu.memory_space<smem>>
    %644 = vector.broadcast %643 : f32 to vector<8x256xf32>
    %645 = arith.mulf %642, %644 : vector<8x256xf32>
    %646 = arith.addf %640, %645 : vector<8x256xf32>
    %c13_409 = arith.constant 13 : index
    %c0_410 = arith.constant 0 : index
    %c0_411 = arith.constant 0 : index
    %647 = vector.load %arg1[%c13_409, %c0_410, %c0_411] : memref<16x8x256xf32, #tpu.memory_space<vmem>>, vector<1x8x256xf32>
    %648 = vector.shape_cast %647 : vector<1x8x256xf32> to vector<8x256xf32>
    %c24_412 = arith.constant 24 : index
    %649 = memref.load %arg2[%c24_412] : memref<90xf32, #tpu.memory_space<smem>>
    %650 = vector.broadcast %649 : f32 to vector<8x256xf32>
    %651 = arith.mulf %648, %650 : vector<8x256xf32>
    %652 = arith.addf %646, %651 : vector<8x256xf32>
    %c14_413 = arith.constant 14 : index
    %c0_414 = arith.constant 0 : index
    %c0_415 = arith.constant 0 : index
    %653 = vector.load %arg1[%c14_413, %c0_414, %c0_415] : memref<16x8x256xf32, #tpu.memory_space<vmem>>, vector<1x8x256xf32>
    %654 = vector.shape_cast %653 : vector<1x8x256xf32> to vector<8x256xf32>
    %c25_416 = arith.constant 25 : index
    %655 = memref.load %arg2[%c25_416] : memref<90xf32, #tpu.memory_space<smem>>
    %656 = vector.broadcast %655 : f32 to vector<8x256xf32>
    %657 = arith.mulf %654, %656 : vector<8x256xf32>
    %658 = arith.addf %652, %657 : vector<8x256xf32>
    %c15_417 = arith.constant 15 : index
    %c0_418 = arith.constant 0 : index
    %c0_419 = arith.constant 0 : index
    %659 = vector.load %arg1[%c15_417, %c0_418, %c0_419] : memref<16x8x256xf32, #tpu.memory_space<vmem>>, vector<1x8x256xf32>
    %660 = vector.shape_cast %659 : vector<1x8x256xf32> to vector<8x256xf32>
    %c26_420 = arith.constant 26 : index
    %661 = memref.load %arg2[%c26_420] : memref<90xf32, #tpu.memory_space<smem>>
    %662 = vector.broadcast %661 : f32 to vector<8x256xf32>
    %663 = arith.mulf %660, %662 : vector<8x256xf32>
    %664 = arith.addf %658, %663 : vector<8x256xf32>
    %665 = arith.maximumf %611, %664 : vector<8x256xf32>
    %c2_421 = arith.constant 2 : index
    %666 = memref.load %arg3[%c2_421] : memref<10xf32, #tpu.memory_space<smem>>
    %667 = vector.broadcast %666 : f32 to vector<8x256xf32>
    %668 = arith.addf %665, %667 : vector<8x256xf32>
    %cst_422 = arith.constant 0.000000e+00 : f32
    %669 = vector.broadcast %cst_422 : f32 to vector<8x256xf32>
    %670 = arith.maximumf %668, %669 : vector<8x256xf32>
    %c512 = arith.constant 512 : index
    %c0_423 = arith.constant 0 : index
    %671 = vector.load %arg4[%c512, %c0_423] : memref<2560x128xf32, #tpu.memory_space<vmem>>, vector<256x128xf32>
    %cst_424 = arith.constant dense<0.000000e+00> : vector<8x128xf32>
    %672 = tpu.matmul %670, %671, %cst_424 {dimension_numbers = #tpu.dot_dimension_numbers<[1], [0], [0], [1], [0, 0, 1, 1], [], []>} : vector<8x256xf32>, vector<256x128xf32>, vector<8x128xf32> -> vector<8x128xf32>
    %c0_425 = arith.constant 0 : index
    %c0_426 = arith.constant 0 : index
    %673 = vector.load %arg6[%c0_425, %c0_426] : memref<8x128xf32, #tpu.memory_space<vmem>>, vector<8x128xf32>
    %674 = arith.addf %673, %672 : vector<8x128xf32>
    %c0_427 = arith.constant 0 : index
    %c0_428 = arith.constant 0 : index
    %675 = vector.load %arg6[%c0_427, %c0_428] : memref<8x128xf32, #tpu.memory_space<vmem>>, vector<8x128xf32>
    tpu.vector_store %arg6[%c0_427, %c0_428], %674 {strides = array<i32>} : memref<8x128xf32, #tpu.memory_space<vmem>>, vector<8x128xf32>,
    %c0_429 = arith.constant 0 : index
    %c0_430 = arith.constant 0 : index
    %c0_431 = arith.constant 0 : index
    %676 = vector.load %arg1[%c0_429, %c0_430, %c0_431] : memref<16x8x256xf32, #tpu.memory_space<vmem>>, vector<1x8x256xf32>
    %677 = vector.shape_cast %676 : vector<1x8x256xf32> to vector<8x256xf32>
    %c27 = arith.constant 27 : index
    %678 = memref.load %arg2[%c27] : memref<90xf32, #tpu.memory_space<smem>>
    %679 = vector.broadcast %678 : f32 to vector<8x256xf32>
    %680 = arith.mulf %677, %679 : vector<8x256xf32>
    %c1_432 = arith.constant 1 : index
    %c0_433 = arith.constant 0 : index
    %c0_434 = arith.constant 0 : index
    %681 = vector.load %arg1[%c1_432, %c0_433, %c0_434] : memref<16x8x256xf32, #tpu.memory_space<vmem>>, vector<1x8x256xf32>
    %682 = vector.shape_cast %681 : vector<1x8x256xf32> to vector<8x256xf32>
    %c28 = arith.constant 28 : index
    %683 = memref.load %arg2[%c28] : memref<90xf32, #tpu.memory_space<smem>>
    %684 = vector.broadcast %683 : f32 to vector<8x256xf32>
    %685 = arith.mulf %682, %684 : vector<8x256xf32>
    %686 = arith.addf %680, %685 : vector<8x256xf32>
    %c2_435 = arith.constant 2 : index
    %c0_436 = arith.constant 0 : index
    %c0_437 = arith.constant 0 : index
    %687 = vector.load %arg1[%c2_435, %c0_436, %c0_437] : memref<16x8x256xf32, #tpu.memory_space<vmem>>, vector<1x8x256xf32>
    %688 = vector.shape_cast %687 : vector<1x8x256xf32> to vector<8x256xf32>
    %c29 = arith.constant 29 : index
    %689 = memref.load %arg2[%c29] : memref<90xf32, #tpu.memory_space<smem>>
    %690 = vector.broadcast %689 : f32 to vector<8x256xf32>
    %691 = arith.mulf %688, %690 : vector<8x256xf32>
    %692 = arith.addf %686, %691 : vector<8x256xf32>
    %c4_438 = arith.constant 4 : index
    %c0_439 = arith.constant 0 : index
    %c0_440 = arith.constant 0 : index
    %693 = vector.load %arg1[%c4_438, %c0_439, %c0_440] : memref<16x8x256xf32, #tpu.memory_space<vmem>>, vector<1x8x256xf32>
    %694 = vector.shape_cast %693 : vector<1x8x256xf32> to vector<8x256xf32>
    %c30 = arith.constant 30 : index
    %695 = memref.load %arg2[%c30] : memref<90xf32, #tpu.memory_space<smem>>
    %696 = vector.broadcast %695 : f32 to vector<8x256xf32>
    %697 = arith.mulf %694, %696 : vector<8x256xf32>
    %698 = arith.addf %692, %697 : vector<8x256xf32>
    %c5_441 = arith.constant 5 : index
    %c0_442 = arith.constant 0 : index
    %c0_443 = arith.constant 0 : index
    %699 = vector.load %arg1[%c5_441, %c0_442, %c0_443] : memref<16x8x256xf32, #tpu.memory_space<vmem>>, vector<1x8x256xf32>
    %700 = vector.shape_cast %699 : vector<1x8x256xf32> to vector<8x256xf32>
    %c31 = arith.constant 31 : index
    %701 = memref.load %arg2[%c31] : memref<90xf32, #tpu.memory_space<smem>>
    %702 = vector.broadcast %701 : f32 to vector<8x256xf32>
    %703 = arith.mulf %700, %702 : vector<8x256xf32>
    %704 = arith.addf %698, %703 : vector<8x256xf32>
    %c6_444 = arith.constant 6 : index
    %c0_445 = arith.constant 0 : index
    %c0_446 = arith.constant 0 : index
    %705 = vector.load %arg1[%c6_444, %c0_445, %c0_446] : memref<16x8x256xf32, #tpu.memory_space<vmem>>, vector<1x8x256xf32>
    %706 = vector.shape_cast %705 : vector<1x8x256xf32> to vector<8x256xf32>
    %c32 = arith.constant 32 : index
    %707 = memref.load %arg2[%c32] : memref<90xf32, #tpu.memory_space<smem>>
    %708 = vector.broadcast %707 : f32 to vector<8x256xf32>
    %709 = arith.mulf %706, %708 : vector<8x256xf32>
    %710 = arith.addf %704, %709 : vector<8x256xf32>
    %c8_447 = arith.constant 8 : index
    %c0_448 = arith.constant 0 : index
    %c0_449 = arith.constant 0 : index
    %711 = vector.load %arg1[%c8_447, %c0_448, %c0_449] : memref<16x8x256xf32, #tpu.memory_space<vmem>>, vector<1x8x256xf32>
    %712 = vector.shape_cast %711 : vector<1x8x256xf32> to vector<8x256xf32>
    %c33 = arith.constant 33 : index
    %713 = memref.load %arg2[%c33] : memref<90xf32, #tpu.memory_space<smem>>
    %714 = vector.broadcast %713 : f32 to vector<8x256xf32>
    %715 = arith.mulf %712, %714 : vector<8x256xf32>
    %716 = arith.addf %710, %715 : vector<8x256xf32>
    %c9_450 = arith.constant 9 : index
    %c0_451 = arith.constant 0 : index
    %c0_452 = arith.constant 0 : index
    %717 = vector.load %arg1[%c9_450, %c0_451, %c0_452] : memref<16x8x256xf32, #tpu.memory_space<vmem>>, vector<1x8x256xf32>
    %718 = vector.shape_cast %717 : vector<1x8x256xf32> to vector<8x256xf32>
    %c34 = arith.constant 34 : index
    %719 = memref.load %arg2[%c34] : memref<90xf32, #tpu.memory_space<smem>>
    %720 = vector.broadcast %719 : f32 to vector<8x256xf32>
    %721 = arith.mulf %718, %720 : vector<8x256xf32>
    %722 = arith.addf %716, %721 : vector<8x256xf32>
    %c10_453 = arith.constant 10 : index
    %c0_454 = arith.constant 0 : index
    %c0_455 = arith.constant 0 : index
    %723 = vector.load %arg1[%c10_453, %c0_454, %c0_455] : memref<16x8x256xf32, #tpu.memory_space<vmem>>, vector<1x8x256xf32>
    %724 = vector.shape_cast %723 : vector<1x8x256xf32> to vector<8x256xf32>
    %c35 = arith.constant 35 : index
    %725 = memref.load %arg2[%c35] : memref<90xf32, #tpu.memory_space<smem>>
    %726 = vector.broadcast %725 : f32 to vector<8x256xf32>
    %727 = arith.mulf %724, %726 : vector<8x256xf32>
    %728 = arith.addf %722, %727 : vector<8x256xf32>
    %c1_456 = arith.constant 1 : index
    %c0_457 = arith.constant 0 : index
    %c0_458 = arith.constant 0 : index
    %729 = vector.load %arg1[%c1_456, %c0_457, %c0_458] : memref<16x8x256xf32, #tpu.memory_space<vmem>>, vector<1x8x256xf32>
    %730 = vector.shape_cast %729 : vector<1x8x256xf32> to vector<8x256xf32>
    %c27_459 = arith.constant 27 : index
    %731 = memref.load %arg2[%c27_459] : memref<90xf32, #tpu.memory_space<smem>>
    %732 = vector.broadcast %731 : f32 to vector<8x256xf32>
    %733 = arith.mulf %730, %732 : vector<8x256xf32>
    %c2_460 = arith.constant 2 : index
    %c0_461 = arith.constant 0 : index
    %c0_462 = arith.constant 0 : index
    %734 = vector.load %arg1[%c2_460, %c0_461, %c0_462] : memref<16x8x256xf32, #tpu.memory_space<vmem>>, vector<1x8x256xf32>
    %735 = vector.shape_cast %734 : vector<1x8x256xf32> to vector<8x256xf32>
    %c28_463 = arith.constant 28 : index
    %736 = memref.load %arg2[%c28_463] : memref<90xf32, #tpu.memory_space<smem>>
    %737 = vector.broadcast %736 : f32 to vector<8x256xf32>
    %738 = arith.mulf %735, %737 : vector<8x256xf32>
    %739 = arith.addf %733, %738 : vector<8x256xf32>
    %c3_464 = arith.constant 3 : index
    %c0_465 = arith.constant 0 : index
    %c0_466 = arith.constant 0 : index
    %740 = vector.load %arg1[%c3_464, %c0_465, %c0_466] : memref<16x8x256xf32, #tpu.memory_space<vmem>>, vector<1x8x256xf32>
    %741 = vector.shape_cast %740 : vector<1x8x256xf32> to vector<8x256xf32>
    %c29_467 = arith.constant 29 : index
    %742 = memref.load %arg2[%c29_467] : memref<90xf32, #tpu.memory_space<smem>>
    %743 = vector.broadcast %742 : f32 to vector<8x256xf32>
    %744 = arith.mulf %741, %743 : vector<8x256xf32>
    %745 = arith.addf %739, %744 : vector<8x256xf32>
    %c5_468 = arith.constant 5 : index
    %c0_469 = arith.constant 0 : index
    %c0_470 = arith.constant 0 : index
    %746 = vector.load %arg1[%c5_468, %c0_469, %c0_470] : memref<16x8x256xf32, #tpu.memory_space<vmem>>, vector<1x8x256xf32>
    %747 = vector.shape_cast %746 : vector<1x8x256xf32> to vector<8x256xf32>
    %c30_471 = arith.constant 30 : index
    %748 = memref.load %arg2[%c30_471] : memref<90xf32, #tpu.memory_space<smem>>
    %749 = vector.broadcast %748 : f32 to vector<8x256xf32>
    %750 = arith.mulf %747, %749 : vector<8x256xf32>
    %751 = arith.addf %745, %750 : vector<8x256xf32>
    %c6_472 = arith.constant 6 : index
    %c0_473 = arith.constant 0 : index
    %c0_474 = arith.constant 0 : index
    %752 = vector.load %arg1[%c6_472, %c0_473, %c0_474] : memref<16x8x256xf32, #tpu.memory_space<vmem>>, vector<1x8x256xf32>
    %753 = vector.shape_cast %752 : vector<1x8x256xf32> to vector<8x256xf32>
    %c31_475 = arith.constant 31 : index
    %754 = memref.load %arg2[%c31_475] : memref<90xf32, #tpu.memory_space<smem>>
    %755 = vector.broadcast %754 : f32 to vector<8x256xf32>
    %756 = arith.mulf %753, %755 : vector<8x256xf32>
    %757 = arith.addf %751, %756 : vector<8x256xf32>
    %c7_476 = arith.constant 7 : index
    %c0_477 = arith.constant 0 : index
    %c0_478 = arith.constant 0 : index
    %758 = vector.load %arg1[%c7_476, %c0_477, %c0_478] : memref<16x8x256xf32, #tpu.memory_space<vmem>>, vector<1x8x256xf32>
    %759 = vector.shape_cast %758 : vector<1x8x256xf32> to vector<8x256xf32>
    %c32_479 = arith.constant 32 : index
    %760 = memref.load %arg2[%c32_479] : memref<90xf32, #tpu.memory_space<smem>>
    %761 = vector.broadcast %760 : f32 to vector<8x256xf32>
    %762 = arith.mulf %759, %761 : vector<8x256xf32>
    %763 = arith.addf %757, %762 : vector<8x256xf32>
    %c9_480 = arith.constant 9 : index
    %c0_481 = arith.constant 0 : index
    %c0_482 = arith.constant 0 : index
    %764 = vector.load %arg1[%c9_480, %c0_481, %c0_482] : memref<16x8x256xf32, #tpu.memory_space<vmem>>, vector<1x8x256xf32>
    %765 = vector.shape_cast %764 : vector<1x8x256xf32> to vector<8x256xf32>
    %c33_483 = arith.constant 33 : index
    %766 = memref.load %arg2[%c33_483] : memref<90xf32, #tpu.memory_space<smem>>
    %767 = vector.broadcast %766 : f32 to vector<8x256xf32>
    %768 = arith.mulf %765, %767 : vector<8x256xf32>
    %769 = arith.addf %763, %768 : vector<8x256xf32>
    %c10_484 = arith.constant 10 : index
    %c0_485 = arith.constant 0 : index
    %c0_486 = arith.constant 0 : index
    %770 = vector.load %arg1[%c10_484, %c0_485, %c0_486] : memref<16x8x256xf32, #tpu.memory_space<vmem>>, vector<1x8x256xf32>
    %771 = vector.shape_cast %770 : vector<1x8x256xf32> to vector<8x256xf32>
    %c34_487 = arith.constant 34 : index
    %772 = memref.load %arg2[%c34_487] : memref<90xf32, #tpu.memory_space<smem>>
    %773 = vector.broadcast %772 : f32 to vector<8x256xf32>
    %774 = arith.mulf %771, %773 : vector<8x256xf32>
    %775 = arith.addf %769, %774 : vector<8x256xf32>
    %c11_488 = arith.constant 11 : index
    %c0_489 = arith.constant 0 : index
    %c0_490 = arith.constant 0 : index
    %776 = vector.load %arg1[%c11_488, %c0_489, %c0_490] : memref<16x8x256xf32, #tpu.memory_space<vmem>>, vector<1x8x256xf32>
    %777 = vector.shape_cast %776 : vector<1x8x256xf32> to vector<8x256xf32>
    %c35_491 = arith.constant 35 : index
    %778 = memref.load %arg2[%c35_491] : memref<90xf32, #tpu.memory_space<smem>>
    %779 = vector.broadcast %778 : f32 to vector<8x256xf32>
    %780 = arith.mulf %777, %779 : vector<8x256xf32>
    %781 = arith.addf %775, %780 : vector<8x256xf32>
    %782 = arith.maximumf %728, %781 : vector<8x256xf32>
    %c4_492 = arith.constant 4 : index
    %c0_493 = arith.constant 0 : index
    %c0_494 = arith.constant 0 : index
    %783 = vector.load %arg1[%c4_492, %c0_493, %c0_494] : memref<16x8x256xf32, #tpu.memory_space<vmem>>, vector<1x8x256xf32>
    %784 = vector.shape_cast %783 : vector<1x8x256xf32> to vector<8x256xf32>
    %c27_495 = arith.constant 27 : index
    %785 = memref.load %arg2[%c27_495] : memref<90xf32, #tpu.memory_space<smem>>
    %786 = vector.broadcast %785 : f32 to vector<8x256xf32>
    %787 = arith.mulf %784, %786 : vector<8x256xf32>
    %c5_496 = arith.constant 5 : index
    %c0_497 = arith.constant 0 : index
    %c0_498 = arith.constant 0 : index
    %788 = vector.load %arg1[%c5_496, %c0_497, %c0_498] : memref<16x8x256xf32, #tpu.memory_space<vmem>>, vector<1x8x256xf32>
    %789 = vector.shape_cast %788 : vector<1x8x256xf32> to vector<8x256xf32>
    %c28_499 = arith.constant 28 : index
    %790 = memref.load %arg2[%c28_499] : memref<90xf32, #tpu.memory_space<smem>>
    %791 = vector.broadcast %790 : f32 to vector<8x256xf32>
    %792 = arith.mulf %789, %791 : vector<8x256xf32>
    %793 = arith.addf %787, %792 : vector<8x256xf32>
    %c6_500 = arith.constant 6 : index
    %c0_501 = arith.constant 0 : index
    %c0_502 = arith.constant 0 : index
    %794 = vector.load %arg1[%c6_500, %c0_501, %c0_502] : memref<16x8x256xf32, #tpu.memory_space<vmem>>, vector<1x8x256xf32>
    %795 = vector.shape_cast %794 : vector<1x8x256xf32> to vector<8x256xf32>
    %c29_503 = arith.constant 29 : index
    %796 = memref.load %arg2[%c29_503] : memref<90xf32, #tpu.memory_space<smem>>
    %797 = vector.broadcast %796 : f32 to vector<8x256xf32>
    %798 = arith.mulf %795, %797 : vector<8x256xf32>
    %799 = arith.addf %793, %798 : vector<8x256xf32>
    %c8_504 = arith.constant 8 : index
    %c0_505 = arith.constant 0 : index
    %c0_506 = arith.constant 0 : index
    %800 = vector.load %arg1[%c8_504, %c0_505, %c0_506] : memref<16x8x256xf32, #tpu.memory_space<vmem>>, vector<1x8x256xf32>
    %801 = vector.shape_cast %800 : vector<1x8x256xf32> to vector<8x256xf32>
    %c30_507 = arith.constant 30 : index
    %802 = memref.load %arg2[%c30_507] : memref<90xf32, #tpu.memory_space<smem>>
    %803 = vector.broadcast %802 : f32 to vector<8x256xf32>
    %804 = arith.mulf %801, %803 : vector<8x256xf32>
    %805 = arith.addf %799, %804 : vector<8x256xf32>
    %c9_508 = arith.constant 9 : index
    %c0_509 = arith.constant 0 : index
    %c0_510 = arith.constant 0 : index
    %806 = vector.load %arg1[%c9_508, %c0_509, %c0_510] : memref<16x8x256xf32, #tpu.memory_space<vmem>>, vector<1x8x256xf32>
    %807 = vector.shape_cast %806 : vector<1x8x256xf32> to vector<8x256xf32>
    %c31_511 = arith.constant 31 : index
    %808 = memref.load %arg2[%c31_511] : memref<90xf32, #tpu.memory_space<smem>>
    %809 = vector.broadcast %808 : f32 to vector<8x256xf32>
    %810 = arith.mulf %807, %809 : vector<8x256xf32>
    %811 = arith.addf %805, %810 : vector<8x256xf32>
    %c10_512 = arith.constant 10 : index
    %c0_513 = arith.constant 0 : index
    %c0_514 = arith.constant 0 : index
    %812 = vector.load %arg1[%c10_512, %c0_513, %c0_514] : memref<16x8x256xf32, #tpu.memory_space<vmem>>, vector<1x8x256xf32>
    %813 = vector.shape_cast %812 : vector<1x8x256xf32> to vector<8x256xf32>
    %c32_515 = arith.constant 32 : index
    %814 = memref.load %arg2[%c32_515] : memref<90xf32, #tpu.memory_space<smem>>
    %815 = vector.broadcast %814 : f32 to vector<8x256xf32>
    %816 = arith.mulf %813, %815 : vector<8x256xf32>
    %817 = arith.addf %811, %816 : vector<8x256xf32>
    %c12_516 = arith.constant 12 : index
    %c0_517 = arith.constant 0 : index
    %c0_518 = arith.constant 0 : index
    %818 = vector.load %arg1[%c12_516, %c0_517, %c0_518] : memref<16x8x256xf32, #tpu.memory_space<vmem>>, vector<1x8x256xf32>
    %819 = vector.shape_cast %818 : vector<1x8x256xf32> to vector<8x256xf32>
    %c33_519 = arith.constant 33 : index
    %820 = memref.load %arg2[%c33_519] : memref<90xf32, #tpu.memory_space<smem>>
    %821 = vector.broadcast %820 : f32 to vector<8x256xf32>
    %822 = arith.mulf %819, %821 : vector<8x256xf32>
    %823 = arith.addf %817, %822 : vector<8x256xf32>
    %c13_520 = arith.constant 13 : index
    %c0_521 = arith.constant 0 : index
    %c0_522 = arith.constant 0 : index
    %824 = vector.load %arg1[%c13_520, %c0_521, %c0_522] : memref<16x8x256xf32, #tpu.memory_space<vmem>>, vector<1x8x256xf32>
    %825 = vector.shape_cast %824 : vector<1x8x256xf32> to vector<8x256xf32>
    %c34_523 = arith.constant 34 : index
    %826 = memref.load %arg2[%c34_523] : memref<90xf32, #tpu.memory_space<smem>>
    %827 = vector.broadcast %826 : f32 to vector<8x256xf32>
    %828 = arith.mulf %825, %827 : vector<8x256xf32>
    %829 = arith.addf %823, %828 : vector<8x256xf32>
    %c14_524 = arith.constant 14 : index
    %c0_525 = arith.constant 0 : index
    %c0_526 = arith.constant 0 : index
    %830 = vector.load %arg1[%c14_524, %c0_525, %c0_526] : memref<16x8x256xf32, #tpu.memory_space<vmem>>, vector<1x8x256xf32>
    %831 = vector.shape_cast %830 : vector<1x8x256xf32> to vector<8x256xf32>
    %c35_527 = arith.constant 35 : index
    %832 = memref.load %arg2[%c35_527] : memref<90xf32, #tpu.memory_space<smem>>
    %833 = vector.broadcast %832 : f32 to vector<8x256xf32>
    %834 = arith.mulf %831, %833 : vector<8x256xf32>
    %835 = arith.addf %829, %834 : vector<8x256xf32>
    %836 = arith.maximumf %782, %835 : vector<8x256xf32>
    %c5_528 = arith.constant 5 : index
    %c0_529 = arith.constant 0 : index
    %c0_530 = arith.constant 0 : index
    %837 = vector.load %arg1[%c5_528, %c0_529, %c0_530] : memref<16x8x256xf32, #tpu.memory_space<vmem>>, vector<1x8x256xf32>
    %838 = vector.shape_cast %837 : vector<1x8x256xf32> to vector<8x256xf32>
    %c27_531 = arith.constant 27 : index
    %839 = memref.load %arg2[%c27_531] : memref<90xf32, #tpu.memory_space<smem>>
    %840 = vector.broadcast %839 : f32 to vector<8x256xf32>
    %841 = arith.mulf %838, %840 : vector<8x256xf32>
    %c6_532 = arith.constant 6 : index
    %c0_533 = arith.constant 0 : index
    %c0_534 = arith.constant 0 : index
    %842 = vector.load %arg1[%c6_532, %c0_533, %c0_534] : memref<16x8x256xf32, #tpu.memory_space<vmem>>, vector<1x8x256xf32>
    %843 = vector.shape_cast %842 : vector<1x8x256xf32> to vector<8x256xf32>
    %c28_535 = arith.constant 28 : index
    %844 = memref.load %arg2[%c28_535] : memref<90xf32, #tpu.memory_space<smem>>
    %845 = vector.broadcast %844 : f32 to vector<8x256xf32>
    %846 = arith.mulf %843, %845 : vector<8x256xf32>
    %847 = arith.addf %841, %846 : vector<8x256xf32>
    %c7_536 = arith.constant 7 : index
    %c0_537 = arith.constant 0 : index
    %c0_538 = arith.constant 0 : index
    %848 = vector.load %arg1[%c7_536, %c0_537, %c0_538] : memref<16x8x256xf32, #tpu.memory_space<vmem>>, vector<1x8x256xf32>
    %849 = vector.shape_cast %848 : vector<1x8x256xf32> to vector<8x256xf32>
    %c29_539 = arith.constant 29 : index
    %850 = memref.load %arg2[%c29_539] : memref<90xf32, #tpu.memory_space<smem>>
    %851 = vector.broadcast %850 : f32 to vector<8x256xf32>
    %852 = arith.mulf %849, %851 : vector<8x256xf32>
    %853 = arith.addf %847, %852 : vector<8x256xf32>
    %c9_540 = arith.constant 9 : index
    %c0_541 = arith.constant 0 : index
    %c0_542 = arith.constant 0 : index
    %854 = vector.load %arg1[%c9_540, %c0_541, %c0_542] : memref<16x8x256xf32, #tpu.memory_space<vmem>>, vector<1x8x256xf32>
    %855 = vector.shape_cast %854 : vector<1x8x256xf32> to vector<8x256xf32>
    %c30_543 = arith.constant 30 : index
    %856 = memref.load %arg2[%c30_543] : memref<90xf32, #tpu.memory_space<smem>>
    %857 = vector.broadcast %856 : f32 to vector<8x256xf32>
    %858 = arith.mulf %855, %857 : vector<8x256xf32>
    %859 = arith.addf %853, %858 : vector<8x256xf32>
    %c10_544 = arith.constant 10 : index
    %c0_545 = arith.constant 0 : index
    %c0_546 = arith.constant 0 : index
    %860 = vector.load %arg1[%c10_544, %c0_545, %c0_546] : memref<16x8x256xf32, #tpu.memory_space<vmem>>, vector<1x8x256xf32>
    %861 = vector.shape_cast %860 : vector<1x8x256xf32> to vector<8x256xf32>
    %c31_547 = arith.constant 31 : index
    %862 = memref.load %arg2[%c31_547] : memref<90xf32, #tpu.memory_space<smem>>
    %863 = vector.broadcast %862 : f32 to vector<8x256xf32>
    %864 = arith.mulf %861, %863 : vector<8x256xf32>
    %865 = arith.addf %859, %864 : vector<8x256xf32>
    %c11_548 = arith.constant 11 : index
    %c0_549 = arith.constant 0 : index
    %c0_550 = arith.constant 0 : index
    %866 = vector.load %arg1[%c11_548, %c0_549, %c0_550] : memref<16x8x256xf32, #tpu.memory_space<vmem>>, vector<1x8x256xf32>
    %867 = vector.shape_cast %866 : vector<1x8x256xf32> to vector<8x256xf32>
    %c32_551 = arith.constant 32 : index
    %868 = memref.load %arg2[%c32_551] : memref<90xf32, #tpu.memory_space<smem>>
    %869 = vector.broadcast %868 : f32 to vector<8x256xf32>
    %870 = arith.mulf %867, %869 : vector<8x256xf32>
    %871 = arith.addf %865, %870 : vector<8x256xf32>
    %c13_552 = arith.constant 13 : index
    %c0_553 = arith.constant 0 : index
    %c0_554 = arith.constant 0 : index
    %872 = vector.load %arg1[%c13_552, %c0_553, %c0_554] : memref<16x8x256xf32, #tpu.memory_space<vmem>>, vector<1x8x256xf32>
    %873 = vector.shape_cast %872 : vector<1x8x256xf32> to vector<8x256xf32>
    %c33_555 = arith.constant 33 : index
    %874 = memref.load %arg2[%c33_555] : memref<90xf32, #tpu.memory_space<smem>>
    %875 = vector.broadcast %874 : f32 to vector<8x256xf32>
    %876 = arith.mulf %873, %875 : vector<8x256xf32>
    %877 = arith.addf %871, %876 : vector<8x256xf32>
    %c14_556 = arith.constant 14 : index
    %c0_557 = arith.constant 0 : index
    %c0_558 = arith.constant 0 : index
    %878 = vector.load %arg1[%c14_556, %c0_557, %c0_558] : memref<16x8x256xf32, #tpu.memory_space<vmem>>, vector<1x8x256xf32>
    %879 = vector.shape_cast %878 : vector<1x8x256xf32> to vector<8x256xf32>
    %c34_559 = arith.constant 34 : index
    %880 = memref.load %arg2[%c34_559] : memref<90xf32, #tpu.memory_space<smem>>
    %881 = vector.broadcast %880 : f32 to vector<8x256xf32>
    %882 = arith.mulf %879, %881 : vector<8x256xf32>
    %883 = arith.addf %877, %882 : vector<8x256xf32>
    %c15_560 = arith.constant 15 : index
    %c0_561 = arith.constant 0 : index
    %c0_562 = arith.constant 0 : index
    %884 = vector.load %arg1[%c15_560, %c0_561, %c0_562] : memref<16x8x256xf32, #tpu.memory_space<vmem>>, vector<1x8x256xf32>
    %885 = vector.shape_cast %884 : vector<1x8x256xf32> to vector<8x256xf32>
    %c35_563 = arith.constant 35 : index
    %886 = memref.load %arg2[%c35_563] : memref<90xf32, #tpu.memory_space<smem>>
    %887 = vector.broadcast %886 : f32 to vector<8x256xf32>
    %888 = arith.mulf %885, %887 : vector<8x256xf32>
    %889 = arith.addf %883, %888 : vector<8x256xf32>
    %890 = arith.maximumf %836, %889 : vector<8x256xf32>
    %c3_564 = arith.constant 3 : index
    %891 = memref.load %arg3[%c3_564] : memref<10xf32, #tpu.memory_space<smem>>
    %892 = vector.broadcast %891 : f32 to vector<8x256xf32>
    %893 = arith.addf %890, %892 : vector<8x256xf32>
    %cst_565 = arith.constant 0.000000e+00 : f32
    %894 = vector.broadcast %cst_565 : f32 to vector<8x256xf32>
    %895 = arith.maximumf %893, %894 : vector<8x256xf32>
    %c768 = arith.constant 768 : index
    %c0_566 = arith.constant 0 : index
    %896 = vector.load %arg4[%c768, %c0_566] : memref<2560x128xf32, #tpu.memory_space<vmem>>, vector<256x128xf32>
    %cst_567 = arith.constant dense<0.000000e+00> : vector<8x128xf32>
    %897 = tpu.matmul %895, %896, %cst_567 {dimension_numbers = #tpu.dot_dimension_numbers<[1], [0], [0], [1], [0, 0, 1, 1], [], []>} : vector<8x256xf32>, vector<256x128xf32>, vector<8x128xf32> -> vector<8x128xf32>
    %c0_568 = arith.constant 0 : index
    %c0_569 = arith.constant 0 : index
    %898 = vector.load %arg6[%c0_568, %c0_569] : memref<8x128xf32, #tpu.memory_space<vmem>>, vector<8x128xf32>
    %899 = arith.addf %898, %897 : vector<8x128xf32>
    %c0_570 = arith.constant 0 : index
    %c0_571 = arith.constant 0 : index
    %900 = vector.load %arg6[%c0_570, %c0_571] : memref<8x128xf32, #tpu.memory_space<vmem>>, vector<8x128xf32>
    tpu.vector_store %arg6[%c0_570, %c0_571], %899 {strides = array<i32>} : memref<8x128xf32, #tpu.memory_space<vmem>>, vector<8x128xf32>,
    %c0_572 = arith.constant 0 : index
    %c0_573 = arith.constant 0 : index
    %c0_574 = arith.constant 0 : index
    %901 = vector.load %arg1[%c0_572, %c0_573, %c0_574] : memref<16x8x256xf32, #tpu.memory_space<vmem>>, vector<1x8x256xf32>
    %902 = vector.shape_cast %901 : vector<1x8x256xf32> to vector<8x256xf32>
    %c36 = arith.constant 36 : index
    %903 = memref.load %arg2[%c36] : memref<90xf32, #tpu.memory_space<smem>>
    %904 = vector.broadcast %903 : f32 to vector<8x256xf32>
    %905 = arith.mulf %902, %904 : vector<8x256xf32>
    %c1_575 = arith.constant 1 : index
    %c0_576 = arith.constant 0 : index
    %c0_577 = arith.constant 0 : index
    %906 = vector.load %arg1[%c1_575, %c0_576, %c0_577] : memref<16x8x256xf32, #tpu.memory_space<vmem>>, vector<1x8x256xf32>
    %907 = vector.shape_cast %906 : vector<1x8x256xf32> to vector<8x256xf32>
    %c37 = arith.constant 37 : index
    %908 = memref.load %arg2[%c37] : memref<90xf32, #tpu.memory_space<smem>>
    %909 = vector.broadcast %908 : f32 to vector<8x256xf32>
    %910 = arith.mulf %907, %909 : vector<8x256xf32>
    %911 = arith.addf %905, %910 : vector<8x256xf32>
    %c2_578 = arith.constant 2 : index
    %c0_579 = arith.constant 0 : index
    %c0_580 = arith.constant 0 : index
    %912 = vector.load %arg1[%c2_578, %c0_579, %c0_580] : memref<16x8x256xf32, #tpu.memory_space<vmem>>, vector<1x8x256xf32>
    %913 = vector.shape_cast %912 : vector<1x8x256xf32> to vector<8x256xf32>
    %c38 = arith.constant 38 : index
    %914 = memref.load %arg2[%c38] : memref<90xf32, #tpu.memory_space<smem>>
    %915 = vector.broadcast %914 : f32 to vector<8x256xf32>
    %916 = arith.mulf %913, %915 : vector<8x256xf32>
    %917 = arith.addf %911, %916 : vector<8x256xf32>
    %c4_581 = arith.constant 4 : index
    %c0_582 = arith.constant 0 : index
    %c0_583 = arith.constant 0 : index
    %918 = vector.load %arg1[%c4_581, %c0_582, %c0_583] : memref<16x8x256xf32, #tpu.memory_space<vmem>>, vector<1x8x256xf32>
    %919 = vector.shape_cast %918 : vector<1x8x256xf32> to vector<8x256xf32>
    %c39 = arith.constant 39 : index
    %920 = memref.load %arg2[%c39] : memref<90xf32, #tpu.memory_space<smem>>
    %921 = vector.broadcast %920 : f32 to vector<8x256xf32>
    %922 = arith.mulf %919, %921 : vector<8x256xf32>
    %923 = arith.addf %917, %922 : vector<8x256xf32>
    %c5_584 = arith.constant 5 : index
    %c0_585 = arith.constant 0 : index
    %c0_586 = arith.constant 0 : index
    %924 = vector.load %arg1[%c5_584, %c0_585, %c0_586] : memref<16x8x256xf32, #tpu.memory_space<vmem>>, vector<1x8x256xf32>
    %925 = vector.shape_cast %924 : vector<1x8x256xf32> to vector<8x256xf32>
    %c40 = arith.constant 40 : index
    %926 = memref.load %arg2[%c40] : memref<90xf32, #tpu.memory_space<smem>>
    %927 = vector.broadcast %926 : f32 to vector<8x256xf32>
    %928 = arith.mulf %925, %927 : vector<8x256xf32>
    %929 = arith.addf %923, %928 : vector<8x256xf32>
    %c6_587 = arith.constant 6 : index
    %c0_588 = arith.constant 0 : index
    %c0_589 = arith.constant 0 : index
    %930 = vector.load %arg1[%c6_587, %c0_588, %c0_589] : memref<16x8x256xf32, #tpu.memory_space<vmem>>, vector<1x8x256xf32>
    %931 = vector.shape_cast %930 : vector<1x8x256xf32> to vector<8x256xf32>
    %c41 = arith.constant 41 : index
    %932 = memref.load %arg2[%c41] : memref<90xf32, #tpu.memory_space<smem>>
    %933 = vector.broadcast %932 : f32 to vector<8x256xf32>
    %934 = arith.mulf %931, %933 : vector<8x256xf32>
    %935 = arith.addf %929, %934 : vector<8x256xf32>
    %c8_590 = arith.constant 8 : index
    %c0_591 = arith.constant 0 : index
    %c0_592 = arith.constant 0 : index
    %936 = vector.load %arg1[%c8_590, %c0_591, %c0_592] : memref<16x8x256xf32, #tpu.memory_space<vmem>>, vector<1x8x256xf32>
    %937 = vector.shape_cast %936 : vector<1x8x256xf32> to vector<8x256xf32>
    %c42 = arith.constant 42 : index
    %938 = memref.load %arg2[%c42] : memref<90xf32, #tpu.memory_space<smem>>
    %939 = vector.broadcast %938 : f32 to vector<8x256xf32>
    %940 = arith.mulf %937, %939 : vector<8x256xf32>
    %941 = arith.addf %935, %940 : vector<8x256xf32>
    %c9_593 = arith.constant 9 : index
    %c0_594 = arith.constant 0 : index
    %c0_595 = arith.constant 0 : index
    %942 = vector.load %arg1[%c9_593, %c0_594, %c0_595] : memref<16x8x256xf32, #tpu.memory_space<vmem>>, vector<1x8x256xf32>
    %943 = vector.shape_cast %942 : vector<1x8x256xf32> to vector<8x256xf32>
    %c43 = arith.constant 43 : index
    %944 = memref.load %arg2[%c43] : memref<90xf32, #tpu.memory_space<smem>>
    %945 = vector.broadcast %944 : f32 to vector<8x256xf32>
    %946 = arith.mulf %943, %945 : vector<8x256xf32>
    %947 = arith.addf %941, %946 : vector<8x256xf32>
    %c10_596 = arith.constant 10 : index
    %c0_597 = arith.constant 0 : index
    %c0_598 = arith.constant 0 : index
    %948 = vector.load %arg1[%c10_596, %c0_597, %c0_598] : memref<16x8x256xf32, #tpu.memory_space<vmem>>, vector<1x8x256xf32>
    %949 = vector.shape_cast %948 : vector<1x8x256xf32> to vector<8x256xf32>
    %c44 = arith.constant 44 : index
    %950 = memref.load %arg2[%c44] : memref<90xf32, #tpu.memory_space<smem>>
    %951 = vector.broadcast %950 : f32 to vector<8x256xf32>
    %952 = arith.mulf %949, %951 : vector<8x256xf32>
    %953 = arith.addf %947, %952 : vector<8x256xf32>
    %c1_599 = arith.constant 1 : index
    %c0_600 = arith.constant 0 : index
    %c0_601 = arith.constant 0 : index
    %954 = vector.load %arg1[%c1_599, %c0_600, %c0_601] : memref<16x8x256xf32, #tpu.memory_space<vmem>>, vector<1x8x256xf32>
    %955 = vector.shape_cast %954 : vector<1x8x256xf32> to vector<8x256xf32>
    %c36_602 = arith.constant 36 : index
    %956 = memref.load %arg2[%c36_602] : memref<90xf32, #tpu.memory_space<smem>>
    %957 = vector.broadcast %956 : f32 to vector<8x256xf32>
    %958 = arith.mulf %955, %957 : vector<8x256xf32>
    %c2_603 = arith.constant 2 : index
    %c0_604 = arith.constant 0 : index
    %c0_605 = arith.constant 0 : index
    %959 = vector.load %arg1[%c2_603, %c0_604, %c0_605] : memref<16x8x256xf32, #tpu.memory_space<vmem>>, vector<1x8x256xf32>
    %960 = vector.shape_cast %959 : vector<1x8x256xf32> to vector<8x256xf32>
    %c37_606 = arith.constant 37 : index
    %961 = memref.load %arg2[%c37_606] : memref<90xf32, #tpu.memory_space<smem>>
    %962 = vector.broadcast %961 : f32 to vector<8x256xf32>
    %963 = arith.mulf %960, %962 : vector<8x256xf32>
    %964 = arith.addf %958, %963 : vector<8x256xf32>
    %c3_607 = arith.constant 3 : index
    %c0_608 = arith.constant 0 : index
    %c0_609 = arith.constant 0 : index
    %965 = vector.load %arg1[%c3_607, %c0_608, %c0_609] : memref<16x8x256xf32, #tpu.memory_space<vmem>>, vector<1x8x256xf32>
    %966 = vector.shape_cast %965 : vector<1x8x256xf32> to vector<8x256xf32>
    %c38_610 = arith.constant 38 : index
    %967 = memref.load %arg2[%c38_610] : memref<90xf32, #tpu.memory_space<smem>>
    %968 = vector.broadcast %967 : f32 to vector<8x256xf32>
    %969 = arith.mulf %966, %968 : vector<8x256xf32>
    %970 = arith.addf %964, %969 : vector<8x256xf32>
    %c5_611 = arith.constant 5 : index
    %c0_612 = arith.constant 0 : index
    %c0_613 = arith.constant 0 : index
    %971 = vector.load %arg1[%c5_611, %c0_612, %c0_613] : memref<16x8x256xf32, #tpu.memory_space<vmem>>, vector<1x8x256xf32>
    %972 = vector.shape_cast %971 : vector<1x8x256xf32> to vector<8x256xf32>
    %c39_614 = arith.constant 39 : index
    %973 = memref.load %arg2[%c39_614] : memref<90xf32, #tpu.memory_space<smem>>
    %974 = vector.broadcast %973 : f32 to vector<8x256xf32>
    %975 = arith.mulf %972, %974 : vector<8x256xf32>
    %976 = arith.addf %970, %975 : vector<8x256xf32>
    %c6_615 = arith.constant 6 : index
    %c0_616 = arith.constant 0 : index
    %c0_617 = arith.constant 0 : index
    %977 = vector.load %arg1[%c6_615, %c0_616, %c0_617] : memref<16x8x256xf32, #tpu.memory_space<vmem>>, vector<1x8x256xf32>
    %978 = vector.shape_cast %977 : vector<1x8x256xf32> to vector<8x256xf32>
    %c40_618 = arith.constant 40 : index
    %979 = memref.load %arg2[%c40_618] : memref<90xf32, #tpu.memory_space<smem>>
    %980 = vector.broadcast %979 : f32 to vector<8x256xf32>
    %981 = arith.mulf %978, %980 : vector<8x256xf32>
    %982 = arith.addf %976, %981 : vector<8x256xf32>
    %c7_619 = arith.constant 7 : index
    %c0_620 = arith.constant 0 : index
    %c0_621 = arith.constant 0 : index
    %983 = vector.load %arg1[%c7_619, %c0_620, %c0_621] : memref<16x8x256xf32, #tpu.memory_space<vmem>>, vector<1x8x256xf32>
    %984 = vector.shape_cast %983 : vector<1x8x256xf32> to vector<8x256xf32>
    %c41_622 = arith.constant 41 : index
    %985 = memref.load %arg2[%c41_622] : memref<90xf32, #tpu.memory_space<smem>>
    %986 = vector.broadcast %985 : f32 to vector<8x256xf32>
    %987 = arith.mulf %984, %986 : vector<8x256xf32>
    %988 = arith.addf %982, %987 : vector<8x256xf32>
    %c9_623 = arith.constant 9 : index
    %c0_624 = arith.constant 0 : index
    %c0_625 = arith.constant 0 : index
    %989 = vector.load %arg1[%c9_623, %c0_624, %c0_625] : memref<16x8x256xf32, #tpu.memory_space<vmem>>, vector<1x8x256xf32>
    %990 = vector.shape_cast %989 : vector<1x8x256xf32> to vector<8x256xf32>
    %c42_626 = arith.constant 42 : index
    %991 = memref.load %arg2[%c42_626] : memref<90xf32, #tpu.memory_space<smem>>
    %992 = vector.broadcast %991 : f32 to vector<8x256xf32>
    %993 = arith.mulf %990, %992 : vector<8x256xf32>
    %994 = arith.addf %988, %993 : vector<8x256xf32>
    %c10_627 = arith.constant 10 : index
    %c0_628 = arith.constant 0 : index
    %c0_629 = arith.constant 0 : index
    %995 = vector.load %arg1[%c10_627, %c0_628, %c0_629] : memref<16x8x256xf32, #tpu.memory_space<vmem>>, vector<1x8x256xf32>
    %996 = vector.shape_cast %995 : vector<1x8x256xf32> to vector<8x256xf32>
    %c43_630 = arith.constant 43 : index
    %997 = memref.load %arg2[%c43_630] : memref<90xf32, #tpu.memory_space<smem>>
    %998 = vector.broadcast %997 : f32 to vector<8x256xf32>
    %999 = arith.mulf %996, %998 : vector<8x256xf32>
    %1000 = arith.addf %994, %999 : vector<8x256xf32>
    %c11_631 = arith.constant 11 : index
    %c0_632 = arith.constant 0 : index
    %c0_633 = arith.constant 0 : index
    %1001 = vector.load %arg1[%c11_631, %c0_632, %c0_633] : memref<16x8x256xf32, #tpu.memory_space<vmem>>, vector<1x8x256xf32>
    %1002 = vector.shape_cast %1001 : vector<1x8x256xf32> to vector<8x256xf32>
    %c44_634 = arith.constant 44 : index
    %1003 = memref.load %arg2[%c44_634] : memref<90xf32, #tpu.memory_space<smem>>
    %1004 = vector.broadcast %1003 : f32 to vector<8x256xf32>
    %1005 = arith.mulf %1002, %1004 : vector<8x256xf32>
    %1006 = arith.addf %1000, %1005 : vector<8x256xf32>
    %1007 = arith.maximumf %953, %1006 : vector<8x256xf32>
    %c4_635 = arith.constant 4 : index
    %c0_636 = arith.constant 0 : index
    %c0_637 = arith.constant 0 : index
    %1008 = vector.load %arg1[%c4_635, %c0_636, %c0_637] : memref<16x8x256xf32, #tpu.memory_space<vmem>>, vector<1x8x256xf32>
    %1009 = vector.shape_cast %1008 : vector<1x8x256xf32> to vector<8x256xf32>
    %c36_638 = arith.constant 36 : index
    %1010 = memref.load %arg2[%c36_638] : memref<90xf32, #tpu.memory_space<smem>>
    %1011 = vector.broadcast %1010 : f32 to vector<8x256xf32>
    %1012 = arith.mulf %1009, %1011 : vector<8x256xf32>
    %c5_639 = arith.constant 5 : index
    %c0_640 = arith.constant 0 : index
    %c0_641 = arith.constant 0 : index
    %1013 = vector.load %arg1[%c5_639, %c0_640, %c0_641] : memref<16x8x256xf32, #tpu.memory_space<vmem>>, vector<1x8x256xf32>
    %1014 = vector.shape_cast %1013 : vector<1x8x256xf32> to vector<8x256xf32>
    %c37_642 = arith.constant 37 : index
    %1015 = memref.load %arg2[%c37_642] : memref<90xf32, #tpu.memory_space<smem>>
    %1016 = vector.broadcast %1015 : f32 to vector<8x256xf32>
    %1017 = arith.mulf %1014, %1016 : vector<8x256xf32>
    %1018 = arith.addf %1012, %1017 : vector<8x256xf32>
    %c6_643 = arith.constant 6 : index
    %c0_644 = arith.constant 0 : index
    %c0_645 = arith.constant 0 : index
    %1019 = vector.load %arg1[%c6_643, %c0_644, %c0_645] : memref<16x8x256xf32, #tpu.memory_space<vmem>>, vector<1x8x256xf32>
    %1020 = vector.shape_cast %1019 : vector<1x8x256xf32> to vector<8x256xf32>
    %c38_646 = arith.constant 38 : index
    %1021 = memref.load %arg2[%c38_646] : memref<90xf32, #tpu.memory_space<smem>>
    %1022 = vector.broadcast %1021 : f32 to vector<8x256xf32>
    %1023 = arith.mulf %1020, %1022 : vector<8x256xf32>
    %1024 = arith.addf %1018, %1023 : vector<8x256xf32>
    %c8_647 = arith.constant 8 : index
    %c0_648 = arith.constant 0 : index
    %c0_649 = arith.constant 0 : index
    %1025 = vector.load %arg1[%c8_647, %c0_648, %c0_649] : memref<16x8x256xf32, #tpu.memory_space<vmem>>, vector<1x8x256xf32>
    %1026 = vector.shape_cast %1025 : vector<1x8x256xf32> to vector<8x256xf32>
    %c39_650 = arith.constant 39 : index
    %1027 = memref.load %arg2[%c39_650] : memref<90xf32, #tpu.memory_space<smem>>
    %1028 = vector.broadcast %1027 : f32 to vector<8x256xf32>
    %1029 = arith.mulf %1026, %1028 : vector<8x256xf32>
    %1030 = arith.addf %1024, %1029 : vector<8x256xf32>
    %c9_651 = arith.constant 9 : index
    %c0_652 = arith.constant 0 : index
    %c0_653 = arith.constant 0 : index
    %1031 = vector.load %arg1[%c9_651, %c0_652, %c0_653] : memref<16x8x256xf32, #tpu.memory_space<vmem>>, vector<1x8x256xf32>
    %1032 = vector.shape_cast %1031 : vector<1x8x256xf32> to vector<8x256xf32>
    %c40_654 = arith.constant 40 : index
    %1033 = memref.load %arg2[%c40_654] : memref<90xf32, #tpu.memory_space<smem>>
    %1034 = vector.broadcast %1033 : f32 to vector<8x256xf32>
    %1035 = arith.mulf %1032, %1034 : vector<8x256xf32>
    %1036 = arith.addf %1030, %1035 : vector<8x256xf32>
    %c10_655 = arith.constant 10 : index
    %c0_656 = arith.constant 0 : index
    %c0_657 = arith.constant 0 : index
    %1037 = vector.load %arg1[%c10_655, %c0_656, %c0_657] : memref<16x8x256xf32, #tpu.memory_space<vmem>>, vector<1x8x256xf32>
    %1038 = vector.shape_cast %1037 : vector<1x8x256xf32> to vector<8x256xf32>
    %c41_658 = arith.constant 41 : index
    %1039 = memref.load %arg2[%c41_658] : memref<90xf32, #tpu.memory_space<smem>>
    %1040 = vector.broadcast %1039 : f32 to vector<8x256xf32>
    %1041 = arith.mulf %1038, %1040 : vector<8x256xf32>
    %1042 = arith.addf %1036, %1041 : vector<8x256xf32>
    %c12_659 = arith.constant 12 : index
    %c0_660 = arith.constant 0 : index
    %c0_661 = arith.constant 0 : index
    %1043 = vector.load %arg1[%c12_659, %c0_660, %c0_661] : memref<16x8x256xf32, #tpu.memory_space<vmem>>, vector<1x8x256xf32>
    %1044 = vector.shape_cast %1043 : vector<1x8x256xf32> to vector<8x256xf32>
    %c42_662 = arith.constant 42 : index
    %1045 = memref.load %arg2[%c42_662] : memref<90xf32, #tpu.memory_space<smem>>
    %1046 = vector.broadcast %1045 : f32 to vector<8x256xf32>
    %1047 = arith.mulf %1044, %1046 : vector<8x256xf32>
    %1048 = arith.addf %1042, %1047 : vector<8x256xf32>
    %c13_663 = arith.constant 13 : index
    %c0_664 = arith.constant 0 : index
    %c0_665 = arith.constant 0 : index
    %1049 = vector.load %arg1[%c13_663, %c0_664, %c0_665] : memref<16x8x256xf32, #tpu.memory_space<vmem>>, vector<1x8x256xf32>
    %1050 = vector.shape_cast %1049 : vector<1x8x256xf32> to vector<8x256xf32>
    %c43_666 = arith.constant 43 : index
    %1051 = memref.load %arg2[%c43_666] : memref<90xf32, #tpu.memory_space<smem>>
    %1052 = vector.broadcast %1051 : f32 to vector<8x256xf32>
    %1053 = arith.mulf %1050, %1052 : vector<8x256xf32>
    %1054 = arith.addf %1048, %1053 : vector<8x256xf32>
    %c14_667 = arith.constant 14 : index
    %c0_668 = arith.constant 0 : index
    %c0_669 = arith.constant 0 : index
    %1055 = vector.load %arg1[%c14_667, %c0_668, %c0_669] : memref<16x8x256xf32, #tpu.memory_space<vmem>>, vector<1x8x256xf32>
    %1056 = vector.shape_cast %1055 : vector<1x8x256xf32> to vector<8x256xf32>
    %c44_670 = arith.constant 44 : index
    %1057 = memref.load %arg2[%c44_670] : memref<90xf32, #tpu.memory_space<smem>>
    %1058 = vector.broadcast %1057 : f32 to vector<8x256xf32>
    %1059 = arith.mulf %1056, %1058 : vector<8x256xf32>
    %1060 = arith.addf %1054, %1059 : vector<8x256xf32>
    %1061 = arith.maximumf %1007, %1060 : vector<8x256xf32>
    %c5_671 = arith.constant 5 : index
    %c0_672 = arith.constant 0 : index
    %c0_673 = arith.constant 0 : index
    %1062 = vector.load %arg1[%c5_671, %c0_672, %c0_673] : memref<16x8x256xf32, #tpu.memory_space<vmem>>, vector<1x8x256xf32>
    %1063 = vector.shape_cast %1062 : vector<1x8x256xf32> to vector<8x256xf32>
    %c36_674 = arith.constant 36 : index
    %1064 = memref.load %arg2[%c36_674] : memref<90xf32, #tpu.memory_space<smem>>
    %1065 = vector.broadcast %1064 : f32 to vector<8x256xf32>
    %1066 = arith.mulf %1063, %1065 : vector<8x256xf32>
    %c6_675 = arith.constant 6 : index
    %c0_676 = arith.constant 0 : index
    %c0_677 = arith.constant 0 : index
    %1067 = vector.load %arg1[%c6_675, %c0_676, %c0_677] : memref<16x8x256xf32, #tpu.memory_space<vmem>>, vector<1x8x256xf32>
    %1068 = vector.shape_cast %1067 : vector<1x8x256xf32> to vector<8x256xf32>
    %c37_678 = arith.constant 37 : index
    %1069 = memref.load %arg2[%c37_678] : memref<90xf32, #tpu.memory_space<smem>>
    %1070 = vector.broadcast %1069 : f32 to vector<8x256xf32>
    %1071 = arith.mulf %1068, %1070 : vector<8x256xf32>
    %1072 = arith.addf %1066, %1071 : vector<8x256xf32>
    %c7_679 = arith.constant 7 : index
    %c0_680 = arith.constant 0 : index
    %c0_681 = arith.constant 0 : index
    %1073 = vector.load %arg1[%c7_679, %c0_680, %c0_681] : memref<16x8x256xf32, #tpu.memory_space<vmem>>, vector<1x8x256xf32>
    %1074 = vector.shape_cast %1073 : vector<1x8x256xf32> to vector<8x256xf32>
    %c38_682 = arith.constant 38 : index
    %1075 = memref.load %arg2[%c38_682] : memref<90xf32, #tpu.memory_space<smem>>
    %1076 = vector.broadcast %1075 : f32 to vector<8x256xf32>
    %1077 = arith.mulf %1074, %1076 : vector<8x256xf32>
    %1078 = arith.addf %1072, %1077 : vector<8x256xf32>
    %c9_683 = arith.constant 9 : index
    %c0_684 = arith.constant 0 : index
    %c0_685 = arith.constant 0 : index
    %1079 = vector.load %arg1[%c9_683, %c0_684, %c0_685] : memref<16x8x256xf32, #tpu.memory_space<vmem>>, vector<1x8x256xf32>
    %1080 = vector.shape_cast %1079 : vector<1x8x256xf32> to vector<8x256xf32>
    %c39_686 = arith.constant 39 : index
    %1081 = memref.load %arg2[%c39_686] : memref<90xf32, #tpu.memory_space<smem>>
    %1082 = vector.broadcast %1081 : f32 to vector<8x256xf32>
    %1083 = arith.mulf %1080, %1082 : vector<8x256xf32>
    %1084 = arith.addf %1078, %1083 : vector<8x256xf32>
    %c10_687 = arith.constant 10 : index
    %c0_688 = arith.constant 0 : index
    %c0_689 = arith.constant 0 : index
    %1085 = vector.load %arg1[%c10_687, %c0_688, %c0_689] : memref<16x8x256xf32, #tpu.memory_space<vmem>>, vector<1x8x256xf32>
    %1086 = vector.shape_cast %1085 : vector<1x8x256xf32> to vector<8x256xf32>
    %c40_690 = arith.constant 40 : index
    %1087 = memref.load %arg2[%c40_690] : memref<90xf32, #tpu.memory_space<smem>>
    %1088 = vector.broadcast %1087 : f32 to vector<8x256xf32>
    %1089 = arith.mulf %1086, %1088 : vector<8x256xf32>
    %1090 = arith.addf %1084, %1089 : vector<8x256xf32>
    %c11_691 = arith.constant 11 : index
    %c0_692 = arith.constant 0 : index
    %c0_693 = arith.constant 0 : index
    %1091 = vector.load %arg1[%c11_691, %c0_692, %c0_693] : memref<16x8x256xf32, #tpu.memory_space<vmem>>, vector<1x8x256xf32>
    %1092 = vector.shape_cast %1091 : vector<1x8x256xf32> to vector<8x256xf32>
    %c41_694 = arith.constant 41 : index
    %1093 = memref.load %arg2[%c41_694] : memref<90xf32, #tpu.memory_space<smem>>
    %1094 = vector.broadcast %1093 : f32 to vector<8x256xf32>
    %1095 = arith.mulf %1092, %1094 : vector<8x256xf32>
    %1096 = arith.addf %1090, %1095 : vector<8x256xf32>
    %c13_695 = arith.constant 13 : index
    %c0_696 = arith.constant 0 : index
    %c0_697 = arith.constant 0 : index
    %1097 = vector.load %arg1[%c13_695, %c0_696, %c0_697] : memref<16x8x256xf32, #tpu.memory_space<vmem>>, vector<1x8x256xf32>
    %1098 = vector.shape_cast %1097 : vector<1x8x256xf32> to vector<8x256xf32>
    %c42_698 = arith.constant 42 : index
    %1099 = memref.load %arg2[%c42_698] : memref<90xf32, #tpu.memory_space<smem>>
    %1100 = vector.broadcast %1099 : f32 to vector<8x256xf32>
    %1101 = arith.mulf %1098, %1100 : vector<8x256xf32>
    %1102 = arith.addf %1096, %1101 : vector<8x256xf32>
    %c14_699 = arith.constant 14 : index
    %c0_700 = arith.constant 0 : index
    %c0_701 = arith.constant 0 : index
    %1103 = vector.load %arg1[%c14_699, %c0_700, %c0_701] : memref<16x8x256xf32, #tpu.memory_space<vmem>>, vector<1x8x256xf32>
    %1104 = vector.shape_cast %1103 : vector<1x8x256xf32> to vector<8x256xf32>
    %c43_702 = arith.constant 43 : index
    %1105 = memref.load %arg2[%c43_702] : memref<90xf32, #tpu.memory_space<smem>>
    %1106 = vector.broadcast %1105 : f32 to vector<8x256xf32>
    %1107 = arith.mulf %1104, %1106 : vector<8x256xf32>
    %1108 = arith.addf %1102, %1107 : vector<8x256xf32>
    %c15_703 = arith.constant 15 : index
    %c0_704 = arith.constant 0 : index
    %c0_705 = arith.constant 0 : index
    %1109 = vector.load %arg1[%c15_703, %c0_704, %c0_705] : memref<16x8x256xf32, #tpu.memory_space<vmem>>, vector<1x8x256xf32>
    %1110 = vector.shape_cast %1109 : vector<1x8x256xf32> to vector<8x256xf32>
    %c44_706 = arith.constant 44 : index
    %1111 = memref.load %arg2[%c44_706] : memref<90xf32, #tpu.memory_space<smem>>
    %1112 = vector.broadcast %1111 : f32 to vector<8x256xf32>
    %1113 = arith.mulf %1110, %1112 : vector<8x256xf32>
    %1114 = arith.addf %1108, %1113 : vector<8x256xf32>
    %1115 = arith.maximumf %1061, %1114 : vector<8x256xf32>
    %c4_707 = arith.constant 4 : index
    %1116 = memref.load %arg3[%c4_707] : memref<10xf32, #tpu.memory_space<smem>>
    %1117 = vector.broadcast %1116 : f32 to vector<8x256xf32>
    %1118 = arith.addf %1115, %1117 : vector<8x256xf32>
    %cst_708 = arith.constant 0.000000e+00 : f32
    %1119 = vector.broadcast %cst_708 : f32 to vector<8x256xf32>
    %1120 = arith.maximumf %1118, %1119 : vector<8x256xf32>
    %c1024 = arith.constant 1024 : index
    %c0_709 = arith.constant 0 : index
    %1121 = vector.load %arg4[%c1024, %c0_709] : memref<2560x128xf32, #tpu.memory_space<vmem>>, vector<256x128xf32>
    %cst_710 = arith.constant dense<0.000000e+00> : vector<8x128xf32>
    %1122 = tpu.matmul %1120, %1121, %cst_710 {dimension_numbers = #tpu.dot_dimension_numbers<[1], [0], [0], [1], [0, 0, 1, 1], [], []>} : vector<8x256xf32>, vector<256x128xf32>, vector<8x128xf32> -> vector<8x128xf32>
    %c0_711 = arith.constant 0 : index
    %c0_712 = arith.constant 0 : index
    %1123 = vector.load %arg6[%c0_711, %c0_712] : memref<8x128xf32, #tpu.memory_space<vmem>>, vector<8x128xf32>
    %1124 = arith.addf %1123, %1122 : vector<8x128xf32>
    %c0_713 = arith.constant 0 : index
    %c0_714 = arith.constant 0 : index
    %1125 = vector.load %arg6[%c0_713, %c0_714] : memref<8x128xf32, #tpu.memory_space<vmem>>, vector<8x128xf32>
    tpu.vector_store %arg6[%c0_713, %c0_714], %1124 {strides = array<i32>} : memref<8x128xf32, #tpu.memory_space<vmem>>, vector<8x128xf32>,
    %c0_715 = arith.constant 0 : index
    %c0_716 = arith.constant 0 : index
    %c0_717 = arith.constant 0 : index
    %1126 = vector.load %arg1[%c0_715, %c0_716, %c0_717] : memref<16x8x256xf32, #tpu.memory_space<vmem>>, vector<1x8x256xf32>
    %1127 = vector.shape_cast %1126 : vector<1x8x256xf32> to vector<8x256xf32>
    %c45 = arith.constant 45 : index
    %1128 = memref.load %arg2[%c45] : memref<90xf32, #tpu.memory_space<smem>>
    %1129 = vector.broadcast %1128 : f32 to vector<8x256xf32>
    %1130 = arith.mulf %1127, %1129 : vector<8x256xf32>
    %c1_718 = arith.constant 1 : index
    %c0_719 = arith.constant 0 : index
    %c0_720 = arith.constant 0 : index
    %1131 = vector.load %arg1[%c1_718, %c0_719, %c0_720] : memref<16x8x256xf32, #tpu.memory_space<vmem>>, vector<1x8x256xf32>
    %1132 = vector.shape_cast %1131 : vector<1x8x256xf32> to vector<8x256xf32>
    %c46 = arith.constant 46 : index
    %1133 = memref.load %arg2[%c46] : memref<90xf32, #tpu.memory_space<smem>>
    %1134 = vector.broadcast %1133 : f32 to vector<8x256xf32>
    %1135 = arith.mulf %1132, %1134 : vector<8x256xf32>
    %1136 = arith.addf %1130, %1135 : vector<8x256xf32>
    %c2_721 = arith.constant 2 : index
    %c0_722 = arith.constant 0 : index
    %c0_723 = arith.constant 0 : index
    %1137 = vector.load %arg1[%c2_721, %c0_722, %c0_723] : memref<16x8x256xf32, #tpu.memory_space<vmem>>, vector<1x8x256xf32>
    %1138 = vector.shape_cast %1137 : vector<1x8x256xf32> to vector<8x256xf32>
    %c47 = arith.constant 47 : index
    %1139 = memref.load %arg2[%c47] : memref<90xf32, #tpu.memory_space<smem>>
    %1140 = vector.broadcast %1139 : f32 to vector<8x256xf32>
    %1141 = arith.mulf %1138, %1140 : vector<8x256xf32>
    %1142 = arith.addf %1136, %1141 : vector<8x256xf32>
    %c4_724 = arith.constant 4 : index
    %c0_725 = arith.constant 0 : index
    %c0_726 = arith.constant 0 : index
    %1143 = vector.load %arg1[%c4_724, %c0_725, %c0_726] : memref<16x8x256xf32, #tpu.memory_space<vmem>>, vector<1x8x256xf32>
    %1144 = vector.shape_cast %1143 : vector<1x8x256xf32> to vector<8x256xf32>
    %c48 = arith.constant 48 : index
    %1145 = memref.load %arg2[%c48] : memref<90xf32, #tpu.memory_space<smem>>
    %1146 = vector.broadcast %1145 : f32 to vector<8x256xf32>
    %1147 = arith.mulf %1144, %1146 : vector<8x256xf32>
    %1148 = arith.addf %1142, %1147 : vector<8x256xf32>
    %c5_727 = arith.constant 5 : index
    %c0_728 = arith.constant 0 : index
    %c0_729 = arith.constant 0 : index
    %1149 = vector.load %arg1[%c5_727, %c0_728, %c0_729] : memref<16x8x256xf32, #tpu.memory_space<vmem>>, vector<1x8x256xf32>
    %1150 = vector.shape_cast %1149 : vector<1x8x256xf32> to vector<8x256xf32>
    %c49 = arith.constant 49 : index
    %1151 = memref.load %arg2[%c49] : memref<90xf32, #tpu.memory_space<smem>>
    %1152 = vector.broadcast %1151 : f32 to vector<8x256xf32>
    %1153 = arith.mulf %1150, %1152 : vector<8x256xf32>
    %1154 = arith.addf %1148, %1153 : vector<8x256xf32>
    %c6_730 = arith.constant 6 : index
    %c0_731 = arith.constant 0 : index
    %c0_732 = arith.constant 0 : index
    %1155 = vector.load %arg1[%c6_730, %c0_731, %c0_732] : memref<16x8x256xf32, #tpu.memory_space<vmem>>, vector<1x8x256xf32>
    %1156 = vector.shape_cast %1155 : vector<1x8x256xf32> to vector<8x256xf32>
    %c50 = arith.constant 50 : index
    %1157 = memref.load %arg2[%c50] : memref<90xf32, #tpu.memory_space<smem>>
    %1158 = vector.broadcast %1157 : f32 to vector<8x256xf32>
    %1159 = arith.mulf %1156, %1158 : vector<8x256xf32>
    %1160 = arith.addf %1154, %1159 : vector<8x256xf32>
    %c8_733 = arith.constant 8 : index
    %c0_734 = arith.constant 0 : index
    %c0_735 = arith.constant 0 : index
    %1161 = vector.load %arg1[%c8_733, %c0_734, %c0_735] : memref<16x8x256xf32, #tpu.memory_space<vmem>>, vector<1x8x256xf32>
    %1162 = vector.shape_cast %1161 : vector<1x8x256xf32> to vector<8x256xf32>
    %c51 = arith.constant 51 : index
    %1163 = memref.load %arg2[%c51] : memref<90xf32, #tpu.memory_space<smem>>
    %1164 = vector.broadcast %1163 : f32 to vector<8x256xf32>
    %1165 = arith.mulf %1162, %1164 : vector<8x256xf32>
    %1166 = arith.addf %1160, %1165 : vector<8x256xf32>
    %c9_736 = arith.constant 9 : index
    %c0_737 = arith.constant 0 : index
    %c0_738 = arith.constant 0 : index
    %1167 = vector.load %arg1[%c9_736, %c0_737, %c0_738] : memref<16x8x256xf32, #tpu.memory_space<vmem>>, vector<1x8x256xf32>
    %1168 = vector.shape_cast %1167 : vector<1x8x256xf32> to vector<8x256xf32>
    %c52 = arith.constant 52 : index
    %1169 = memref.load %arg2[%c52] : memref<90xf32, #tpu.memory_space<smem>>
    %1170 = vector.broadcast %1169 : f32 to vector<8x256xf32>
    %1171 = arith.mulf %1168, %1170 : vector<8x256xf32>
    %1172 = arith.addf %1166, %1171 : vector<8x256xf32>
    %c10_739 = arith.constant 10 : index
    %c0_740 = arith.constant 0 : index
    %c0_741 = arith.constant 0 : index
    %1173 = vector.load %arg1[%c10_739, %c0_740, %c0_741] : memref<16x8x256xf32, #tpu.memory_space<vmem>>, vector<1x8x256xf32>
    %1174 = vector.shape_cast %1173 : vector<1x8x256xf32> to vector<8x256xf32>
    %c53 = arith.constant 53 : index
    %1175 = memref.load %arg2[%c53] : memref<90xf32, #tpu.memory_space<smem>>
    %1176 = vector.broadcast %1175 : f32 to vector<8x256xf32>
    %1177 = arith.mulf %1174, %1176 : vector<8x256xf32>
    %1178 = arith.addf %1172, %1177 : vector<8x256xf32>
    %c1_742 = arith.constant 1 : index
    %c0_743 = arith.constant 0 : index
    %c0_744 = arith.constant 0 : index
    %1179 = vector.load %arg1[%c1_742, %c0_743, %c0_744] : memref<16x8x256xf32, #tpu.memory_space<vmem>>, vector<1x8x256xf32>
    %1180 = vector.shape_cast %1179 : vector<1x8x256xf32> to vector<8x256xf32>
    %c45_745 = arith.constant 45 : index
    %1181 = memref.load %arg2[%c45_745] : memref<90xf32, #tpu.memory_space<smem>>
    %1182 = vector.broadcast %1181 : f32 to vector<8x256xf32>
    %1183 = arith.mulf %1180, %1182 : vector<8x256xf32>
    %c2_746 = arith.constant 2 : index
    %c0_747 = arith.constant 0 : index
    %c0_748 = arith.constant 0 : index
    %1184 = vector.load %arg1[%c2_746, %c0_747, %c0_748] : memref<16x8x256xf32, #tpu.memory_space<vmem>>, vector<1x8x256xf32>
    %1185 = vector.shape_cast %1184 : vector<1x8x256xf32> to vector<8x256xf32>
    %c46_749 = arith.constant 46 : index
    %1186 = memref.load %arg2[%c46_749] : memref<90xf32, #tpu.memory_space<smem>>
    %1187 = vector.broadcast %1186 : f32 to vector<8x256xf32>
    %1188 = arith.mulf %1185, %1187 : vector<8x256xf32>
    %1189 = arith.addf %1183, %1188 : vector<8x256xf32>
    %c3_750 = arith.constant 3 : index
    %c0_751 = arith.constant 0 : index
    %c0_752 = arith.constant 0 : index
    %1190 = vector.load %arg1[%c3_750, %c0_751, %c0_752] : memref<16x8x256xf32, #tpu.memory_space<vmem>>, vector<1x8x256xf32>
    %1191 = vector.shape_cast %1190 : vector<1x8x256xf32> to vector<8x256xf32>
    %c47_753 = arith.constant 47 : index
    %1192 = memref.load %arg2[%c47_753] : memref<90xf32, #tpu.memory_space<smem>>
    %1193 = vector.broadcast %1192 : f32 to vector<8x256xf32>
    %1194 = arith.mulf %1191, %1193 : vector<8x256xf32>
    %1195 = arith.addf %1189, %1194 : vector<8x256xf32>
    %c5_754 = arith.constant 5 : index
    %c0_755 = arith.constant 0 : index
    %c0_756 = arith.constant 0 : index
    %1196 = vector.load %arg1[%c5_754, %c0_755, %c0_756] : memref<16x8x256xf32, #tpu.memory_space<vmem>>, vector<1x8x256xf32>
    %1197 = vector.shape_cast %1196 : vector<1x8x256xf32> to vector<8x256xf32>
    %c48_757 = arith.constant 48 : index
    %1198 = memref.load %arg2[%c48_757] : memref<90xf32, #tpu.memory_space<smem>>
    %1199 = vector.broadcast %1198 : f32 to vector<8x256xf32>
    %1200 = arith.mulf %1197, %1199 : vector<8x256xf32>
    %1201 = arith.addf %1195, %1200 : vector<8x256xf32>
    %c6_758 = arith.constant 6 : index
    %c0_759 = arith.constant 0 : index
    %c0_760 = arith.constant 0 : index
    %1202 = vector.load %arg1[%c6_758, %c0_759, %c0_760] : memref<16x8x256xf32, #tpu.memory_space<vmem>>, vector<1x8x256xf32>
    %1203 = vector.shape_cast %1202 : vector<1x8x256xf32> to vector<8x256xf32>
    %c49_761 = arith.constant 49 : index
    %1204 = memref.load %arg2[%c49_761] : memref<90xf32, #tpu.memory_space<smem>>
    %1205 = vector.broadcast %1204 : f32 to vector<8x256xf32>
    %1206 = arith.mulf %1203, %1205 : vector<8x256xf32>
    %1207 = arith.addf %1201, %1206 : vector<8x256xf32>
    %c7_762 = arith.constant 7 : index
    %c0_763 = arith.constant 0 : index
    %c0_764 = arith.constant 0 : index
    %1208 = vector.load %arg1[%c7_762, %c0_763, %c0_764] : memref<16x8x256xf32, #tpu.memory_space<vmem>>, vector<1x8x256xf32>
    %1209 = vector.shape_cast %1208 : vector<1x8x256xf32> to vector<8x256xf32>
    %c50_765 = arith.constant 50 : index
    %1210 = memref.load %arg2[%c50_765] : memref<90xf32, #tpu.memory_space<smem>>
    %1211 = vector.broadcast %1210 : f32 to vector<8x256xf32>
    %1212 = arith.mulf %1209, %1211 : vector<8x256xf32>
    %1213 = arith.addf %1207, %1212 : vector<8x256xf32>
    %c9_766 = arith.constant 9 : index
    %c0_767 = arith.constant 0 : index
    %c0_768 = arith.constant 0 : index
    %1214 = vector.load %arg1[%c9_766, %c0_767, %c0_768] : memref<16x8x256xf32, #tpu.memory_space<vmem>>, vector<1x8x256xf32>
    %1215 = vector.shape_cast %1214 : vector<1x8x256xf32> to vector<8x256xf32>
    %c51_769 = arith.constant 51 : index
    %1216 = memref.load %arg2[%c51_769] : memref<90xf32, #tpu.memory_space<smem>>
    %1217 = vector.broadcast %1216 : f32 to vector<8x256xf32>
    %1218 = arith.mulf %1215, %1217 : vector<8x256xf32>
    %1219 = arith.addf %1213, %1218 : vector<8x256xf32>
    %c10_770 = arith.constant 10 : index
    %c0_771 = arith.constant 0 : index
    %c0_772 = arith.constant 0 : index
    %1220 = vector.load %arg1[%c10_770, %c0_771, %c0_772] : memref<16x8x256xf32, #tpu.memory_space<vmem>>, vector<1x8x256xf32>
    %1221 = vector.shape_cast %1220 : vector<1x8x256xf32> to vector<8x256xf32>
    %c52_773 = arith.constant 52 : index
    %1222 = memref.load %arg2[%c52_773] : memref<90xf32, #tpu.memory_space<smem>>
    %1223 = vector.broadcast %1222 : f32 to vector<8x256xf32>
    %1224 = arith.mulf %1221, %1223 : vector<8x256xf32>
    %1225 = arith.addf %1219, %1224 : vector<8x256xf32>
    %c11_774 = arith.constant 11 : index
    %c0_775 = arith.constant 0 : index
    %c0_776 = arith.constant 0 : index
    %1226 = vector.load %arg1[%c11_774, %c0_775, %c0_776] : memref<16x8x256xf32, #tpu.memory_space<vmem>>, vector<1x8x256xf32>
    %1227 = vector.shape_cast %1226 : vector<1x8x256xf32> to vector<8x256xf32>
    %c53_777 = arith.constant 53 : index
    %1228 = memref.load %arg2[%c53_777] : memref<90xf32, #tpu.memory_space<smem>>
    %1229 = vector.broadcast %1228 : f32 to vector<8x256xf32>
    %1230 = arith.mulf %1227, %1229 : vector<8x256xf32>
    %1231 = arith.addf %1225, %1230 : vector<8x256xf32>
    %1232 = arith.maximumf %1178, %1231 : vector<8x256xf32>
    %c4_778 = arith.constant 4 : index
    %c0_779 = arith.constant 0 : index
    %c0_780 = arith.constant 0 : index
    %1233 = vector.load %arg1[%c4_778, %c0_779, %c0_780] : memref<16x8x256xf32, #tpu.memory_space<vmem>>, vector<1x8x256xf32>
    %1234 = vector.shape_cast %1233 : vector<1x8x256xf32> to vector<8x256xf32>
    %c45_781 = arith.constant 45 : index
    %1235 = memref.load %arg2[%c45_781] : memref<90xf32, #tpu.memory_space<smem>>
    %1236 = vector.broadcast %1235 : f32 to vector<8x256xf32>
    %1237 = arith.mulf %1234, %1236 : vector<8x256xf32>
    %c5_782 = arith.constant 5 : index
    %c0_783 = arith.constant 0 : index
    %c0_784 = arith.constant 0 : index
    %1238 = vector.load %arg1[%c5_782, %c0_783, %c0_784] : memref<16x8x256xf32, #tpu.memory_space<vmem>>, vector<1x8x256xf32>
    %1239 = vector.shape_cast %1238 : vector<1x8x256xf32> to vector<8x256xf32>
    %c46_785 = arith.constant 46 : index
    %1240 = memref.load %arg2[%c46_785] : memref<90xf32, #tpu.memory_space<smem>>
    %1241 = vector.broadcast %1240 : f32 to vector<8x256xf32>
    %1242 = arith.mulf %1239, %1241 : vector<8x256xf32>
    %1243 = arith.addf %1237, %1242 : vector<8x256xf32>
    %c6_786 = arith.constant 6 : index
    %c0_787 = arith.constant 0 : index
    %c0_788 = arith.constant 0 : index
    %1244 = vector.load %arg1[%c6_786, %c0_787, %c0_788] : memref<16x8x256xf32, #tpu.memory_space<vmem>>, vector<1x8x256xf32>
    %1245 = vector.shape_cast %1244 : vector<1x8x256xf32> to vector<8x256xf32>
    %c47_789 = arith.constant 47 : index
    %1246 = memref.load %arg2[%c47_789] : memref<90xf32, #tpu.memory_space<smem>>
    %1247 = vector.broadcast %1246 : f32 to vector<8x256xf32>
    %1248 = arith.mulf %1245, %1247 : vector<8x256xf32>
    %1249 = arith.addf %1243, %1248 : vector<8x256xf32>
    %c8_790 = arith.constant 8 : index
    %c0_791 = arith.constant 0 : index
    %c0_792 = arith.constant 0 : index
    %1250 = vector.load %arg1[%c8_790, %c0_791, %c0_792] : memref<16x8x256xf32, #tpu.memory_space<vmem>>, vector<1x8x256xf32>
    %1251 = vector.shape_cast %1250 : vector<1x8x256xf32> to vector<8x256xf32>
    %c48_793 = arith.constant 48 : index
    %1252 = memref.load %arg2[%c48_793] : memref<90xf32, #tpu.memory_space<smem>>
    %1253 = vector.broadcast %1252 : f32 to vector<8x256xf32>
    %1254 = arith.mulf %1251, %1253 : vector<8x256xf32>
    %1255 = arith.addf %1249, %1254 : vector<8x256xf32>
    %c9_794 = arith.constant 9 : index
    %c0_795 = arith.constant 0 : index
    %c0_796 = arith.constant 0 : index
    %1256 = vector.load %arg1[%c9_794, %c0_795, %c0_796] : memref<16x8x256xf32, #tpu.memory_space<vmem>>, vector<1x8x256xf32>
    %1257 = vector.shape_cast %1256 : vector<1x8x256xf32> to vector<8x256xf32>
    %c49_797 = arith.constant 49 : index
    %1258 = memref.load %arg2[%c49_797] : memref<90xf32, #tpu.memory_space<smem>>
    %1259 = vector.broadcast %1258 : f32 to vector<8x256xf32>
    %1260 = arith.mulf %1257, %1259 : vector<8x256xf32>
    %1261 = arith.addf %1255, %1260 : vector<8x256xf32>
    %c10_798 = arith.constant 10 : index
    %c0_799 = arith.constant 0 : index
    %c0_800 = arith.constant 0 : index
    %1262 = vector.load %arg1[%c10_798, %c0_799, %c0_800] : memref<16x8x256xf32, #tpu.memory_space<vmem>>, vector<1x8x256xf32>
    %1263 = vector.shape_cast %1262 : vector<1x8x256xf32> to vector<8x256xf32>
    %c50_801 = arith.constant 50 : index
    %1264 = memref.load %arg2[%c50_801] : memref<90xf32, #tpu.memory_space<smem>>
    %1265 = vector.broadcast %1264 : f32 to vector<8x256xf32>
    %1266 = arith.mulf %1263, %1265 : vector<8x256xf32>
    %1267 = arith.addf %1261, %1266 : vector<8x256xf32>
    %c12_802 = arith.constant 12 : index
    %c0_803 = arith.constant 0 : index
    %c0_804 = arith.constant 0 : index
    %1268 = vector.load %arg1[%c12_802, %c0_803, %c0_804] : memref<16x8x256xf32, #tpu.memory_space<vmem>>, vector<1x8x256xf32>
    %1269 = vector.shape_cast %1268 : vector<1x8x256xf32> to vector<8x256xf32>
    %c51_805 = arith.constant 51 : index
    %1270 = memref.load %arg2[%c51_805] : memref<90xf32, #tpu.memory_space<smem>>
    %1271 = vector.broadcast %1270 : f32 to vector<8x256xf32>
    %1272 = arith.mulf %1269, %1271 : vector<8x256xf32>
    %1273 = arith.addf %1267, %1272 : vector<8x256xf32>
    %c13_806 = arith.constant 13 : index
    %c0_807 = arith.constant 0 : index
    %c0_808 = arith.constant 0 : index
    %1274 = vector.load %arg1[%c13_806, %c0_807, %c0_808] : memref<16x8x256xf32, #tpu.memory_space<vmem>>, vector<1x8x256xf32>
    %1275 = vector.shape_cast %1274 : vector<1x8x256xf32> to vector<8x256xf32>
    %c52_809 = arith.constant 52 : index
    %1276 = memref.load %arg2[%c52_809] : memref<90xf32, #tpu.memory_space<smem>>
    %1277 = vector.broadcast %1276 : f32 to vector<8x256xf32>
    %1278 = arith.mulf %1275, %1277 : vector<8x256xf32>
    %1279 = arith.addf %1273, %1278 : vector<8x256xf32>
    %c14_810 = arith.constant 14 : index
    %c0_811 = arith.constant 0 : index
    %c0_812 = arith.constant 0 : index
    %1280 = vector.load %arg1[%c14_810, %c0_811, %c0_812] : memref<16x8x256xf32, #tpu.memory_space<vmem>>, vector<1x8x256xf32>
    %1281 = vector.shape_cast %1280 : vector<1x8x256xf32> to vector<8x256xf32>
    %c53_813 = arith.constant 53 : index
    %1282 = memref.load %arg2[%c53_813] : memref<90xf32, #tpu.memory_space<smem>>
    %1283 = vector.broadcast %1282 : f32 to vector<8x256xf32>
    %1284 = arith.mulf %1281, %1283 : vector<8x256xf32>
    %1285 = arith.addf %1279, %1284 : vector<8x256xf32>
    %1286 = arith.maximumf %1232, %1285 : vector<8x256xf32>
    %c5_814 = arith.constant 5 : index
    %c0_815 = arith.constant 0 : index
    %c0_816 = arith.constant 0 : index
    %1287 = vector.load %arg1[%c5_814, %c0_815, %c0_816] : memref<16x8x256xf32, #tpu.memory_space<vmem>>, vector<1x8x256xf32>
    %1288 = vector.shape_cast %1287 : vector<1x8x256xf32> to vector<8x256xf32>
    %c45_817 = arith.constant 45 : index
    %1289 = memref.load %arg2[%c45_817] : memref<90xf32, #tpu.memory_space<smem>>
    %1290 = vector.broadcast %1289 : f32 to vector<8x256xf32>
    %1291 = arith.mulf %1288, %1290 : vector<8x256xf32>
    %c6_818 = arith.constant 6 : index
    %c0_819 = arith.constant 0 : index
    %c0_820 = arith.constant 0 : index
    %1292 = vector.load %arg1[%c6_818, %c0_819, %c0_820] : memref<16x8x256xf32, #tpu.memory_space<vmem>>, vector<1x8x256xf32>
    %1293 = vector.shape_cast %1292 : vector<1x8x256xf32> to vector<8x256xf32>
    %c46_821 = arith.constant 46 : index
    %1294 = memref.load %arg2[%c46_821] : memref<90xf32, #tpu.memory_space<smem>>
    %1295 = vector.broadcast %1294 : f32 to vector<8x256xf32>
    %1296 = arith.mulf %1293, %1295 : vector<8x256xf32>
    %1297 = arith.addf %1291, %1296 : vector<8x256xf32>
    %c7_822 = arith.constant 7 : index
    %c0_823 = arith.constant 0 : index
    %c0_824 = arith.constant 0 : index
    %1298 = vector.load %arg1[%c7_822, %c0_823, %c0_824] : memref<16x8x256xf32, #tpu.memory_space<vmem>>, vector<1x8x256xf32>
    %1299 = vector.shape_cast %1298 : vector<1x8x256xf32> to vector<8x256xf32>
    %c47_825 = arith.constant 47 : index
    %1300 = memref.load %arg2[%c47_825] : memref<90xf32, #tpu.memory_space<smem>>
    %1301 = vector.broadcast %1300 : f32 to vector<8x256xf32>
    %1302 = arith.mulf %1299, %1301 : vector<8x256xf32>
    %1303 = arith.addf %1297, %1302 : vector<8x256xf32>
    %c9_826 = arith.constant 9 : index
    %c0_827 = arith.constant 0 : index
    %c0_828 = arith.constant 0 : index
    %1304 = vector.load %arg1[%c9_826, %c0_827, %c0_828] : memref<16x8x256xf32, #tpu.memory_space<vmem>>, vector<1x8x256xf32>
    %1305 = vector.shape_cast %1304 : vector<1x8x256xf32> to vector<8x256xf32>
    %c48_829 = arith.constant 48 : index
    %1306 = memref.load %arg2[%c48_829] : memref<90xf32, #tpu.memory_space<smem>>
    %1307 = vector.broadcast %1306 : f32 to vector<8x256xf32>
    %1308 = arith.mulf %1305, %1307 : vector<8x256xf32>
    %1309 = arith.addf %1303, %1308 : vector<8x256xf32>
    %c10_830 = arith.constant 10 : index
    %c0_831 = arith.constant 0 : index
    %c0_832 = arith.constant 0 : index
    %1310 = vector.load %arg1[%c10_830, %c0_831, %c0_832] : memref<16x8x256xf32, #tpu.memory_space<vmem>>, vector<1x8x256xf32>
    %1311 = vector.shape_cast %1310 : vector<1x8x256xf32> to vector<8x256xf32>
    %c49_833 = arith.constant 49 : index
    %1312 = memref.load %arg2[%c49_833] : memref<90xf32, #tpu.memory_space<smem>>
    %1313 = vector.broadcast %1312 : f32 to vector<8x256xf32>
    %1314 = arith.mulf %1311, %1313 : vector<8x256xf32>
    %1315 = arith.addf %1309, %1314 : vector<8x256xf32>
    %c11_834 = arith.constant 11 : index
    %c0_835 = arith.constant 0 : index
    %c0_836 = arith.constant 0 : index
    %1316 = vector.load %arg1[%c11_834, %c0_835, %c0_836] : memref<16x8x256xf32, #tpu.memory_space<vmem>>, vector<1x8x256xf32>
    %1317 = vector.shape_cast %1316 : vector<1x8x256xf32> to vector<8x256xf32>
    %c50_837 = arith.constant 50 : index
    %1318 = memref.load %arg2[%c50_837] : memref<90xf32, #tpu.memory_space<smem>>
    %1319 = vector.broadcast %1318 : f32 to vector<8x256xf32>
    %1320 = arith.mulf %1317, %1319 : vector<8x256xf32>
    %1321 = arith.addf %1315, %1320 : vector<8x256xf32>
    %c13_838 = arith.constant 13 : index
    %c0_839 = arith.constant 0 : index
    %c0_840 = arith.constant 0 : index
    %1322 = vector.load %arg1[%c13_838, %c0_839, %c0_840] : memref<16x8x256xf32, #tpu.memory_space<vmem>>, vector<1x8x256xf32>
    %1323 = vector.shape_cast %1322 : vector<1x8x256xf32> to vector<8x256xf32>
    %c51_841 = arith.constant 51 : index
    %1324 = memref.load %arg2[%c51_841] : memref<90xf32, #tpu.memory_space<smem>>
    %1325 = vector.broadcast %1324 : f32 to vector<8x256xf32>
    %1326 = arith.mulf %1323, %1325 : vector<8x256xf32>
    %1327 = arith.addf %1321, %1326 : vector<8x256xf32>
    %c14_842 = arith.constant 14 : index
    %c0_843 = arith.constant 0 : index
    %c0_844 = arith.constant 0 : index
    %1328 = vector.load %arg1[%c14_842, %c0_843, %c0_844] : memref<16x8x256xf32, #tpu.memory_space<vmem>>, vector<1x8x256xf32>
    %1329 = vector.shape_cast %1328 : vector<1x8x256xf32> to vector<8x256xf32>
    %c52_845 = arith.constant 52 : index
    %1330 = memref.load %arg2[%c52_845] : memref<90xf32, #tpu.memory_space<smem>>
    %1331 = vector.broadcast %1330 : f32 to vector<8x256xf32>
    %1332 = arith.mulf %1329, %1331 : vector<8x256xf32>
    %1333 = arith.addf %1327, %1332 : vector<8x256xf32>
    %c15_846 = arith.constant 15 : index
    %c0_847 = arith.constant 0 : index
    %c0_848 = arith.constant 0 : index
    %1334 = vector.load %arg1[%c15_846, %c0_847, %c0_848] : memref<16x8x256xf32, #tpu.memory_space<vmem>>, vector<1x8x256xf32>
    %1335 = vector.shape_cast %1334 : vector<1x8x256xf32> to vector<8x256xf32>
    %c53_849 = arith.constant 53 : index
    %1336 = memref.load %arg2[%c53_849] : memref<90xf32, #tpu.memory_space<smem>>
    %1337 = vector.broadcast %1336 : f32 to vector<8x256xf32>
    %1338 = arith.mulf %1335, %1337 : vector<8x256xf32>
    %1339 = arith.addf %1333, %1338 : vector<8x256xf32>
    %1340 = arith.maximumf %1286, %1339 : vector<8x256xf32>
    %c5_850 = arith.constant 5 : index
    %1341 = memref.load %arg3[%c5_850] : memref<10xf32, #tpu.memory_space<smem>>
    %1342 = vector.broadcast %1341 : f32 to vector<8x256xf32>
    %1343 = arith.addf %1340, %1342 : vector<8x256xf32>
    %cst_851 = arith.constant 0.000000e+00 : f32
    %1344 = vector.broadcast %cst_851 : f32 to vector<8x256xf32>
    %1345 = arith.maximumf %1343, %1344 : vector<8x256xf32>
    %c1280 = arith.constant 1280 : index
    %c0_852 = arith.constant 0 : index
    %1346 = vector.load %arg4[%c1280, %c0_852] : memref<2560x128xf32, #tpu.memory_space<vmem>>, vector<256x128xf32>
    %cst_853 = arith.constant dense<0.000000e+00> : vector<8x128xf32>
    %1347 = tpu.matmul %1345, %1346, %cst_853 {dimension_numbers = #tpu.dot_dimension_numbers<[1], [0], [0], [1], [0, 0, 1, 1], [], []>} : vector<8x256xf32>, vector<256x128xf32>, vector<8x128xf32> -> vector<8x128xf32>
    %c0_854 = arith.constant 0 : index
    %c0_855 = arith.constant 0 : index
    %1348 = vector.load %arg6[%c0_854, %c0_855] : memref<8x128xf32, #tpu.memory_space<vmem>>, vector<8x128xf32>
    %1349 = arith.addf %1348, %1347 : vector<8x128xf32>
    %c0_856 = arith.constant 0 : index
    %c0_857 = arith.constant 0 : index
    %1350 = vector.load %arg6[%c0_856, %c0_857] : memref<8x128xf32, #tpu.memory_space<vmem>>, vector<8x128xf32>
    tpu.vector_store %arg6[%c0_856, %c0_857], %1349 {strides = array<i32>} : memref<8x128xf32, #tpu.memory_space<vmem>>, vector<8x128xf32>,
    %c0_858 = arith.constant 0 : index
    %c0_859 = arith.constant 0 : index
    %c0_860 = arith.constant 0 : index
    %1351 = vector.load %arg1[%c0_858, %c0_859, %c0_860] : memref<16x8x256xf32, #tpu.memory_space<vmem>>, vector<1x8x256xf32>
    %1352 = vector.shape_cast %1351 : vector<1x8x256xf32> to vector<8x256xf32>
    %c54 = arith.constant 54 : index
    %1353 = memref.load %arg2[%c54] : memref<90xf32, #tpu.memory_space<smem>>
    %1354 = vector.broadcast %1353 : f32 to vector<8x256xf32>
    %1355 = arith.mulf %1352, %1354 : vector<8x256xf32>
    %c1_861 = arith.constant 1 : index
    %c0_862 = arith.constant 0 : index
    %c0_863 = arith.constant 0 : index
    %1356 = vector.load %arg1[%c1_861, %c0_862, %c0_863] : memref<16x8x256xf32, #tpu.memory_space<vmem>>, vector<1x8x256xf32>
    %1357 = vector.shape_cast %1356 : vector<1x8x256xf32> to vector<8x256xf32>
    %c55 = arith.constant 55 : index
    %1358 = memref.load %arg2[%c55] : memref<90xf32, #tpu.memory_space<smem>>
    %1359 = vector.broadcast %1358 : f32 to vector<8x256xf32>
    %1360 = arith.mulf %1357, %1359 : vector<8x256xf32>
    %1361 = arith.addf %1355, %1360 : vector<8x256xf32>
    %c2_864 = arith.constant 2 : index
    %c0_865 = arith.constant 0 : index
    %c0_866 = arith.constant 0 : index
    %1362 = vector.load %arg1[%c2_864, %c0_865, %c0_866] : memref<16x8x256xf32, #tpu.memory_space<vmem>>, vector<1x8x256xf32>
    %1363 = vector.shape_cast %1362 : vector<1x8x256xf32> to vector<8x256xf32>
    %c56 = arith.constant 56 : index
    %1364 = memref.load %arg2[%c56] : memref<90xf32, #tpu.memory_space<smem>>
    %1365 = vector.broadcast %1364 : f32 to vector<8x256xf32>
    %1366 = arith.mulf %1363, %1365 : vector<8x256xf32>
    %1367 = arith.addf %1361, %1366 : vector<8x256xf32>
    %c4_867 = arith.constant 4 : index
    %c0_868 = arith.constant 0 : index
    %c0_869 = arith.constant 0 : index
    %1368 = vector.load %arg1[%c4_867, %c0_868, %c0_869] : memref<16x8x256xf32, #tpu.memory_space<vmem>>, vector<1x8x256xf32>
    %1369 = vector.shape_cast %1368 : vector<1x8x256xf32> to vector<8x256xf32>
    %c57 = arith.constant 57 : index
    %1370 = memref.load %arg2[%c57] : memref<90xf32, #tpu.memory_space<smem>>
    %1371 = vector.broadcast %1370 : f32 to vector<8x256xf32>
    %1372 = arith.mulf %1369, %1371 : vector<8x256xf32>
    %1373 = arith.addf %1367, %1372 : vector<8x256xf32>
    %c5_870 = arith.constant 5 : index
    %c0_871 = arith.constant 0 : index
    %c0_872 = arith.constant 0 : index
    %1374 = vector.load %arg1[%c5_870, %c0_871, %c0_872] : memref<16x8x256xf32, #tpu.memory_space<vmem>>, vector<1x8x256xf32>
    %1375 = vector.shape_cast %1374 : vector<1x8x256xf32> to vector<8x256xf32>
    %c58 = arith.constant 58 : index
    %1376 = memref.load %arg2[%c58] : memref<90xf32, #tpu.memory_space<smem>>
    %1377 = vector.broadcast %1376 : f32 to vector<8x256xf32>
    %1378 = arith.mulf %1375, %1377 : vector<8x256xf32>
    %1379 = arith.addf %1373, %1378 : vector<8x256xf32>
    %c6_873 = arith.constant 6 : index
    %c0_874 = arith.constant 0 : index
    %c0_875 = arith.constant 0 : index
    %1380 = vector.load %arg1[%c6_873, %c0_874, %c0_875] : memref<16x8x256xf32, #tpu.memory_space<vmem>>, vector<1x8x256xf32>
    %1381 = vector.shape_cast %1380 : vector<1x8x256xf32> to vector<8x256xf32>
    %c59 = arith.constant 59 : index
    %1382 = memref.load %arg2[%c59] : memref<90xf32, #tpu.memory_space<smem>>
    %1383 = vector.broadcast %1382 : f32 to vector<8x256xf32>
    %1384 = arith.mulf %1381, %1383 : vector<8x256xf32>
    %1385 = arith.addf %1379, %1384 : vector<8x256xf32>
    %c8_876 = arith.constant 8 : index
    %c0_877 = arith.constant 0 : index
    %c0_878 = arith.constant 0 : index
    %1386 = vector.load %arg1[%c8_876, %c0_877, %c0_878] : memref<16x8x256xf32, #tpu.memory_space<vmem>>, vector<1x8x256xf32>
    %1387 = vector.shape_cast %1386 : vector<1x8x256xf32> to vector<8x256xf32>
    %c60 = arith.constant 60 : index
    %1388 = memref.load %arg2[%c60] : memref<90xf32, #tpu.memory_space<smem>>
    %1389 = vector.broadcast %1388 : f32 to vector<8x256xf32>
    %1390 = arith.mulf %1387, %1389 : vector<8x256xf32>
    %1391 = arith.addf %1385, %1390 : vector<8x256xf32>
    %c9_879 = arith.constant 9 : index
    %c0_880 = arith.constant 0 : index
    %c0_881 = arith.constant 0 : index
    %1392 = vector.load %arg1[%c9_879, %c0_880, %c0_881] : memref<16x8x256xf32, #tpu.memory_space<vmem>>, vector<1x8x256xf32>
    %1393 = vector.shape_cast %1392 : vector<1x8x256xf32> to vector<8x256xf32>
    %c61 = arith.constant 61 : index
    %1394 = memref.load %arg2[%c61] : memref<90xf32, #tpu.memory_space<smem>>
    %1395 = vector.broadcast %1394 : f32 to vector<8x256xf32>
    %1396 = arith.mulf %1393, %1395 : vector<8x256xf32>
    %1397 = arith.addf %1391, %1396 : vector<8x256xf32>
    %c10_882 = arith.constant 10 : index
    %c0_883 = arith.constant 0 : index
    %c0_884 = arith.constant 0 : index
    %1398 = vector.load %arg1[%c10_882, %c0_883, %c0_884] : memref<16x8x256xf32, #tpu.memory_space<vmem>>, vector<1x8x256xf32>
    %1399 = vector.shape_cast %1398 : vector<1x8x256xf32> to vector<8x256xf32>
    %c62 = arith.constant 62 : index
    %1400 = memref.load %arg2[%c62] : memref<90xf32, #tpu.memory_space<smem>>
    %1401 = vector.broadcast %1400 : f32 to vector<8x256xf32>
    %1402 = arith.mulf %1399, %1401 : vector<8x256xf32>
    %1403 = arith.addf %1397, %1402 : vector<8x256xf32>
    %c1_885 = arith.constant 1 : index
    %c0_886 = arith.constant 0 : index
    %c0_887 = arith.constant 0 : index
    %1404 = vector.load %arg1[%c1_885, %c0_886, %c0_887] : memref<16x8x256xf32, #tpu.memory_space<vmem>>, vector<1x8x256xf32>
    %1405 = vector.shape_cast %1404 : vector<1x8x256xf32> to vector<8x256xf32>
    %c54_888 = arith.constant 54 : index
    %1406 = memref.load %arg2[%c54_888] : memref<90xf32, #tpu.memory_space<smem>>
    %1407 = vector.broadcast %1406 : f32 to vector<8x256xf32>
    %1408 = arith.mulf %1405, %1407 : vector<8x256xf32>
    %c2_889 = arith.constant 2 : index
    %c0_890 = arith.constant 0 : index
    %c0_891 = arith.constant 0 : index
    %1409 = vector.load %arg1[%c2_889, %c0_890, %c0_891] : memref<16x8x256xf32, #tpu.memory_space<vmem>>, vector<1x8x256xf32>
    %1410 = vector.shape_cast %1409 : vector<1x8x256xf32> to vector<8x256xf32>
    %c55_892 = arith.constant 55 : index
    %1411 = memref.load %arg2[%c55_892] : memref<90xf32, #tpu.memory_space<smem>>
    %1412 = vector.broadcast %1411 : f32 to vector<8x256xf32>
    %1413 = arith.mulf %1410, %1412 : vector<8x256xf32>
    %1414 = arith.addf %1408, %1413 : vector<8x256xf32>
    %c3_893 = arith.constant 3 : index
    %c0_894 = arith.constant 0 : index
    %c0_895 = arith.constant 0 : index
    %1415 = vector.load %arg1[%c3_893, %c0_894, %c0_895] : memref<16x8x256xf32, #tpu.memory_space<vmem>>, vector<1x8x256xf32>
    %1416 = vector.shape_cast %1415 : vector<1x8x256xf32> to vector<8x256xf32>
    %c56_896 = arith.constant 56 : index
    %1417 = memref.load %arg2[%c56_896] : memref<90xf32, #tpu.memory_space<smem>>
    %1418 = vector.broadcast %1417 : f32 to vector<8x256xf32>
    %1419 = arith.mulf %1416, %1418 : vector<8x256xf32>
    %1420 = arith.addf %1414, %1419 : vector<8x256xf32>
    %c5_897 = arith.constant 5 : index
    %c0_898 = arith.constant 0 : index
    %c0_899 = arith.constant 0 : index
    %1421 = vector.load %arg1[%c5_897, %c0_898, %c0_899] : memref<16x8x256xf32, #tpu.memory_space<vmem>>, vector<1x8x256xf32>
    %1422 = vector.shape_cast %1421 : vector<1x8x256xf32> to vector<8x256xf32>
    %c57_900 = arith.constant 57 : index
    %1423 = memref.load %arg2[%c57_900] : memref<90xf32, #tpu.memory_space<smem>>
    %1424 = vector.broadcast %1423 : f32 to vector<8x256xf32>
    %1425 = arith.mulf %1422, %1424 : vector<8x256xf32>
    %1426 = arith.addf %1420, %1425 : vector<8x256xf32>
    %c6_901 = arith.constant 6 : index
    %c0_902 = arith.constant 0 : index
    %c0_903 = arith.constant 0 : index
    %1427 = vector.load %arg1[%c6_901, %c0_902, %c0_903] : memref<16x8x256xf32, #tpu.memory_space<vmem>>, vector<1x8x256xf32>
    %1428 = vector.shape_cast %1427 : vector<1x8x256xf32> to vector<8x256xf32>
    %c58_904 = arith.constant 58 : index
    %1429 = memref.load %arg2[%c58_904] : memref<90xf32, #tpu.memory_space<smem>>
    %1430 = vector.broadcast %1429 : f32 to vector<8x256xf32>
    %1431 = arith.mulf %1428, %1430 : vector<8x256xf32>
    %1432 = arith.addf %1426, %1431 : vector<8x256xf32>
    %c7_905 = arith.constant 7 : index
    %c0_906 = arith.constant 0 : index
    %c0_907 = arith.constant 0 : index
    %1433 = vector.load %arg1[%c7_905, %c0_906, %c0_907] : memref<16x8x256xf32, #tpu.memory_space<vmem>>, vector<1x8x256xf32>
    %1434 = vector.shape_cast %1433 : vector<1x8x256xf32> to vector<8x256xf32>
    %c59_908 = arith.constant 59 : index
    %1435 = memref.load %arg2[%c59_908] : memref<90xf32, #tpu.memory_space<smem>>
    %1436 = vector.broadcast %1435 : f32 to vector<8x256xf32>
    %1437 = arith.mulf %1434, %1436 : vector<8x256xf32>
    %1438 = arith.addf %1432, %1437 : vector<8x256xf32>
    %c9_909 = arith.constant 9 : index
    %c0_910 = arith.constant 0 : index
    %c0_911 = arith.constant 0 : index
    %1439 = vector.load %arg1[%c9_909, %c0_910, %c0_911] : memref<16x8x256xf32, #tpu.memory_space<vmem>>, vector<1x8x256xf32>
    %1440 = vector.shape_cast %1439 : vector<1x8x256xf32> to vector<8x256xf32>
    %c60_912 = arith.constant 60 : index
    %1441 = memref.load %arg2[%c60_912] : memref<90xf32, #tpu.memory_space<smem>>
    %1442 = vector.broadcast %1441 : f32 to vector<8x256xf32>
    %1443 = arith.mulf %1440, %1442 : vector<8x256xf32>
    %1444 = arith.addf %1438, %1443 : vector<8x256xf32>
    %c10_913 = arith.constant 10 : index
    %c0_914 = arith.constant 0 : index
    %c0_915 = arith.constant 0 : index
    %1445 = vector.load %arg1[%c10_913, %c0_914, %c0_915] : memref<16x8x256xf32, #tpu.memory_space<vmem>>, vector<1x8x256xf32>
    %1446 = vector.shape_cast %1445 : vector<1x8x256xf32> to vector<8x256xf32>
    %c61_916 = arith.constant 61 : index
    %1447 = memref.load %arg2[%c61_916] : memref<90xf32, #tpu.memory_space<smem>>
    %1448 = vector.broadcast %1447 : f32 to vector<8x256xf32>
    %1449 = arith.mulf %1446, %1448 : vector<8x256xf32>
    %1450 = arith.addf %1444, %1449 : vector<8x256xf32>
    %c11_917 = arith.constant 11 : index
    %c0_918 = arith.constant 0 : index
    %c0_919 = arith.constant 0 : index
    %1451 = vector.load %arg1[%c11_917, %c0_918, %c0_919] : memref<16x8x256xf32, #tpu.memory_space<vmem>>, vector<1x8x256xf32>
    %1452 = vector.shape_cast %1451 : vector<1x8x256xf32> to vector<8x256xf32>
    %c62_920 = arith.constant 62 : index
    %1453 = memref.load %arg2[%c62_920] : memref<90xf32, #tpu.memory_space<smem>>
    %1454 = vector.broadcast %1453 : f32 to vector<8x256xf32>
    %1455 = arith.mulf %1452, %1454 : vector<8x256xf32>
    %1456 = arith.addf %1450, %1455 : vector<8x256xf32>
    %1457 = arith.maximumf %1403, %1456 : vector<8x256xf32>
    %c4_921 = arith.constant 4 : index
    %c0_922 = arith.constant 0 : index
    %c0_923 = arith.constant 0 : index
    %1458 = vector.load %arg1[%c4_921, %c0_922, %c0_923] : memref<16x8x256xf32, #tpu.memory_space<vmem>>, vector<1x8x256xf32>
    %1459 = vector.shape_cast %1458 : vector<1x8x256xf32> to vector<8x256xf32>
    %c54_924 = arith.constant 54 : index
    %1460 = memref.load %arg2[%c54_924] : memref<90xf32, #tpu.memory_space<smem>>
    %1461 = vector.broadcast %1460 : f32 to vector<8x256xf32>
    %1462 = arith.mulf %1459, %1461 : vector<8x256xf32>
    %c5_925 = arith.constant 5 : index
    %c0_926 = arith.constant 0 : index
    %c0_927 = arith.constant 0 : index
    %1463 = vector.load %arg1[%c5_925, %c0_926, %c0_927] : memref<16x8x256xf32, #tpu.memory_space<vmem>>, vector<1x8x256xf32>
    %1464 = vector.shape_cast %1463 : vector<1x8x256xf32> to vector<8x256xf32>
    %c55_928 = arith.constant 55 : index
    %1465 = memref.load %arg2[%c55_928] : memref<90xf32, #tpu.memory_space<smem>>
    %1466 = vector.broadcast %1465 : f32 to vector<8x256xf32>
    %1467 = arith.mulf %1464, %1466 : vector<8x256xf32>
    %1468 = arith.addf %1462, %1467 : vector<8x256xf32>
    %c6_929 = arith.constant 6 : index
    %c0_930 = arith.constant 0 : index
    %c0_931 = arith.constant 0 : index
    %1469 = vector.load %arg1[%c6_929, %c0_930, %c0_931] : memref<16x8x256xf32, #tpu.memory_space<vmem>>, vector<1x8x256xf32>
    %1470 = vector.shape_cast %1469 : vector<1x8x256xf32> to vector<8x256xf32>
    %c56_932 = arith.constant 56 : index
    %1471 = memref.load %arg2[%c56_932] : memref<90xf32, #tpu.memory_space<smem>>
    %1472 = vector.broadcast %1471 : f32 to vector<8x256xf32>
    %1473 = arith.mulf %1470, %1472 : vector<8x256xf32>
    %1474 = arith.addf %1468, %1473 : vector<8x256xf32>
    %c8_933 = arith.constant 8 : index
    %c0_934 = arith.constant 0 : index
    %c0_935 = arith.constant 0 : index
    %1475 = vector.load %arg1[%c8_933, %c0_934, %c0_935] : memref<16x8x256xf32, #tpu.memory_space<vmem>>, vector<1x8x256xf32>
    %1476 = vector.shape_cast %1475 : vector<1x8x256xf32> to vector<8x256xf32>
    %c57_936 = arith.constant 57 : index
    %1477 = memref.load %arg2[%c57_936] : memref<90xf32, #tpu.memory_space<smem>>
    %1478 = vector.broadcast %1477 : f32 to vector<8x256xf32>
    %1479 = arith.mulf %1476, %1478 : vector<8x256xf32>
    %1480 = arith.addf %1474, %1479 : vector<8x256xf32>
    %c9_937 = arith.constant 9 : index
    %c0_938 = arith.constant 0 : index
    %c0_939 = arith.constant 0 : index
    %1481 = vector.load %arg1[%c9_937, %c0_938, %c0_939] : memref<16x8x256xf32, #tpu.memory_space<vmem>>, vector<1x8x256xf32>
    %1482 = vector.shape_cast %1481 : vector<1x8x256xf32> to vector<8x256xf32>
    %c58_940 = arith.constant 58 : index
    %1483 = memref.load %arg2[%c58_940] : memref<90xf32, #tpu.memory_space<smem>>
    %1484 = vector.broadcast %1483 : f32 to vector<8x256xf32>
    %1485 = arith.mulf %1482, %1484 : vector<8x256xf32>
    %1486 = arith.addf %1480, %1485 : vector<8x256xf32>
    %c10_941 = arith.constant 10 : index
    %c0_942 = arith.constant 0 : index
    %c0_943 = arith.constant 0 : index
    %1487 = vector.load %arg1[%c10_941, %c0_942, %c0_943] : memref<16x8x256xf32, #tpu.memory_space<vmem>>, vector<1x8x256xf32>
    %1488 = vector.shape_cast %1487 : vector<1x8x256xf32> to vector<8x256xf32>
    %c59_944 = arith.constant 59 : index
    %1489 = memref.load %arg2[%c59_944] : memref<90xf32, #tpu.memory_space<smem>>
    %1490 = vector.broadcast %1489 : f32 to vector<8x256xf32>
    %1491 = arith.mulf %1488, %1490 : vector<8x256xf32>
    %1492 = arith.addf %1486, %1491 : vector<8x256xf32>
    %c12_945 = arith.constant 12 : index
    %c0_946 = arith.constant 0 : index
    %c0_947 = arith.constant 0 : index
    %1493 = vector.load %arg1[%c12_945, %c0_946, %c0_947] : memref<16x8x256xf32, #tpu.memory_space<vmem>>, vector<1x8x256xf32>
    %1494 = vector.shape_cast %1493 : vector<1x8x256xf32> to vector<8x256xf32>
    %c60_948 = arith.constant 60 : index
    %1495 = memref.load %arg2[%c60_948] : memref<90xf32, #tpu.memory_space<smem>>
    %1496 = vector.broadcast %1495 : f32 to vector<8x256xf32>
    %1497 = arith.mulf %1494, %1496 : vector<8x256xf32>
    %1498 = arith.addf %1492, %1497 : vector<8x256xf32>
    %c13_949 = arith.constant 13 : index
    %c0_950 = arith.constant 0 : index
    %c0_951 = arith.constant 0 : index
    %1499 = vector.load %arg1[%c13_949, %c0_950, %c0_951] : memref<16x8x256xf32, #tpu.memory_space<vmem>>, vector<1x8x256xf32>
    %1500 = vector.shape_cast %1499 : vector<1x8x256xf32> to vector<8x256xf32>
    %c61_952 = arith.constant 61 : index
    %1501 = memref.load %arg2[%c61_952] : memref<90xf32, #tpu.memory_space<smem>>
    %1502 = vector.broadcast %1501 : f32 to vector<8x256xf32>
    %1503 = arith.mulf %1500, %1502 : vector<8x256xf32>
    %1504 = arith.addf %1498, %1503 : vector<8x256xf32>
    %c14_953 = arith.constant 14 : index
    %c0_954 = arith.constant 0 : index
    %c0_955 = arith.constant 0 : index
    %1505 = vector.load %arg1[%c14_953, %c0_954, %c0_955] : memref<16x8x256xf32, #tpu.memory_space<vmem>>, vector<1x8x256xf32>
    %1506 = vector.shape_cast %1505 : vector<1x8x256xf32> to vector<8x256xf32>
    %c62_956 = arith.constant 62 : index
    %1507 = memref.load %arg2[%c62_956] : memref<90xf32, #tpu.memory_space<smem>>
    %1508 = vector.broadcast %1507 : f32 to vector<8x256xf32>
    %1509 = arith.mulf %1506, %1508 : vector<8x256xf32>
    %1510 = arith.addf %1504, %1509 : vector<8x256xf32>
    %1511 = arith.maximumf %1457, %1510 : vector<8x256xf32>
    %c5_957 = arith.constant 5 : index
    %c0_958 = arith.constant 0 : index
    %c0_959 = arith.constant 0 : index
    %1512 = vector.load %arg1[%c5_957, %c0_958, %c0_959] : memref<16x8x256xf32, #tpu.memory_space<vmem>>, vector<1x8x256xf32>
    %1513 = vector.shape_cast %1512 : vector<1x8x256xf32> to vector<8x256xf32>
    %c54_960 = arith.constant 54 : index
    %1514 = memref.load %arg2[%c54_960] : memref<90xf32, #tpu.memory_space<smem>>
    %1515 = vector.broadcast %1514 : f32 to vector<8x256xf32>
    %1516 = arith.mulf %1513, %1515 : vector<8x256xf32>
    %c6_961 = arith.constant 6 : index
    %c0_962 = arith.constant 0 : index
    %c0_963 = arith.constant 0 : index
    %1517 = vector.load %arg1[%c6_961, %c0_962, %c0_963] : memref<16x8x256xf32, #tpu.memory_space<vmem>>, vector<1x8x256xf32>
    %1518 = vector.shape_cast %1517 : vector<1x8x256xf32> to vector<8x256xf32>
    %c55_964 = arith.constant 55 : index
    %1519 = memref.load %arg2[%c55_964] : memref<90xf32, #tpu.memory_space<smem>>
    %1520 = vector.broadcast %1519 : f32 to vector<8x256xf32>
    %1521 = arith.mulf %1518, %1520 : vector<8x256xf32>
    %1522 = arith.addf %1516, %1521 : vector<8x256xf32>
    %c7_965 = arith.constant 7 : index
    %c0_966 = arith.constant 0 : index
    %c0_967 = arith.constant 0 : index
    %1523 = vector.load %arg1[%c7_965, %c0_966, %c0_967] : memref<16x8x256xf32, #tpu.memory_space<vmem>>, vector<1x8x256xf32>
    %1524 = vector.shape_cast %1523 : vector<1x8x256xf32> to vector<8x256xf32>
    %c56_968 = arith.constant 56 : index
    %1525 = memref.load %arg2[%c56_968] : memref<90xf32, #tpu.memory_space<smem>>
    %1526 = vector.broadcast %1525 : f32 to vector<8x256xf32>
    %1527 = arith.mulf %1524, %1526 : vector<8x256xf32>
    %1528 = arith.addf %1522, %1527 : vector<8x256xf32>
    %c9_969 = arith.constant 9 : index
    %c0_970 = arith.constant 0 : index
    %c0_971 = arith.constant 0 : index
    %1529 = vector.load %arg1[%c9_969, %c0_970, %c0_971] : memref<16x8x256xf32, #tpu.memory_space<vmem>>, vector<1x8x256xf32>
    %1530 = vector.shape_cast %1529 : vector<1x8x256xf32> to vector<8x256xf32>
    %c57_972 = arith.constant 57 : index
    %1531 = memref.load %arg2[%c57_972] : memref<90xf32, #tpu.memory_space<smem>>
    %1532 = vector.broadcast %1531 : f32 to vector<8x256xf32>
    %1533 = arith.mulf %1530, %1532 : vector<8x256xf32>
    %1534 = arith.addf %1528, %1533 : vector<8x256xf32>
    %c10_973 = arith.constant 10 : index
    %c0_974 = arith.constant 0 : index
    %c0_975 = arith.constant 0 : index
    %1535 = vector.load %arg1[%c10_973, %c0_974, %c0_975] : memref<16x8x256xf32, #tpu.memory_space<vmem>>, vector<1x8x256xf32>
    %1536 = vector.shape_cast %1535 : vector<1x8x256xf32> to vector<8x256xf32>
    %c58_976 = arith.constant 58 : index
    %1537 = memref.load %arg2[%c58_976] : memref<90xf32, #tpu.memory_space<smem>>
    %1538 = vector.broadcast %1537 : f32 to vector<8x256xf32>
    %1539 = arith.mulf %1536, %1538 : vector<8x256xf32>
    %1540 = arith.addf %1534, %1539 : vector<8x256xf32>
    %c11_977 = arith.constant 11 : index
    %c0_978 = arith.constant 0 : index
    %c0_979 = arith.constant 0 : index
    %1541 = vector.load %arg1[%c11_977, %c0_978, %c0_979] : memref<16x8x256xf32, #tpu.memory_space<vmem>>, vector<1x8x256xf32>
    %1542 = vector.shape_cast %1541 : vector<1x8x256xf32> to vector<8x256xf32>
    %c59_980 = arith.constant 59 : index
    %1543 = memref.load %arg2[%c59_980] : memref<90xf32, #tpu.memory_space<smem>>
    %1544 = vector.broadcast %1543 : f32 to vector<8x256xf32>
    %1545 = arith.mulf %1542, %1544 : vector<8x256xf32>
    %1546 = arith.addf %1540, %1545 : vector<8x256xf32>
    %c13_981 = arith.constant 13 : index
    %c0_982 = arith.constant 0 : index
    %c0_983 = arith.constant 0 : index
    %1547 = vector.load %arg1[%c13_981, %c0_982, %c0_983] : memref<16x8x256xf32, #tpu.memory_space<vmem>>, vector<1x8x256xf32>
    %1548 = vector.shape_cast %1547 : vector<1x8x256xf32> to vector<8x256xf32>
    %c60_984 = arith.constant 60 : index
    %1549 = memref.load %arg2[%c60_984] : memref<90xf32, #tpu.memory_space<smem>>
    %1550 = vector.broadcast %1549 : f32 to vector<8x256xf32>
    %1551 = arith.mulf %1548, %1550 : vector<8x256xf32>
    %1552 = arith.addf %1546, %1551 : vector<8x256xf32>
    %c14_985 = arith.constant 14 : index
    %c0_986 = arith.constant 0 : index
    %c0_987 = arith.constant 0 : index
    %1553 = vector.load %arg1[%c14_985, %c0_986, %c0_987] : memref<16x8x256xf32, #tpu.memory_space<vmem>>, vector<1x8x256xf32>
    %1554 = vector.shape_cast %1553 : vector<1x8x256xf32> to vector<8x256xf32>
    %c61_988 = arith.constant 61 : index
    %1555 = memref.load %arg2[%c61_988] : memref<90xf32, #tpu.memory_space<smem>>
    %1556 = vector.broadcast %1555 : f32 to vector<8x256xf32>
    %1557 = arith.mulf %1554, %1556 : vector<8x256xf32>
    %1558 = arith.addf %1552, %1557 : vector<8x256xf32>
    %c15_989 = arith.constant 15 : index
    %c0_990 = arith.constant 0 : index
    %c0_991 = arith.constant 0 : index
    %1559 = vector.load %arg1[%c15_989, %c0_990, %c0_991] : memref<16x8x256xf32, #tpu.memory_space<vmem>>, vector<1x8x256xf32>
    %1560 = vector.shape_cast %1559 : vector<1x8x256xf32> to vector<8x256xf32>
    %c62_992 = arith.constant 62 : index
    %1561 = memref.load %arg2[%c62_992] : memref<90xf32, #tpu.memory_space<smem>>
    %1562 = vector.broadcast %1561 : f32 to vector<8x256xf32>
    %1563 = arith.mulf %1560, %1562 : vector<8x256xf32>
    %1564 = arith.addf %1558, %1563 : vector<8x256xf32>
    %1565 = arith.maximumf %1511, %1564 : vector<8x256xf32>
    %c6_993 = arith.constant 6 : index
    %1566 = memref.load %arg3[%c6_993] : memref<10xf32, #tpu.memory_space<smem>>
    %1567 = vector.broadcast %1566 : f32 to vector<8x256xf32>
    %1568 = arith.addf %1565, %1567 : vector<8x256xf32>
    %cst_994 = arith.constant 0.000000e+00 : f32
    %1569 = vector.broadcast %cst_994 : f32 to vector<8x256xf32>
    %1570 = arith.maximumf %1568, %1569 : vector<8x256xf32>
    %c1536 = arith.constant 1536 : index
    %c0_995 = arith.constant 0 : index
    %1571 = vector.load %arg4[%c1536, %c0_995] : memref<2560x128xf32, #tpu.memory_space<vmem>>, vector<256x128xf32>
    %cst_996 = arith.constant dense<0.000000e+00> : vector<8x128xf32>
    %1572 = tpu.matmul %1570, %1571, %cst_996 {dimension_numbers = #tpu.dot_dimension_numbers<[1], [0], [0], [1], [0, 0, 1, 1], [], []>} : vector<8x256xf32>, vector<256x128xf32>, vector<8x128xf32> -> vector<8x128xf32>
    %c0_997 = arith.constant 0 : index
    %c0_998 = arith.constant 0 : index
    %1573 = vector.load %arg6[%c0_997, %c0_998] : memref<8x128xf32, #tpu.memory_space<vmem>>, vector<8x128xf32>
    %1574 = arith.addf %1573, %1572 : vector<8x128xf32>
    %c0_999 = arith.constant 0 : index
    %c0_1000 = arith.constant 0 : index
    %1575 = vector.load %arg6[%c0_999, %c0_1000] : memref<8x128xf32, #tpu.memory_space<vmem>>, vector<8x128xf32>
    tpu.vector_store %arg6[%c0_999, %c0_1000], %1574 {strides = array<i32>} : memref<8x128xf32, #tpu.memory_space<vmem>>, vector<8x128xf32>,
    %c0_1001 = arith.constant 0 : index
    %c0_1002 = arith.constant 0 : index
    %c0_1003 = arith.constant 0 : index
    %1576 = vector.load %arg1[%c0_1001, %c0_1002, %c0_1003] : memref<16x8x256xf32, #tpu.memory_space<vmem>>, vector<1x8x256xf32>
    %1577 = vector.shape_cast %1576 : vector<1x8x256xf32> to vector<8x256xf32>
    %c63 = arith.constant 63 : index
    %1578 = memref.load %arg2[%c63] : memref<90xf32, #tpu.memory_space<smem>>
    %1579 = vector.broadcast %1578 : f32 to vector<8x256xf32>
    %1580 = arith.mulf %1577, %1579 : vector<8x256xf32>
    %c1_1004 = arith.constant 1 : index
    %c0_1005 = arith.constant 0 : index
    %c0_1006 = arith.constant 0 : index
    %1581 = vector.load %arg1[%c1_1004, %c0_1005, %c0_1006] : memref<16x8x256xf32, #tpu.memory_space<vmem>>, vector<1x8x256xf32>
    %1582 = vector.shape_cast %1581 : vector<1x8x256xf32> to vector<8x256xf32>
    %c64 = arith.constant 64 : index
    %1583 = memref.load %arg2[%c64] : memref<90xf32, #tpu.memory_space<smem>>
    %1584 = vector.broadcast %1583 : f32 to vector<8x256xf32>
    %1585 = arith.mulf %1582, %1584 : vector<8x256xf32>
    %1586 = arith.addf %1580, %1585 : vector<8x256xf32>
    %c2_1007 = arith.constant 2 : index
    %c0_1008 = arith.constant 0 : index
    %c0_1009 = arith.constant 0 : index
    %1587 = vector.load %arg1[%c2_1007, %c0_1008, %c0_1009] : memref<16x8x256xf32, #tpu.memory_space<vmem>>, vector<1x8x256xf32>
    %1588 = vector.shape_cast %1587 : vector<1x8x256xf32> to vector<8x256xf32>
    %c65 = arith.constant 65 : index
    %1589 = memref.load %arg2[%c65] : memref<90xf32, #tpu.memory_space<smem>>
    %1590 = vector.broadcast %1589 : f32 to vector<8x256xf32>
    %1591 = arith.mulf %1588, %1590 : vector<8x256xf32>
    %1592 = arith.addf %1586, %1591 : vector<8x256xf32>
    %c4_1010 = arith.constant 4 : index
    %c0_1011 = arith.constant 0 : index
    %c0_1012 = arith.constant 0 : index
    %1593 = vector.load %arg1[%c4_1010, %c0_1011, %c0_1012] : memref<16x8x256xf32, #tpu.memory_space<vmem>>, vector<1x8x256xf32>
    %1594 = vector.shape_cast %1593 : vector<1x8x256xf32> to vector<8x256xf32>
    %c66 = arith.constant 66 : index
    %1595 = memref.load %arg2[%c66] : memref<90xf32, #tpu.memory_space<smem>>
    %1596 = vector.broadcast %1595 : f32 to vector<8x256xf32>
    %1597 = arith.mulf %1594, %1596 : vector<8x256xf32>
    %1598 = arith.addf %1592, %1597 : vector<8x256xf32>
    %c5_1013 = arith.constant 5 : index
    %c0_1014 = arith.constant 0 : index
    %c0_1015 = arith.constant 0 : index
    %1599 = vector.load %arg1[%c5_1013, %c0_1014, %c0_1015] : memref<16x8x256xf32, #tpu.memory_space<vmem>>, vector<1x8x256xf32>
    %1600 = vector.shape_cast %1599 : vector<1x8x256xf32> to vector<8x256xf32>
    %c67 = arith.constant 67 : index
    %1601 = memref.load %arg2[%c67] : memref<90xf32, #tpu.memory_space<smem>>
    %1602 = vector.broadcast %1601 : f32 to vector<8x256xf32>
    %1603 = arith.mulf %1600, %1602 : vector<8x256xf32>
    %1604 = arith.addf %1598, %1603 : vector<8x256xf32>
    %c6_1016 = arith.constant 6 : index
    %c0_1017 = arith.constant 0 : index
    %c0_1018 = arith.constant 0 : index
    %1605 = vector.load %arg1[%c6_1016, %c0_1017, %c0_1018] : memref<16x8x256xf32, #tpu.memory_space<vmem>>, vector<1x8x256xf32>
    %1606 = vector.shape_cast %1605 : vector<1x8x256xf32> to vector<8x256xf32>
    %c68 = arith.constant 68 : index
    %1607 = memref.load %arg2[%c68] : memref<90xf32, #tpu.memory_space<smem>>
    %1608 = vector.broadcast %1607 : f32 to vector<8x256xf32>
    %1609 = arith.mulf %1606, %1608 : vector<8x256xf32>
    %1610 = arith.addf %1604, %1609 : vector<8x256xf32>
    %c8_1019 = arith.constant 8 : index
    %c0_1020 = arith.constant 0 : index
    %c0_1021 = arith.constant 0 : index
    %1611 = vector.load %arg1[%c8_1019, %c0_1020, %c0_1021] : memref<16x8x256xf32, #tpu.memory_space<vmem>>, vector<1x8x256xf32>
    %1612 = vector.shape_cast %1611 : vector<1x8x256xf32> to vector<8x256xf32>
    %c69 = arith.constant 69 : index
    %1613 = memref.load %arg2[%c69] : memref<90xf32, #tpu.memory_space<smem>>
    %1614 = vector.broadcast %1613 : f32 to vector<8x256xf32>
    %1615 = arith.mulf %1612, %1614 : vector<8x256xf32>
    %1616 = arith.addf %1610, %1615 : vector<8x256xf32>
    %c9_1022 = arith.constant 9 : index
    %c0_1023 = arith.constant 0 : index
    %c0_1024 = arith.constant 0 : index
    %1617 = vector.load %arg1[%c9_1022, %c0_1023, %c0_1024] : memref<16x8x256xf32, #tpu.memory_space<vmem>>, vector<1x8x256xf32>
    %1618 = vector.shape_cast %1617 : vector<1x8x256xf32> to vector<8x256xf32>
    %c70 = arith.constant 70 : index
    %1619 = memref.load %arg2[%c70] : memref<90xf32, #tpu.memory_space<smem>>
    %1620 = vector.broadcast %1619 : f32 to vector<8x256xf32>
    %1621 = arith.mulf %1618, %1620 : vector<8x256xf32>
    %1622 = arith.addf %1616, %1621 : vector<8x256xf32>
    %c10_1025 = arith.constant 10 : index
    %c0_1026 = arith.constant 0 : index
    %c0_1027 = arith.constant 0 : index
    %1623 = vector.load %arg1[%c10_1025, %c0_1026, %c0_1027] : memref<16x8x256xf32, #tpu.memory_space<vmem>>, vector<1x8x256xf32>
    %1624 = vector.shape_cast %1623 : vector<1x8x256xf32> to vector<8x256xf32>
    %c71 = arith.constant 71 : index
    %1625 = memref.load %arg2[%c71] : memref<90xf32, #tpu.memory_space<smem>>
    %1626 = vector.broadcast %1625 : f32 to vector<8x256xf32>
    %1627 = arith.mulf %1624, %1626 : vector<8x256xf32>
    %1628 = arith.addf %1622, %1627 : vector<8x256xf32>
    %c1_1028 = arith.constant 1 : index
    %c0_1029 = arith.constant 0 : index
    %c0_1030 = arith.constant 0 : index
    %1629 = vector.load %arg1[%c1_1028, %c0_1029, %c0_1030] : memref<16x8x256xf32, #tpu.memory_space<vmem>>, vector<1x8x256xf32>
    %1630 = vector.shape_cast %1629 : vector<1x8x256xf32> to vector<8x256xf32>
    %c63_1031 = arith.constant 63 : index
    %1631 = memref.load %arg2[%c63_1031] : memref<90xf32, #tpu.memory_space<smem>>
    %1632 = vector.broadcast %1631 : f32 to vector<8x256xf32>
    %1633 = arith.mulf %1630, %1632 : vector<8x256xf32>
    %c2_1032 = arith.constant 2 : index
    %c0_1033 = arith.constant 0 : index
    %c0_1034 = arith.constant 0 : index
    %1634 = vector.load %arg1[%c2_1032, %c0_1033, %c0_1034] : memref<16x8x256xf32, #tpu.memory_space<vmem>>, vector<1x8x256xf32>
    %1635 = vector.shape_cast %1634 : vector<1x8x256xf32> to vector<8x256xf32>
    %c64_1035 = arith.constant 64 : index
    %1636 = memref.load %arg2[%c64_1035] : memref<90xf32, #tpu.memory_space<smem>>
    %1637 = vector.broadcast %1636 : f32 to vector<8x256xf32>
    %1638 = arith.mulf %1635, %1637 : vector<8x256xf32>
    %1639 = arith.addf %1633, %1638 : vector<8x256xf32>
    %c3_1036 = arith.constant 3 : index
    %c0_1037 = arith.constant 0 : index
    %c0_1038 = arith.constant 0 : index
    %1640 = vector.load %arg1[%c3_1036, %c0_1037, %c0_1038] : memref<16x8x256xf32, #tpu.memory_space<vmem>>, vector<1x8x256xf32>
    %1641 = vector.shape_cast %1640 : vector<1x8x256xf32> to vector<8x256xf32>
    %c65_1039 = arith.constant 65 : index
    %1642 = memref.load %arg2[%c65_1039] : memref<90xf32, #tpu.memory_space<smem>>
    %1643 = vector.broadcast %1642 : f32 to vector<8x256xf32>
    %1644 = arith.mulf %1641, %1643 : vector<8x256xf32>
    %1645 = arith.addf %1639, %1644 : vector<8x256xf32>
    %c5_1040 = arith.constant 5 : index
    %c0_1041 = arith.constant 0 : index
    %c0_1042 = arith.constant 0 : index
    %1646 = vector.load %arg1[%c5_1040, %c0_1041, %c0_1042] : memref<16x8x256xf32, #tpu.memory_space<vmem>>, vector<1x8x256xf32>
    %1647 = vector.shape_cast %1646 : vector<1x8x256xf32> to vector<8x256xf32>
    %c66_1043 = arith.constant 66 : index
    %1648 = memref.load %arg2[%c66_1043] : memref<90xf32, #tpu.memory_space<smem>>
    %1649 = vector.broadcast %1648 : f32 to vector<8x256xf32>
    %1650 = arith.mulf %1647, %1649 : vector<8x256xf32>
    %1651 = arith.addf %1645, %1650 : vector<8x256xf32>
    %c6_1044 = arith.constant 6 : index
    %c0_1045 = arith.constant 0 : index
    %c0_1046 = arith.constant 0 : index
    %1652 = vector.load %arg1[%c6_1044, %c0_1045, %c0_1046] : memref<16x8x256xf32, #tpu.memory_space<vmem>>, vector<1x8x256xf32>
    %1653 = vector.shape_cast %1652 : vector<1x8x256xf32> to vector<8x256xf32>
    %c67_1047 = arith.constant 67 : index
    %1654 = memref.load %arg2[%c67_1047] : memref<90xf32, #tpu.memory_space<smem>>
    %1655 = vector.broadcast %1654 : f32 to vector<8x256xf32>
    %1656 = arith.mulf %1653, %1655 : vector<8x256xf32>
    %1657 = arith.addf %1651, %1656 : vector<8x256xf32>
    %c7_1048 = arith.constant 7 : index
    %c0_1049 = arith.constant 0 : index
    %c0_1050 = arith.constant 0 : index
    %1658 = vector.load %arg1[%c7_1048, %c0_1049, %c0_1050] : memref<16x8x256xf32, #tpu.memory_space<vmem>>, vector<1x8x256xf32>
    %1659 = vector.shape_cast %1658 : vector<1x8x256xf32> to vector<8x256xf32>
    %c68_1051 = arith.constant 68 : index
    %1660 = memref.load %arg2[%c68_1051] : memref<90xf32, #tpu.memory_space<smem>>
    %1661 = vector.broadcast %1660 : f32 to vector<8x256xf32>
    %1662 = arith.mulf %1659, %1661 : vector<8x256xf32>
    %1663 = arith.addf %1657, %1662 : vector<8x256xf32>
    %c9_1052 = arith.constant 9 : index
    %c0_1053 = arith.constant 0 : index
    %c0_1054 = arith.constant 0 : index
    %1664 = vector.load %arg1[%c9_1052, %c0_1053, %c0_1054] : memref<16x8x256xf32, #tpu.memory_space<vmem>>, vector<1x8x256xf32>
    %1665 = vector.shape_cast %1664 : vector<1x8x256xf32> to vector<8x256xf32>
    %c69_1055 = arith.constant 69 : index
    %1666 = memref.load %arg2[%c69_1055] : memref<90xf32, #tpu.memory_space<smem>>
    %1667 = vector.broadcast %1666 : f32 to vector<8x256xf32>
    %1668 = arith.mulf %1665, %1667 : vector<8x256xf32>
    %1669 = arith.addf %1663, %1668 : vector<8x256xf32>
    %c10_1056 = arith.constant 10 : index
    %c0_1057 = arith.constant 0 : index
    %c0_1058 = arith.constant 0 : index
    %1670 = vector.load %arg1[%c10_1056, %c0_1057, %c0_1058] : memref<16x8x256xf32, #tpu.memory_space<vmem>>, vector<1x8x256xf32>
    %1671 = vector.shape_cast %1670 : vector<1x8x256xf32> to vector<8x256xf32>
    %c70_1059 = arith.constant 70 : index
    %1672 = memref.load %arg2[%c70_1059] : memref<90xf32, #tpu.memory_space<smem>>
    %1673 = vector.broadcast %1672 : f32 to vector<8x256xf32>
    %1674 = arith.mulf %1671, %1673 : vector<8x256xf32>
    %1675 = arith.addf %1669, %1674 : vector<8x256xf32>
    %c11_1060 = arith.constant 11 : index
    %c0_1061 = arith.constant 0 : index
    %c0_1062 = arith.constant 0 : index
    %1676 = vector.load %arg1[%c11_1060, %c0_1061, %c0_1062] : memref<16x8x256xf32, #tpu.memory_space<vmem>>, vector<1x8x256xf32>
    %1677 = vector.shape_cast %1676 : vector<1x8x256xf32> to vector<8x256xf32>
    %c71_1063 = arith.constant 71 : index
    %1678 = memref.load %arg2[%c71_1063] : memref<90xf32, #tpu.memory_space<smem>>
    %1679 = vector.broadcast %1678 : f32 to vector<8x256xf32>
    %1680 = arith.mulf %1677, %1679 : vector<8x256xf32>
    %1681 = arith.addf %1675, %1680 : vector<8x256xf32>
    %1682 = arith.maximumf %1628, %1681 : vector<8x256xf32>
    %c4_1064 = arith.constant 4 : index
    %c0_1065 = arith.constant 0 : index
    %c0_1066 = arith.constant 0 : index
    %1683 = vector.load %arg1[%c4_1064, %c0_1065, %c0_1066] : memref<16x8x256xf32, #tpu.memory_space<vmem>>, vector<1x8x256xf32>
    %1684 = vector.shape_cast %1683 : vector<1x8x256xf32> to vector<8x256xf32>
    %c63_1067 = arith.constant 63 : index
    %1685 = memref.load %arg2[%c63_1067] : memref<90xf32, #tpu.memory_space<smem>>
    %1686 = vector.broadcast %1685 : f32 to vector<8x256xf32>
    %1687 = arith.mulf %1684, %1686 : vector<8x256xf32>
    %c5_1068 = arith.constant 5 : index
    %c0_1069 = arith.constant 0 : index
    %c0_1070 = arith.constant 0 : index
    %1688 = vector.load %arg1[%c5_1068, %c0_1069, %c0_1070] : memref<16x8x256xf32, #tpu.memory_space<vmem>>, vector<1x8x256xf32>
    %1689 = vector.shape_cast %1688 : vector<1x8x256xf32> to vector<8x256xf32>
    %c64_1071 = arith.constant 64 : index
    %1690 = memref.load %arg2[%c64_1071] : memref<90xf32, #tpu.memory_space<smem>>
    %1691 = vector.broadcast %1690 : f32 to vector<8x256xf32>
    %1692 = arith.mulf %1689, %1691 : vector<8x256xf32>
    %1693 = arith.addf %1687, %1692 : vector<8x256xf32>
    %c6_1072 = arith.constant 6 : index
    %c0_1073 = arith.constant 0 : index
    %c0_1074 = arith.constant 0 : index
    %1694 = vector.load %arg1[%c6_1072, %c0_1073, %c0_1074] : memref<16x8x256xf32, #tpu.memory_space<vmem>>, vector<1x8x256xf32>
    %1695 = vector.shape_cast %1694 : vector<1x8x256xf32> to vector<8x256xf32>
    %c65_1075 = arith.constant 65 : index
    %1696 = memref.load %arg2[%c65_1075] : memref<90xf32, #tpu.memory_space<smem>>
    %1697 = vector.broadcast %1696 : f32 to vector<8x256xf32>
    %1698 = arith.mulf %1695, %1697 : vector<8x256xf32>
    %1699 = arith.addf %1693, %1698 : vector<8x256xf32>
    %c8_1076 = arith.constant 8 : index
    %c0_1077 = arith.constant 0 : index
    %c0_1078 = arith.constant 0 : index
    %1700 = vector.load %arg1[%c8_1076, %c0_1077, %c0_1078] : memref<16x8x256xf32, #tpu.memory_space<vmem>>, vector<1x8x256xf32>
    %1701 = vector.shape_cast %1700 : vector<1x8x256xf32> to vector<8x256xf32>
    %c66_1079 = arith.constant 66 : index
    %1702 = memref.load %arg2[%c66_1079] : memref<90xf32, #tpu.memory_space<smem>>
    %1703 = vector.broadcast %1702 : f32 to vector<8x256xf32>
    %1704 = arith.mulf %1701, %1703 : vector<8x256xf32>
    %1705 = arith.addf %1699, %1704 : vector<8x256xf32>
    %c9_1080 = arith.constant 9 : index
    %c0_1081 = arith.constant 0 : index
    %c0_1082 = arith.constant 0 : index
    %1706 = vector.load %arg1[%c9_1080, %c0_1081, %c0_1082] : memref<16x8x256xf32, #tpu.memory_space<vmem>>, vector<1x8x256xf32>
    %1707 = vector.shape_cast %1706 : vector<1x8x256xf32> to vector<8x256xf32>
    %c67_1083 = arith.constant 67 : index
    %1708 = memref.load %arg2[%c67_1083] : memref<90xf32, #tpu.memory_space<smem>>
    %1709 = vector.broadcast %1708 : f32 to vector<8x256xf32>
    %1710 = arith.mulf %1707, %1709 : vector<8x256xf32>
    %1711 = arith.addf %1705, %1710 : vector<8x256xf32>
    %c10_1084 = arith.constant 10 : index
    %c0_1085 = arith.constant 0 : index
    %c0_1086 = arith.constant 0 : index
    %1712 = vector.load %arg1[%c10_1084, %c0_1085, %c0_1086] : memref<16x8x256xf32, #tpu.memory_space<vmem>>, vector<1x8x256xf32>
    %1713 = vector.shape_cast %1712 : vector<1x8x256xf32> to vector<8x256xf32>
    %c68_1087 = arith.constant 68 : index
    %1714 = memref.load %arg2[%c68_1087] : memref<90xf32, #tpu.memory_space<smem>>
    %1715 = vector.broadcast %1714 : f32 to vector<8x256xf32>
    %1716 = arith.mulf %1713, %1715 : vector<8x256xf32>
    %1717 = arith.addf %1711, %1716 : vector<8x256xf32>
    %c12_1088 = arith.constant 12 : index
    %c0_1089 = arith.constant 0 : index
    %c0_1090 = arith.constant 0 : index
    %1718 = vector.load %arg1[%c12_1088, %c0_1089, %c0_1090] : memref<16x8x256xf32, #tpu.memory_space<vmem>>, vector<1x8x256xf32>
    %1719 = vector.shape_cast %1718 : vector<1x8x256xf32> to vector<8x256xf32>
    %c69_1091 = arith.constant 69 : index
    %1720 = memref.load %arg2[%c69_1091] : memref<90xf32, #tpu.memory_space<smem>>
    %1721 = vector.broadcast %1720 : f32 to vector<8x256xf32>
    %1722 = arith.mulf %1719, %1721 : vector<8x256xf32>
    %1723 = arith.addf %1717, %1722 : vector<8x256xf32>
    %c13_1092 = arith.constant 13 : index
    %c0_1093 = arith.constant 0 : index
    %c0_1094 = arith.constant 0 : index
    %1724 = vector.load %arg1[%c13_1092, %c0_1093, %c0_1094] : memref<16x8x256xf32, #tpu.memory_space<vmem>>, vector<1x8x256xf32>
    %1725 = vector.shape_cast %1724 : vector<1x8x256xf32> to vector<8x256xf32>
    %c70_1095 = arith.constant 70 : index
    %1726 = memref.load %arg2[%c70_1095] : memref<90xf32, #tpu.memory_space<smem>>
    %1727 = vector.broadcast %1726 : f32 to vector<8x256xf32>
    %1728 = arith.mulf %1725, %1727 : vector<8x256xf32>
    %1729 = arith.addf %1723, %1728 : vector<8x256xf32>
    %c14_1096 = arith.constant 14 : index
    %c0_1097 = arith.constant 0 : index
    %c0_1098 = arith.constant 0 : index
    %1730 = vector.load %arg1[%c14_1096, %c0_1097, %c0_1098] : memref<16x8x256xf32, #tpu.memory_space<vmem>>, vector<1x8x256xf32>
    %1731 = vector.shape_cast %1730 : vector<1x8x256xf32> to vector<8x256xf32>
    %c71_1099 = arith.constant 71 : index
    %1732 = memref.load %arg2[%c71_1099] : memref<90xf32, #tpu.memory_space<smem>>
    %1733 = vector.broadcast %1732 : f32 to vector<8x256xf32>
    %1734 = arith.mulf %1731, %1733 : vector<8x256xf32>
    %1735 = arith.addf %1729, %1734 : vector<8x256xf32>
    %1736 = arith.maximumf %1682, %1735 : vector<8x256xf32>
    %c5_1100 = arith.constant 5 : index
    %c0_1101 = arith.constant 0 : index
    %c0_1102 = arith.constant 0 : index
    %1737 = vector.load %arg1[%c5_1100, %c0_1101, %c0_1102] : memref<16x8x256xf32, #tpu.memory_space<vmem>>, vector<1x8x256xf32>
    %1738 = vector.shape_cast %1737 : vector<1x8x256xf32> to vector<8x256xf32>
    %c63_1103 = arith.constant 63 : index
    %1739 = memref.load %arg2[%c63_1103] : memref<90xf32, #tpu.memory_space<smem>>
    %1740 = vector.broadcast %1739 : f32 to vector<8x256xf32>
    %1741 = arith.mulf %1738, %1740 : vector<8x256xf32>
    %c6_1104 = arith.constant 6 : index
    %c0_1105 = arith.constant 0 : index
    %c0_1106 = arith.constant 0 : index
    %1742 = vector.load %arg1[%c6_1104, %c0_1105, %c0_1106] : memref<16x8x256xf32, #tpu.memory_space<vmem>>, vector<1x8x256xf32>
    %1743 = vector.shape_cast %1742 : vector<1x8x256xf32> to vector<8x256xf32>
    %c64_1107 = arith.constant 64 : index
    %1744 = memref.load %arg2[%c64_1107] : memref<90xf32, #tpu.memory_space<smem>>
    %1745 = vector.broadcast %1744 : f32 to vector<8x256xf32>
    %1746 = arith.mulf %1743, %1745 : vector<8x256xf32>
    %1747 = arith.addf %1741, %1746 : vector<8x256xf32>
    %c7_1108 = arith.constant 7 : index
    %c0_1109 = arith.constant 0 : index
    %c0_1110 = arith.constant 0 : index
    %1748 = vector.load %arg1[%c7_1108, %c0_1109, %c0_1110] : memref<16x8x256xf32, #tpu.memory_space<vmem>>, vector<1x8x256xf32>
    %1749 = vector.shape_cast %1748 : vector<1x8x256xf32> to vector<8x256xf32>
    %c65_1111 = arith.constant 65 : index
    %1750 = memref.load %arg2[%c65_1111] : memref<90xf32, #tpu.memory_space<smem>>
    %1751 = vector.broadcast %1750 : f32 to vector<8x256xf32>
    %1752 = arith.mulf %1749, %1751 : vector<8x256xf32>
    %1753 = arith.addf %1747, %1752 : vector<8x256xf32>
    %c9_1112 = arith.constant 9 : index
    %c0_1113 = arith.constant 0 : index
    %c0_1114 = arith.constant 0 : index
    %1754 = vector.load %arg1[%c9_1112, %c0_1113, %c0_1114] : memref<16x8x256xf32, #tpu.memory_space<vmem>>, vector<1x8x256xf32>
    %1755 = vector.shape_cast %1754 : vector<1x8x256xf32> to vector<8x256xf32>
    %c66_1115 = arith.constant 66 : index
    %1756 = memref.load %arg2[%c66_1115] : memref<90xf32, #tpu.memory_space<smem>>
    %1757 = vector.broadcast %1756 : f32 to vector<8x256xf32>
    %1758 = arith.mulf %1755, %1757 : vector<8x256xf32>
    %1759 = arith.addf %1753, %1758 : vector<8x256xf32>
    %c10_1116 = arith.constant 10 : index
    %c0_1117 = arith.constant 0 : index
    %c0_1118 = arith.constant 0 : index
    %1760 = vector.load %arg1[%c10_1116, %c0_1117, %c0_1118] : memref<16x8x256xf32, #tpu.memory_space<vmem>>, vector<1x8x256xf32>
    %1761 = vector.shape_cast %1760 : vector<1x8x256xf32> to vector<8x256xf32>
    %c67_1119 = arith.constant 67 : index
    %1762 = memref.load %arg2[%c67_1119] : memref<90xf32, #tpu.memory_space<smem>>
    %1763 = vector.broadcast %1762 : f32 to vector<8x256xf32>
    %1764 = arith.mulf %1761, %1763 : vector<8x256xf32>
    %1765 = arith.addf %1759, %1764 : vector<8x256xf32>
    %c11_1120 = arith.constant 11 : index
    %c0_1121 = arith.constant 0 : index
    %c0_1122 = arith.constant 0 : index
    %1766 = vector.load %arg1[%c11_1120, %c0_1121, %c0_1122] : memref<16x8x256xf32, #tpu.memory_space<vmem>>, vector<1x8x256xf32>
    %1767 = vector.shape_cast %1766 : vector<1x8x256xf32> to vector<8x256xf32>
    %c68_1123 = arith.constant 68 : index
    %1768 = memref.load %arg2[%c68_1123] : memref<90xf32, #tpu.memory_space<smem>>
    %1769 = vector.broadcast %1768 : f32 to vector<8x256xf32>
    %1770 = arith.mulf %1767, %1769 : vector<8x256xf32>
    %1771 = arith.addf %1765, %1770 : vector<8x256xf32>
    %c13_1124 = arith.constant 13 : index
    %c0_1125 = arith.constant 0 : index
    %c0_1126 = arith.constant 0 : index
    %1772 = vector.load %arg1[%c13_1124, %c0_1125, %c0_1126] : memref<16x8x256xf32, #tpu.memory_space<vmem>>, vector<1x8x256xf32>
    %1773 = vector.shape_cast %1772 : vector<1x8x256xf32> to vector<8x256xf32>
    %c69_1127 = arith.constant 69 : index
    %1774 = memref.load %arg2[%c69_1127] : memref<90xf32, #tpu.memory_space<smem>>
    %1775 = vector.broadcast %1774 : f32 to vector<8x256xf32>
    %1776 = arith.mulf %1773, %1775 : vector<8x256xf32>
    %1777 = arith.addf %1771, %1776 : vector<8x256xf32>
    %c14_1128 = arith.constant 14 : index
    %c0_1129 = arith.constant 0 : index
    %c0_1130 = arith.constant 0 : index
    %1778 = vector.load %arg1[%c14_1128, %c0_1129, %c0_1130] : memref<16x8x256xf32, #tpu.memory_space<vmem>>, vector<1x8x256xf32>
    %1779 = vector.shape_cast %1778 : vector<1x8x256xf32> to vector<8x256xf32>
    %c70_1131 = arith.constant 70 : index
    %1780 = memref.load %arg2[%c70_1131] : memref<90xf32, #tpu.memory_space<smem>>
    %1781 = vector.broadcast %1780 : f32 to vector<8x256xf32>
    %1782 = arith.mulf %1779, %1781 : vector<8x256xf32>
    %1783 = arith.addf %1777, %1782 : vector<8x256xf32>
    %c15_1132 = arith.constant 15 : index
    %c0_1133 = arith.constant 0 : index
    %c0_1134 = arith.constant 0 : index
    %1784 = vector.load %arg1[%c15_1132, %c0_1133, %c0_1134] : memref<16x8x256xf32, #tpu.memory_space<vmem>>, vector<1x8x256xf32>
    %1785 = vector.shape_cast %1784 : vector<1x8x256xf32> to vector<8x256xf32>
    %c71_1135 = arith.constant 71 : index
    %1786 = memref.load %arg2[%c71_1135] : memref<90xf32, #tpu.memory_space<smem>>
    %1787 = vector.broadcast %1786 : f32 to vector<8x256xf32>
    %1788 = arith.mulf %1785, %1787 : vector<8x256xf32>
    %1789 = arith.addf %1783, %1788 : vector<8x256xf32>
    %1790 = arith.maximumf %1736, %1789 : vector<8x256xf32>
    %c7_1136 = arith.constant 7 : index
    %1791 = memref.load %arg3[%c7_1136] : memref<10xf32, #tpu.memory_space<smem>>
    %1792 = vector.broadcast %1791 : f32 to vector<8x256xf32>
    %1793 = arith.addf %1790, %1792 : vector<8x256xf32>
    %cst_1137 = arith.constant 0.000000e+00 : f32
    %1794 = vector.broadcast %cst_1137 : f32 to vector<8x256xf32>
    %1795 = arith.maximumf %1793, %1794 : vector<8x256xf32>
    %c1792 = arith.constant 1792 : index
    %c0_1138 = arith.constant 0 : index
    %1796 = vector.load %arg4[%c1792, %c0_1138] : memref<2560x128xf32, #tpu.memory_space<vmem>>, vector<256x128xf32>
    %cst_1139 = arith.constant dense<0.000000e+00> : vector<8x128xf32>
    %1797 = tpu.matmul %1795, %1796, %cst_1139 {dimension_numbers = #tpu.dot_dimension_numbers<[1], [0], [0], [1], [0, 0, 1, 1], [], []>} : vector<8x256xf32>, vector<256x128xf32>, vector<8x128xf32> -> vector<8x128xf32>
    %c0_1140 = arith.constant 0 : index
    %c0_1141 = arith.constant 0 : index
    %1798 = vector.load %arg6[%c0_1140, %c0_1141] : memref<8x128xf32, #tpu.memory_space<vmem>>, vector<8x128xf32>
    %1799 = arith.addf %1798, %1797 : vector<8x128xf32>
    %c0_1142 = arith.constant 0 : index
    %c0_1143 = arith.constant 0 : index
    %1800 = vector.load %arg6[%c0_1142, %c0_1143] : memref<8x128xf32, #tpu.memory_space<vmem>>, vector<8x128xf32>
    tpu.vector_store %arg6[%c0_1142, %c0_1143], %1799 {strides = array<i32>} : memref<8x128xf32, #tpu.memory_space<vmem>>, vector<8x128xf32>,
    %c0_1144 = arith.constant 0 : index
    %c0_1145 = arith.constant 0 : index
    %c0_1146 = arith.constant 0 : index
    %1801 = vector.load %arg1[%c0_1144, %c0_1145, %c0_1146] : memref<16x8x256xf32, #tpu.memory_space<vmem>>, vector<1x8x256xf32>
    %1802 = vector.shape_cast %1801 : vector<1x8x256xf32> to vector<8x256xf32>
    %c72 = arith.constant 72 : index
    %1803 = memref.load %arg2[%c72] : memref<90xf32, #tpu.memory_space<smem>>
    %1804 = vector.broadcast %1803 : f32 to vector<8x256xf32>
    %1805 = arith.mulf %1802, %1804 : vector<8x256xf32>
    %c1_1147 = arith.constant 1 : index
    %c0_1148 = arith.constant 0 : index
    %c0_1149 = arith.constant 0 : index
    %1806 = vector.load %arg1[%c1_1147, %c0_1148, %c0_1149] : memref<16x8x256xf32, #tpu.memory_space<vmem>>, vector<1x8x256xf32>
    %1807 = vector.shape_cast %1806 : vector<1x8x256xf32> to vector<8x256xf32>
    %c73 = arith.constant 73 : index
    %1808 = memref.load %arg2[%c73] : memref<90xf32, #tpu.memory_space<smem>>
    %1809 = vector.broadcast %1808 : f32 to vector<8x256xf32>
    %1810 = arith.mulf %1807, %1809 : vector<8x256xf32>
    %1811 = arith.addf %1805, %1810 : vector<8x256xf32>
    %c2_1150 = arith.constant 2 : index
    %c0_1151 = arith.constant 0 : index
    %c0_1152 = arith.constant 0 : index
    %1812 = vector.load %arg1[%c2_1150, %c0_1151, %c0_1152] : memref<16x8x256xf32, #tpu.memory_space<vmem>>, vector<1x8x256xf32>
    %1813 = vector.shape_cast %1812 : vector<1x8x256xf32> to vector<8x256xf32>
    %c74 = arith.constant 74 : index
    %1814 = memref.load %arg2[%c74] : memref<90xf32, #tpu.memory_space<smem>>
    %1815 = vector.broadcast %1814 : f32 to vector<8x256xf32>
    %1816 = arith.mulf %1813, %1815 : vector<8x256xf32>
    %1817 = arith.addf %1811, %1816 : vector<8x256xf32>
    %c4_1153 = arith.constant 4 : index
    %c0_1154 = arith.constant 0 : index
    %c0_1155 = arith.constant 0 : index
    %1818 = vector.load %arg1[%c4_1153, %c0_1154, %c0_1155] : memref<16x8x256xf32, #tpu.memory_space<vmem>>, vector<1x8x256xf32>
    %1819 = vector.shape_cast %1818 : vector<1x8x256xf32> to vector<8x256xf32>
    %c75 = arith.constant 75 : index
    %1820 = memref.load %arg2[%c75] : memref<90xf32, #tpu.memory_space<smem>>
    %1821 = vector.broadcast %1820 : f32 to vector<8x256xf32>
    %1822 = arith.mulf %1819, %1821 : vector<8x256xf32>
    %1823 = arith.addf %1817, %1822 : vector<8x256xf32>
    %c5_1156 = arith.constant 5 : index
    %c0_1157 = arith.constant 0 : index
    %c0_1158 = arith.constant 0 : index
    %1824 = vector.load %arg1[%c5_1156, %c0_1157, %c0_1158] : memref<16x8x256xf32, #tpu.memory_space<vmem>>, vector<1x8x256xf32>
    %1825 = vector.shape_cast %1824 : vector<1x8x256xf32> to vector<8x256xf32>
    %c76 = arith.constant 76 : index
    %1826 = memref.load %arg2[%c76] : memref<90xf32, #tpu.memory_space<smem>>
    %1827 = vector.broadcast %1826 : f32 to vector<8x256xf32>
    %1828 = arith.mulf %1825, %1827 : vector<8x256xf32>
    %1829 = arith.addf %1823, %1828 : vector<8x256xf32>
    %c6_1159 = arith.constant 6 : index
    %c0_1160 = arith.constant 0 : index
    %c0_1161 = arith.constant 0 : index
    %1830 = vector.load %arg1[%c6_1159, %c0_1160, %c0_1161] : memref<16x8x256xf32, #tpu.memory_space<vmem>>, vector<1x8x256xf32>
    %1831 = vector.shape_cast %1830 : vector<1x8x256xf32> to vector<8x256xf32>
    %c77 = arith.constant 77 : index
    %1832 = memref.load %arg2[%c77] : memref<90xf32, #tpu.memory_space<smem>>
    %1833 = vector.broadcast %1832 : f32 to vector<8x256xf32>
    %1834 = arith.mulf %1831, %1833 : vector<8x256xf32>
    %1835 = arith.addf %1829, %1834 : vector<8x256xf32>
    %c8_1162 = arith.constant 8 : index
    %c0_1163 = arith.constant 0 : index
    %c0_1164 = arith.constant 0 : index
    %1836 = vector.load %arg1[%c8_1162, %c0_1163, %c0_1164] : memref<16x8x256xf32, #tpu.memory_space<vmem>>, vector<1x8x256xf32>
    %1837 = vector.shape_cast %1836 : vector<1x8x256xf32> to vector<8x256xf32>
    %c78 = arith.constant 78 : index
    %1838 = memref.load %arg2[%c78] : memref<90xf32, #tpu.memory_space<smem>>
    %1839 = vector.broadcast %1838 : f32 to vector<8x256xf32>
    %1840 = arith.mulf %1837, %1839 : vector<8x256xf32>
    %1841 = arith.addf %1835, %1840 : vector<8x256xf32>
    %c9_1165 = arith.constant 9 : index
    %c0_1166 = arith.constant 0 : index
    %c0_1167 = arith.constant 0 : index
    %1842 = vector.load %arg1[%c9_1165, %c0_1166, %c0_1167] : memref<16x8x256xf32, #tpu.memory_space<vmem>>, vector<1x8x256xf32>
    %1843 = vector.shape_cast %1842 : vector<1x8x256xf32> to vector<8x256xf32>
    %c79 = arith.constant 79 : index
    %1844 = memref.load %arg2[%c79] : memref<90xf32, #tpu.memory_space<smem>>
    %1845 = vector.broadcast %1844 : f32 to vector<8x256xf32>
    %1846 = arith.mulf %1843, %1845 : vector<8x256xf32>
    %1847 = arith.addf %1841, %1846 : vector<8x256xf32>
    %c10_1168 = arith.constant 10 : index
    %c0_1169 = arith.constant 0 : index
    %c0_1170 = arith.constant 0 : index
    %1848 = vector.load %arg1[%c10_1168, %c0_1169, %c0_1170] : memref<16x8x256xf32, #tpu.memory_space<vmem>>, vector<1x8x256xf32>
    %1849 = vector.shape_cast %1848 : vector<1x8x256xf32> to vector<8x256xf32>
    %c80 = arith.constant 80 : index
    %1850 = memref.load %arg2[%c80] : memref<90xf32, #tpu.memory_space<smem>>
    %1851 = vector.broadcast %1850 : f32 to vector<8x256xf32>
    %1852 = arith.mulf %1849, %1851 : vector<8x256xf32>
    %1853 = arith.addf %1847, %1852 : vector<8x256xf32>
    %c1_1171 = arith.constant 1 : index
    %c0_1172 = arith.constant 0 : index
    %c0_1173 = arith.constant 0 : index
    %1854 = vector.load %arg1[%c1_1171, %c0_1172, %c0_1173] : memref<16x8x256xf32, #tpu.memory_space<vmem>>, vector<1x8x256xf32>
    %1855 = vector.shape_cast %1854 : vector<1x8x256xf32> to vector<8x256xf32>
    %c72_1174 = arith.constant 72 : index
    %1856 = memref.load %arg2[%c72_1174] : memref<90xf32, #tpu.memory_space<smem>>
    %1857 = vector.broadcast %1856 : f32 to vector<8x256xf32>
    %1858 = arith.mulf %1855, %1857 : vector<8x256xf32>
    %c2_1175 = arith.constant 2 : index
    %c0_1176 = arith.constant 0 : index
    %c0_1177 = arith.constant 0 : index
    %1859 = vector.load %arg1[%c2_1175, %c0_1176, %c0_1177] : memref<16x8x256xf32, #tpu.memory_space<vmem>>, vector<1x8x256xf32>
    %1860 = vector.shape_cast %1859 : vector<1x8x256xf32> to vector<8x256xf32>
    %c73_1178 = arith.constant 73 : index
    %1861 = memref.load %arg2[%c73_1178] : memref<90xf32, #tpu.memory_space<smem>>
    %1862 = vector.broadcast %1861 : f32 to vector<8x256xf32>
    %1863 = arith.mulf %1860, %1862 : vector<8x256xf32>
    %1864 = arith.addf %1858, %1863 : vector<8x256xf32>
    %c3_1179 = arith.constant 3 : index
    %c0_1180 = arith.constant 0 : index
    %c0_1181 = arith.constant 0 : index
    %1865 = vector.load %arg1[%c3_1179, %c0_1180, %c0_1181] : memref<16x8x256xf32, #tpu.memory_space<vmem>>, vector<1x8x256xf32>
    %1866 = vector.shape_cast %1865 : vector<1x8x256xf32> to vector<8x256xf32>
    %c74_1182 = arith.constant 74 : index
    %1867 = memref.load %arg2[%c74_1182] : memref<90xf32, #tpu.memory_space<smem>>
    %1868 = vector.broadcast %1867 : f32 to vector<8x256xf32>
    %1869 = arith.mulf %1866, %1868 : vector<8x256xf32>
    %1870 = arith.addf %1864, %1869 : vector<8x256xf32>
    %c5_1183 = arith.constant 5 : index
    %c0_1184 = arith.constant 0 : index
    %c0_1185 = arith.constant 0 : index
    %1871 = vector.load %arg1[%c5_1183, %c0_1184, %c0_1185] : memref<16x8x256xf32, #tpu.memory_space<vmem>>, vector<1x8x256xf32>
    %1872 = vector.shape_cast %1871 : vector<1x8x256xf32> to vector<8x256xf32>
    %c75_1186 = arith.constant 75 : index
    %1873 = memref.load %arg2[%c75_1186] : memref<90xf32, #tpu.memory_space<smem>>
    %1874 = vector.broadcast %1873 : f32 to vector<8x256xf32>
    %1875 = arith.mulf %1872, %1874 : vector<8x256xf32>
    %1876 = arith.addf %1870, %1875 : vector<8x256xf32>
    %c6_1187 = arith.constant 6 : index
    %c0_1188 = arith.constant 0 : index
    %c0_1189 = arith.constant 0 : index
    %1877 = vector.load %arg1[%c6_1187, %c0_1188, %c0_1189] : memref<16x8x256xf32, #tpu.memory_space<vmem>>, vector<1x8x256xf32>
    %1878 = vector.shape_cast %1877 : vector<1x8x256xf32> to vector<8x256xf32>
    %c76_1190 = arith.constant 76 : index
    %1879 = memref.load %arg2[%c76_1190] : memref<90xf32, #tpu.memory_space<smem>>
    %1880 = vector.broadcast %1879 : f32 to vector<8x256xf32>
    %1881 = arith.mulf %1878, %1880 : vector<8x256xf32>
    %1882 = arith.addf %1876, %1881 : vector<8x256xf32>
    %c7_1191 = arith.constant 7 : index
    %c0_1192 = arith.constant 0 : index
    %c0_1193 = arith.constant 0 : index
    %1883 = vector.load %arg1[%c7_1191, %c0_1192, %c0_1193] : memref<16x8x256xf32, #tpu.memory_space<vmem>>, vector<1x8x256xf32>
    %1884 = vector.shape_cast %1883 : vector<1x8x256xf32> to vector<8x256xf32>
    %c77_1194 = arith.constant 77 : index
    %1885 = memref.load %arg2[%c77_1194] : memref<90xf32, #tpu.memory_space<smem>>
    %1886 = vector.broadcast %1885 : f32 to vector<8x256xf32>
    %1887 = arith.mulf %1884, %1886 : vector<8x256xf32>
    %1888 = arith.addf %1882, %1887 : vector<8x256xf32>
    %c9_1195 = arith.constant 9 : index
    %c0_1196 = arith.constant 0 : index
    %c0_1197 = arith.constant 0 : index
    %1889 = vector.load %arg1[%c9_1195, %c0_1196, %c0_1197] : memref<16x8x256xf32, #tpu.memory_space<vmem>>, vector<1x8x256xf32>
    %1890 = vector.shape_cast %1889 : vector<1x8x256xf32> to vector<8x256xf32>
    %c78_1198 = arith.constant 78 : index
    %1891 = memref.load %arg2[%c78_1198] : memref<90xf32, #tpu.memory_space<smem>>
    %1892 = vector.broadcast %1891 : f32 to vector<8x256xf32>
    %1893 = arith.mulf %1890, %1892 : vector<8x256xf32>
    %1894 = arith.addf %1888, %1893 : vector<8x256xf32>
    %c10_1199 = arith.constant 10 : index
    %c0_1200 = arith.constant 0 : index
    %c0_1201 = arith.constant 0 : index
    %1895 = vector.load %arg1[%c10_1199, %c0_1200, %c0_1201] : memref<16x8x256xf32, #tpu.memory_space<vmem>>, vector<1x8x256xf32>
    %1896 = vector.shape_cast %1895 : vector<1x8x256xf32> to vector<8x256xf32>
    %c79_1202 = arith.constant 79 : index
    %1897 = memref.load %arg2[%c79_1202] : memref<90xf32, #tpu.memory_space<smem>>
    %1898 = vector.broadcast %1897 : f32 to vector<8x256xf32>
    %1899 = arith.mulf %1896, %1898 : vector<8x256xf32>
    %1900 = arith.addf %1894, %1899 : vector<8x256xf32>
    %c11_1203 = arith.constant 11 : index
    %c0_1204 = arith.constant 0 : index
    %c0_1205 = arith.constant 0 : index
    %1901 = vector.load %arg1[%c11_1203, %c0_1204, %c0_1205] : memref<16x8x256xf32, #tpu.memory_space<vmem>>, vector<1x8x256xf32>
    %1902 = vector.shape_cast %1901 : vector<1x8x256xf32> to vector<8x256xf32>
    %c80_1206 = arith.constant 80 : index
    %1903 = memref.load %arg2[%c80_1206] : memref<90xf32, #tpu.memory_space<smem>>
    %1904 = vector.broadcast %1903 : f32 to vector<8x256xf32>
    %1905 = arith.mulf %1902, %1904 : vector<8x256xf32>
    %1906 = arith.addf %1900, %1905 : vector<8x256xf32>
    %1907 = arith.maximumf %1853, %1906 : vector<8x256xf32>
    %c4_1207 = arith.constant 4 : index
    %c0_1208 = arith.constant 0 : index
    %c0_1209 = arith.constant 0 : index
    %1908 = vector.load %arg1[%c4_1207, %c0_1208, %c0_1209] : memref<16x8x256xf32, #tpu.memory_space<vmem>>, vector<1x8x256xf32>
    %1909 = vector.shape_cast %1908 : vector<1x8x256xf32> to vector<8x256xf32>
    %c72_1210 = arith.constant 72 : index
    %1910 = memref.load %arg2[%c72_1210] : memref<90xf32, #tpu.memory_space<smem>>
    %1911 = vector.broadcast %1910 : f32 to vector<8x256xf32>
    %1912 = arith.mulf %1909, %1911 : vector<8x256xf32>
    %c5_1211 = arith.constant 5 : index
    %c0_1212 = arith.constant 0 : index
    %c0_1213 = arith.constant 0 : index
    %1913 = vector.load %arg1[%c5_1211, %c0_1212, %c0_1213] : memref<16x8x256xf32, #tpu.memory_space<vmem>>, vector<1x8x256xf32>
    %1914 = vector.shape_cast %1913 : vector<1x8x256xf32> to vector<8x256xf32>
    %c73_1214 = arith.constant 73 : index
    %1915 = memref.load %arg2[%c73_1214] : memref<90xf32, #tpu.memory_space<smem>>
    %1916 = vector.broadcast %1915 : f32 to vector<8x256xf32>
    %1917 = arith.mulf %1914, %1916 : vector<8x256xf32>
    %1918 = arith.addf %1912, %1917 : vector<8x256xf32>
    %c6_1215 = arith.constant 6 : index
    %c0_1216 = arith.constant 0 : index
    %c0_1217 = arith.constant 0 : index
    %1919 = vector.load %arg1[%c6_1215, %c0_1216, %c0_1217] : memref<16x8x256xf32, #tpu.memory_space<vmem>>, vector<1x8x256xf32>
    %1920 = vector.shape_cast %1919 : vector<1x8x256xf32> to vector<8x256xf32>
    %c74_1218 = arith.constant 74 : index
    %1921 = memref.load %arg2[%c74_1218] : memref<90xf32, #tpu.memory_space<smem>>
    %1922 = vector.broadcast %1921 : f32 to vector<8x256xf32>
    %1923 = arith.mulf %1920, %1922 : vector<8x256xf32>
    %1924 = arith.addf %1918, %1923 : vector<8x256xf32>
    %c8_1219 = arith.constant 8 : index
    %c0_1220 = arith.constant 0 : index
    %c0_1221 = arith.constant 0 : index
    %1925 = vector.load %arg1[%c8_1219, %c0_1220, %c0_1221] : memref<16x8x256xf32, #tpu.memory_space<vmem>>, vector<1x8x256xf32>
    %1926 = vector.shape_cast %1925 : vector<1x8x256xf32> to vector<8x256xf32>
    %c75_1222 = arith.constant 75 : index
    %1927 = memref.load %arg2[%c75_1222] : memref<90xf32, #tpu.memory_space<smem>>
    %1928 = vector.broadcast %1927 : f32 to vector<8x256xf32>
    %1929 = arith.mulf %1926, %1928 : vector<8x256xf32>
    %1930 = arith.addf %1924, %1929 : vector<8x256xf32>
    %c9_1223 = arith.constant 9 : index
    %c0_1224 = arith.constant 0 : index
    %c0_1225 = arith.constant 0 : index
    %1931 = vector.load %arg1[%c9_1223, %c0_1224, %c0_1225] : memref<16x8x256xf32, #tpu.memory_space<vmem>>, vector<1x8x256xf32>
    %1932 = vector.shape_cast %1931 : vector<1x8x256xf32> to vector<8x256xf32>
    %c76_1226 = arith.constant 76 : index
    %1933 = memref.load %arg2[%c76_1226] : memref<90xf32, #tpu.memory_space<smem>>
    %1934 = vector.broadcast %1933 : f32 to vector<8x256xf32>
    %1935 = arith.mulf %1932, %1934 : vector<8x256xf32>
    %1936 = arith.addf %1930, %1935 : vector<8x256xf32>
    %c10_1227 = arith.constant 10 : index
    %c0_1228 = arith.constant 0 : index
    %c0_1229 = arith.constant 0 : index
    %1937 = vector.load %arg1[%c10_1227, %c0_1228, %c0_1229] : memref<16x8x256xf32, #tpu.memory_space<vmem>>, vector<1x8x256xf32>
    %1938 = vector.shape_cast %1937 : vector<1x8x256xf32> to vector<8x256xf32>
    %c77_1230 = arith.constant 77 : index
    %1939 = memref.load %arg2[%c77_1230] : memref<90xf32, #tpu.memory_space<smem>>
    %1940 = vector.broadcast %1939 : f32 to vector<8x256xf32>
    %1941 = arith.mulf %1938, %1940 : vector<8x256xf32>
    %1942 = arith.addf %1936, %1941 : vector<8x256xf32>
    %c12_1231 = arith.constant 12 : index
    %c0_1232 = arith.constant 0 : index
    %c0_1233 = arith.constant 0 : index
    %1943 = vector.load %arg1[%c12_1231, %c0_1232, %c0_1233] : memref<16x8x256xf32, #tpu.memory_space<vmem>>, vector<1x8x256xf32>
    %1944 = vector.shape_cast %1943 : vector<1x8x256xf32> to vector<8x256xf32>
    %c78_1234 = arith.constant 78 : index
    %1945 = memref.load %arg2[%c78_1234] : memref<90xf32, #tpu.memory_space<smem>>
    %1946 = vector.broadcast %1945 : f32 to vector<8x256xf32>
    %1947 = arith.mulf %1944, %1946 : vector<8x256xf32>
    %1948 = arith.addf %1942, %1947 : vector<8x256xf32>
    %c13_1235 = arith.constant 13 : index
    %c0_1236 = arith.constant 0 : index
    %c0_1237 = arith.constant 0 : index
    %1949 = vector.load %arg1[%c13_1235, %c0_1236, %c0_1237] : memref<16x8x256xf32, #tpu.memory_space<vmem>>, vector<1x8x256xf32>
    %1950 = vector.shape_cast %1949 : vector<1x8x256xf32> to vector<8x256xf32>
    %c79_1238 = arith.constant 79 : index
    %1951 = memref.load %arg2[%c79_1238] : memref<90xf32, #tpu.memory_space<smem>>
    %1952 = vector.broadcast %1951 : f32 to vector<8x256xf32>
    %1953 = arith.mulf %1950, %1952 : vector<8x256xf32>
    %1954 = arith.addf %1948, %1953 : vector<8x256xf32>
    %c14_1239 = arith.constant 14 : index
    %c0_1240 = arith.constant 0 : index
    %c0_1241 = arith.constant 0 : index
    %1955 = vector.load %arg1[%c14_1239, %c0_1240, %c0_1241] : memref<16x8x256xf32, #tpu.memory_space<vmem>>, vector<1x8x256xf32>
    %1956 = vector.shape_cast %1955 : vector<1x8x256xf32> to vector<8x256xf32>
    %c80_1242 = arith.constant 80 : index
    %1957 = memref.load %arg2[%c80_1242] : memref<90xf32, #tpu.memory_space<smem>>
    %1958 = vector.broadcast %1957 : f32 to vector<8x256xf32>
    %1959 = arith.mulf %1956, %1958 : vector<8x256xf32>
    %1960 = arith.addf %1954, %1959 : vector<8x256xf32>
    %1961 = arith.maximumf %1907, %1960 : vector<8x256xf32>
    %c5_1243 = arith.constant 5 : index
    %c0_1244 = arith.constant 0 : index
    %c0_1245 = arith.constant 0 : index
    %1962 = vector.load %arg1[%c5_1243, %c0_1244, %c0_1245] : memref<16x8x256xf32, #tpu.memory_space<vmem>>, vector<1x8x256xf32>
    %1963 = vector.shape_cast %1962 : vector<1x8x256xf32> to vector<8x256xf32>
    %c72_1246 = arith.constant 72 : index
    %1964 = memref.load %arg2[%c72_1246] : memref<90xf32, #tpu.memory_space<smem>>
    %1965 = vector.broadcast %1964 : f32 to vector<8x256xf32>
    %1966 = arith.mulf %1963, %1965 : vector<8x256xf32>
    %c6_1247 = arith.constant 6 : index
    %c0_1248 = arith.constant 0 : index
    %c0_1249 = arith.constant 0 : index
    %1967 = vector.load %arg1[%c6_1247, %c0_1248, %c0_1249] : memref<16x8x256xf32, #tpu.memory_space<vmem>>, vector<1x8x256xf32>
    %1968 = vector.shape_cast %1967 : vector<1x8x256xf32> to vector<8x256xf32>
    %c73_1250 = arith.constant 73 : index
    %1969 = memref.load %arg2[%c73_1250] : memref<90xf32, #tpu.memory_space<smem>>
    %1970 = vector.broadcast %1969 : f32 to vector<8x256xf32>
    %1971 = arith.mulf %1968, %1970 : vector<8x256xf32>
    %1972 = arith.addf %1966, %1971 : vector<8x256xf32>
    %c7_1251 = arith.constant 7 : index
    %c0_1252 = arith.constant 0 : index
    %c0_1253 = arith.constant 0 : index
    %1973 = vector.load %arg1[%c7_1251, %c0_1252, %c0_1253] : memref<16x8x256xf32, #tpu.memory_space<vmem>>, vector<1x8x256xf32>
    %1974 = vector.shape_cast %1973 : vector<1x8x256xf32> to vector<8x256xf32>
    %c74_1254 = arith.constant 74 : index
    %1975 = memref.load %arg2[%c74_1254] : memref<90xf32, #tpu.memory_space<smem>>
    %1976 = vector.broadcast %1975 : f32 to vector<8x256xf32>
    %1977 = arith.mulf %1974, %1976 : vector<8x256xf32>
    %1978 = arith.addf %1972, %1977 : vector<8x256xf32>
    %c9_1255 = arith.constant 9 : index
    %c0_1256 = arith.constant 0 : index
    %c0_1257 = arith.constant 0 : index
    %1979 = vector.load %arg1[%c9_1255, %c0_1256, %c0_1257] : memref<16x8x256xf32, #tpu.memory_space<vmem>>, vector<1x8x256xf32>
    %1980 = vector.shape_cast %1979 : vector<1x8x256xf32> to vector<8x256xf32>
    %c75_1258 = arith.constant 75 : index
    %1981 = memref.load %arg2[%c75_1258] : memref<90xf32, #tpu.memory_space<smem>>
    %1982 = vector.broadcast %1981 : f32 to vector<8x256xf32>
    %1983 = arith.mulf %1980, %1982 : vector<8x256xf32>
    %1984 = arith.addf %1978, %1983 : vector<8x256xf32>
    %c10_1259 = arith.constant 10 : index
    %c0_1260 = arith.constant 0 : index
    %c0_1261 = arith.constant 0 : index
    %1985 = vector.load %arg1[%c10_1259, %c0_1260, %c0_1261] : memref<16x8x256xf32, #tpu.memory_space<vmem>>, vector<1x8x256xf32>
    %1986 = vector.shape_cast %1985 : vector<1x8x256xf32> to vector<8x256xf32>
    %c76_1262 = arith.constant 76 : index
    %1987 = memref.load %arg2[%c76_1262] : memref<90xf32, #tpu.memory_space<smem>>
    %1988 = vector.broadcast %1987 : f32 to vector<8x256xf32>
    %1989 = arith.mulf %1986, %1988 : vector<8x256xf32>
    %1990 = arith.addf %1984, %1989 : vector<8x256xf32>
    %c11_1263 = arith.constant 11 : index
    %c0_1264 = arith.constant 0 : index
    %c0_1265 = arith.constant 0 : index
    %1991 = vector.load %arg1[%c11_1263, %c0_1264, %c0_1265] : memref<16x8x256xf32, #tpu.memory_space<vmem>>, vector<1x8x256xf32>
    %1992 = vector.shape_cast %1991 : vector<1x8x256xf32> to vector<8x256xf32>
    %c77_1266 = arith.constant 77 : index
    %1993 = memref.load %arg2[%c77_1266] : memref<90xf32, #tpu.memory_space<smem>>
    %1994 = vector.broadcast %1993 : f32 to vector<8x256xf32>
    %1995 = arith.mulf %1992, %1994 : vector<8x256xf32>
    %1996 = arith.addf %1990, %1995 : vector<8x256xf32>
    %c13_1267 = arith.constant 13 : index
    %c0_1268 = arith.constant 0 : index
    %c0_1269 = arith.constant 0 : index
    %1997 = vector.load %arg1[%c13_1267, %c0_1268, %c0_1269] : memref<16x8x256xf32, #tpu.memory_space<vmem>>, vector<1x8x256xf32>
    %1998 = vector.shape_cast %1997 : vector<1x8x256xf32> to vector<8x256xf32>
    %c78_1270 = arith.constant 78 : index
    %1999 = memref.load %arg2[%c78_1270] : memref<90xf32, #tpu.memory_space<smem>>
    %2000 = vector.broadcast %1999 : f32 to vector<8x256xf32>
    %2001 = arith.mulf %1998, %2000 : vector<8x256xf32>
    %2002 = arith.addf %1996, %2001 : vector<8x256xf32>
    %c14_1271 = arith.constant 14 : index
    %c0_1272 = arith.constant 0 : index
    %c0_1273 = arith.constant 0 : index
    %2003 = vector.load %arg1[%c14_1271, %c0_1272, %c0_1273] : memref<16x8x256xf32, #tpu.memory_space<vmem>>, vector<1x8x256xf32>
    %2004 = vector.shape_cast %2003 : vector<1x8x256xf32> to vector<8x256xf32>
    %c79_1274 = arith.constant 79 : index
    %2005 = memref.load %arg2[%c79_1274] : memref<90xf32, #tpu.memory_space<smem>>
    %2006 = vector.broadcast %2005 : f32 to vector<8x256xf32>
    %2007 = arith.mulf %2004, %2006 : vector<8x256xf32>
    %2008 = arith.addf %2002, %2007 : vector<8x256xf32>
    %c15_1275 = arith.constant 15 : index
    %c0_1276 = arith.constant 0 : index
    %c0_1277 = arith.constant 0 : index
    %2009 = vector.load %arg1[%c15_1275, %c0_1276, %c0_1277] : memref<16x8x256xf32, #tpu.memory_space<vmem>>, vector<1x8x256xf32>
    %2010 = vector.shape_cast %2009 : vector<1x8x256xf32> to vector<8x256xf32>
    %c80_1278 = arith.constant 80 : index
    %2011 = memref.load %arg2[%c80_1278] : memref<90xf32, #tpu.memory_space<smem>>
    %2012 = vector.broadcast %2011 : f32 to vector<8x256xf32>
    %2013 = arith.mulf %2010, %2012 : vector<8x256xf32>
    %2014 = arith.addf %2008, %2013 : vector<8x256xf32>
    %2015 = arith.maximumf %1961, %2014 : vector<8x256xf32>
    %c8_1279 = arith.constant 8 : index
    %2016 = memref.load %arg3[%c8_1279] : memref<10xf32, #tpu.memory_space<smem>>
    %2017 = vector.broadcast %2016 : f32 to vector<8x256xf32>
    %2018 = arith.addf %2015, %2017 : vector<8x256xf32>
    %cst_1280 = arith.constant 0.000000e+00 : f32
    %2019 = vector.broadcast %cst_1280 : f32 to vector<8x256xf32>
    %2020 = arith.maximumf %2018, %2019 : vector<8x256xf32>
    %c2048 = arith.constant 2048 : index
    %c0_1281 = arith.constant 0 : index
    %2021 = vector.load %arg4[%c2048, %c0_1281] : memref<2560x128xf32, #tpu.memory_space<vmem>>, vector<256x128xf32>
    %cst_1282 = arith.constant dense<0.000000e+00> : vector<8x128xf32>
    %2022 = tpu.matmul %2020, %2021, %cst_1282 {dimension_numbers = #tpu.dot_dimension_numbers<[1], [0], [0], [1], [0, 0, 1, 1], [], []>} : vector<8x256xf32>, vector<256x128xf32>, vector<8x128xf32> -> vector<8x128xf32>
    %c0_1283 = arith.constant 0 : index
    %c0_1284 = arith.constant 0 : index
    %2023 = vector.load %arg6[%c0_1283, %c0_1284] : memref<8x128xf32, #tpu.memory_space<vmem>>, vector<8x128xf32>
    %2024 = arith.addf %2023, %2022 : vector<8x128xf32>
    %c0_1285 = arith.constant 0 : index
    %c0_1286 = arith.constant 0 : index
    %2025 = vector.load %arg6[%c0_1285, %c0_1286] : memref<8x128xf32, #tpu.memory_space<vmem>>, vector<8x128xf32>
    tpu.vector_store %arg6[%c0_1285, %c0_1286], %2024 {strides = array<i32>} : memref<8x128xf32, #tpu.memory_space<vmem>>, vector<8x128xf32>,
    %c0_1287 = arith.constant 0 : index
    %c0_1288 = arith.constant 0 : index
    %c0_1289 = arith.constant 0 : index
    %2026 = vector.load %arg1[%c0_1287, %c0_1288, %c0_1289] : memref<16x8x256xf32, #tpu.memory_space<vmem>>, vector<1x8x256xf32>
    %2027 = vector.shape_cast %2026 : vector<1x8x256xf32> to vector<8x256xf32>
    %c81 = arith.constant 81 : index
    %2028 = memref.load %arg2[%c81] : memref<90xf32, #tpu.memory_space<smem>>
    %2029 = vector.broadcast %2028 : f32 to vector<8x256xf32>
    %2030 = arith.mulf %2027, %2029 : vector<8x256xf32>
    %c1_1290 = arith.constant 1 : index
    %c0_1291 = arith.constant 0 : index
    %c0_1292 = arith.constant 0 : index
    %2031 = vector.load %arg1[%c1_1290, %c0_1291, %c0_1292] : memref<16x8x256xf32, #tpu.memory_space<vmem>>, vector<1x8x256xf32>
    %2032 = vector.shape_cast %2031 : vector<1x8x256xf32> to vector<8x256xf32>
    %c82 = arith.constant 82 : index
    %2033 = memref.load %arg2[%c82] : memref<90xf32, #tpu.memory_space<smem>>
    %2034 = vector.broadcast %2033 : f32 to vector<8x256xf32>
    %2035 = arith.mulf %2032, %2034 : vector<8x256xf32>
    %2036 = arith.addf %2030, %2035 : vector<8x256xf32>
    %c2_1293 = arith.constant 2 : index
    %c0_1294 = arith.constant 0 : index
    %c0_1295 = arith.constant 0 : index
    %2037 = vector.load %arg1[%c2_1293, %c0_1294, %c0_1295] : memref<16x8x256xf32, #tpu.memory_space<vmem>>, vector<1x8x256xf32>
    %2038 = vector.shape_cast %2037 : vector<1x8x256xf32> to vector<8x256xf32>
    %c83 = arith.constant 83 : index
    %2039 = memref.load %arg2[%c83] : memref<90xf32, #tpu.memory_space<smem>>
    %2040 = vector.broadcast %2039 : f32 to vector<8x256xf32>
    %2041 = arith.mulf %2038, %2040 : vector<8x256xf32>
    %2042 = arith.addf %2036, %2041 : vector<8x256xf32>
    %c4_1296 = arith.constant 4 : index
    %c0_1297 = arith.constant 0 : index
    %c0_1298 = arith.constant 0 : index
    %2043 = vector.load %arg1[%c4_1296, %c0_1297, %c0_1298] : memref<16x8x256xf32, #tpu.memory_space<vmem>>, vector<1x8x256xf32>
    %2044 = vector.shape_cast %2043 : vector<1x8x256xf32> to vector<8x256xf32>
    %c84 = arith.constant 84 : index
    %2045 = memref.load %arg2[%c84] : memref<90xf32, #tpu.memory_space<smem>>
    %2046 = vector.broadcast %2045 : f32 to vector<8x256xf32>
    %2047 = arith.mulf %2044, %2046 : vector<8x256xf32>
    %2048 = arith.addf %2042, %2047 : vector<8x256xf32>
    %c5_1299 = arith.constant 5 : index
    %c0_1300 = arith.constant 0 : index
    %c0_1301 = arith.constant 0 : index
    %2049 = vector.load %arg1[%c5_1299, %c0_1300, %c0_1301] : memref<16x8x256xf32, #tpu.memory_space<vmem>>, vector<1x8x256xf32>
    %2050 = vector.shape_cast %2049 : vector<1x8x256xf32> to vector<8x256xf32>
    %c85 = arith.constant 85 : index
    %2051 = memref.load %arg2[%c85] : memref<90xf32, #tpu.memory_space<smem>>
    %2052 = vector.broadcast %2051 : f32 to vector<8x256xf32>
    %2053 = arith.mulf %2050, %2052 : vector<8x256xf32>
    %2054 = arith.addf %2048, %2053 : vector<8x256xf32>
    %c6_1302 = arith.constant 6 : index
    %c0_1303 = arith.constant 0 : index
    %c0_1304 = arith.constant 0 : index
    %2055 = vector.load %arg1[%c6_1302, %c0_1303, %c0_1304] : memref<16x8x256xf32, #tpu.memory_space<vmem>>, vector<1x8x256xf32>
    %2056 = vector.shape_cast %2055 : vector<1x8x256xf32> to vector<8x256xf32>
    %c86 = arith.constant 86 : index
    %2057 = memref.load %arg2[%c86] : memref<90xf32, #tpu.memory_space<smem>>
    %2058 = vector.broadcast %2057 : f32 to vector<8x256xf32>
    %2059 = arith.mulf %2056, %2058 : vector<8x256xf32>
    %2060 = arith.addf %2054, %2059 : vector<8x256xf32>
    %c8_1305 = arith.constant 8 : index
    %c0_1306 = arith.constant 0 : index
    %c0_1307 = arith.constant 0 : index
    %2061 = vector.load %arg1[%c8_1305, %c0_1306, %c0_1307] : memref<16x8x256xf32, #tpu.memory_space<vmem>>, vector<1x8x256xf32>
    %2062 = vector.shape_cast %2061 : vector<1x8x256xf32> to vector<8x256xf32>
    %c87 = arith.constant 87 : index
    %2063 = memref.load %arg2[%c87] : memref<90xf32, #tpu.memory_space<smem>>
    %2064 = vector.broadcast %2063 : f32 to vector<8x256xf32>
    %2065 = arith.mulf %2062, %2064 : vector<8x256xf32>
    %2066 = arith.addf %2060, %2065 : vector<8x256xf32>
    %c9_1308 = arith.constant 9 : index
    %c0_1309 = arith.constant 0 : index
    %c0_1310 = arith.constant 0 : index
    %2067 = vector.load %arg1[%c9_1308, %c0_1309, %c0_1310] : memref<16x8x256xf32, #tpu.memory_space<vmem>>, vector<1x8x256xf32>
    %2068 = vector.shape_cast %2067 : vector<1x8x256xf32> to vector<8x256xf32>
    %c88 = arith.constant 88 : index
    %2069 = memref.load %arg2[%c88] : memref<90xf32, #tpu.memory_space<smem>>
    %2070 = vector.broadcast %2069 : f32 to vector<8x256xf32>
    %2071 = arith.mulf %2068, %2070 : vector<8x256xf32>
    %2072 = arith.addf %2066, %2071 : vector<8x256xf32>
    %c10_1311 = arith.constant 10 : index
    %c0_1312 = arith.constant 0 : index
    %c0_1313 = arith.constant 0 : index
    %2073 = vector.load %arg1[%c10_1311, %c0_1312, %c0_1313] : memref<16x8x256xf32, #tpu.memory_space<vmem>>, vector<1x8x256xf32>
    %2074 = vector.shape_cast %2073 : vector<1x8x256xf32> to vector<8x256xf32>
    %c89 = arith.constant 89 : index
    %2075 = memref.load %arg2[%c89] : memref<90xf32, #tpu.memory_space<smem>>
    %2076 = vector.broadcast %2075 : f32 to vector<8x256xf32>
    %2077 = arith.mulf %2074, %2076 : vector<8x256xf32>
    %2078 = arith.addf %2072, %2077 : vector<8x256xf32>
    %c1_1314 = arith.constant 1 : index
    %c0_1315 = arith.constant 0 : index
    %c0_1316 = arith.constant 0 : index
    %2079 = vector.load %arg1[%c1_1314, %c0_1315, %c0_1316] : memref<16x8x256xf32, #tpu.memory_space<vmem>>, vector<1x8x256xf32>
    %2080 = vector.shape_cast %2079 : vector<1x8x256xf32> to vector<8x256xf32>
    %c81_1317 = arith.constant 81 : index
    %2081 = memref.load %arg2[%c81_1317] : memref<90xf32, #tpu.memory_space<smem>>
    %2082 = vector.broadcast %2081 : f32 to vector<8x256xf32>
    %2083 = arith.mulf %2080, %2082 : vector<8x256xf32>
    %c2_1318 = arith.constant 2 : index
    %c0_1319 = arith.constant 0 : index
    %c0_1320 = arith.constant 0 : index
    %2084 = vector.load %arg1[%c2_1318, %c0_1319, %c0_1320] : memref<16x8x256xf32, #tpu.memory_space<vmem>>, vector<1x8x256xf32>
    %2085 = vector.shape_cast %2084 : vector<1x8x256xf32> to vector<8x256xf32>
    %c82_1321 = arith.constant 82 : index
    %2086 = memref.load %arg2[%c82_1321] : memref<90xf32, #tpu.memory_space<smem>>
    %2087 = vector.broadcast %2086 : f32 to vector<8x256xf32>
    %2088 = arith.mulf %2085, %2087 : vector<8x256xf32>
    %2089 = arith.addf %2083, %2088 : vector<8x256xf32>
    %c3_1322 = arith.constant 3 : index
    %c0_1323 = arith.constant 0 : index
    %c0_1324 = arith.constant 0 : index
    %2090 = vector.load %arg1[%c3_1322, %c0_1323, %c0_1324] : memref<16x8x256xf32, #tpu.memory_space<vmem>>, vector<1x8x256xf32>
    %2091 = vector.shape_cast %2090 : vector<1x8x256xf32> to vector<8x256xf32>
    %c83_1325 = arith.constant 83 : index
    %2092 = memref.load %arg2[%c83_1325] : memref<90xf32, #tpu.memory_space<smem>>
    %2093 = vector.broadcast %2092 : f32 to vector<8x256xf32>
    %2094 = arith.mulf %2091, %2093 : vector<8x256xf32>
    %2095 = arith.addf %2089, %2094 : vector<8x256xf32>
    %c5_1326 = arith.constant 5 : index
    %c0_1327 = arith.constant 0 : index
    %c0_1328 = arith.constant 0 : index
    %2096 = vector.load %arg1[%c5_1326, %c0_1327, %c0_1328] : memref<16x8x256xf32, #tpu.memory_space<vmem>>, vector<1x8x256xf32>
    %2097 = vector.shape_cast %2096 : vector<1x8x256xf32> to vector<8x256xf32>
    %c84_1329 = arith.constant 84 : index
    %2098 = memref.load %arg2[%c84_1329] : memref<90xf32, #tpu.memory_space<smem>>
    %2099 = vector.broadcast %2098 : f32 to vector<8x256xf32>
    %2100 = arith.mulf %2097, %2099 : vector<8x256xf32>
    %2101 = arith.addf %2095, %2100 : vector<8x256xf32>
    %c6_1330 = arith.constant 6 : index
    %c0_1331 = arith.constant 0 : index
    %c0_1332 = arith.constant 0 : index
    %2102 = vector.load %arg1[%c6_1330, %c0_1331, %c0_1332] : memref<16x8x256xf32, #tpu.memory_space<vmem>>, vector<1x8x256xf32>
    %2103 = vector.shape_cast %2102 : vector<1x8x256xf32> to vector<8x256xf32>
    %c85_1333 = arith.constant 85 : index
    %2104 = memref.load %arg2[%c85_1333] : memref<90xf32, #tpu.memory_space<smem>>
    %2105 = vector.broadcast %2104 : f32 to vector<8x256xf32>
    %2106 = arith.mulf %2103, %2105 : vector<8x256xf32>
    %2107 = arith.addf %2101, %2106 : vector<8x256xf32>
    %c7_1334 = arith.constant 7 : index
    %c0_1335 = arith.constant 0 : index
    %c0_1336 = arith.constant 0 : index
    %2108 = vector.load %arg1[%c7_1334, %c0_1335, %c0_1336] : memref<16x8x256xf32, #tpu.memory_space<vmem>>, vector<1x8x256xf32>
    %2109 = vector.shape_cast %2108 : vector<1x8x256xf32> to vector<8x256xf32>
    %c86_1337 = arith.constant 86 : index
    %2110 = memref.load %arg2[%c86_1337] : memref<90xf32, #tpu.memory_space<smem>>
    %2111 = vector.broadcast %2110 : f32 to vector<8x256xf32>
    %2112 = arith.mulf %2109, %2111 : vector<8x256xf32>
    %2113 = arith.addf %2107, %2112 : vector<8x256xf32>
    %c9_1338 = arith.constant 9 : index
    %c0_1339 = arith.constant 0 : index
    %c0_1340 = arith.constant 0 : index
    %2114 = vector.load %arg1[%c9_1338, %c0_1339, %c0_1340] : memref<16x8x256xf32, #tpu.memory_space<vmem>>, vector<1x8x256xf32>
    %2115 = vector.shape_cast %2114 : vector<1x8x256xf32> to vector<8x256xf32>
    %c87_1341 = arith.constant 87 : index
    %2116 = memref.load %arg2[%c87_1341] : memref<90xf32, #tpu.memory_space<smem>>
    %2117 = vector.broadcast %2116 : f32 to vector<8x256xf32>
    %2118 = arith.mulf %2115, %2117 : vector<8x256xf32>
    %2119 = arith.addf %2113, %2118 : vector<8x256xf32>
    %c10_1342 = arith.constant 10 : index
    %c0_1343 = arith.constant 0 : index
    %c0_1344 = arith.constant 0 : index
    %2120 = vector.load %arg1[%c10_1342, %c0_1343, %c0_1344] : memref<16x8x256xf32, #tpu.memory_space<vmem>>, vector<1x8x256xf32>
    %2121 = vector.shape_cast %2120 : vector<1x8x256xf32> to vector<8x256xf32>
    %c88_1345 = arith.constant 88 : index
    %2122 = memref.load %arg2[%c88_1345] : memref<90xf32, #tpu.memory_space<smem>>
    %2123 = vector.broadcast %2122 : f32 to vector<8x256xf32>
    %2124 = arith.mulf %2121, %2123 : vector<8x256xf32>
    %2125 = arith.addf %2119, %2124 : vector<8x256xf32>
    %c11_1346 = arith.constant 11 : index
    %c0_1347 = arith.constant 0 : index
    %c0_1348 = arith.constant 0 : index
    %2126 = vector.load %arg1[%c11_1346, %c0_1347, %c0_1348] : memref<16x8x256xf32, #tpu.memory_space<vmem>>, vector<1x8x256xf32>
    %2127 = vector.shape_cast %2126 : vector<1x8x256xf32> to vector<8x256xf32>
    %c89_1349 = arith.constant 89 : index
    %2128 = memref.load %arg2[%c89_1349] : memref<90xf32, #tpu.memory_space<smem>>
    %2129 = vector.broadcast %2128 : f32 to vector<8x256xf32>
    %2130 = arith.mulf %2127, %2129 : vector<8x256xf32>
    %2131 = arith.addf %2125, %2130 : vector<8x256xf32>
    %2132 = arith.maximumf %2078, %2131 : vector<8x256xf32>
    %c4_1350 = arith.constant 4 : index
    %c0_1351 = arith.constant 0 : index
    %c0_1352 = arith.constant 0 : index
    %2133 = vector.load %arg1[%c4_1350, %c0_1351, %c0_1352] : memref<16x8x256xf32, #tpu.memory_space<vmem>>, vector<1x8x256xf32>
    %2134 = vector.shape_cast %2133 : vector<1x8x256xf32> to vector<8x256xf32>
    %c81_1353 = arith.constant 81 : index
    %2135 = memref.load %arg2[%c81_1353] : memref<90xf32, #tpu.memory_space<smem>>
    %2136 = vector.broadcast %2135 : f32 to vector<8x256xf32>
    %2137 = arith.mulf %2134, %2136 : vector<8x256xf32>
    %c5_1354 = arith.constant 5 : index
    %c0_1355 = arith.constant 0 : index
    %c0_1356 = arith.constant 0 : index
    %2138 = vector.load %arg1[%c5_1354, %c0_1355, %c0_1356] : memref<16x8x256xf32, #tpu.memory_space<vmem>>, vector<1x8x256xf32>
    %2139 = vector.shape_cast %2138 : vector<1x8x256xf32> to vector<8x256xf32>
    %c82_1357 = arith.constant 82 : index
    %2140 = memref.load %arg2[%c82_1357] : memref<90xf32, #tpu.memory_space<smem>>
    %2141 = vector.broadcast %2140 : f32 to vector<8x256xf32>
    %2142 = arith.mulf %2139, %2141 : vector<8x256xf32>
    %2143 = arith.addf %2137, %2142 : vector<8x256xf32>
    %c6_1358 = arith.constant 6 : index
    %c0_1359 = arith.constant 0 : index
    %c0_1360 = arith.constant 0 : index
    %2144 = vector.load %arg1[%c6_1358, %c0_1359, %c0_1360] : memref<16x8x256xf32, #tpu.memory_space<vmem>>, vector<1x8x256xf32>
    %2145 = vector.shape_cast %2144 : vector<1x8x256xf32> to vector<8x256xf32>
    %c83_1361 = arith.constant 83 : index
    %2146 = memref.load %arg2[%c83_1361] : memref<90xf32, #tpu.memory_space<smem>>
    %2147 = vector.broadcast %2146 : f32 to vector<8x256xf32>
    %2148 = arith.mulf %2145, %2147 : vector<8x256xf32>
    %2149 = arith.addf %2143, %2148 : vector<8x256xf32>
    %c8_1362 = arith.constant 8 : index
    %c0_1363 = arith.constant 0 : index
    %c0_1364 = arith.constant 0 : index
    %2150 = vector.load %arg1[%c8_1362, %c0_1363, %c0_1364] : memref<16x8x256xf32, #tpu.memory_space<vmem>>, vector<1x8x256xf32>
    %2151 = vector.shape_cast %2150 : vector<1x8x256xf32> to vector<8x256xf32>
    %c84_1365 = arith.constant 84 : index
    %2152 = memref.load %arg2[%c84_1365] : memref<90xf32, #tpu.memory_space<smem>>
    %2153 = vector.broadcast %2152 : f32 to vector<8x256xf32>
    %2154 = arith.mulf %2151, %2153 : vector<8x256xf32>
    %2155 = arith.addf %2149, %2154 : vector<8x256xf32>
    %c9_1366 = arith.constant 9 : index
    %c0_1367 = arith.constant 0 : index
    %c0_1368 = arith.constant 0 : index
    %2156 = vector.load %arg1[%c9_1366, %c0_1367, %c0_1368] : memref<16x8x256xf32, #tpu.memory_space<vmem>>, vector<1x8x256xf32>
    %2157 = vector.shape_cast %2156 : vector<1x8x256xf32> to vector<8x256xf32>
    %c85_1369 = arith.constant 85 : index
    %2158 = memref.load %arg2[%c85_1369] : memref<90xf32, #tpu.memory_space<smem>>
    %2159 = vector.broadcast %2158 : f32 to vector<8x256xf32>
    %2160 = arith.mulf %2157, %2159 : vector<8x256xf32>
    %2161 = arith.addf %2155, %2160 : vector<8x256xf32>
    %c10_1370 = arith.constant 10 : index
    %c0_1371 = arith.constant 0 : index
    %c0_1372 = arith.constant 0 : index
    %2162 = vector.load %arg1[%c10_1370, %c0_1371, %c0_1372] : memref<16x8x256xf32, #tpu.memory_space<vmem>>, vector<1x8x256xf32>
    %2163 = vector.shape_cast %2162 : vector<1x8x256xf32> to vector<8x256xf32>
    %c86_1373 = arith.constant 86 : index
    %2164 = memref.load %arg2[%c86_1373] : memref<90xf32, #tpu.memory_space<smem>>
    %2165 = vector.broadcast %2164 : f32 to vector<8x256xf32>
    %2166 = arith.mulf %2163, %2165 : vector<8x256xf32>
    %2167 = arith.addf %2161, %2166 : vector<8x256xf32>
    %c12_1374 = arith.constant 12 : index
    %c0_1375 = arith.constant 0 : index
    %c0_1376 = arith.constant 0 : index
    %2168 = vector.load %arg1[%c12_1374, %c0_1375, %c0_1376] : memref<16x8x256xf32, #tpu.memory_space<vmem>>, vector<1x8x256xf32>
    %2169 = vector.shape_cast %2168 : vector<1x8x256xf32> to vector<8x256xf32>
    %c87_1377 = arith.constant 87 : index
    %2170 = memref.load %arg2[%c87_1377] : memref<90xf32, #tpu.memory_space<smem>>
    %2171 = vector.broadcast %2170 : f32 to vector<8x256xf32>
    %2172 = arith.mulf %2169, %2171 : vector<8x256xf32>
    %2173 = arith.addf %2167, %2172 : vector<8x256xf32>
    %c13_1378 = arith.constant 13 : index
    %c0_1379 = arith.constant 0 : index
    %c0_1380 = arith.constant 0 : index
    %2174 = vector.load %arg1[%c13_1378, %c0_1379, %c0_1380] : memref<16x8x256xf32, #tpu.memory_space<vmem>>, vector<1x8x256xf32>
    %2175 = vector.shape_cast %2174 : vector<1x8x256xf32> to vector<8x256xf32>
    %c88_1381 = arith.constant 88 : index
    %2176 = memref.load %arg2[%c88_1381] : memref<90xf32, #tpu.memory_space<smem>>
    %2177 = vector.broadcast %2176 : f32 to vector<8x256xf32>
    %2178 = arith.mulf %2175, %2177 : vector<8x256xf32>
    %2179 = arith.addf %2173, %2178 : vector<8x256xf32>
    %c14_1382 = arith.constant 14 : index
    %c0_1383 = arith.constant 0 : index
    %c0_1384 = arith.constant 0 : index
    %2180 = vector.load %arg1[%c14_1382, %c0_1383, %c0_1384] : memref<16x8x256xf32, #tpu.memory_space<vmem>>, vector<1x8x256xf32>
    %2181 = vector.shape_cast %2180 : vector<1x8x256xf32> to vector<8x256xf32>
    %c89_1385 = arith.constant 89 : index
    %2182 = memref.load %arg2[%c89_1385] : memref<90xf32, #tpu.memory_space<smem>>
    %2183 = vector.broadcast %2182 : f32 to vector<8x256xf32>
    %2184 = arith.mulf %2181, %2183 : vector<8x256xf32>
    %2185 = arith.addf %2179, %2184 : vector<8x256xf32>
    %2186 = arith.maximumf %2132, %2185 : vector<8x256xf32>
    %c5_1386 = arith.constant 5 : index
    %c0_1387 = arith.constant 0 : index
    %c0_1388 = arith.constant 0 : index
    %2187 = vector.load %arg1[%c5_1386, %c0_1387, %c0_1388] : memref<16x8x256xf32, #tpu.memory_space<vmem>>, vector<1x8x256xf32>
    %2188 = vector.shape_cast %2187 : vector<1x8x256xf32> to vector<8x256xf32>
    %c81_1389 = arith.constant 81 : index
    %2189 = memref.load %arg2[%c81_1389] : memref<90xf32, #tpu.memory_space<smem>>
    %2190 = vector.broadcast %2189 : f32 to vector<8x256xf32>
    %2191 = arith.mulf %2188, %2190 : vector<8x256xf32>
    %c6_1390 = arith.constant 6 : index
    %c0_1391 = arith.constant 0 : index
    %c0_1392 = arith.constant 0 : index
    %2192 = vector.load %arg1[%c6_1390, %c0_1391, %c0_1392] : memref<16x8x256xf32, #tpu.memory_space<vmem>>, vector<1x8x256xf32>
    %2193 = vector.shape_cast %2192 : vector<1x8x256xf32> to vector<8x256xf32>
    %c82_1393 = arith.constant 82 : index
    %2194 = memref.load %arg2[%c82_1393] : memref<90xf32, #tpu.memory_space<smem>>
    %2195 = vector.broadcast %2194 : f32 to vector<8x256xf32>
    %2196 = arith.mulf %2193, %2195 : vector<8x256xf32>
    %2197 = arith.addf %2191, %2196 : vector<8x256xf32>
    %c7_1394 = arith.constant 7 : index
    %c0_1395 = arith.constant 0 : index
    %c0_1396 = arith.constant 0 : index
    %2198 = vector.load %arg1[%c7_1394, %c0_1395, %c0_1396] : memref<16x8x256xf32, #tpu.memory_space<vmem>>, vector<1x8x256xf32>
    %2199 = vector.shape_cast %2198 : vector<1x8x256xf32> to vector<8x256xf32>
    %c83_1397 = arith.constant 83 : index
    %2200 = memref.load %arg2[%c83_1397] : memref<90xf32, #tpu.memory_space<smem>>
    %2201 = vector.broadcast %2200 : f32 to vector<8x256xf32>
    %2202 = arith.mulf %2199, %2201 : vector<8x256xf32>
    %2203 = arith.addf %2197, %2202 : vector<8x256xf32>
    %c9_1398 = arith.constant 9 : index
    %c0_1399 = arith.constant 0 : index
    %c0_1400 = arith.constant 0 : index
    %2204 = vector.load %arg1[%c9_1398, %c0_1399, %c0_1400] : memref<16x8x256xf32, #tpu.memory_space<vmem>>, vector<1x8x256xf32>
    %2205 = vector.shape_cast %2204 : vector<1x8x256xf32> to vector<8x256xf32>
    %c84_1401 = arith.constant 84 : index
    %2206 = memref.load %arg2[%c84_1401] : memref<90xf32, #tpu.memory_space<smem>>
    %2207 = vector.broadcast %2206 : f32 to vector<8x256xf32>
    %2208 = arith.mulf %2205, %2207 : vector<8x256xf32>
    %2209 = arith.addf %2203, %2208 : vector<8x256xf32>
    %c10_1402 = arith.constant 10 : index
    %c0_1403 = arith.constant 0 : index
    %c0_1404 = arith.constant 0 : index
    %2210 = vector.load %arg1[%c10_1402, %c0_1403, %c0_1404] : memref<16x8x256xf32, #tpu.memory_space<vmem>>, vector<1x8x256xf32>
    %2211 = vector.shape_cast %2210 : vector<1x8x256xf32> to vector<8x256xf32>
    %c85_1405 = arith.constant 85 : index
    %2212 = memref.load %arg2[%c85_1405] : memref<90xf32, #tpu.memory_space<smem>>
    %2213 = vector.broadcast %2212 : f32 to vector<8x256xf32>
    %2214 = arith.mulf %2211, %2213 : vector<8x256xf32>
    %2215 = arith.addf %2209, %2214 : vector<8x256xf32>
    %c11_1406 = arith.constant 11 : index
    %c0_1407 = arith.constant 0 : index
    %c0_1408 = arith.constant 0 : index
    %2216 = vector.load %arg1[%c11_1406, %c0_1407, %c0_1408] : memref<16x8x256xf32, #tpu.memory_space<vmem>>, vector<1x8x256xf32>
    %2217 = vector.shape_cast %2216 : vector<1x8x256xf32> to vector<8x256xf32>
    %c86_1409 = arith.constant 86 : index
    %2218 = memref.load %arg2[%c86_1409] : memref<90xf32, #tpu.memory_space<smem>>
    %2219 = vector.broadcast %2218 : f32 to vector<8x256xf32>
    %2220 = arith.mulf %2217, %2219 : vector<8x256xf32>
    %2221 = arith.addf %2215, %2220 : vector<8x256xf32>
    %c13_1410 = arith.constant 13 : index
    %c0_1411 = arith.constant 0 : index
    %c0_1412 = arith.constant 0 : index
    %2222 = vector.load %arg1[%c13_1410, %c0_1411, %c0_1412] : memref<16x8x256xf32, #tpu.memory_space<vmem>>, vector<1x8x256xf32>
    %2223 = vector.shape_cast %2222 : vector<1x8x256xf32> to vector<8x256xf32>
    %c87_1413 = arith.constant 87 : index
    %2224 = memref.load %arg2[%c87_1413] : memref<90xf32, #tpu.memory_space<smem>>
    %2225 = vector.broadcast %2224 : f32 to vector<8x256xf32>
    %2226 = arith.mulf %2223, %2225 : vector<8x256xf32>
    %2227 = arith.addf %2221, %2226 : vector<8x256xf32>
    %c14_1414 = arith.constant 14 : index
    %c0_1415 = arith.constant 0 : index
    %c0_1416 = arith.constant 0 : index
    %2228 = vector.load %arg1[%c14_1414, %c0_1415, %c0_1416] : memref<16x8x256xf32, #tpu.memory_space<vmem>>, vector<1x8x256xf32>
    %2229 = vector.shape_cast %2228 : vector<1x8x256xf32> to vector<8x256xf32>
    %c88_1417 = arith.constant 88 : index
    %2230 = memref.load %arg2[%c88_1417] : memref<90xf32, #tpu.memory_space<smem>>
    %2231 = vector.broadcast %2230 : f32 to vector<8x256xf32>
    %2232 = arith.mulf %2229, %2231 : vector<8x256xf32>
    %2233 = arith.addf %2227, %2232 : vector<8x256xf32>
    %c15_1418 = arith.constant 15 : index
    %c0_1419 = arith.constant 0 : index
    %c0_1420 = arith.constant 0 : index
    %2234 = vector.load %arg1[%c15_1418, %c0_1419, %c0_1420] : memref<16x8x256xf32, #tpu.memory_space<vmem>>, vector<1x8x256xf32>
    %2235 = vector.shape_cast %2234 : vector<1x8x256xf32> to vector<8x256xf32>
    %c89_1421 = arith.constant 89 : index
    %2236 = memref.load %arg2[%c89_1421] : memref<90xf32, #tpu.memory_space<smem>>
    %2237 = vector.broadcast %2236 : f32 to vector<8x256xf32>
    %2238 = arith.mulf %2235, %2237 : vector<8x256xf32>
    %2239 = arith.addf %2233, %2238 : vector<8x256xf32>
    %2240 = arith.maximumf %2186, %2239 : vector<8x256xf32>
    %c9_1422 = arith.constant 9 : index
    %2241 = memref.load %arg3[%c9_1422] : memref<10xf32, #tpu.memory_space<smem>>
    %2242 = vector.broadcast %2241 : f32 to vector<8x256xf32>
    %2243 = arith.addf %2240, %2242 : vector<8x256xf32>
    %cst_1423 = arith.constant 0.000000e+00 : f32
    %2244 = vector.broadcast %cst_1423 : f32 to vector<8x256xf32>
    %2245 = arith.maximumf %2243, %2244 : vector<8x256xf32>
    %c2304 = arith.constant 2304 : index
    %c0_1424 = arith.constant 0 : index
    %2246 = vector.load %arg4[%c2304, %c0_1424] : memref<2560x128xf32, #tpu.memory_space<vmem>>, vector<256x128xf32>
    %cst_1425 = arith.constant dense<0.000000e+00> : vector<8x128xf32>
    %2247 = tpu.matmul %2245, %2246, %cst_1425 {dimension_numbers = #tpu.dot_dimension_numbers<[1], [0], [0], [1], [0, 0, 1, 1], [], []>} : vector<8x256xf32>, vector<256x128xf32>, vector<8x128xf32> -> vector<8x128xf32>
    %c0_1426 = arith.constant 0 : index
    %c0_1427 = arith.constant 0 : index
    %2248 = vector.load %arg6[%c0_1426, %c0_1427] : memref<8x128xf32, #tpu.memory_space<vmem>>, vector<8x128xf32>
    %2249 = arith.addf %2248, %2247 : vector<8x128xf32>
    %c0_1428 = arith.constant 0 : index
    %c0_1429 = arith.constant 0 : index
    %2250 = vector.load %arg6[%c0_1428, %c0_1429] : memref<8x128xf32, #tpu.memory_space<vmem>>, vector<8x128xf32>
    tpu.vector_store %arg6[%c0_1428, %c0_1429], %2249 {strides = array<i32>} : memref<8x128xf32, #tpu.memory_space<vmem>>, vector<8x128xf32>,
    return
  }
  func.func @transform_0(%arg0: i32) -> (i32, i32, i32) {
    %c0_i32 = arith.constant 0 : i32
    %c0_i32_0 = arith.constant 0 : i32
    %c0_i32_1 = arith.constant 0 : i32
    return %c0_i32, %arg0, %c0_i32_0 : i32, i32, i32
  }
  func.func @transform_1(%arg0: i32) -> i32 {
    %c0_i32 = arith.constant 0 : i32
    %c0_i32_0 = arith.constant 0 : i32
    return %c0_i32 : i32
  }
  func.func @transform_2(%arg0: i32) -> i32 {
    %c0_i32 = arith.constant 0 : i32
    %c0_i32_0 = arith.constant 0 : i32
    return %c0_i32 : i32
  }
  func.func @transform_3(%arg0: i32) -> (i32, i32) {
    %c0_i32 = arith.constant 0 : i32
    %c0_i32_0 = arith.constant 0 : i32
    %c0_i32_1 = arith.constant 0 : i32
    return %c0_i32, %c0_i32_0 : i32, i32
  }
  func.func @transform_4(%arg0: i32) -> (i32, i32) {
    %c0_i32 = arith.constant 0 : i32
    %c0_i32_0 = arith.constant 0 : i32
    %c0_i32_1 = arith.constant 0 : i32
    return %c0_i32, %c0_i32_0 : i32, i32
  }
  func.func @transform_5(%arg0: i32) -> (i32, i32) {
    %c0_i32 = arith.constant 0 : i32
    %c0_i32_0 = arith.constant 0 : i32
    return %arg0, %c0_i32 : i32, i32
  }
}

</mosaic_0001>

<llo_original>
// kernel: cnn_forward.1
$region0: #{cnn_forward.1}
  #allocation0 [shape = 'u32[]', space=smem, size = 0x4, offset = 0x4, fixed_abs, tag = 'smem constant byte address 0x4 - core index']
  #allocation1 [shape = 'u32[144,128]{1,0:T(1,128)}', space=vmem, size = 0x12000, scoped, tag = 'internal scratch']
  %s0 = inlined_call_operand.vmem [shape: f32[16,8,256], index: 0, kind: input, shape index: {}]
  %s1 = inlined_call_operand.vmem [shape: f32[90], index: 1, kind: input, shape index: {}]
  %s2 = inlined_call_operand.vmem [shape: f32[10], index: 2, kind: input, shape index: {}]
  %s3 = inlined_call_operand.vmem [shape: f32[2560,128], index: 3, kind: input, shape index: {}]
  %s4 = inlined_call_operand.vmem [shape: f32[1,128], index: 4, kind: input, shape index: {}]
  %s5 = inlined_call_operand.vmem [shape: f32[8,128], index: 5, kind: output, shape index: {}]
  %s6 = sld [smem:[#allocation0]]
  $region38: #{cnn_forward.1} parent=0
    _
  %s8 = ssub.s32 1, %s6
  %s9 = scalar_select 0, %s8, %s6
  $region1: #{cnn_forward.1} parent=0
    #allocation2 [shape = 'u8[512]{0}', space=smem, size = 0x200, scoped, tag = 'input window, operand 1, single buffered']
    #allocation3 [shape = 's32[1]{0}', space=sflag, size = 0x4, scoped, tag = 'scoped memory for cnn_forward.1']
    #allocation4 [shape = 'u8[512]{0}', space=smem, size = 0x200, scoped, tag = 'input window, operand 2, single buffered']
    #allocation5 [shape = 's32[1]{0}', space=sflag, size = 0x4, scoped, tag = 'scoped memory for cnn_forward.1']
    %10 = vsyncpa [#allocation3], 0
    %11 = vsyncpa [#allocation5], 0
    // Predicated region
    $region2: #{cnn_forward.1} parent=1 // pred_check
      _
    $region3: #{cnn_forward.1} parent=1 // pred_check_branch
      %13 = sbr.rel (0) target = $region5
    $region4: #{cnn_forward.1} parent=1 // pred_region
      _
    $region5: #{cnn_forward.1} parent=1 // pred_fallthru
      _
    // Predicated region
    $region6: #{cnn_forward.1} parent=1 // pred_check
      _
    $region7: #{cnn_forward.1} parent=1 // pred_check_branch
      %15 = sbr.rel (0) target = $region9
    $region8: #{cnn_forward.1} parent=1 // pred_region
      %s17 = ssub.s32 16, 16
      %18 = vsyncadd [#allocation3], %s17
      %s20 = sshll.u32 %s1, 4
      %s21 = int_to_ptr.vmem [resolvable:$true] %s20
      %23 = dma.vmem_to_smem %s21, 16, [#allocation2], [#allocation3]
    $region9: #{cnn_forward.1} parent=1 // pred_fallthru
      _
    // Predicated region
    $region10: #{cnn_forward.1} parent=1 // pred_check
      _
    $region11: #{cnn_forward.1} parent=1 // pred_check_branch
      %25 = sbr.rel (0) target = $region13
    $region12: #{cnn_forward.1} parent=1 // pred_region
      %s27 = ssub.s32 16, 16
      %28 = vsyncadd [#allocation5], %s27
      %s30 = sshll.u32 %s2, 4
      %s31 = int_to_ptr.vmem [resolvable:$true] %s30
      %33 = dma.vmem_to_smem %s31, 16, [#allocation4], [#allocation5]
    $region13: #{cnn_forward.1} parent=1 // pred_fallthru
      _
    // Predicated region
    $region14: #{cnn_forward.1} parent=1 // pred_check
      _
    $region15: #{cnn_forward.1} parent=1 // pred_check_branch
      %35 = sbr.rel (0) target = $region17
    $region16: #{cnn_forward.1} parent=1 // pred_region
      _
    $region17: #{cnn_forward.1} parent=1 // pred_fallthru
      _
    // Predicated region
    $region18: #{cnn_forward.1} parent=1 // pred_check
      _
    $region19: #{cnn_forward.1} parent=1 // pred_check_branch
      %37 = sbr.rel (0) target = $region21
    $region20: #{cnn_forward.1} parent=1 // pred_region
      _
    $region21: #{cnn_forward.1} parent=1 // pred_fallthru
      _
    // Predicated region
    $region22: #{cnn_forward.1} parent=1 // pred_check
      _
    $region23: #{cnn_forward.1} parent=1 // pred_check_branch
      %39 = sbr.rel (0) target = $region25
    $region24: #{cnn_forward.1} parent=1 // pred_region
      %40 = dma.done [#allocation3], 16
    $region25: #{cnn_forward.1} parent=1 // pred_fallthru
      _
    // Predicated region
    $region26: #{cnn_forward.1} parent=1 // pred_check
      _
    $region27: #{cnn_forward.1} parent=1 // pred_check_branch
      %42 = sbr.rel (0) target = $region29
    $region28: #{cnn_forward.1} parent=1 // pred_region
      %43 = dma.done [#allocation5], 16
    $region29: #{cnn_forward.1} parent=1 // pred_fallthru
      _
    %44 = sfence
    %v45 = vld [vmem:[%s0] sm:$0xff]
    %v46 = vld [vmem:[%s0 + $0x8] sm:$0xff]
    %s47 = sld [smem:[#allocation2]]
    %v48 = vstv %s47
    %v49 = vmul.f32 %v45, %v48
    %v50 = vmul.f32 %v46, %v48
    %s51 = scalar_lea.vmem %s0, 16
    %v52 = vld [vmem:[%s51] sm:$0xff]
    %v53 = vld [vmem:[%s51 + $0x8] sm:$0xff]
    %s54 = sld [smem:[#allocation2 + $0x1]]
    %v55 = vstv %s54
    %v56 = vmul.f32 %v52, %v55
    %v57 = vmul.f32 %v53, %v55
    %v58 = vadd.f32 %v49, %v56
    %v59 = vadd.f32 %v50, %v57
    %s60 = scalar_lea.vmem %s0, 32
    %v61 = vld [vmem:[%s60] sm:$0xff]
    %v62 = vld [vmem:[%s60 + $0x8] sm:$0xff]
    %s63 = sld [smem:[#allocation2 + $0x2]]
    %v64 = vstv %s63
    %v65 = vmul.f32 %v61, %v64
    %v66 = vmul.f32 %v62, %v64
    %v67 = vadd.f32 %v58, %v65
    %v68 = vadd.f32 %v59, %v66
    %s69 = scalar_lea.vmem %s0, 64
    %v70 = vld [vmem:[%s69] sm:$0xff]
    %v71 = vld [vmem:[%s69 + $0x8] sm:$0xff]
    %s72 = sld [smem:[#allocation2 + $0x3]]
    %v73 = vstv %s72
    %v74 = vmul.f32 %v70, %v73
    %v75 = vmul.f32 %v71, %v73
    %v76 = vadd.f32 %v67, %v74
    %v77 = vadd.f32 %v68, %v75
    %s78 = scalar_lea.vmem %s0, 80
    %v79 = vld [vmem:[%s78] sm:$0xff]
    %v80 = vld [vmem:[%s78 + $0x8] sm:$0xff]
    %s81 = sld [smem:[#allocation2 + $0x4]]
    %v82 = vstv %s81
    %v83 = vmul.f32 %v79, %v82
    %v84 = vmul.f32 %v80, %v82
    %v85 = vadd.f32 %v76, %v83
    %v86 = vadd.f32 %v77, %v84
    %s87 = scalar_lea.vmem %s0, 96
    %v88 = vld [vmem:[%s87] sm:$0xff]
    %v89 = vld [vmem:[%s87 + $0x8] sm:$0xff]
    %s90 = sld [smem:[#allocation2 + $0x5]]
    %v91 = vstv %s90
    %v92 = vmul.f32 %v88, %v91
    %v93 = vmul.f32 %v89, %v91
    %v94 = vadd.f32 %v85, %v92
    %v95 = vadd.f32 %v86, %v93
    %s96 = scalar_lea.vmem %s0, 128
    %v97 = vld [vmem:[%s96] sm:$0xff]
    %v98 = vld [vmem:[%s96 + $0x8] sm:$0xff]
    %s99 = sld [smem:[#allocation2 + $0x6]]
    %v100 = vstv %s99
    %v101 = vmul.f32 %v97, %v100
    %v102 = vmul.f32 %v98, %v100
    %v103 = vadd.f32 %v94, %v101
    %v104 = vadd.f32 %v95, %v102
    %s105 = scalar_lea.vmem %s0, 144
    %v106 = vld [vmem:[%s105] sm:$0xff]
    %v107 = vld [vmem:[%s105 + $0x8] sm:$0xff]
    %s108 = sld [smem:[#allocation2 + $0x7]]
    %v109 = vstv %s108
    %v110 = vmul.f32 %v106, %v109
    %v111 = vmul.f32 %v107, %v109
    %v112 = vadd.f32 %v103, %v110
    %v113 = vadd.f32 %v104, %v111
    %s114 = scalar_lea.vmem %s0, 160
    %v115 = vld [vmem:[%s114] sm:$0xff]
    %v116 = vld [vmem:[%s114 + $0x8] sm:$0xff]
    %s117 = sld [smem:[#allocation2 + $0x8]]
    %v118 = vstv %s117
    %v119 = vmul.f32 %v115, %v118
    %v120 = vmul.f32 %v116, %v118
    %v121 = vadd.f32 %v112, %v119
    %v122 = vadd.f32 %v113, %v120
    %v123 = vmul.f32 %v52, %v48
    %v124 = vmul.f32 %v53, %v48
    %v125 = vmul.f32 %v61, %v55
    %v126 = vmul.f32 %v62, %v55
    %v127 = vadd.f32 %v123, %v125
    %v128 = vadd.f32 %v124, %v126
    %s129 = scalar_lea.vmem %s0, 48
    %v130 = vld [vmem:[%s129] sm:$0xff]
    %v131 = vld [vmem:[%s129 + $0x8] sm:$0xff]
    %v132 = vmul.f32 %v130, %v64
    %v133 = vmul.f32 %v131, %v64
    %v134 = vadd.f32 %v127, %v132
    %v135 = vadd.f32 %v128, %v133
    %v136 = vmul.f32 %v79, %v73
    %v137 = vmul.f32 %v80, %v73
    %v138 = vadd.f32 %v134, %v136
    %v139 = vadd.f32 %v135, %v137
    %v140 = vmul.f32 %v88, %v82
    %v141 = vmul.f32 %v89, %v82
    %v142 = vadd.f32 %v138, %v140
    %v143 = vadd.f32 %v139, %v141
    %s144 = scalar_lea.vmem %s0, 112
    %v145 = vld [vmem:[%s144] sm:$0xff]
    %v146 = vld [vmem:[%s144 + $0x8] sm:$0xff]
    %v147 = vmul.f32 %v145, %v91
    %v148 = vmul.f32 %v146, %v91
    %v149 = vadd.f32 %v142, %v147
    %v150 = vadd.f32 %v143, %v148
    %v151 = vmul.f32 %v106, %v100
    %v152 = vmul.f32 %v107, %v100
    %v153 = vadd.f32 %v149, %v151
    %v154 = vadd.f32 %v150, %v152
    %v155 = vmul.f32 %v115, %v109
    %v156 = vmul.f32 %v116, %v109
    %v157 = vadd.f32 %v153, %v155
    %v158 = vadd.f32 %v154, %v156
    %s159 = scalar_lea.vmem %s0, 176
    %v160 = vld [vmem:[%s159] sm:$0xff]
    %v161 = vld [vmem:[%s159 + $0x8] sm:$0xff]
    %v162 = vmul.f32 %v160, %v118
    %v163 = vmul.f32 %v161, %v118
    %v164 = vadd.f32 %v157, %v162
    %v165 = vadd.f32 %v158, %v163
    %v166 = vmax.f32 %v121, %v164
    %v167 = vmax.f32 %v122, %v165
    %v168 = vmul.f32 %v70, %v48
    %v169 = vmul.f32 %v71, %v48
    %v170 = vmul.f32 %v79, %v55
    %v171 = vmul.f32 %v80, %v55
    %v172 = vadd.f32 %v168, %v170
    %v173 = vadd.f32 %v169, %v171
    %v174 = vmul.f32 %v88, %v64
    %v175 = vmul.f32 %v89, %v64
    %v176 = vadd.f32 %v172, %v174
    %v177 = vadd.f32 %v173, %v175
    %v178 = vmul.f32 %v97, %v73
    %v179 = vmul.f32 %v98, %v73
    %v180 = vadd.f32 %v176, %v178
    %v181 = vadd.f32 %v177, %v179
    %v182 = vmul.f32 %v106, %v82
    %v183 = vmul.f32 %v107, %v82
    %v184 = vadd.f32 %v180, %v182
    %v185 = vadd.f32 %v181, %v183
    %v186 = vmul.f32 %v115, %v91
    %v187 = vmul.f32 %v116, %v91
    %v188 = vadd.f32 %v184, %v186
    %v189 = vadd.f32 %v185, %v187
    %s190 = scalar_lea.vmem %s0, 192
    %v191 = vld [vmem:[%s190] sm:$0xff]
    %v192 = vld [vmem:[%s190 + $0x8] sm:$0xff]
    %v193 = vmul.f32 %v191, %v100
    %v194 = vmul.f32 %v192, %v100
    %v195 = vadd.f32 %v188, %v193
    %v196 = vadd.f32 %v189, %v194
    %s197 = scalar_lea.vmem %s0, 208
    %v198 = vld [vmem:[%s197] sm:$0xff]
    %v199 = vld [vmem:[%s197 + $0x8] sm:$0xff]
    %v200 = vmul.f32 %v198, %v109
    %v201 = vmul.f32 %v199, %v109
    %v202 = vadd.f32 %v195, %v200
    %v203 = vadd.f32 %v196, %v201
    %s204 = scalar_lea.vmem %s0, 224
    %v205 = vld [vmem:[%s204] sm:$0xff]
    %v206 = vld [vmem:[%s204 + $0x8] sm:$0xff]
    %v207 = vmul.f32 %v205, %v118
    %v208 = vmul.f32 %v206, %v118
    %v209 = vadd.f32 %v202, %v207
    %v210 = vadd.f32 %v203, %v208
    %v211 = vmax.f32 %v166, %v209
    %v212 = vmax.f32 %v167, %v210
    %v213 = vmul.f32 %v79, %v48
    %v214 = vmul.f32 %v80, %v48
    %v215 = vmul.f32 %v88, %v55
    %v216 = vmul.f32 %v89, %v55
    %v217 = vadd.f32 %v213, %v215
    %v218 = vadd.f32 %v214, %v216
    %v219 = vmul.f32 %v145, %v64
    %v220 = vmul.f32 %v146, %v64
    %v221 = vadd.f32 %v217, %v219
    %v222 = vadd.f32 %v218, %v220
    %v223 = vmul.f32 %v106, %v73
    %v224 = vmul.f32 %v107, %v73
    %v225 = vadd.f32 %v221, %v223
    %v226 = vadd.f32 %v222, %v224
    %v227 = vmul.f32 %v115, %v82
    %v228 = vmul.f32 %v116, %v82
    %v229 = vadd.f32 %v225, %v227
    %v230 = vadd.f32 %v226, %v228
    %v231 = vmul.f32 %v160, %v91
    %v232 = vmul.f32 %v161, %v91
    %v233 = vadd.f32 %v229, %v231
    %v234 = vadd.f32 %v230, %v232
    %v235 = vmul.f32 %v198, %v100
    %v236 = vmul.f32 %v199, %v100
    %v237 = vadd.f32 %v233, %v235
    %v238 = vadd.f32 %v234, %v236
    %v239 = vmul.f32 %v205, %v109
    %v240 = vmul.f32 %v206, %v109
    %v241 = vadd.f32 %v237, %v239
    %v242 = vadd.f32 %v238, %v240
    %s243 = scalar_lea.vmem %s0, 240
    %v244 = vld [vmem:[%s243] sm:$0xff]
    %v245 = vld [vmem:[%s243 + $0x8] sm:$0xff]
    %v246 = vmul.f32 %v244, %v118
    %v247 = vmul.f32 %v245, %v118
    %v248 = vadd.f32 %v241, %v246
    %v249 = vadd.f32 %v242, %v247
    %v250 = vmax.f32 %v211, %v248
    %v251 = vmax.f32 %v212, %v249
    %s252 = sld [smem:[#allocation4]]
    %v253 = vstv %s252
    %v254 = vadd.f32 %v250, %v253
    %v255 = vadd.f32 %v251, %v253
    %v256 = vmax.f32 %v254, 0.0
    %v257 = vmax.f32 %v255, 0.0
    %v258 = vld [vmem:[%s3] sm:$0xff]
    %v259 = vld [vmem:[%s3 + $0x8] sm:$0xff]
    %v260 = vld [vmem:[%s3 + $0x10] sm:$0xff]
    %v261 = vld [vmem:[%s3 + $0x18] sm:$0xff]
    %v262 = vld [vmem:[%s3 + $0x20] sm:$0xff]
    %v263 = vld [vmem:[%s3 + $0x28] sm:$0xff]
    %v264 = vld [vmem:[%s3 + $0x30] sm:$0xff]
    %v265 = vld [vmem:[%s3 + $0x38] sm:$0xff]
    %v266 = vld [vmem:[%s3 + $0x40] sm:$0xff]
    %v267 = vld [vmem:[%s3 + $0x48] sm:$0xff]
    %v268 = vld [vmem:[%s3 + $0x50] sm:$0xff]
    %v269 = vld [vmem:[%s3 + $0x58] sm:$0xff]
    %v270 = vld [vmem:[%s3 + $0x60] sm:$0xff]
    %v271 = vld [vmem:[%s3 + $0x68] sm:$0xff]
    %v272 = vld [vmem:[%s3 + $0x70] sm:$0xff]
    %v273 = vld [vmem:[%s3 + $0x78] sm:$0xff]
    %v274 = vld [vmem:[%s3 + $0x80] sm:$0xff]
    %v275 = vld [vmem:[%s3 + $0x88] sm:$0xff]
    %v276 = vld [vmem:[%s3 + $0x90] sm:$0xff]
    %v277 = vld [vmem:[%s3 + $0x98] sm:$0xff]
    %v278 = vld [vmem:[%s3 + $0xa0] sm:$0xff]
    %v279 = vld [vmem:[%s3 + $0xa8] sm:$0xff]
    %v280 = vld [vmem:[%s3 + $0xb0] sm:$0xff]
    %v281 = vld [vmem:[%s3 + $0xb8] sm:$0xff]
    %v282 = vld [vmem:[%s3 + $0xc0] sm:$0xff]
    %v283 = vld [vmem:[%s3 + $0xc8] sm:$0xff]
    %v284 = vld [vmem:[%s3 + $0xd0] sm:$0xff]
    %v285 = vld [vmem:[%s3 + $0xd8] sm:$0xff]
    %v286 = vld [vmem:[%s3 + $0xe0] sm:$0xff]
    %v287 = vld [vmem:[%s3 + $0xe8] sm:$0xff]
    %v288 = vld [vmem:[%s3 + $0xf0] sm:$0xff]
    %v289 = vld [vmem:[%s3 + $0xf8] sm:$0xff]
    %v290 = vld [vmem:[%s4] sm:$0x1]
    %v292 = vlaneseq
    %v293 = vshrl.u32 %v292, 7
    %v294 = vsub.s32 0, %v293
    %v295 = vrot.slane %v290, %v294
    %297 = vmatprep.subr.mxu0 0.0
    %298 = vmatpush1.msra.mxu0 %v258
    %299 = vmatprep.subr.mxu0 0.0
    %300 = vmatpush1.msra.mxu0 %v259
    %301 = vmatprep.subr.mxu0 0.0
    %302 = vmatpush1.msra.mxu0 %v260
    %303 = vmatprep.subr.mxu0 0.0
    %304 = vmatpush1.msra.mxu0 %v261
    %305 = vmatprep.subr.mxu0 0.0
    %306 = vmatpush1.msra.mxu0 %v262
    %307 = vmatprep.subr.mxu0 0.0
    %308 = vmatpush1.msra.mxu0 %v263
    %309 = vmatprep.subr.mxu0 0.0
    %310 = vmatpush1.msra.mxu0 %v264
    %311 = vmatprep.subr.mxu0 0.0
    %312 = vmatpush1.msra.mxu0 %v265
    %313 = vmatprep.subr.mxu0 0.0
    %314 = vmatpush1.msra.mxu0 %v266
    %315 = vmatprep.subr.mxu0 0.0
    %316 = vmatpush1.msra.mxu0 %v267
    %317 = vmatprep.subr.mxu0 0.0
    %318 = vmatpush1.msra.mxu0 %v268
    %319 = vmatprep.subr.mxu0 0.0
    %320 = vmatpush1.msra.mxu0 %v269
    %321 = vmatprep.subr.mxu0 0.0
    %322 = vmatpush1.msra.mxu0 %v270
    %323 = vmatprep.subr.mxu0 0.0
    %324 = vmatpush1.msra.mxu0 %v271
    %325 = vmatprep.subr.mxu0 0.0
    %326 = vmatpush1.msra.mxu0 %v272
    %327 = vmatprep.subr.mxu0 0.0
    %328 = vmatpush1.msra.mxu0 %v273
    %329 = vmatprep.subr.mxu0 0.0
    %330 = vmatpush1.msra.mxu0 %v274
    %331 = vmatprep.subr.mxu0 0.0
    %332 = vmatpush1.msra.mxu0 %v275
    %333 = vmatprep.subr.mxu0 0.0
    %334 = vmatpush1.msra.mxu0 %v276
    %335 = vmatprep.subr.mxu0 0.0
    %336 = vmatpush1.msra.mxu0 %v277
    %337 = vmatprep.subr.mxu0 0.0
    %338 = vmatpush1.msra.mxu0 %v278
    %339 = vmatprep.subr.mxu0 0.0
    %340 = vmatpush1.msra.mxu0 %v279
    %341 = vmatprep.subr.mxu0 0.0
    %342 = vmatpush1.msra.mxu0 %v280
    %343 = vmatprep.subr.mxu0 0.0
    %344 = vmatpush1.msra.mxu0 %v281
    %345 = vmatprep.subr.mxu0 0.0
    %346 = vmatpush1.msra.mxu0 %v282
    %347 = vmatprep.subr.mxu0 0.0
    %348 = vmatpush1.msra.mxu0 %v283
    %349 = vmatprep.subr.mxu0 0.0
    %350 = vmatpush1.msra.mxu0 %v284
    %351 = vmatprep.subr.mxu0 0.0
    %352 = vmatpush1.msra.mxu0 %v285
    %353 = vmatprep.subr.mxu0 0.0
    %354 = vmatpush1.msra.mxu0 %v286
    %355 = vmatprep.subr.mxu0 0.0
    %356 = vmatpush1.msra.mxu0 %v287
    %357 = vmatprep.subr.mxu0 0.0
    %358 = vmatpush1.msra.mxu0 %v288
    %359 = vmatprep.subr.mxu0 0.0
    %360 = vmatpush1.msra.mxu0 %v289
    %361 = vmatprep.mubr.f32.mxu0 %v257
    %362 = vmatmul.mubr.f32.gmra.mrb[0].mxu0 %v256
    %v363 = vpop.f32.mrb[0].mxu0
    %v364 = vadd.f32 %v295, %v363
    %v365 = vpop.f32.mrb[0].mxu0
    %366 = vdwg.mxu0
    %367 = vst [vmem:[%s5] sm:$0xff] %v364
    %v368 = vld [vmem:[%s0] sm:$0xff]
    %v369 = vld [vmem:[%s0 + $0x8] sm:$0xff]
    %s370 = sld [smem:[#allocation2 + $0x9]]
    %v371 = vstv %s370
    %v372 = vmul.f32 %v368, %v371
    %v373 = vmul.f32 %v369, %v371
    %v374 = vld [vmem:[%s51] sm:$0xff]
    %v375 = vld [vmem:[%s51 + $0x8] sm:$0xff]
    %s376 = sld [smem:[#allocation2 + $0xa]]
    %v377 = vstv %s376
    %v378 = vmul.f32 %v374, %v377
    %v379 = vmul.f32 %v375, %v377
    %v380 = vadd.f32 %v372, %v378
    %v381 = vadd.f32 %v373, %v379
    %v382 = vld [vmem:[%s60] sm:$0xff]
    %v383 = vld [vmem:[%s60 + $0x8] sm:$0xff]
    %s384 = sld [smem:[#allocation2 + $0xb]]
    %v385 = vstv %s384
    %v386 = vmul.f32 %v382, %v385
    %v387 = vmul.f32 %v383, %v385
    %v388 = vadd.f32 %v380, %v386
    %v389 = vadd.f32 %v381, %v387
    %v390 = vld [vmem:[%s69] sm:$0xff]
    %v391 = vld [vmem:[%s69 + $0x8] sm:$0xff]
    %s392 = sld [smem:[#allocation2 + $0xc]]
    %v393 = vstv %s392
    %v394 = vmul.f32 %v390, %v393
    %v395 = vmul.f32 %v391, %v393
    %v396 = vadd.f32 %v388, %v394
    %v397 = vadd.f32 %v389, %v395
    %v398 = vld [vmem:[%s78] sm:$0xff]
    %v399 = vld [vmem:[%s78 + $0x8] sm:$0xff]
    %s400 = sld [smem:[#allocation2 + $0xd]]
    %v401 = vstv %s400
    %v402 = vmul.f32 %v398, %v401
    %v403 = vmul.f32 %v399, %v401
    %v404 = vadd.f32 %v396, %v402
    %v405 = vadd.f32 %v397, %v403
    %v406 = vld [vmem:[%s87] sm:$0xff]
    %v407 = vld [vmem:[%s87 + $0x8] sm:$0xff]
    %s408 = sld [smem:[#allocation2 + $0xe]]
    %v409 = vstv %s408
    %v410 = vmul.f32 %v406, %v409
    %v411 = vmul.f32 %v407, %v409
    %v412 = vadd.f32 %v404, %v410
    %v413 = vadd.f32 %v405, %v411
    %v414 = vld [vmem:[%s96] sm:$0xff]
    %v415 = vld [vmem:[%s96 + $0x8] sm:$0xff]
    %s416 = sld [smem:[#allocation2 + $0xf]]
    %v417 = vstv %s416
    %v418 = vmul.f32 %v414, %v417
    %v419 = vmul.f32 %v415, %v417
    %v420 = vadd.f32 %v412, %v418
    %v421 = vadd.f32 %v413, %v419
    %v422 = vld [vmem:[%s105] sm:$0xff]
    %v423 = vld [vmem:[%s105 + $0x8] sm:$0xff]
    %s424 = sld [smem:[#allocation2 + $0x10]]
    %v425 = vstv %s424
    %v426 = vmul.f32 %v422, %v425
    %v427 = vmul.f32 %v423, %v425
    %v428 = vadd.f32 %v420, %v426
    %v429 = vadd.f32 %v421, %v427
    %v430 = vld [vmem:[%s114] sm:$0xff]
    %v431 = vld [vmem:[%s114 + $0x8] sm:$0xff]
    %s432 = sld [smem:[#allocation2 + $0x11]]
    %v433 = vstv %s432
    %v434 = vmul.f32 %v430, %v433
    %v435 = vmul.f32 %v431, %v433
    %v436 = vadd.f32 %v428, %v434
    %v437 = vadd.f32 %v429, %v435
    %v438 = vmul.f32 %v374, %v371
    %v439 = vmul.f32 %v375, %v371
    %v440 = vmul.f32 %v382, %v377
    %v441 = vmul.f32 %v383, %v377
    %v442 = vadd.f32 %v438, %v440
    %v443 = vadd.f32 %v439, %v441
    %v444 = vld [vmem:[%s129] sm:$0xff]
    %v445 = vld [vmem:[%s129 + $0x8] sm:$0xff]
    %v446 = vmul.f32 %v444, %v385
    %v447 = vmul.f32 %v445, %v385
    %v448 = vadd.f32 %v442, %v446
    %v449 = vadd.f32 %v443, %v447
    %v450 = vmul.f32 %v398, %v393
    %v451 = vmul.f32 %v399, %v393
    %v452 = vadd.f32 %v448, %v450
    %v453 = vadd.f32 %v449, %v451
    %v454 = vmul.f32 %v406, %v401
    %v455 = vmul.f32 %v407, %v401
    %v456 = vadd.f32 %v452, %v454
    %v457 = vadd.f32 %v453, %v455
    %v458 = vld [vmem:[%s144] sm:$0xff]
    %v459 = vld [vmem:[%s144 + $0x8] sm:$0xff]
    %v460 = vmul.f32 %v458, %v409
    %v461 = vmul.f32 %v459, %v409
    %v462 = vadd.f32 %v456, %v460
    %v463 = vadd.f32 %v457, %v461
    %v464 = vmul.f32 %v422, %v417
    %v465 = vmul.f32 %v423, %v417
    %v466 = vadd.f32 %v462, %v464
    %v467 = vadd.f32 %v463, %v465
    %v468 = vmul.f32 %v430, %v425
    %v469 = vmul.f32 %v431, %v425
    %v470 = vadd.f32 %v466, %v468
    %v471 = vadd.f32 %v467, %v469
    %v472 = vld [vmem:[%s159] sm:$0xff]
    %v473 = vld [vmem:[%s159 + $0x8] sm:$0xff]
    %v474 = vmul.f32 %v472, %v433
    %v475 = vmul.f32 %v473, %v433
    %v476 = vadd.f32 %v470, %v474
    %v477 = vadd.f32 %v471, %v475
    %v478 = vmax.f32 %v436, %v476
    %v479 = vmax.f32 %v437, %v477
    %v480 = vmul.f32 %v390, %v371
    %v481 = vmul.f32 %v391, %v371
    %v482 = vmul.f32 %v398, %v377
    %v483 = vmul.f32 %v399, %v377
    %v484 = vadd.f32 %v480, %v482
    %v485 = vadd.f32 %v481, %v483
    %v486 = vmul.f32 %v406, %v385
    %v487 = vmul.f32 %v407, %v385
    %v488 = vadd.f32 %v484, %v486
    %v489 = vadd.f32 %v485, %v487
    %v490 = vmul.f32 %v414, %v393
    %v491 = vmul.f32 %v415, %v393
    %v492 = vadd.f32 %v488, %v490
    %v493 = vadd.f32 %v489, %v491
    %v494 = vmul.f32 %v422, %v401
    %v495 = vmul.f32 %v423, %v401
    %v496 = vadd.f32 %v492, %v494
    %v497 = vadd.f32 %v493, %v495
    %v498 = vmul.f32 %v430, %v409
    %v499 = vmul.f32 %v431, %v409
    %v500 = vadd.f32 %v496, %v498
    %v501 = vadd.f32 %v497, %v499
    %v502 = vld [vmem:[%s190] sm:$0xff]
    %v503 = vld [vmem:[%s190 + $0x8] sm:$0xff]
    %v504 = vmul.f32 %v502, %v417
    %v505 = vmul.f32 %v503, %v417
    %v506 = vadd.f32 %v500, %v504
    %v507 = vadd.f32 %v501, %v505
    %v508 = vld [vmem:[%s197] sm:$0xff]
    %v509 = vld [vmem:[%s197 + $0x8] sm:$0xff]
    %v510 = vmul.f32 %v508, %v425
    %v511 = vmul.f32 %v509, %v425
    %v512 = vadd.f32 %v506, %v510
    %v513 = vadd.f32 %v507, %v511
    %v514 = vld [vmem:[%s204] sm:$0xff]
    %v515 = vld [vmem:[%s204 + $0x8] sm:$0xff]
    %v516 = vmul.f32 %v514, %v433
    %v517 = vmul.f32 %v515, %v433
    %v518 = vadd.f32 %v512, %v516
    %v519 = vadd.f32 %v513, %v517
    %v520 = vmax.f32 %v478, %v518
    %v521 = vmax.f32 %v479, %v519
    %v522 = vmul.f32 %v398, %v371
    %v523 = vmul.f32 %v399, %v371
    %v524 = vmul.f32 %v406, %v377
    %v525 = vmul.f32 %v407, %v377
    %v526 = vadd.f32 %v522, %v524
    %v527 = vadd.f32 %v523, %v525
    %v528 = vmul.f32 %v458, %v385
    %v529 = vmul.f32 %v459, %v385
    %v530 = vadd.f32 %v526, %v528
    %v531 = vadd.f32 %v527, %v529
    %v532 = vmul.f32 %v422, %v393
    %v533 = vmul.f32 %v423, %v393
    %v534 = vadd.f32 %v530, %v532
    %v535 = vadd.f32 %v531, %v533
    %v536 = vmul.f32 %v430, %v401
    %v537 = vmul.f32 %v431, %v401
    %v538 = vadd.f32 %v534, %v536
    %v539 = vadd.f32 %v535, %v537
    %v540 = vmul.f32 %v472, %v409
    %v541 = vmul.f32 %v473, %v409
    %v542 = vadd.f32 %v538, %v540
    %v543 = vadd.f32 %v539, %v541
    %v544 = vmul.f32 %v508, %v417
    %v545 = vmul.f32 %v509, %v417
    %v546 = vadd.f32 %v542, %v544
    %v547 = vadd.f32 %v543, %v545
    %v548 = vmul.f32 %v514, %v425
    %v549 = vmul.f32 %v515, %v425
    %v550 = vadd.f32 %v546, %v548
    %v551 = vadd.f32 %v547, %v549
    %v552 = vld [vmem:[%s243] sm:$0xff]
    %v553 = vld [vmem:[%s243 + $0x8] sm:$0xff]
    %v554 = vmul.f32 %v552, %v433
    %v555 = vmul.f32 %v553, %v433
    %v556 = vadd.f32 %v550, %v554
    %v557 = vadd.f32 %v551, %v555
    %v558 = vmax.f32 %v520, %v556
    %v559 = vmax.f32 %v521, %v557
    %s560 = sld [smem:[#allocation4 + $0x1]]
    %v561 = vstv %s560
    %v562 = vadd.f32 %v558, %v561
    %v563 = vadd.f32 %v559, %v561
    %v564 = vmax.f32 %v562, 0.0
    %v565 = vmax.f32 %v563, 0.0
    %v566 = vld [vmem:[%s3 + $0x100] sm:$0xff]
    %v567 = vld [vmem:[%s3 + $0x108] sm:$0xff]
    %v568 = vld [vmem:[%s3 + $0x110] sm:$0xff]
    %v569 = vld [vmem:[%s3 + $0x118] sm:$0xff]
    %v570 = vld [vmem:[%s3 + $0x120] sm:$0xff]
    %v571 = vld [vmem:[%s3 + $0x128] sm:$0xff]
    %v572 = vld [vmem:[%s3 + $0x130] sm:$0xff]
    %v573 = vld [vmem:[%s3 + $0x138] sm:$0xff]
    %v574 = vld [vmem:[%s3 + $0x140] sm:$0xff]
    %v575 = vld [vmem:[%s3 + $0x148] sm:$0xff]
    %v576 = vld [vmem:[%s3 + $0x150] sm:$0xff]
    %v577 = vld [vmem:[%s3 + $0x158] sm:$0xff]
    %v578 = vld [vmem:[%s3 + $0x160] sm:$0xff]
    %v579 = vld [vmem:[%s3 + $0x168] sm:$0xff]
    %v580 = vld [vmem:[%s3 + $0x170] sm:$0xff]
    %v581 = vld [vmem:[%s3 + $0x178] sm:$0xff]
    %v582 = vld [vmem:[%s3 + $0x180] sm:$0xff]
    %v583 = vld [vmem:[%s3 + $0x188] sm:$0xff]
    %v584 = vld [vmem:[%s3 + $0x190] sm:$0xff]
    %v585 = vld [vmem:[%s3 + $0x198] sm:$0xff]
    %v586 = vld [vmem:[%s3 + $0x1a0] sm:$0xff]
    %v587 = vld [vmem:[%s3 + $0x1a8] sm:$0xff]
    %v588 = vld [vmem:[%s3 + $0x1b0] sm:$0xff]
    %v589 = vld [vmem:[%s3 + $0x1b8] sm:$0xff]
    %v590 = vld [vmem:[%s3 + $0x1c0] sm:$0xff]
    %v591 = vld [vmem:[%s3 + $0x1c8] sm:$0xff]
    %v592 = vld [vmem:[%s3 + $0x1d0] sm:$0xff]
    %v593 = vld [vmem:[%s3 + $0x1d8] sm:$0xff]
    %v594 = vld [vmem:[%s3 + $0x1e0] sm:$0xff]
    %v595 = vld [vmem:[%s3 + $0x1e8] sm:$0xff]
    %v596 = vld [vmem:[%s3 + $0x1f0] sm:$0xff]
    %v597 = vld [vmem:[%s3 + $0x1f8] sm:$0xff]
    %598 = vmatprep.subr.mxu0 0.0
    %599 = vmatpush1.msra.mxu0 %v566
    %600 = vmatprep.subr.mxu0 0.0
    %601 = vmatpush1.msra.mxu0 %v567
    %602 = vmatprep.subr.mxu0 0.0
    %603 = vmatpush1.msra.mxu0 %v568
    %604 = vmatprep.subr.mxu0 0.0
    %605 = vmatpush1.msra.mxu0 %v569
    %606 = vmatprep.subr.mxu0 0.0
    %607 = vmatpush1.msra.mxu0 %v570
    %608 = vmatprep.subr.mxu0 0.0
    %609 = vmatpush1.msra.mxu0 %v571
    %610 = vmatprep.subr.mxu0 0.0
    %611 = vmatpush1.msra.mxu0 %v572
    %612 = vmatprep.subr.mxu0 0.0
    %613 = vmatpush1.msra.mxu0 %v573
    %614 = vmatprep.subr.mxu0 0.0
    %615 = vmatpush1.msra.mxu0 %v574
    %616 = vmatprep.subr.mxu0 0.0
    %617 = vmatpush1.msra.mxu0 %v575
    %618 = vmatprep.subr.mxu0 0.0
    %619 = vmatpush1.msra.mxu0 %v576
    %620 = vmatprep.subr.mxu0 0.0
    %621 = vmatpush1.msra.mxu0 %v577
    %622 = vmatprep.subr.mxu0 0.0
    %623 = vmatpush1.msra.mxu0 %v578
    %624 = vmatprep.subr.mxu0 0.0
    %625 = vmatpush1.msra.mxu0 %v579
    %626 = vmatprep.subr.mxu0 0.0
    %627 = vmatpush1.msra.mxu0 %v580
    %628 = vmatprep.subr.mxu0 0.0
    %629 = vmatpush1.msra.mxu0 %v581
    %630 = vmatprep.subr.mxu0 0.0
    %631 = vmatpush1.msra.mxu0 %v582
    %632 = vmatprep.subr.mxu0 0.0
    %633 = vmatpush1.msra.mxu0 %v583
    %634 = vmatprep.subr.mxu0 0.0
    %635 = vmatpush1.msra.mxu0 %v584
    %636 = vmatprep.subr.mxu0 0.0
    %637 = vmatpush1.msra.mxu0 %v585
    %638 = vmatprep.subr.mxu0 0.0
    %639 = vmatpush1.msra.mxu0 %v586
    %640 = vmatprep.subr.mxu0 0.0
    %641 = vmatpush1.msra.mxu0 %v587
    %642 = vmatprep.subr.mxu0 0.0
    %643 = vmatpush1.msra.mxu0 %v588
    %644 = vmatprep.subr.mxu0 0.0
    %645 = vmatpush1.msra.mxu0 %v589
    %646 = vmatprep.subr.mxu0 0.0
    %647 = vmatpush1.msra.mxu0 %v590
    %648 = vmatprep.subr.mxu0 0.0
    %649 = vmatpush1.msra.mxu0 %v591
    %650 = vmatprep.subr.mxu0 0.0
    %651 = vmatpush1.msra.mxu0 %v592
    %652 = vmatprep.subr.mxu0 0.0
    %653 = vmatpush1.msra.mxu0 %v593
    %654 = vmatprep.subr.mxu0 0.0
    %655 = vmatpush1.msra.mxu0 %v594
    %656 = vmatprep.subr.mxu0 0.0
    %657 = vmatpush1.msra.mxu0 %v595
    %658 = vmatprep.subr.mxu0 0.0
    %659 = vmatpush1.msra.mxu0 %v596
    %660 = vmatprep.subr.mxu0 0.0
    %661 = vmatpush1.msra.mxu0 %v597
    %662 = vmatprep.mubr.f32.mxu0 %v565
    %663 = vmatmul.mubr.f32.gmra.mrb[0].mxu0 %v564
    %v664 = vpop.f32.mrb[0].mxu0
    %v665 = vadd.f32 0.0, %v664
    %v666 = vpop.f32.mrb[0].mxu0
    %667 = vdwg.mxu0
    %v668 = vld [vmem:[%s5] sm:$0xff]
    %v669 = vadd.f32 %v668, %v665
    %670 = vst [vmem:[%s5] sm:$0xff] %v669
    %v671 = vld [vmem:[%s0] sm:$0xff]
    %v672 = vld [vmem:[%s0 + $0x8] sm:$0xff]
    %s673 = sld [smem:[#allocation2 + $0x12]]
    %v674 = vstv %s673
    %v675 = vmul.f32 %v671, %v674
    %v676 = vmul.f32 %v672, %v674
    %v677 = vld [vmem:[%s51] sm:$0xff]
    %v678 = vld [vmem:[%s51 + $0x8] sm:$0xff]
    %s679 = sld [smem:[#allocation2 + $0x13]]
    %v680 = vstv %s679
    %v681 = vmul.f32 %v677, %v680
    %v682 = vmul.f32 %v678, %v680
    %v683 = vadd.f32 %v675, %v681
    %v684 = vadd.f32 %v676, %v682
    %v685 = vld [vmem:[%s60] sm:$0xff]
    %v686 = vld [vmem:[%s60 + $0x8] sm:$0xff]
    %s687 = sld [smem:[#allocation2 + $0x14]]
    %v688 = vstv %s687
    %v689 = vmul.f32 %v685, %v688
    %v690 = vmul.f32 %v686, %v688
    %v691 = vadd.f32 %v683, %v689
    %v692 = vadd.f32 %v684, %v690
    %v693 = vld [vmem:[%s69] sm:$0xff]
    %v694 = vld [vmem:[%s69 + $0x8] sm:$0xff]
    %s695 = sld [smem:[#allocation2 + $0x15]]
    %v696 = vstv %s695
    %v697 = vmul.f32 %v693, %v696
    %v698 = vmul.f32 %v694, %v696
    %v699 = vadd.f32 %v691, %v697
    %v700 = vadd.f32 %v692, %v698
    %v701 = vld [vmem:[%s78] sm:$0xff]
    %v702 = vld [vmem:[%s78 + $0x8] sm:$0xff]
    %s703 = sld [smem:[#allocation2 + $0x16]]
    %v704 = vstv %s703
    %v705 = vmul.f32 %v701, %v704
    %v706 = vmul.f32 %v702, %v704
    %v707 = vadd.f32 %v699, %v705
    %v708 = vadd.f32 %v700, %v706
    %v709 = vld [vmem:[%s87] sm:$0xff]
    %v710 = vld [vmem:[%s87 + $0x8] sm:$0xff]
    %s711 = sld [smem:[#allocation2 + $0x17]]
    %v712 = vstv %s711
    %v713 = vmul.f32 %v709, %v712
    %v714 = vmul.f32 %v710, %v712
    %v715 = vadd.f32 %v707, %v713
    %v716 = vadd.f32 %v708, %v714
    %v717 = vld [vmem:[%s96] sm:$0xff]
    %v718 = vld [vmem:[%s96 + $0x8] sm:$0xff]
    %s719 = sld [smem:[#allocation2 + $0x18]]
    %v720 = vstv %s719
    %v721 = vmul.f32 %v717, %v720
    %v722 = vmul.f32 %v718, %v720
    %v723 = vadd.f32 %v715, %v721
    %v724 = vadd.f32 %v716, %v722
    %v725 = vld [vmem:[%s105] sm:$0xff]
    %v726 = vld [vmem:[%s105 + $0x8] sm:$0xff]
    %s727 = sld [smem:[#allocation2 + $0x19]]
    %v728 = vstv %s727
    %v729 = vmul.f32 %v725, %v728
    %v730 = vmul.f32 %v726, %v728
    %v731 = vadd.f32 %v723, %v729
    %v732 = vadd.f32 %v724, %v730
    %v733 = vld [vmem:[%s114] sm:$0xff]
    %v734 = vld [vmem:[%s114 + $0x8] sm:$0xff]
    %s735 = sld [smem:[#allocation2 + $0x1a]]
    %v736 = vstv %s735
    %v737 = vmul.f32 %v733, %v736
    %v738 = vmul.f32 %v734, %v736
    %v739 = vadd.f32 %v731, %v737
    %v740 = vadd.f32 %v732, %v738
    %v741 = vmul.f32 %v677, %v674
    %v742 = vmul.f32 %v678, %v674
    %v743 = vmul.f32 %v685, %v680
    %v744 = vmul.f32 %v686, %v680
    %v745 = vadd.f32 %v741, %v743
    %v746 = vadd.f32 %v742, %v744
    %v747 = vld [vmem:[%s129] sm:$0xff]
    %v748 = vld [vmem:[%s129 + $0x8] sm:$0xff]
    %v749 = vmul.f32 %v747, %v688
    %v750 = vmul.f32 %v748, %v688
    %v751 = vadd.f32 %v745, %v749
    %v752 = vadd.f32 %v746, %v750
    %v753 = vmul.f32 %v701, %v696
    %v754 = vmul.f32 %v702, %v696
    %v755 = vadd.f32 %v751, %v753
    %v756 = vadd.f32 %v752, %v754
    %v757 = vmul.f32 %v709, %v704
    %v758 = vmul.f32 %v710, %v704
    %v759 = vadd.f32 %v755, %v757
    %v760 = vadd.f32 %v756, %v758
    %v761 = vld [vmem:[%s144] sm:$0xff]
    %v762 = vld [vmem:[%s144 + $0x8] sm:$0xff]
    %v763 = vmul.f32 %v761, %v712
    %v764 = vmul.f32 %v762, %v712
    %v765 = vadd.f32 %v759, %v763
    %v766 = vadd.f32 %v760, %v764
    %v767 = vmul.f32 %v725, %v720
    %v768 = vmul.f32 %v726, %v720
    %v769 = vadd.f32 %v765, %v767
    %v770 = vadd.f32 %v766, %v768
    %v771 = vmul.f32 %v733, %v728
    %v772 = vmul.f32 %v734, %v728
    %v773 = vadd.f32 %v769, %v771
    %v774 = vadd.f32 %v770, %v772
    %v775 = vld [vmem:[%s159] sm:$0xff]
    %v776 = vld [vmem:[%s159 + $0x8] sm:$0xff]
    %v777 = vmul.f32 %v775, %v736
    %v778 = vmul.f32 %v776, %v736
    %v779 = vadd.f32 %v773, %v777
    %v780 = vadd.f32 %v774, %v778
    %v781 = vmax.f32 %v739, %v779
    %v782 = vmax.f32 %v740, %v780
    %v783 = vmul.f32 %v693, %v674
    %v784 = vmul.f32 %v694, %v674
    %v785 = vmul.f32 %v701, %v680
    %v786 = vmul.f32 %v702, %v680
    %v787 = vadd.f32 %v783, %v785
    %v788 = vadd.f32 %v784, %v786
    %v789 = vmul.f32 %v709, %v688
    %v790 = vmul.f32 %v710, %v688
    %v791 = vadd.f32 %v787, %v789
    %v792 = vadd.f32 %v788, %v790
    %v793 = vmul.f32 %v717, %v696
    %v794 = vmul.f32 %v718, %v696
    %v795 = vadd.f32 %v791, %v793
    %v796 = vadd.f32 %v792, %v794
    %v797 = vmul.f32 %v725, %v704
    %v798 = vmul.f32 %v726, %v704
    %v799 = vadd.f32 %v795, %v797
    %v800 = vadd.f32 %v796, %v798
    %v801 = vmul.f32 %v733, %v712
    %v802 = vmul.f32 %v734, %v712
    %v803 = vadd.f32 %v799, %v801
    %v804 = vadd.f32 %v800, %v802
    %v805 = vld [vmem:[%s190] sm:$0xff]
    %v806 = vld [vmem:[%s190 + $0x8] sm:$0xff]
    %v807 = vmul.f32 %v805, %v720
    %v808 = vmul.f32 %v806, %v720
    %v809 = vadd.f32 %v803, %v807
    %v810 = vadd.f32 %v804, %v808
    %v811 = vld [vmem:[%s197] sm:$0xff]
    %v812 = vld [vmem:[%s197 + $0x8] sm:$0xff]
    %v813 = vmul.f32 %v811, %v728
    %v814 = vmul.f32 %v812, %v728
    %v815 = vadd.f32 %v809, %v813
    %v816 = vadd.f32 %v810, %v814
    %v817 = vld [vmem:[%s204] sm:$0xff]
    %v818 = vld [vmem:[%s204 + $0x8] sm:$0xff]
    %v819 = vmul.f32 %v817, %v736
    %v820 = vmul.f32 %v818, %v736
    %v821 = vadd.f32 %v815, %v819
    %v822 = vadd.f32 %v816, %v820
    %v823 = vmax.f32 %v781, %v821
    %v824 = vmax.f32 %v782, %v822
    %v825 = vmul.f32 %v701, %v674
    %v826 = vmul.f32 %v702, %v674
    %v827 = vmul.f32 %v709, %v680
    %v828 = vmul.f32 %v710, %v680
    %v829 = vadd.f32 %v825, %v827
    %v830 = vadd.f32 %v826, %v828
    %v831 = vmul.f32 %v761, %v688
    %v832 = vmul.f32 %v762, %v688
    %v833 = vadd.f32 %v829, %v831
    %v834 = vadd.f32 %v830, %v832
    %v835 = vmul.f32 %v725, %v696
    %v836 = vmul.f32 %v726, %v696
    %v837 = vadd.f32 %v833, %v835
    %v838 = vadd.f32 %v834, %v836
    %v839 = vmul.f32 %v733, %v704
    %v840 = vmul.f32 %v734, %v704
    %v841 = vadd.f32 %v837, %v839
    %v842 = vadd.f32 %v838, %v840
    %v843 = vmul.f32 %v775, %v712
    %v844 = vmul.f32 %v776, %v712
    %v845 = vadd.f32 %v841, %v843
    %v846 = vadd.f32 %v842, %v844
    %v847 = vmul.f32 %v811, %v720
    %v848 = vmul.f32 %v812, %v720
    %v849 = vadd.f32 %v845, %v847
    %v850 = vadd.f32 %v846, %v848
    %v851 = vmul.f32 %v817, %v728
    %v852 = vmul.f32 %v818, %v728
    %v853 = vadd.f32 %v849, %v851
    %v854 = vadd.f32 %v850, %v852
    %v855 = vld [vmem:[%s243] sm:$0xff]
    %v856 = vld [vmem:[%s243 + $0x8] sm:$0xff]
    %v857 = vmul.f32 %v855, %v736
    %v858 = vmul.f32 %v856, %v736
    %v859 = vadd.f32 %v853, %v857
    %v860 = vadd.f32 %v854, %v858
    %v861 = vmax.f32 %v823, %v859
    %v862 = vmax.f32 %v824, %v860
    %s863 = sld [smem:[#allocation4 + $0x2]]
    %v864 = vstv %s863
    %v865 = vadd.f32 %v861, %v864
    %v866 = vadd.f32 %v862, %v864
    %v867 = vmax.f32 %v865, 0.0
    %v868 = vmax.f32 %v866, 0.0
    %v869 = vld [vmem:[%s3 + $0x200] sm:$0xff]
    %v870 = vld [vmem:[%s3 + $0x208] sm:$0xff]
    %v871 = vld [vmem:[%s3 + $0x210] sm:$0xff]
    %v872 = vld [vmem:[%s3 + $0x218] sm:$0xff]
    %v873 = vld [vmem:[%s3 + $0x220] sm:$0xff]
    %v874 = vld [vmem:[%s3 + $0x228] sm:$0xff]
    %v875 = vld [vmem:[%s3 + $0x230] sm:$0xff]
    %v876 = vld [vmem:[%s3 + $0x238] sm:$0xff]
    %v877 = vld [vmem:[%s3 + $0x240] sm:$0xff]
    %v878 = vld [vmem:[%s3 + $0x248] sm:$0xff]
    %v879 = vld [vmem:[%s3 + $0x250] sm:$0xff]
    %v880 = vld [vmem:[%s3 + $0x258] sm:$0xff]
    %v881 = vld [vmem:[%s3 + $0x260] sm:$0xff]
    %v882 = vld [vmem:[%s3 + $0x268] sm:$0xff]
    %v883 = vld [vmem:[%s3 + $0x270] sm:$0xff]
    %v884 = vld [vmem:[%s3 + $0x278] sm:$0xff]
    %v885 = vld [vmem:[%s3 + $0x280] sm:$0xff]
    %v886 = vld [vmem:[%s3 + $0x288] sm:$0xff]
    %v887 = vld [vmem:[%s3 + $0x290] sm:$0xff]
    %v888 = vld [vmem:[%s3 + $0x298] sm:$0xff]
    %v889 = vld [vmem:[%s3 + $0x2a0] sm:$0xff]
    %v890 = vld [vmem:[%s3 + $0x2a8] sm:$0xff]
    %v891 = vld [vmem:[%s3 + $0x2b0] sm:$0xff]
    %v892 = vld [vmem:[%s3 + $0x2b8] sm:$0xff]
    %v893 = vld [vmem:[%s3 + $0x2c0] sm:$0xff]
    %v894 = vld [vmem:[%s3 + $0x2c8] sm:$0xff]
    %v895 = vld [vmem:[%s3 + $0x2d0] sm:$0xff]
    %v896 = vld [vmem:[%s3 + $0x2d8] sm:$0xff]
    %v897 = vld [vmem:[%s3 + $0x2e0] sm:$0xff]
    %v898 = vld [vmem:[%s3 + $0x2e8] sm:$0xff]
    %v899 = vld [vmem:[%s3 + $0x2f0] sm:$0xff]
    %v900 = vld [vmem:[%s3 + $0x2f8] sm:$0xff]
    %901 = vmatprep.subr.mxu0 0.0
    %902 = vmatpush1.msra.mxu0 %v869
    %903 = vmatprep.subr.mxu0 0.0
    %904 = vmatpush1.msra.mxu0 %v870
    %905 = vmatprep.subr.mxu0 0.0
    %906 = vmatpush1.msra.mxu0 %v871
    %907 = vmatprep.subr.mxu0 0.0
    %908 = vmatpush1.msra.mxu0 %v872
    %909 = vmatprep.subr.mxu0 0.0
    %910 = vmatpush1.msra.mxu0 %v873
    %911 = vmatprep.subr.mxu0 0.0
    %912 = vmatpush1.msra.mxu0 %v874
    %913 = vmatprep.subr.mxu0 0.0
    %914 = vmatpush1.msra.mxu0 %v875
    %915 = vmatprep.subr.mxu0 0.0
    %916 = vmatpush1.msra.mxu0 %v876
    %917 = vmatprep.subr.mxu0 0.0
    %918 = vmatpush1.msra.mxu0 %v877
    %919 = vmatprep.subr.mxu0 0.0
    %920 = vmatpush1.msra.mxu0 %v878
    %921 = vmatprep.subr.mxu0 0.0
    %922 = vmatpush1.msra.mxu0 %v879
    %923 = vmatprep.subr.mxu0 0.0
    %924 = vmatpush1.msra.mxu0 %v880
    %925 = vmatprep.subr.mxu0 0.0
    %926 = vmatpush1.msra.mxu0 %v881
    %927 = vmatprep.subr.mxu0 0.0
    %928 = vmatpush1.msra.mxu0 %v882
    %929 = vmatprep.subr.mxu0 0.0
    %930 = vmatpush1.msra.mxu0 %v883
    %931 = vmatprep.subr.mxu0 0.0
    %932 = vmatpush1.msra.mxu0 %v884
    %933 = vmatprep.subr.mxu0 0.0
    %934 = vmatpush1.msra.mxu0 %v885
    %935 = vmatprep.subr.mxu0 0.0
    %936 = vmatpush1.msra.mxu0 %v886
    %937 = vmatprep.subr.mxu0 0.0
    %938 = vmatpush1.msra.mxu0 %v887
    %939 = vmatprep.subr.mxu0 0.0
    %940 = vmatpush1.msra.mxu0 %v888
    %941 = vmatprep.subr.mxu0 0.0
    %942 = vmatpush1.msra.mxu0 %v889
    %943 = vmatprep.subr.mxu0 0.0
    %944 = vmatpush1.msra.mxu0 %v890
    %945 = vmatprep.subr.mxu0 0.0
    %946 = vmatpush1.msra.mxu0 %v891
    %947 = vmatprep.subr.mxu0 0.0
    %948 = vmatpush1.msra.mxu0 %v892
    %949 = vmatprep.subr.mxu0 0.0
    %950 = vmatpush1.msra.mxu0 %v893
    %951 = vmatprep.subr.mxu0 0.0
    %952 = vmatpush1.msra.mxu0 %v894
    %953 = vmatprep.subr.mxu0 0.0
    %954 = vmatpush1.msra.mxu0 %v895
    %955 = vmatprep.subr.mxu0 0.0
    %956 = vmatpush1.msra.mxu0 %v896
    %957 = vmatprep.subr.mxu0 0.0
    %958 = vmatpush1.msra.mxu0 %v897
    %959 = vmatprep.subr.mxu0 0.0
    %960 = vmatpush1.msra.mxu0 %v898
    %961 = vmatprep.subr.mxu0 0.0
    %962 = vmatpush1.msra.mxu0 %v899
    %963 = vmatprep.subr.mxu0 0.0
    %964 = vmatpush1.msra.mxu0 %v900
    %965 = vmatprep.mubr.f32.mxu0 %v868
    %966 = vmatmul.mubr.f32.gmra.mrb[0].mxu0 %v867
    %v967 = vpop.f32.mrb[0].mxu0
    %v968 = vadd.f32 0.0, %v967
    %v969 = vpop.f32.mrb[0].mxu0
    %970 = vdwg.mxu0
    %v971 = vld [vmem:[%s5] sm:$0xff]
    %v972 = vadd.f32 %v971, %v968
    %973 = vst [vmem:[%s5] sm:$0xff] %v972
    %v974 = vld [vmem:[%s0] sm:$0xff]
    %v975 = vld [vmem:[%s0 + $0x8] sm:$0xff]
    %s976 = sld [smem:[#allocation2 + $0x1b]]
    %v977 = vstv %s976
    %v978 = vmul.f32 %v974, %v977
    %v979 = vmul.f32 %v975, %v977
    %v980 = vld [vmem:[%s51] sm:$0xff]
    %v981 = vld [vmem:[%s51 + $0x8] sm:$0xff]
    %s982 = sld [smem:[#allocation2 + $0x1c]]
    %v983 = vstv %s982
    %v984 = vmul.f32 %v980, %v983
    %v985 = vmul.f32 %v981, %v983
    %v986 = vadd.f32 %v978, %v984
    %v987 = vadd.f32 %v979, %v985
    %v988 = vld [vmem:[%s60] sm:$0xff]
    %v989 = vld [vmem:[%s60 + $0x8] sm:$0xff]
    %s990 = sld [smem:[#allocation2 + $0x1d]]
    %v991 = vstv %s990
    %v992 = vmul.f32 %v988, %v991
    %v993 = vmul.f32 %v989, %v991
    %v994 = vadd.f32 %v986, %v992
    %v995 = vadd.f32 %v987, %v993
    %v996 = vld [vmem:[%s69] sm:$0xff]
    %v997 = vld [vmem:[%s69 + $0x8] sm:$0xff]
    %s998 = sld [smem:[#allocation2 + $0x1e]]
    %v999 = vstv %s998
    %v1000 = vmul.f32 %v996, %v999
    %v1001 = vmul.f32 %v997, %v999
    %v1002 = vadd.f32 %v994, %v1000
    %v1003 = vadd.f32 %v995, %v1001
    %v1004 = vld [vmem:[%s78] sm:$0xff]
    %v1005 = vld [vmem:[%s78 + $0x8] sm:$0xff]
    %s1006 = sld [smem:[#allocation2 + $0x1f]]
    %v1007 = vstv %s1006
    %v1008 = vmul.f32 %v1004, %v1007
    %v1009 = vmul.f32 %v1005, %v1007
    %v1010 = vadd.f32 %v1002, %v1008
    %v1011 = vadd.f32 %v1003, %v1009
    %v1012 = vld [vmem:[%s87] sm:$0xff]
    %v1013 = vld [vmem:[%s87 + $0x8] sm:$0xff]
    %s1014 = sld [smem:[#allocation2 + $0x20]]
    %v1015 = vstv %s1014
    %v1016 = vmul.f32 %v1012, %v1015
    %v1017 = vmul.f32 %v1013, %v1015
    %v1018 = vadd.f32 %v1010, %v1016
    %v1019 = vadd.f32 %v1011, %v1017
    %v1020 = vld [vmem:[%s96] sm:$0xff]
    %v1021 = vld [vmem:[%s96 + $0x8] sm:$0xff]
    %s1022 = sld [smem:[#allocation2 + $0x21]]
    %v1023 = vstv %s1022
    %v1024 = vmul.f32 %v1020, %v1023
    %v1025 = vmul.f32 %v1021, %v1023
    %v1026 = vadd.f32 %v1018, %v1024
    %v1027 = vadd.f32 %v1019, %v1025
    %v1028 = vld [vmem:[%s105] sm:$0xff]
    %v1029 = vld [vmem:[%s105 + $0x8] sm:$0xff]
    %s1030 = sld [smem:[#allocation2 + $0x22]]
    %v1031 = vstv %s1030
    %v1032 = vmul.f32 %v1028, %v1031
    %v1033 = vmul.f32 %v1029, %v1031
    %v1034 = vadd.f32 %v1026, %v1032
    %v1035 = vadd.f32 %v1027, %v1033
    %v1036 = vld [vmem:[%s114] sm:$0xff]
    %v1037 = vld [vmem:[%s114 + $0x8] sm:$0xff]
    %s1038 = sld [smem:[#allocation2 + $0x23]]
    %v1039 = vstv %s1038
    %v1040 = vmul.f32 %v1036, %v1039
    %v1041 = vmul.f32 %v1037, %v1039
    %v1042 = vadd.f32 %v1034, %v1040
    %v1043 = vadd.f32 %v1035, %v1041
    %v1044 = vmul.f32 %v980, %v977
    %v1045 = vmul.f32 %v981, %v977
    %v1046 = vmul.f32 %v988, %v983
    %v1047 = vmul.f32 %v989, %v983
    %v1048 = vadd.f32 %v1044, %v1046
    %v1049 = vadd.f32 %v1045, %v1047
    %v1050 = vld [vmem:[%s129] sm:$0xff]
    %v1051 = vld [vmem:[%s129 + $0x8] sm:$0xff]
    %v1052 = vmul.f32 %v1050, %v991
    %v1053 = vmul.f32 %v1051, %v991
    %v1054 = vadd.f32 %v1048, %v1052
    %v1055 = vadd.f32 %v1049, %v1053
    %v1056 = vmul.f32 %v1004, %v999
    %v1057 = vmul.f32 %v1005, %v999
    %v1058 = vadd.f32 %v1054, %v1056
    %v1059 = vadd.f32 %v1055, %v1057
    %v1060 = vmul.f32 %v1012, %v1007
    %v1061 = vmul.f32 %v1013, %v1007
    %v1062 = vadd.f32 %v1058, %v1060
    %v1063 = vadd.f32 %v1059, %v1061
    %v1064 = vld [vmem:[%s144] sm:$0xff]
    %v1065 = vld [vmem:[%s144 + $0x8] sm:$0xff]
    %v1066 = vmul.f32 %v1064, %v1015
    %v1067 = vmul.f32 %v1065, %v1015
    %v1068 = vadd.f32 %v1062, %v1066
    %v1069 = vadd.f32 %v1063, %v1067
    %v1070 = vmul.f32 %v1028, %v1023
    %v1071 = vmul.f32 %v1029, %v1023
    %v1072 = vadd.f32 %v1068, %v1070
    %v1073 = vadd.f32 %v1069, %v1071
    %v1074 = vmul.f32 %v1036, %v1031
    %v1075 = vmul.f32 %v1037, %v1031
    %v1076 = vadd.f32 %v1072, %v1074
    %v1077 = vadd.f32 %v1073, %v1075
    %v1078 = vld [vmem:[%s159] sm:$0xff]
    %v1079 = vld [vmem:[%s159 + $0x8] sm:$0xff]
    %v1080 = vmul.f32 %v1078, %v1039
    %v1081 = vmul.f32 %v1079, %v1039
    %v1082 = vadd.f32 %v1076, %v1080
    %v1083 = vadd.f32 %v1077, %v1081
    %v1084 = vmax.f32 %v1042, %v1082
    %v1085 = vmax.f32 %v1043, %v1083
    %v1086 = vmul.f32 %v996, %v977
    %v1087 = vmul.f32 %v997, %v977
    %v1088 = vmul.f32 %v1004, %v983
    %v1089 = vmul.f32 %v1005, %v983
    %v1090 = vadd.f32 %v1086, %v1088
    %v1091 = vadd.f32 %v1087, %v1089
    %v1092 = vmul.f32 %v1012, %v991
    %v1093 = vmul.f32 %v1013, %v991
    %v1094 = vadd.f32 %v1090, %v1092
    %v1095 = vadd.f32 %v1091, %v1093
    %v1096 = vmul.f32 %v1020, %v999
    %v1097 = vmul.f32 %v1021, %v999
    %v1098 = vadd.f32 %v1094, %v1096
    %v1099 = vadd.f32 %v1095, %v1097
    %v1100 = vmul.f32 %v1028, %v1007
    %v1101 = vmul.f32 %v1029, %v1007
    %v1102 = vadd.f32 %v1098, %v1100
    %v1103 = vadd.f32 %v1099, %v1101
    %v1104 = vmul.f32 %v1036, %v1015
    %v1105 = vmul.f32 %v1037, %v1015
    %v1106 = vadd.f32 %v1102, %v1104
    %v1107 = vadd.f32 %v1103, %v1105
    %v1108 = vld [vmem:[%s190] sm:$0xff]
    %v1109 = vld [vmem:[%s190 + $0x8] sm:$0xff]
    %v1110 = vmul.f32 %v1108, %v1023
    %v1111 = vmul.f32 %v1109, %v1023
    %v1112 = vadd.f32 %v1106, %v1110
    %v1113 = vadd.f32 %v1107, %v1111
    %v1114 = vld [vmem:[%s197] sm:$0xff]
    %v1115 = vld [vmem:[%s197 + $0x8] sm:$0xff]
    %v1116 = vmul.f32 %v1114, %v1031
    %v1117 = vmul.f32 %v1115, %v1031
    %v1118 = vadd.f32 %v1112, %v1116
    %v1119 = vadd.f32 %v1113, %v1117
    %v1120 = vld [vmem:[%s204] sm:$0xff]
    %v1121 = vld [vmem:[%s204 + $0x8] sm:$0xff]
    %v1122 = vmul.f32 %v1120, %v1039
    %v1123 = vmul.f32 %v1121, %v1039
    %v1124 = vadd.f32 %v1118, %v1122
    %v1125 = vadd.f32 %v1119, %v1123
    %v1126 = vmax.f32 %v1084, %v1124
    %v1127 = vmax.f32 %v1085, %v1125
    %v1128 = vmul.f32 %v1004, %v977
    %v1129 = vmul.f32 %v1005, %v977
    %v1130 = vmul.f32 %v1012, %v983
    %v1131 = vmul.f32 %v1013, %v983
    %v1132 = vadd.f32 %v1128, %v1130
    %v1133 = vadd.f32 %v1129, %v1131
    %v1134 = vmul.f32 %v1064, %v991
    %v1135 = vmul.f32 %v1065, %v991
    %v1136 = vadd.f32 %v1132, %v1134
    %v1137 = vadd.f32 %v1133, %v1135
    %v1138 = vmul.f32 %v1028, %v999
    %v1139 = vmul.f32 %v1029, %v999
    %v1140 = vadd.f32 %v1136, %v1138
    %v1141 = vadd.f32 %v1137, %v1139
    %v1142 = vmul.f32 %v1036, %v1007
    %v1143 = vmul.f32 %v1037, %v1007
    %v1144 = vadd.f32 %v1140, %v1142
    %v1145 = vadd.f32 %v1141, %v1143
    %v1146 = vmul.f32 %v1078, %v1015
    %v1147 = vmul.f32 %v1079, %v1015
    %v1148 = vadd.f32 %v1144, %v1146
    %v1149 = vadd.f32 %v1145, %v1147
    %v1150 = vmul.f32 %v1114, %v1023
    %v1151 = vmul.f32 %v1115, %v1023
    %v1152 = vadd.f32 %v1148, %v1150
    %v1153 = vadd.f32 %v1149, %v1151
    %v1154 = vmul.f32 %v1120, %v1031
    %v1155 = vmul.f32 %v1121, %v1031
    %v1156 = vadd.f32 %v1152, %v1154
    %v1157 = vadd.f32 %v1153, %v1155
    %v1158 = vld [vmem:[%s243] sm:$0xff]
    %v1159 = vld [vmem:[%s243 + $0x8] sm:$0xff]
    %v1160 = vmul.f32 %v1158, %v1039
    %v1161 = vmul.f32 %v1159, %v1039
    %v1162 = vadd.f32 %v1156, %v1160
    %v1163 = vadd.f32 %v1157, %v1161
    %v1164 = vmax.f32 %v1126, %v1162
    %v1165 = vmax.f32 %v1127, %v1163
    %s1166 = sld [smem:[#allocation4 + $0x3]]
    %v1167 = vstv %s1166
    %v1168 = vadd.f32 %v1164, %v1167
    %v1169 = vadd.f32 %v1165, %v1167
    %v1170 = vmax.f32 %v1168, 0.0
    %v1171 = vmax.f32 %v1169, 0.0
    %v1172 = vld [vmem:[%s3 + $0x300] sm:$0xff]
    %v1173 = vld [vmem:[%s3 + $0x308] sm:$0xff]
    %v1174 = vld [vmem:[%s3 + $0x310] sm:$0xff]
    %v1175 = vld [vmem:[%s3 + $0x318] sm:$0xff]
    %v1176 = vld [vmem:[%s3 + $0x320] sm:$0xff]
    %v1177 = vld [vmem:[%s3 + $0x328] sm:$0xff]
    %v1178 = vld [vmem:[%s3 + $0x330] sm:$0xff]
    %v1179 = vld [vmem:[%s3 + $0x338] sm:$0xff]
    %v1180 = vld [vmem:[%s3 + $0x340] sm:$0xff]
    %v1181 = vld [vmem:[%s3 + $0x348] sm:$0xff]
    %v1182 = vld [vmem:[%s3 + $0x350] sm:$0xff]
    %v1183 = vld [vmem:[%s3 + $0x358] sm:$0xff]
    %v1184 = vld [vmem:[%s3 + $0x360] sm:$0xff]
    %v1185 = vld [vmem:[%s3 + $0x368] sm:$0xff]
    %v1186 = vld [vmem:[%s3 + $0x370] sm:$0xff]
    %v1187 = vld [vmem:[%s3 + $0x378] sm:$0xff]
    %v1188 = vld [vmem:[%s3 + $0x380] sm:$0xff]
    %v1189 = vld [vmem:[%s3 + $0x388] sm:$0xff]
    %v1190 = vld [vmem:[%s3 + $0x390] sm:$0xff]
    %v1191 = vld [vmem:[%s3 + $0x398] sm:$0xff]
    %v1192 = vld [vmem:[%s3 + $0x3a0] sm:$0xff]
    %v1193 = vld [vmem:[%s3 + $0x3a8] sm:$0xff]
    %v1194 = vld [vmem:[%s3 + $0x3b0] sm:$0xff]
    %v1195 = vld [vmem:[%s3 + $0x3b8] sm:$0xff]
    %v1196 = vld [vmem:[%s3 + $0x3c0] sm:$0xff]
    %v1197 = vld [vmem:[%s3 + $0x3c8] sm:$0xff]
    %v1198 = vld [vmem:[%s3 + $0x3d0] sm:$0xff]
    %v1199 = vld [vmem:[%s3 + $0x3d8] sm:$0xff]
    %v1200 = vld [vmem:[%s3 + $0x3e0] sm:$0xff]
    %v1201 = vld [vmem:[%s3 + $0x3e8] sm:$0xff]
    %v1202 = vld [vmem:[%s3 + $0x3f0] sm:$0xff]
    %v1203 = vld [vmem:[%s3 + $0x3f8] sm:$0xff]
    %1204 = vmatprep.subr.mxu0 0.0
    %1205 = vmatpush1.msra.mxu0 %v1172
    %1206 = vmatprep.subr.mxu0 0.0
    %1207 = vmatpush1.msra.mxu0 %v1173
    %1208 = vmatprep.subr.mxu0 0.0
    %1209 = vmatpush1.msra.mxu0 %v1174
    %1210 = vmatprep.subr.mxu0 0.0
    %1211 = vmatpush1.msra.mxu0 %v1175
    %1212 = vmatprep.subr.mxu0 0.0
    %1213 = vmatpush1.msra.mxu0 %v1176
    %1214 = vmatprep.subr.mxu0 0.0
    %1215 = vmatpush1.msra.mxu0 %v1177
    %1216 = vmatprep.subr.mxu0 0.0
    %1217 = vmatpush1.msra.mxu0 %v1178
    %1218 = vmatprep.subr.mxu0 0.0
    %1219 = vmatpush1.msra.mxu0 %v1179
    %1220 = vmatprep.subr.mxu0 0.0
    %1221 = vmatpush1.msra.mxu0 %v1180
    %1222 = vmatprep.subr.mxu0 0.0
    %1223 = vmatpush1.msra.mxu0 %v1181
    %1224 = vmatprep.subr.mxu0 0.0
    %1225 = vmatpush1.msra.mxu0 %v1182
    %1226 = vmatprep.subr.mxu0 0.0
    %1227 = vmatpush1.msra.mxu0 %v1183
    %1228 = vmatprep.subr.mxu0 0.0
    %1229 = vmatpush1.msra.mxu0 %v1184
    %1230 = vmatprep.subr.mxu0 0.0
    %1231 = vmatpush1.msra.mxu0 %v1185
    %1232 = vmatprep.subr.mxu0 0.0
    %1233 = vmatpush1.msra.mxu0 %v1186
    %1234 = vmatprep.subr.mxu0 0.0
    %1235 = vmatpush1.msra.mxu0 %v1187
    %1236 = vmatprep.subr.mxu0 0.0
    %1237 = vmatpush1.msra.mxu0 %v1188
    %1238 = vmatprep.subr.mxu0 0.0
    %1239 = vmatpush1.msra.mxu0 %v1189
    %1240 = vmatprep.subr.mxu0 0.0
    %1241 = vmatpush1.msra.mxu0 %v1190
    %1242 = vmatprep.subr.mxu0 0.0
    %1243 = vmatpush1.msra.mxu0 %v1191
    %1244 = vmatprep.subr.mxu0 0.0
    %1245 = vmatpush1.msra.mxu0 %v1192
    %1246 = vmatprep.subr.mxu0 0.0
    %1247 = vmatpush1.msra.mxu0 %v1193
    %1248 = vmatprep.subr.mxu0 0.0
    %1249 = vmatpush1.msra.mxu0 %v1194
    %1250 = vmatprep.subr.mxu0 0.0
    %1251 = vmatpush1.msra.mxu0 %v1195
    %1252 = vmatprep.subr.mxu0 0.0
    %1253 = vmatpush1.msra.mxu0 %v1196
    %1254 = vmatprep.subr.mxu0 0.0
    %1255 = vmatpush1.msra.mxu0 %v1197
    %1256 = vmatprep.subr.mxu0 0.0
    %1257 = vmatpush1.msra.mxu0 %v1198
    %1258 = vmatprep.subr.mxu0 0.0
    %1259 = vmatpush1.msra.mxu0 %v1199
    %1260 = vmatprep.subr.mxu0 0.0
    %1261 = vmatpush1.msra.mxu0 %v1200
    %1262 = vmatprep.subr.mxu0 0.0
    %1263 = vmatpush1.msra.mxu0 %v1201
    %1264 = vmatprep.subr.mxu0 0.0
    %1265 = vmatpush1.msra.mxu0 %v1202
    %1266 = vmatprep.subr.mxu0 0.0
    %1267 = vmatpush1.msra.mxu0 %v1203
    %1268 = vmatprep.mubr.f32.mxu0 %v1171
    %1269 = vmatmul.mubr.f32.gmra.mrb[0].mxu0 %v1170
    %v1270 = vpop.f32.mrb[0].mxu0
    %v1271 = vadd.f32 0.0, %v1270
    %v1272 = vpop.f32.mrb[0].mxu0
    %1273 = vdwg.mxu0
    %v1274 = vld [vmem:[%s5] sm:$0xff]
    %v1275 = vadd.f32 %v1274, %v1271
    %1276 = vst [vmem:[%s5] sm:$0xff] %v1275
    %v1277 = vld [vmem:[%s0] sm:$0xff]
    %v1278 = vld [vmem:[%s0 + $0x8] sm:$0xff]
    %s1279 = sld [smem:[#allocation2 + $0x24]]
    %v1280 = vstv %s1279
    %v1281 = vmul.f32 %v1277, %v1280
    %v1282 = vmul.f32 %v1278, %v1280
    %v1283 = vld [vmem:[%s51] sm:$0xff]
    %v1284 = vld [vmem:[%s51 + $0x8] sm:$0xff]
    %s1285 = sld [smem:[#allocation2 + $0x25]]
    %v1286 = vstv %s1285
    %v1287 = vmul.f32 %v1283, %v1286
    %v1288 = vmul.f32 %v1284, %v1286
    %v1289 = vadd.f32 %v1281, %v1287
    %v1290 = vadd.f32 %v1282, %v1288
    %v1291 = vld [vmem:[%s60] sm:$0xff]
    %v1292 = vld [vmem:[%s60 + $0x8] sm:$0xff]
    %s1293 = sld [smem:[#allocation2 + $0x26]]
    %v1294 = vstv %s1293
    %v1295 = vmul.f32 %v1291, %v1294
    %v1296 = vmul.f32 %v1292, %v1294
    %v1297 = vadd.f32 %v1289, %v1295
    %v1298 = vadd.f32 %v1290, %v1296
    %v1299 = vld [vmem:[%s69] sm:$0xff]
    %v1300 = vld [vmem:[%s69 + $0x8] sm:$0xff]
    %s1301 = sld [smem:[#allocation2 + $0x27]]
    %v1302 = vstv %s1301
    %v1303 = vmul.f32 %v1299, %v1302
    %v1304 = vmul.f32 %v1300, %v1302
    %v1305 = vadd.f32 %v1297, %v1303
    %v1306 = vadd.f32 %v1298, %v1304
    %v1307 = vld [vmem:[%s78] sm:$0xff]
    %v1308 = vld [vmem:[%s78 + $0x8] sm:$0xff]
    %s1309 = sld [smem:[#allocation2 + $0x28]]
    %v1310 = vstv %s1309
    %v1311 = vmul.f32 %v1307, %v1310
    %v1312 = vmul.f32 %v1308, %v1310
    %v1313 = vadd.f32 %v1305, %v1311
    %v1314 = vadd.f32 %v1306, %v1312
    %v1315 = vld [vmem:[%s87] sm:$0xff]
    %v1316 = vld [vmem:[%s87 + $0x8] sm:$0xff]
    %s1317 = sld [smem:[#allocation2 + $0x29]]
    %v1318 = vstv %s1317
    %v1319 = vmul.f32 %v1315, %v1318
    %v1320 = vmul.f32 %v1316, %v1318
    %v1321 = vadd.f32 %v1313, %v1319
    %v1322 = vadd.f32 %v1314, %v1320
    %v1323 = vld [vmem:[%s96] sm:$0xff]
    %v1324 = vld [vmem:[%s96 + $0x8] sm:$0xff]
    %s1325 = sld [smem:[#allocation2 + $0x2a]]
    %v1326 = vstv %s1325
    %v1327 = vmul.f32 %v1323, %v1326
    %v1328 = vmul.f32 %v1324, %v1326
    %v1329 = vadd.f32 %v1321, %v1327
    %v1330 = vadd.f32 %v1322, %v1328
    %v1331 = vld [vmem:[%s105] sm:$0xff]
    %v1332 = vld [vmem:[%s105 + $0x8] sm:$0xff]
    %s1333 = sld [smem:[#allocation2 + $0x2b]]
    %v1334 = vstv %s1333
    %v1335 = vmul.f32 %v1331, %v1334
    %v1336 = vmul.f32 %v1332, %v1334
    %v1337 = vadd.f32 %v1329, %v1335
    %v1338 = vadd.f32 %v1330, %v1336
    %v1339 = vld [vmem:[%s114] sm:$0xff]
    %v1340 = vld [vmem:[%s114 + $0x8] sm:$0xff]
    %s1341 = sld [smem:[#allocation2 + $0x2c]]
    %v1342 = vstv %s1341
    %v1343 = vmul.f32 %v1339, %v1342
    %v1344 = vmul.f32 %v1340, %v1342
    %v1345 = vadd.f32 %v1337, %v1343
    %v1346 = vadd.f32 %v1338, %v1344
    %v1347 = vmul.f32 %v1283, %v1280
    %v1348 = vmul.f32 %v1284, %v1280
    %v1349 = vmul.f32 %v1291, %v1286
    %v1350 = vmul.f32 %v1292, %v1286
    %v1351 = vadd.f32 %v1347, %v1349
    %v1352 = vadd.f32 %v1348, %v1350
    %v1353 = vld [vmem:[%s129] sm:$0xff]
    %v1354 = vld [vmem:[%s129 + $0x8] sm:$0xff]
    %v1355 = vmul.f32 %v1353, %v1294
    %v1356 = vmul.f32 %v1354, %v1294
    %v1357 = vadd.f32 %v1351, %v1355
    %v1358 = vadd.f32 %v1352, %v1356
    %v1359 = vmul.f32 %v1307, %v1302
    %v1360 = vmul.f32 %v1308, %v1302
    %v1361 = vadd.f32 %v1357, %v1359
    %v1362 = vadd.f32 %v1358, %v1360
    %v1363 = vmul.f32 %v1315, %v1310
    %v1364 = vmul.f32 %v1316, %v1310
    %v1365 = vadd.f32 %v1361, %v1363
    %v1366 = vadd.f32 %v1362, %v1364
    %v1367 = vld [vmem:[%s144] sm:$0xff]
    %v1368 = vld [vmem:[%s144 + $0x8] sm:$0xff]
    %v1369 = vmul.f32 %v1367, %v1318
    %v1370 = vmul.f32 %v1368, %v1318
    %v1371 = vadd.f32 %v1365, %v1369
    %v1372 = vadd.f32 %v1366, %v1370
    %v1373 = vmul.f32 %v1331, %v1326
    %v1374 = vmul.f32 %v1332, %v1326
    %v1375 = vadd.f32 %v1371, %v1373
    %v1376 = vadd.f32 %v1372, %v1374
    %v1377 = vmul.f32 %v1339, %v1334
    %v1378 = vmul.f32 %v1340, %v1334
    %v1379 = vadd.f32 %v1375, %v1377
    %v1380 = vadd.f32 %v1376, %v1378
    %v1381 = vld [vmem:[%s159] sm:$0xff]
    %v1382 = vld [vmem:[%s159 + $0x8] sm:$0xff]
    %v1383 = vmul.f32 %v1381, %v1342
    %v1384 = vmul.f32 %v1382, %v1342
    %v1385 = vadd.f32 %v1379, %v1383
    %v1386 = vadd.f32 %v1380, %v1384
    %v1387 = vmax.f32 %v1345, %v1385
    %v1388 = vmax.f32 %v1346, %v1386
    %v1389 = vmul.f32 %v1299, %v1280
    %v1390 = vmul.f32 %v1300, %v1280
    %v1391 = vmul.f32 %v1307, %v1286
    %v1392 = vmul.f32 %v1308, %v1286
    %v1393 = vadd.f32 %v1389, %v1391
    %v1394 = vadd.f32 %v1390, %v1392
    %v1395 = vmul.f32 %v1315, %v1294
    %v1396 = vmul.f32 %v1316, %v1294
    %v1397 = vadd.f32 %v1393, %v1395
    %v1398 = vadd.f32 %v1394, %v1396
    %v1399 = vmul.f32 %v1323, %v1302
    %v1400 = vmul.f32 %v1324, %v1302
    %v1401 = vadd.f32 %v1397, %v1399
    %v1402 = vadd.f32 %v1398, %v1400
    %v1403 = vmul.f32 %v1331, %v1310
    %v1404 = vmul.f32 %v1332, %v1310
    %v1405 = vadd.f32 %v1401, %v1403
    %v1406 = vadd.f32 %v1402, %v1404
    %v1407 = vmul.f32 %v1339, %v1318
    %v1408 = vmul.f32 %v1340, %v1318
    %v1409 = vadd.f32 %v1405, %v1407
    %v1410 = vadd.f32 %v1406, %v1408
    %v1411 = vld [vmem:[%s190] sm:$0xff]
    %v1412 = vld [vmem:[%s190 + $0x8] sm:$0xff]
    %v1413 = vmul.f32 %v1411, %v1326
    %v1414 = vmul.f32 %v1412, %v1326
    %v1415 = vadd.f32 %v1409, %v1413
    %v1416 = vadd.f32 %v1410, %v1414
    %v1417 = vld [vmem:[%s197] sm:$0xff]
    %v1418 = vld [vmem:[%s197 + $0x8] sm:$0xff]
    %v1419 = vmul.f32 %v1417, %v1334
    %v1420 = vmul.f32 %v1418, %v1334
    %v1421 = vadd.f32 %v1415, %v1419
    %v1422 = vadd.f32 %v1416, %v1420
    %v1423 = vld [vmem:[%s204] sm:$0xff]
    %v1424 = vld [vmem:[%s204 + $0x8] sm:$0xff]
    %v1425 = vmul.f32 %v1423, %v1342
    %v1426 = vmul.f32 %v1424, %v1342
    %v1427 = vadd.f32 %v1421, %v1425
    %v1428 = vadd.f32 %v1422, %v1426
    %v1429 = vmax.f32 %v1387, %v1427
    %v1430 = vmax.f32 %v1388, %v1428
    %v1431 = vmul.f32 %v1307, %v1280
    %v1432 = vmul.f32 %v1308, %v1280
    %v1433 = vmul.f32 %v1315, %v1286
    %v1434 = vmul.f32 %v1316, %v1286
    %v1435 = vadd.f32 %v1431, %v1433
    %v1436 = vadd.f32 %v1432, %v1434
    %v1437 = vmul.f32 %v1367, %v1294
    %v1438 = vmul.f32 %v1368, %v1294
    %v1439 = vadd.f32 %v1435, %v1437
    %v1440 = vadd.f32 %v1436, %v1438
    %v1441 = vmul.f32 %v1331, %v1302
    %v1442 = vmul.f32 %v1332, %v1302
    %v1443 = vadd.f32 %v1439, %v1441
    %v1444 = vadd.f32 %v1440, %v1442
    %v1445 = vmul.f32 %v1339, %v1310
    %v1446 = vmul.f32 %v1340, %v1310
    %v1447 = vadd.f32 %v1443, %v1445
    %v1448 = vadd.f32 %v1444, %v1446
    %v1449 = vmul.f32 %v1381, %v1318
    %v1450 = vmul.f32 %v1382, %v1318
    %v1451 = vadd.f32 %v1447, %v1449
    %v1452 = vadd.f32 %v1448, %v1450
    %v1453 = vmul.f32 %v1417, %v1326
    %v1454 = vmul.f32 %v1418, %v1326
    %v1455 = vadd.f32 %v1451, %v1453
    %v1456 = vadd.f32 %v1452, %v1454
    %v1457 = vmul.f32 %v1423, %v1334
    %v1458 = vmul.f32 %v1424, %v1334
    %v1459 = vadd.f32 %v1455, %v1457
    %v1460 = vadd.f32 %v1456, %v1458
    %v1461 = vld [vmem:[%s243] sm:$0xff]
    %v1462 = vld [vmem:[%s243 + $0x8] sm:$0xff]
    %v1463 = vmul.f32 %v1461, %v1342
    %v1464 = vmul.f32 %v1462, %v1342
    %v1465 = vadd.f32 %v1459, %v1463
    %v1466 = vadd.f32 %v1460, %v1464
    %v1467 = vmax.f32 %v1429, %v1465
    %v1468 = vmax.f32 %v1430, %v1466
    %s1469 = sld [smem:[#allocation4 + $0x4]]
    %v1470 = vstv %s1469
    %v1471 = vadd.f32 %v1467, %v1470
    %v1472 = vadd.f32 %v1468, %v1470
    %v1473 = vmax.f32 %v1471, 0.0
    %v1474 = vmax.f32 %v1472, 0.0
    %v1475 = vld [vmem:[%s3 + $0x400] sm:$0xff]
    %v1476 = vld [vmem:[%s3 + $0x408] sm:$0xff]
    %v1477 = vld [vmem:[%s3 + $0x410] sm:$0xff]
    %v1478 = vld [vmem:[%s3 + $0x418] sm:$0xff]
    %v1479 = vld [vmem:[%s3 + $0x420] sm:$0xff]
    %v1480 = vld [vmem:[%s3 + $0x428] sm:$0xff]
    %v1481 = vld [vmem:[%s3 + $0x430] sm:$0xff]
    %v1482 = vld [vmem:[%s3 + $0x438] sm:$0xff]
    %v1483 = vld [vmem:[%s3 + $0x440] sm:$0xff]
    %v1484 = vld [vmem:[%s3 + $0x448] sm:$0xff]
    %v1485 = vld [vmem:[%s3 + $0x450] sm:$0xff]
    %v1486 = vld [vmem:[%s3 + $0x458] sm:$0xff]
    %v1487 = vld [vmem:[%s3 + $0x460] sm:$0xff]
    %v1488 = vld [vmem:[%s3 + $0x468] sm:$0xff]
    %v1489 = vld [vmem:[%s3 + $0x470] sm:$0xff]
    %v1490 = vld [vmem:[%s3 + $0x478] sm:$0xff]
    %v1491 = vld [vmem:[%s3 + $0x480] sm:$0xff]
    %v1492 = vld [vmem:[%s3 + $0x488] sm:$0xff]
    %v1493 = vld [vmem:[%s3 + $0x490] sm:$0xff]
    %v1494 = vld [vmem:[%s3 + $0x498] sm:$0xff]
    %v1495 = vld [vmem:[%s3 + $0x4a0] sm:$0xff]
    %v1496 = vld [vmem:[%s3 + $0x4a8] sm:$0xff]
    %v1497 = vld [vmem:[%s3 + $0x4b0] sm:$0xff]
    %v1498 = vld [vmem:[%s3 + $0x4b8] sm:$0xff]
    %v1499 = vld [vmem:[%s3 + $0x4c0] sm:$0xff]
    %v1500 = vld [vmem:[%s3 + $0x4c8] sm:$0xff]
    %v1501 = vld [vmem:[%s3 + $0x4d0] sm:$0xff]
    %v1502 = vld [vmem:[%s3 + $0x4d8] sm:$0xff]
    %v1503 = vld [vmem:[%s3 + $0x4e0] sm:$0xff]
    %v1504 = vld [vmem:[%s3 + $0x4e8] sm:$0xff]
    %v1505 = vld [vmem:[%s3 + $0x4f0] sm:$0xff]
    %v1506 = vld [vmem:[%s3 + $0x4f8] sm:$0xff]
    %1507 = vmatprep.subr.mxu0 0.0
    %1508 = vmatpush1.msra.mxu0 %v1475
    %1509 = vmatprep.subr.mxu0 0.0
    %1510 = vmatpush1.msra.mxu0 %v1476
    %1511 = vmatprep.subr.mxu0 0.0
    %1512 = vmatpush1.msra.mxu0 %v1477
    %1513 = vmatprep.subr.mxu0 0.0
    %1514 = vmatpush1.msra.mxu0 %v1478
    %1515 = vmatprep.subr.mxu0 0.0
    %1516 = vmatpush1.msra.mxu0 %v1479
    %1517 = vmatprep.subr.mxu0 0.0
    %1518 = vmatpush1.msra.mxu0 %v1480
    %1519 = vmatprep.subr.mxu0 0.0
    %1520 = vmatpush1.msra.mxu0 %v1481
    %1521 = vmatprep.subr.mxu0 0.0
    %1522 = vmatpush1.msra.mxu0 %v1482
    %1523 = vmatprep.subr.mxu0 0.0
    %1524 = vmatpush1.msra.mxu0 %v1483
    %1525 = vmatprep.subr.mxu0 0.0
    %1526 = vmatpush1.msra.mxu0 %v1484
    %1527 = vmatprep.subr.mxu0 0.0
    %1528 = vmatpush1.msra.mxu0 %v1485
    %1529 = vmatprep.subr.mxu0 0.0
    %1530 = vmatpush1.msra.mxu0 %v1486
    %1531 = vmatprep.subr.mxu0 0.0
    %1532 = vmatpush1.msra.mxu0 %v1487
    %1533 = vmatprep.subr.mxu0 0.0
    %1534 = vmatpush1.msra.mxu0 %v1488
    %1535 = vmatprep.subr.mxu0 0.0
    %1536 = vmatpush1.msra.mxu0 %v1489
    %1537 = vmatprep.subr.mxu0 0.0
    %1538 = vmatpush1.msra.mxu0 %v1490
    %1539 = vmatprep.subr.mxu0 0.0
    %1540 = vmatpush1.msra.mxu0 %v1491
    %1541 = vmatprep.subr.mxu0 0.0
    %1542 = vmatpush1.msra.mxu0 %v1492
    %1543 = vmatprep.subr.mxu0 0.0
    %1544 = vmatpush1.msra.mxu0 %v1493
    %1545 = vmatprep.subr.mxu0 0.0
    %1546 = vmatpush1.msra.mxu0 %v1494
    %1547 = vmatprep.subr.mxu0 0.0
    %1548 = vmatpush1.msra.mxu0 %v1495
    %1549 = vmatprep.subr.mxu0 0.0
    %1550 = vmatpush1.msra.mxu0 %v1496
    %1551 = vmatprep.subr.mxu0 0.0
    %1552 = vmatpush1.msra.mxu0 %v1497
    %1553 = vmatprep.subr.mxu0 0.0
    %1554 = vmatpush1.msra.mxu0 %v1498
    %1555 = vmatprep.subr.mxu0 0.0
    %1556 = vmatpush1.msra.mxu0 %v1499
    %1557 = vmatprep.subr.mxu0 0.0
    %1558 = vmatpush1.msra.mxu0 %v1500
    %1559 = vmatprep.subr.mxu0 0.0
    %1560 = vmatpush1.msra.mxu0 %v1501
    %1561 = vmatprep.subr.mxu0 0.0
    %1562 = vmatpush1.msra.mxu0 %v1502
    %1563 = vmatprep.subr.mxu0 0.0
    %1564 = vmatpush1.msra.mxu0 %v1503
    %1565 = vmatprep.subr.mxu0 0.0
    %1566 = vmatpush1.msra.mxu0 %v1504
    %1567 = vmatprep.subr.mxu0 0.0
    %1568 = vmatpush1.msra.mxu0 %v1505
    %1569 = vmatprep.subr.mxu0 0.0
    %1570 = vmatpush1.msra.mxu0 %v1506
    %1571 = vmatprep.mubr.f32.mxu0 %v1474
    %1572 = vmatmul.mubr.f32.gmra.mrb[0].mxu0 %v1473
    %v1573 = vpop.f32.mrb[0].mxu0
    %v1574 = vadd.f32 0.0, %v1573
    %v1575 = vpop.f32.mrb[0].mxu0
    %1576 = vdwg.mxu0
    %v1577 = vld [vmem:[%s5] sm:$0xff]
    %v1578 = vadd.f32 %v1577, %v1574
    %1579 = vst [vmem:[%s5] sm:$0xff] %v1578
    %v1580 = vld [vmem:[%s0] sm:$0xff]
    %v1581 = vld [vmem:[%s0 + $0x8] sm:$0xff]
    %s1582 = sld [smem:[#allocation2 + $0x2d]]
    %v1583 = vstv %s1582
    %v1584 = vmul.f32 %v1580, %v1583
    %v1585 = vmul.f32 %v1581, %v1583
    %v1586 = vld [vmem:[%s51] sm:$0xff]
    %v1587 = vld [vmem:[%s51 + $0x8] sm:$0xff]
    %s1588 = sld [smem:[#allocation2 + $0x2e]]
    %v1589 = vstv %s1588
    %v1590 = vmul.f32 %v1586, %v1589
    %v1591 = vmul.f32 %v1587, %v1589
    %v1592 = vadd.f32 %v1584, %v1590
    %v1593 = vadd.f32 %v1585, %v1591
    %v1594 = vld [vmem:[%s60] sm:$0xff]
    %v1595 = vld [vmem:[%s60 + $0x8] sm:$0xff]
    %s1596 = sld [smem:[#allocation2 + $0x2f]]
    %v1597 = vstv %s1596
    %v1598 = vmul.f32 %v1594, %v1597
    %v1599 = vmul.f32 %v1595, %v1597
    %v1600 = vadd.f32 %v1592, %v1598
    %v1601 = vadd.f32 %v1593, %v1599
    %v1602 = vld [vmem:[%s69] sm:$0xff]
    %v1603 = vld [vmem:[%s69 + $0x8] sm:$0xff]
    %s1604 = sld [smem:[#allocation2 + $0x30]]
    %v1605 = vstv %s1604
    %v1606 = vmul.f32 %v1602, %v1605
    %v1607 = vmul.f32 %v1603, %v1605
    %v1608 = vadd.f32 %v1600, %v1606
    %v1609 = vadd.f32 %v1601, %v1607
    %v1610 = vld [vmem:[%s78] sm:$0xff]
    %v1611 = vld [vmem:[%s78 + $0x8] sm:$0xff]
    %s1612 = sld [smem:[#allocation2 + $0x31]]
    %v1613 = vstv %s1612
    %v1614 = vmul.f32 %v1610, %v1613
    %v1615 = vmul.f32 %v1611, %v1613
    %v1616 = vadd.f32 %v1608, %v1614
    %v1617 = vadd.f32 %v1609, %v1615
    %v1618 = vld [vmem:[%s87] sm:$0xff]
    %v1619 = vld [vmem:[%s87 + $0x8] sm:$0xff]
    %s1620 = sld [smem:[#allocation2 + $0x32]]
    %v1621 = vstv %s1620
    %v1622 = vmul.f32 %v1618, %v1621
    %v1623 = vmul.f32 %v1619, %v1621
    %v1624 = vadd.f32 %v1616, %v1622
    %v1625 = vadd.f32 %v1617, %v1623
    %v1626 = vld [vmem:[%s96] sm:$0xff]
    %v1627 = vld [vmem:[%s96 + $0x8] sm:$0xff]
    %s1628 = sld [smem:[#allocation2 + $0x33]]
    %v1629 = vstv %s1628
    %v1630 = vmul.f32 %v1626, %v1629
    %v1631 = vmul.f32 %v1627, %v1629
    %v1632 = vadd.f32 %v1624, %v1630
    %v1633 = vadd.f32 %v1625, %v1631
    %v1634 = vld [vmem:[%s105] sm:$0xff]
    %v1635 = vld [vmem:[%s105 + $0x8] sm:$0xff]
    %s1636 = sld [smem:[#allocation2 + $0x34]]
    %v1637 = vstv %s1636
    %v1638 = vmul.f32 %v1634, %v1637
    %v1639 = vmul.f32 %v1635, %v1637
    %v1640 = vadd.f32 %v1632, %v1638
    %v1641 = vadd.f32 %v1633, %v1639
    %v1642 = vld [vmem:[%s114] sm:$0xff]
    %v1643 = vld [vmem:[%s114 + $0x8] sm:$0xff]
    %s1644 = sld [smem:[#allocation2 + $0x35]]
    %v1645 = vstv %s1644
    %v1646 = vmul.f32 %v1642, %v1645
    %v1647 = vmul.f32 %v1643, %v1645
    %v1648 = vadd.f32 %v1640, %v1646
    %v1649 = vadd.f32 %v1641, %v1647
    %v1650 = vmul.f32 %v1586, %v1583
    %v1651 = vmul.f32 %v1587, %v1583
    %v1652 = vmul.f32 %v1594, %v1589
    %v1653 = vmul.f32 %v1595, %v1589
    %v1654 = vadd.f32 %v1650, %v1652
    %v1655 = vadd.f32 %v1651, %v1653
    %v1656 = vld [vmem:[%s129] sm:$0xff]
    %v1657 = vld [vmem:[%s129 + $0x8] sm:$0xff]
    %v1658 = vmul.f32 %v1656, %v1597
    %v1659 = vmul.f32 %v1657, %v1597
    %v1660 = vadd.f32 %v1654, %v1658
    %v1661 = vadd.f32 %v1655, %v1659
    %v1662 = vmul.f32 %v1610, %v1605
    %v1663 = vmul.f32 %v1611, %v1605
    %v1664 = vadd.f32 %v1660, %v1662
    %v1665 = vadd.f32 %v1661, %v1663
    %v1666 = vmul.f32 %v1618, %v1613
    %v1667 = vmul.f32 %v1619, %v1613
    %v1668 = vadd.f32 %v1664, %v1666
    %v1669 = vadd.f32 %v1665, %v1667
    %v1670 = vld [vmem:[%s144] sm:$0xff]
    %v1671 = vld [vmem:[%s144 + $0x8] sm:$0xff]
    %v1672 = vmul.f32 %v1670, %v1621
    %v1673 = vmul.f32 %v1671, %v1621
    %v1674 = vadd.f32 %v1668, %v1672
    %v1675 = vadd.f32 %v1669, %v1673
    %v1676 = vmul.f32 %v1634, %v1629
    %v1677 = vmul.f32 %v1635, %v1629
    %v1678 = vadd.f32 %v1674, %v1676
    %v1679 = vadd.f32 %v1675, %v1677
    %v1680 = vmul.f32 %v1642, %v1637
    %v1681 = vmul.f32 %v1643, %v1637
    %v1682 = vadd.f32 %v1678, %v1680
    %v1683 = vadd.f32 %v1679, %v1681
    %v1684 = vld [vmem:[%s159] sm:$0xff]
    %v1685 = vld [vmem:[%s159 + $0x8] sm:$0xff]
    %v1686 = vmul.f32 %v1684, %v1645
    %v1687 = vmul.f32 %v1685, %v1645
    %v1688 = vadd.f32 %v1682, %v1686
    %v1689 = vadd.f32 %v1683, %v1687
    %v1690 = vmax.f32 %v1648, %v1688
    %v1691 = vmax.f32 %v1649, %v1689
    %v1692 = vmul.f32 %v1602, %v1583
    %v1693 = vmul.f32 %v1603, %v1583
    %v1694 = vmul.f32 %v1610, %v1589
    %v1695 = vmul.f32 %v1611, %v1589
    %v1696 = vadd.f32 %v1692, %v1694
    %v1697 = vadd.f32 %v1693, %v1695
    %v1698 = vmul.f32 %v1618, %v1597
    %v1699 = vmul.f32 %v1619, %v1597
    %v1700 = vadd.f32 %v1696, %v1698
    %v1701 = vadd.f32 %v1697, %v1699
    %v1702 = vmul.f32 %v1626, %v1605
    %v1703 = vmul.f32 %v1627, %v1605
    %v1704 = vadd.f32 %v1700, %v1702
    %v1705 = vadd.f32 %v1701, %v1703
    %v1706 = vmul.f32 %v1634, %v1613
    %v1707 = vmul.f32 %v1635, %v1613
    %v1708 = vadd.f32 %v1704, %v1706
    %v1709 = vadd.f32 %v1705, %v1707
    %v1710 = vmul.f32 %v1642, %v1621
    %v1711 = vmul.f32 %v1643, %v1621
    %v1712 = vadd.f32 %v1708, %v1710
    %v1713 = vadd.f32 %v1709, %v1711
    %v1714 = vld [vmem:[%s190] sm:$0xff]
    %v1715 = vld [vmem:[%s190 + $0x8] sm:$0xff]
    %v1716 = vmul.f32 %v1714, %v1629
    %v1717 = vmul.f32 %v1715, %v1629
    %v1718 = vadd.f32 %v1712, %v1716
    %v1719 = vadd.f32 %v1713, %v1717
    %v1720 = vld [vmem:[%s197] sm:$0xff]
    %v1721 = vld [vmem:[%s197 + $0x8] sm:$0xff]
    %v1722 = vmul.f32 %v1720, %v1637
    %v1723 = vmul.f32 %v1721, %v1637
    %v1724 = vadd.f32 %v1718, %v1722
    %v1725 = vadd.f32 %v1719, %v1723
    %v1726 = vld [vmem:[%s204] sm:$0xff]
    %v1727 = vld [vmem:[%s204 + $0x8] sm:$0xff]
    %v1728 = vmul.f32 %v1726, %v1645
    %v1729 = vmul.f32 %v1727, %v1645
    %v1730 = vadd.f32 %v1724, %v1728
    %v1731 = vadd.f32 %v1725, %v1729
    %v1732 = vmax.f32 %v1690, %v1730
    %v1733 = vmax.f32 %v1691, %v1731
    %v1734 = vmul.f32 %v1610, %v1583
    %v1735 = vmul.f32 %v1611, %v1583
    %v1736 = vmul.f32 %v1618, %v1589
    %v1737 = vmul.f32 %v1619, %v1589
    %v1738 = vadd.f32 %v1734, %v1736
    %v1739 = vadd.f32 %v1735, %v1737
    %v1740 = vmul.f32 %v1670, %v1597
    %v1741 = vmul.f32 %v1671, %v1597
    %v1742 = vadd.f32 %v1738, %v1740
    %v1743 = vadd.f32 %v1739, %v1741
    %v1744 = vmul.f32 %v1634, %v1605
    %v1745 = vmul.f32 %v1635, %v1605
    %v1746 = vadd.f32 %v1742, %v1744
    %v1747 = vadd.f32 %v1743, %v1745
    %v1748 = vmul.f32 %v1642, %v1613
    %v1749 = vmul.f32 %v1643, %v1613
    %v1750 = vadd.f32 %v1746, %v1748
    %v1751 = vadd.f32 %v1747, %v1749
    %v1752 = vmul.f32 %v1684, %v1621
    %v1753 = vmul.f32 %v1685, %v1621
    %v1754 = vadd.f32 %v1750, %v1752
    %v1755 = vadd.f32 %v1751, %v1753
    %v1756 = vmul.f32 %v1720, %v1629
    %v1757 = vmul.f32 %v1721, %v1629
    %v1758 = vadd.f32 %v1754, %v1756
    %v1759 = vadd.f32 %v1755, %v1757
    %v1760 = vmul.f32 %v1726, %v1637
    %v1761 = vmul.f32 %v1727, %v1637
    %v1762 = vadd.f32 %v1758, %v1760
    %v1763 = vadd.f32 %v1759, %v1761
    %v1764 = vld [vmem:[%s243] sm:$0xff]
    %v1765 = vld [vmem:[%s243 + $0x8] sm:$0xff]
    %v1766 = vmul.f32 %v1764, %v1645
    %v1767 = vmul.f32 %v1765, %v1645
    %v1768 = vadd.f32 %v1762, %v1766
    %v1769 = vadd.f32 %v1763, %v1767
    %v1770 = vmax.f32 %v1732, %v1768
    %v1771 = vmax.f32 %v1733, %v1769
    %s1772 = sld [smem:[#allocation4 + $0x5]]
    %v1773 = vstv %s1772
    %v1774 = vadd.f32 %v1770, %v1773
    %v1775 = vadd.f32 %v1771, %v1773
    %v1776 = vmax.f32 %v1774, 0.0
    %v1777 = vmax.f32 %v1775, 0.0
    %v1778 = vld [vmem:[%s3 + $0x500] sm:$0xff]
    %v1779 = vld [vmem:[%s3 + $0x508] sm:$0xff]
    %v1780 = vld [vmem:[%s3 + $0x510] sm:$0xff]
    %v1781 = vld [vmem:[%s3 + $0x518] sm:$0xff]
    %v1782 = vld [vmem:[%s3 + $0x520] sm:$0xff]
    %v1783 = vld [vmem:[%s3 + $0x528] sm:$0xff]
    %v1784 = vld [vmem:[%s3 + $0x530] sm:$0xff]
    %v1785 = vld [vmem:[%s3 + $0x538] sm:$0xff]
    %v1786 = vld [vmem:[%s3 + $0x540] sm:$0xff]
    %v1787 = vld [vmem:[%s3 + $0x548] sm:$0xff]
    %v1788 = vld [vmem:[%s3 + $0x550] sm:$0xff]
    %v1789 = vld [vmem:[%s3 + $0x558] sm:$0xff]
    %v1790 = vld [vmem:[%s3 + $0x560] sm:$0xff]
    %v1791 = vld [vmem:[%s3 + $0x568] sm:$0xff]
    %v1792 = vld [vmem:[%s3 + $0x570] sm:$0xff]
    %v1793 = vld [vmem:[%s3 + $0x578] sm:$0xff]
    %v1794 = vld [vmem:[%s3 + $0x580] sm:$0xff]
    %v1795 = vld [vmem:[%s3 + $0x588] sm:$0xff]
    %v1796 = vld [vmem:[%s3 + $0x590] sm:$0xff]
    %v1797 = vld [vmem:[%s3 + $0x598] sm:$0xff]
    %v1798 = vld [vmem:[%s3 + $0x5a0] sm:$0xff]
    %v1799 = vld [vmem:[%s3 + $0x5a8] sm:$0xff]
    %v1800 = vld [vmem:[%s3 + $0x5b0] sm:$0xff]
    %v1801 = vld [vmem:[%s3 + $0x5b8] sm:$0xff]
    %v1802 = vld [vmem:[%s3 + $0x5c0] sm:$0xff]
    %v1803 = vld [vmem:[%s3 + $0x5c8] sm:$0xff]
    %v1804 = vld [vmem:[%s3 + $0x5d0] sm:$0xff]
    %v1805 = vld [vmem:[%s3 + $0x5d8] sm:$0xff]
    %v1806 = vld [vmem:[%s3 + $0x5e0] sm:$0xff]
    %v1807 = vld [vmem:[%s3 + $0x5e8] sm:$0xff]
    %v1808 = vld [vmem:[%s3 + $0x5f0] sm:$0xff]
    %v1809 = vld [vmem:[%s3 + $0x5f8] sm:$0xff]
    %1810 = vmatprep.subr.mxu0 0.0
    %1811 = vmatpush1.msra.mxu0 %v1778
    %1812 = vmatprep.subr.mxu0 0.0
    %1813 = vmatpush1.msra.mxu0 %v1779
    %1814 = vmatprep.subr.mxu0 0.0
    %1815 = vmatpush1.msra.mxu0 %v1780
    %1816 = vmatprep.subr.mxu0 0.0
    %1817 = vmatpush1.msra.mxu0 %v1781
    %1818 = vmatprep.subr.mxu0 0.0
    %1819 = vmatpush1.msra.mxu0 %v1782
    %1820 = vmatprep.subr.mxu0 0.0
    %1821 = vmatpush1.msra.mxu0 %v1783
    %1822 = vmatprep.subr.mxu0 0.0
    %1823 = vmatpush1.msra.mxu0 %v1784
    %1824 = vmatprep.subr.mxu0 0.0
    %1825 = vmatpush1.msra.mxu0 %v1785
    %1826 = vmatprep.subr.mxu0 0.0
    %1827 = vmatpush1.msra.mxu0 %v1786
    %1828 = vmatprep.subr.mxu0 0.0
    %1829 = vmatpush1.msra.mxu0 %v1787
    %1830 = vmatprep.subr.mxu0 0.0
    %1831 = vmatpush1.msra.mxu0 %v1788
    %1832 = vmatprep.subr.mxu0 0.0
    %1833 = vmatpush1.msra.mxu0 %v1789
    %1834 = vmatprep.subr.mxu0 0.0
    %1835 = vmatpush1.msra.mxu0 %v1790
    %1836 = vmatprep.subr.mxu0 0.0
    %1837 = vmatpush1.msra.mxu0 %v1791
    %1838 = vmatprep.subr.mxu0 0.0
    %1839 = vmatpush1.msra.mxu0 %v1792
    %1840 = vmatprep.subr.mxu0 0.0
    %1841 = vmatpush1.msra.mxu0 %v1793
    %1842 = vmatprep.subr.mxu0 0.0
    %1843 = vmatpush1.msra.mxu0 %v1794
    %1844 = vmatprep.subr.mxu0 0.0
    %1845 = vmatpush1.msra.mxu0 %v1795
    %1846 = vmatprep.subr.mxu0 0.0
    %1847 = vmatpush1.msra.mxu0 %v1796
    %1848 = vmatprep.subr.mxu0 0.0
    %1849 = vmatpush1.msra.mxu0 %v1797
    %1850 = vmatprep.subr.mxu0 0.0
    %1851 = vmatpush1.msra.mxu0 %v1798
    %1852 = vmatprep.subr.mxu0 0.0
    %1853 = vmatpush1.msra.mxu0 %v1799
    %1854 = vmatprep.subr.mxu0 0.0
    %1855 = vmatpush1.msra.mxu0 %v1800
    %1856 = vmatprep.subr.mxu0 0.0
    %1857 = vmatpush1.msra.mxu0 %v1801
    %1858 = vmatprep.subr.mxu0 0.0
    %1859 = vmatpush1.msra.mxu0 %v1802
    %1860 = vmatprep.subr.mxu0 0.0
    %1861 = vmatpush1.msra.mxu0 %v1803
    %1862 = vmatprep.subr.mxu0 0.0
    %1863 = vmatpush1.msra.mxu0 %v1804
    %1864 = vmatprep.subr.mxu0 0.0
    %1865 = vmatpush1.msra.mxu0 %v1805
    %1866 = vmatprep.subr.mxu0 0.0
    %1867 = vmatpush1.msra.mxu0 %v1806
    %1868 = vmatprep.subr.mxu0 0.0
    %1869 = vmatpush1.msra.mxu0 %v1807
    %1870 = vmatprep.subr.mxu0 0.0
    %1871 = vmatpush1.msra.mxu0 %v1808
    %1872 = vmatprep.subr.mxu0 0.0
    %1873 = vmatpush1.msra.mxu0 %v1809
    %1874 = vmatprep.mubr.f32.mxu0 %v1777
    %1875 = vmatmul.mubr.f32.gmra.mrb[0].mxu0 %v1776
    %v1876 = vpop.f32.mrb[0].mxu0
    %v1877 = vadd.f32 0.0, %v1876
    %v1878 = vpop.f32.mrb[0].mxu0
    %1879 = vdwg.mxu0
    %v1880 = vld [vmem:[%s5] sm:$0xff]
    %v1881 = vadd.f32 %v1880, %v1877
    %1882 = vst [vmem:[%s5] sm:$0xff] %v1881
    %v1883 = vld [vmem:[%s0] sm:$0xff]
    %v1884 = vld [vmem:[%s0 + $0x8] sm:$0xff]
    %s1885 = sld [smem:[#allocation2 + $0x36]]
    %v1886 = vstv %s1885
    %v1887 = vmul.f32 %v1883, %v1886
    %v1888 = vmul.f32 %v1884, %v1886
    %v1889 = vld [vmem:[%s51] sm:$0xff]
    %v1890 = vld [vmem:[%s51 + $0x8] sm:$0xff]
    %s1891 = sld [smem:[#allocation2 + $0x37]]
    %v1892 = vstv %s1891
    %v1893 = vmul.f32 %v1889, %v1892
    %v1894 = vmul.f32 %v1890, %v1892
    %v1895 = vadd.f32 %v1887, %v1893
    %v1896 = vadd.f32 %v1888, %v1894
    %v1897 = vld [vmem:[%s60] sm:$0xff]
    %v1898 = vld [vmem:[%s60 + $0x8] sm:$0xff]
    %s1899 = sld [smem:[#allocation2 + $0x38]]
    %v1900 = vstv %s1899
    %v1901 = vmul.f32 %v1897, %v1900
    %v1902 = vmul.f32 %v1898, %v1900
    %v1903 = vadd.f32 %v1895, %v1901
    %v1904 = vadd.f32 %v1896, %v1902
    %v1905 = vld [vmem:[%s69] sm:$0xff]
    %v1906 = vld [vmem:[%s69 + $0x8] sm:$0xff]
    %s1907 = sld [smem:[#allocation2 + $0x39]]
    %v1908 = vstv %s1907
    %v1909 = vmul.f32 %v1905, %v1908
    %v1910 = vmul.f32 %v1906, %v1908
    %v1911 = vadd.f32 %v1903, %v1909
    %v1912 = vadd.f32 %v1904, %v1910
    %v1913 = vld [vmem:[%s78] sm:$0xff]
    %v1914 = vld [vmem:[%s78 + $0x8] sm:$0xff]
    %s1915 = sld [smem:[#allocation2 + $0x3a]]
    %v1916 = vstv %s1915
    %v1917 = vmul.f32 %v1913, %v1916
    %v1918 = vmul.f32 %v1914, %v1916
    %v1919 = vadd.f32 %v1911, %v1917
    %v1920 = vadd.f32 %v1912, %v1918
    %v1921 = vld [vmem:[%s87] sm:$0xff]
    %v1922 = vld [vmem:[%s87 + $0x8] sm:$0xff]
    %s1923 = sld [smem:[#allocation2 + $0x3b]]
    %v1924 = vstv %s1923
    %v1925 = vmul.f32 %v1921, %v1924
    %v1926 = vmul.f32 %v1922, %v1924
    %v1927 = vadd.f32 %v1919, %v1925
    %v1928 = vadd.f32 %v1920, %v1926
    %v1929 = vld [vmem:[%s96] sm:$0xff]
    %v1930 = vld [vmem:[%s96 + $0x8] sm:$0xff]
    %s1931 = sld [smem:[#allocation2 + $0x3c]]
    %v1932 = vstv %s1931
    %v1933 = vmul.f32 %v1929, %v1932
    %v1934 = vmul.f32 %v1930, %v1932
    %v1935 = vadd.f32 %v1927, %v1933
    %v1936 = vadd.f32 %v1928, %v1934
    %v1937 = vld [vmem:[%s105] sm:$0xff]
    %v1938 = vld [vmem:[%s105 + $0x8] sm:$0xff]
    %s1939 = sld [smem:[#allocation2 + $0x3d]]
    %v1940 = vstv %s1939
    %v1941 = vmul.f32 %v1937, %v1940
    %v1942 = vmul.f32 %v1938, %v1940
    %v1943 = vadd.f32 %v1935, %v1941
    %v1944 = vadd.f32 %v1936, %v1942
    %v1945 = vld [vmem:[%s114] sm:$0xff]
    %v1946 = vld [vmem:[%s114 + $0x8] sm:$0xff]
    %s1947 = sld [smem:[#allocation2 + $0x3e]]
    %v1948 = vstv %s1947
    %v1949 = vmul.f32 %v1945, %v1948
    %v1950 = vmul.f32 %v1946, %v1948
    %v1951 = vadd.f32 %v1943, %v1949
    %v1952 = vadd.f32 %v1944, %v1950
    %v1953 = vmul.f32 %v1889, %v1886
    %v1954 = vmul.f32 %v1890, %v1886
    %v1955 = vmul.f32 %v1897, %v1892
    %v1956 = vmul.f32 %v1898, %v1892
    %v1957 = vadd.f32 %v1953, %v1955
    %v1958 = vadd.f32 %v1954, %v1956
    %v1959 = vld [vmem:[%s129] sm:$0xff]
    %v1960 = vld [vmem:[%s129 + $0x8] sm:$0xff]
    %v1961 = vmul.f32 %v1959, %v1900
    %v1962 = vmul.f32 %v1960, %v1900
    %v1963 = vadd.f32 %v1957, %v1961
    %v1964 = vadd.f32 %v1958, %v1962
    %v1965 = vmul.f32 %v1913, %v1908
    %v1966 = vmul.f32 %v1914, %v1908
    %v1967 = vadd.f32 %v1963, %v1965
    %v1968 = vadd.f32 %v1964, %v1966
    %v1969 = vmul.f32 %v1921, %v1916
    %v1970 = vmul.f32 %v1922, %v1916
    %v1971 = vadd.f32 %v1967, %v1969
    %v1972 = vadd.f32 %v1968, %v1970
    %v1973 = vld [vmem:[%s144] sm:$0xff]
    %v1974 = vld [vmem:[%s144 + $0x8] sm:$0xff]
    %v1975 = vmul.f32 %v1973, %v1924
    %v1976 = vmul.f32 %v1974, %v1924
    %v1977 = vadd.f32 %v1971, %v1975
    %v1978 = vadd.f32 %v1972, %v1976
    %v1979 = vmul.f32 %v1937, %v1932
    %v1980 = vmul.f32 %v1938, %v1932
    %v1981 = vadd.f32 %v1977, %v1979
    %v1982 = vadd.f32 %v1978, %v1980
    %v1983 = vmul.f32 %v1945, %v1940
    %v1984 = vmul.f32 %v1946, %v1940
    %v1985 = vadd.f32 %v1981, %v1983
    %v1986 = vadd.f32 %v1982, %v1984
    %v1987 = vld [vmem:[%s159] sm:$0xff]
    %v1988 = vld [vmem:[%s159 + $0x8] sm:$0xff]
    %v1989 = vmul.f32 %v1987, %v1948
    %v1990 = vmul.f32 %v1988, %v1948
    %v1991 = vadd.f32 %v1985, %v1989
    %v1992 = vadd.f32 %v1986, %v1990
    %v1993 = vmax.f32 %v1951, %v1991
    %v1994 = vmax.f32 %v1952, %v1992
    %v1995 = vmul.f32 %v1905, %v1886
    %v1996 = vmul.f32 %v1906, %v1886
    %v1997 = vmul.f32 %v1913, %v1892
    %v1998 = vmul.f32 %v1914, %v1892
    %v1999 = vadd.f32 %v1995, %v1997
    %v2000 = vadd.f32 %v1996, %v1998
    %v2001 = vmul.f32 %v1921, %v1900
    %v2002 = vmul.f32 %v1922, %v1900
    %v2003 = vadd.f32 %v1999, %v2001
    %v2004 = vadd.f32 %v2000, %v2002
    %v2005 = vmul.f32 %v1929, %v1908
    %v2006 = vmul.f32 %v1930, %v1908
    %v2007 = vadd.f32 %v2003, %v2005
    %v2008 = vadd.f32 %v2004, %v2006
    %v2009 = vmul.f32 %v1937, %v1916
    %v2010 = vmul.f32 %v1938, %v1916
    %v2011 = vadd.f32 %v2007, %v2009
    %v2012 = vadd.f32 %v2008, %v2010
    %v2013 = vmul.f32 %v1945, %v1924
    %v2014 = vmul.f32 %v1946, %v1924
    %v2015 = vadd.f32 %v2011, %v2013
    %v2016 = vadd.f32 %v2012, %v2014
    %v2017 = vld [vmem:[%s190] sm:$0xff]
    %v2018 = vld [vmem:[%s190 + $0x8] sm:$0xff]
    %v2019 = vmul.f32 %v2017, %v1932
    %v2020 = vmul.f32 %v2018, %v1932
    %v2021 = vadd.f32 %v2015, %v2019
    %v2022 = vadd.f32 %v2016, %v2020
    %v2023 = vld [vmem:[%s197] sm:$0xff]
    %v2024 = vld [vmem:[%s197 + $0x8] sm:$0xff]
    %v2025 = vmul.f32 %v2023, %v1940
    %v2026 = vmul.f32 %v2024, %v1940
    %v2027 = vadd.f32 %v2021, %v2025
    %v2028 = vadd.f32 %v2022, %v2026
    %v2029 = vld [vmem:[%s204] sm:$0xff]
    %v2030 = vld [vmem:[%s204 + $0x8] sm:$0xff]
    %v2031 = vmul.f32 %v2029, %v1948
    %v2032 = vmul.f32 %v2030, %v1948
    %v2033 = vadd.f32 %v2027, %v2031
    %v2034 = vadd.f32 %v2028, %v2032
    %v2035 = vmax.f32 %v1993, %v2033
    %v2036 = vmax.f32 %v1994, %v2034
    %v2037 = vmul.f32 %v1913, %v1886
    %v2038 = vmul.f32 %v1914, %v1886
    %v2039 = vmul.f32 %v1921, %v1892
    %v2040 = vmul.f32 %v1922, %v1892
    %v2041 = vadd.f32 %v2037, %v2039
    %v2042 = vadd.f32 %v2038, %v2040
    %v2043 = vmul.f32 %v1973, %v1900
    %v2044 = vmul.f32 %v1974, %v1900
    %v2045 = vadd.f32 %v2041, %v2043
    %v2046 = vadd.f32 %v2042, %v2044
    %v2047 = vmul.f32 %v1937, %v1908
    %v2048 = vmul.f32 %v1938, %v1908
    %v2049 = vadd.f32 %v2045, %v2047
    %v2050 = vadd.f32 %v2046, %v2048
    %v2051 = vmul.f32 %v1945, %v1916
    %v2052 = vmul.f32 %v1946, %v1916
    %v2053 = vadd.f32 %v2049, %v2051
    %v2054 = vadd.f32 %v2050, %v2052
    %v2055 = vmul.f32 %v1987, %v1924
    %v2056 = vmul.f32 %v1988, %v1924
    %v2057 = vadd.f32 %v2053, %v2055
    %v2058 = vadd.f32 %v2054, %v2056
    %v2059 = vmul.f32 %v2023, %v1932
    %v2060 = vmul.f32 %v2024, %v1932
    %v2061 = vadd.f32 %v2057, %v2059
    %v2062 = vadd.f32 %v2058, %v2060
    %v2063 = vmul.f32 %v2029, %v1940
    %v2064 = vmul.f32 %v2030, %v1940
    %v2065 = vadd.f32 %v2061, %v2063
    %v2066 = vadd.f32 %v2062, %v2064
    %v2067 = vld [vmem:[%s243] sm:$0xff]
    %v2068 = vld [vmem:[%s243 + $0x8] sm:$0xff]
    %v2069 = vmul.f32 %v2067, %v1948
    %v2070 = vmul.f32 %v2068, %v1948
    %v2071 = vadd.f32 %v2065, %v2069
    %v2072 = vadd.f32 %v2066, %v2070
    %v2073 = vmax.f32 %v2035, %v2071
    %v2074 = vmax.f32 %v2036, %v2072
    %s2075 = sld [smem:[#allocation4 + $0x6]]
    %v2076 = vstv %s2075
    %v2077 = vadd.f32 %v2073, %v2076
    %v2078 = vadd.f32 %v2074, %v2076
    %v2079 = vmax.f32 %v2077, 0.0
    %v2080 = vmax.f32 %v2078, 0.0
    %v2081 = vld [vmem:[%s3 + $0x600] sm:$0xff]
    %v2082 = vld [vmem:[%s3 + $0x608] sm:$0xff]
    %v2083 = vld [vmem:[%s3 + $0x610] sm:$0xff]
    %v2084 = vld [vmem:[%s3 + $0x618] sm:$0xff]
    %v2085 = vld [vmem:[%s3 + $0x620] sm:$0xff]
    %v2086 = vld [vmem:[%s3 + $0x628] sm:$0xff]
    %v2087 = vld [vmem:[%s3 + $0x630] sm:$0xff]
    %v2088 = vld [vmem:[%s3 + $0x638] sm:$0xff]
    %v2089 = vld [vmem:[%s3 + $0x640] sm:$0xff]
    %v2090 = vld [vmem:[%s3 + $0x648] sm:$0xff]
    %v2091 = vld [vmem:[%s3 + $0x650] sm:$0xff]
    %v2092 = vld [vmem:[%s3 + $0x658] sm:$0xff]
    %v2093 = vld [vmem:[%s3 + $0x660] sm:$0xff]
    %v2094 = vld [vmem:[%s3 + $0x668] sm:$0xff]
    %v2095 = vld [vmem:[%s3 + $0x670] sm:$0xff]
    %v2096 = vld [vmem:[%s3 + $0x678] sm:$0xff]
    %v2097 = vld [vmem:[%s3 + $0x680] sm:$0xff]
    %v2098 = vld [vmem:[%s3 + $0x688] sm:$0xff]
    %v2099 = vld [vmem:[%s3 + $0x690] sm:$0xff]
    %v2100 = vld [vmem:[%s3 + $0x698] sm:$0xff]
    %v2101 = vld [vmem:[%s3 + $0x6a0] sm:$0xff]
    %v2102 = vld [vmem:[%s3 + $0x6a8] sm:$0xff]
    %v2103 = vld [vmem:[%s3 + $0x6b0] sm:$0xff]
    %v2104 = vld [vmem:[%s3 + $0x6b8] sm:$0xff]
    %v2105 = vld [vmem:[%s3 + $0x6c0] sm:$0xff]
    %v2106 = vld [vmem:[%s3 + $0x6c8] sm:$0xff]
    %v2107 = vld [vmem:[%s3 + $0x6d0] sm:$0xff]
    %v2108 = vld [vmem:[%s3 + $0x6d8] sm:$0xff]
    %v2109 = vld [vmem:[%s3 + $0x6e0] sm:$0xff]
    %v2110 = vld [vmem:[%s3 + $0x6e8] sm:$0xff]
    %v2111 = vld [vmem:[%s3 + $0x6f0] sm:$0xff]
    %v2112 = vld [vmem:[%s3 + $0x6f8] sm:$0xff]
    %2113 = vmatprep.subr.mxu0 0.0
    %2114 = vmatpush1.msra.mxu0 %v2081
    %2115 = vmatprep.subr.mxu0 0.0
    %2116 = vmatpush1.msra.mxu0 %v2082
    %2117 = vmatprep.subr.mxu0 0.0
    %2118 = vmatpush1.msra.mxu0 %v2083
    %2119 = vmatprep.subr.mxu0 0.0
    %2120 = vmatpush1.msra.mxu0 %v2084
    %2121 = vmatprep.subr.mxu0 0.0
    %2122 = vmatpush1.msra.mxu0 %v2085
    %2123 = vmatprep.subr.mxu0 0.0
    %2124 = vmatpush1.msra.mxu0 %v2086
    %2125 = vmatprep.subr.mxu0 0.0
    %2126 = vmatpush1.msra.mxu0 %v2087
    %2127 = vmatprep.subr.mxu0 0.0
    %2128 = vmatpush1.msra.mxu0 %v2088
    %2129 = vmatprep.subr.mxu0 0.0
    %2130 = vmatpush1.msra.mxu0 %v2089
    %2131 = vmatprep.subr.mxu0 0.0
    %2132 = vmatpush1.msra.mxu0 %v2090
    %2133 = vmatprep.subr.mxu0 0.0
    %2134 = vmatpush1.msra.mxu0 %v2091
    %2135 = vmatprep.subr.mxu0 0.0
    %2136 = vmatpush1.msra.mxu0 %v2092
    %2137 = vmatprep.subr.mxu0 0.0
    %2138 = vmatpush1.msra.mxu0 %v2093
    %2139 = vmatprep.subr.mxu0 0.0
    %2140 = vmatpush1.msra.mxu0 %v2094
    %2141 = vmatprep.subr.mxu0 0.0
    %2142 = vmatpush1.msra.mxu0 %v2095
    %2143 = vmatprep.subr.mxu0 0.0
    %2144 = vmatpush1.msra.mxu0 %v2096
    %2145 = vmatprep.subr.mxu0 0.0
    %2146 = vmatpush1.msra.mxu0 %v2097
    %2147 = vmatprep.subr.mxu0 0.0
    %2148 = vmatpush1.msra.mxu0 %v2098
    %2149 = vmatprep.subr.mxu0 0.0
    %2150 = vmatpush1.msra.mxu0 %v2099
    %2151 = vmatprep.subr.mxu0 0.0
    %2152 = vmatpush1.msra.mxu0 %v2100
    %2153 = vmatprep.subr.mxu0 0.0
    %2154 = vmatpush1.msra.mxu0 %v2101
    %2155 = vmatprep.subr.mxu0 0.0
    %2156 = vmatpush1.msra.mxu0 %v2102
    %2157 = vmatprep.subr.mxu0 0.0
    %2158 = vmatpush1.msra.mxu0 %v2103
    %2159 = vmatprep.subr.mxu0 0.0
    %2160 = vmatpush1.msra.mxu0 %v2104
    %2161 = vmatprep.subr.mxu0 0.0
    %2162 = vmatpush1.msra.mxu0 %v2105
    %2163 = vmatprep.subr.mxu0 0.0
    %2164 = vmatpush1.msra.mxu0 %v2106
    %2165 = vmatprep.subr.mxu0 0.0
    %2166 = vmatpush1.msra.mxu0 %v2107
    %2167 = vmatprep.subr.mxu0 0.0
    %2168 = vmatpush1.msra.mxu0 %v2108
    %2169 = vmatprep.subr.mxu0 0.0
    %2170 = vmatpush1.msra.mxu0 %v2109
    %2171 = vmatprep.subr.mxu0 0.0
    %2172 = vmatpush1.msra.mxu0 %v2110
    %2173 = vmatprep.subr.mxu0 0.0
    %2174 = vmatpush1.msra.mxu0 %v2111
    %2175 = vmatprep.subr.mxu0 0.0
    %2176 = vmatpush1.msra.mxu0 %v2112
    %2177 = vmatprep.mubr.f32.mxu0 %v2080
    %2178 = vmatmul.mubr.f32.gmra.mrb[0].mxu0 %v2079
    %v2179 = vpop.f32.mrb[0].mxu0
    %v2180 = vadd.f32 0.0, %v2179
    %v2181 = vpop.f32.mrb[0].mxu0
    %2182 = vdwg.mxu0
    %v2183 = vld [vmem:[%s5] sm:$0xff]
    %v2184 = vadd.f32 %v2183, %v2180
    %2185 = vst [vmem:[%s5] sm:$0xff] %v2184
    %v2186 = vld [vmem:[%s0] sm:$0xff]
    %v2187 = vld [vmem:[%s0 + $0x8] sm:$0xff]
    %s2188 = sld [smem:[#allocation2 + $0x3f]]
    %v2189 = vstv %s2188
    %v2190 = vmul.f32 %v2186, %v2189
    %v2191 = vmul.f32 %v2187, %v2189
    %v2192 = vld [vmem:[%s51] sm:$0xff]
    %v2193 = vld [vmem:[%s51 + $0x8] sm:$0xff]
    %s2194 = sld [smem:[#allocation2 + $0x40]]
    %v2195 = vstv %s2194
    %v2196 = vmul.f32 %v2192, %v2195
    %v2197 = vmul.f32 %v2193, %v2195
    %v2198 = vadd.f32 %v2190, %v2196
    %v2199 = vadd.f32 %v2191, %v2197
    %v2200 = vld [vmem:[%s60] sm:$0xff]
    %v2201 = vld [vmem:[%s60 + $0x8] sm:$0xff]
    %s2202 = sld [smem:[#allocation2 + $0x41]]
    %v2203 = vstv %s2202
    %v2204 = vmul.f32 %v2200, %v2203
    %v2205 = vmul.f32 %v2201, %v2203
    %v2206 = vadd.f32 %v2198, %v2204
    %v2207 = vadd.f32 %v2199, %v2205
    %v2208 = vld [vmem:[%s69] sm:$0xff]
    %v2209 = vld [vmem:[%s69 + $0x8] sm:$0xff]
    %s2210 = sld [smem:[#allocation2 + $0x42]]
    %v2211 = vstv %s2210
    %v2212 = vmul.f32 %v2208, %v2211
    %v2213 = vmul.f32 %v2209, %v2211
    %v2214 = vadd.f32 %v2206, %v2212
    %v2215 = vadd.f32 %v2207, %v2213
    %v2216 = vld [vmem:[%s78] sm:$0xff]
    %v2217 = vld [vmem:[%s78 + $0x8] sm:$0xff]
    %s2218 = sld [smem:[#allocation2 + $0x43]]
    %v2219 = vstv %s2218
    %v2220 = vmul.f32 %v2216, %v2219
    %v2221 = vmul.f32 %v2217, %v2219
    %v2222 = vadd.f32 %v2214, %v2220
    %v2223 = vadd.f32 %v2215, %v2221
    %v2224 = vld [vmem:[%s87] sm:$0xff]
    %v2225 = vld [vmem:[%s87 + $0x8] sm:$0xff]
    %s2226 = sld [smem:[#allocation2 + $0x44]]
    %v2227 = vstv %s2226
    %v2228 = vmul.f32 %v2224, %v2227
    %v2229 = vmul.f32 %v2225, %v2227
    %v2230 = vadd.f32 %v2222, %v2228
    %v2231 = vadd.f32 %v2223, %v2229
    %v2232 = vld [vmem:[%s96] sm:$0xff]
    %v2233 = vld [vmem:[%s96 + $0x8] sm:$0xff]
    %s2234 = sld [smem:[#allocation2 + $0x45]]
    %v2235 = vstv %s2234
    %v2236 = vmul.f32 %v2232, %v2235
    %v2237 = vmul.f32 %v2233, %v2235
    %v2238 = vadd.f32 %v2230, %v2236
    %v2239 = vadd.f32 %v2231, %v2237
    %v2240 = vld [vmem:[%s105] sm:$0xff]
    %v2241 = vld [vmem:[%s105 + $0x8] sm:$0xff]
    %s2242 = sld [smem:[#allocation2 + $0x46]]
    %v2243 = vstv %s2242
    %v2244 = vmul.f32 %v2240, %v2243
    %v2245 = vmul.f32 %v2241, %v2243
    %v2246 = vadd.f32 %v2238, %v2244
    %v2247 = vadd.f32 %v2239, %v2245
    %v2248 = vld [vmem:[%s114] sm:$0xff]
    %v2249 = vld [vmem:[%s114 + $0x8] sm:$0xff]
    %s2250 = sld [smem:[#allocation2 + $0x47]]
    %v2251 = vstv %s2250
    %v2252 = vmul.f32 %v2248, %v2251
    %v2253 = vmul.f32 %v2249, %v2251
    %v2254 = vadd.f32 %v2246, %v2252
    %v2255 = vadd.f32 %v2247, %v2253
    %v2256 = vmul.f32 %v2192, %v2189
    %v2257 = vmul.f32 %v2193, %v2189
    %v2258 = vmul.f32 %v2200, %v2195
    %v2259 = vmul.f32 %v2201, %v2195
    %v2260 = vadd.f32 %v2256, %v2258
    %v2261 = vadd.f32 %v2257, %v2259
    %v2262 = vld [vmem:[%s129] sm:$0xff]
    %v2263 = vld [vmem:[%s129 + $0x8] sm:$0xff]
    %v2264 = vmul.f32 %v2262, %v2203
    %v2265 = vmul.f32 %v2263, %v2203
    %v2266 = vadd.f32 %v2260, %v2264
    %v2267 = vadd.f32 %v2261, %v2265
    %v2268 = vmul.f32 %v2216, %v2211
    %v2269 = vmul.f32 %v2217, %v2211
    %v2270 = vadd.f32 %v2266, %v2268
    %v2271 = vadd.f32 %v2267, %v2269
    %v2272 = vmul.f32 %v2224, %v2219
    %v2273 = vmul.f32 %v2225, %v2219
    %v2274 = vadd.f32 %v2270, %v2272
    %v2275 = vadd.f32 %v2271, %v2273
    %v2276 = vld [vmem:[%s144] sm:$0xff]
    %v2277 = vld [vmem:[%s144 + $0x8] sm:$0xff]
    %v2278 = vmul.f32 %v2276, %v2227
    %v2279 = vmul.f32 %v2277, %v2227
    %v2280 = vadd.f32 %v2274, %v2278
    %v2281 = vadd.f32 %v2275, %v2279
    %v2282 = vmul.f32 %v2240, %v2235
    %v2283 = vmul.f32 %v2241, %v2235
    %v2284 = vadd.f32 %v2280, %v2282
    %v2285 = vadd.f32 %v2281, %v2283
    %v2286 = vmul.f32 %v2248, %v2243
    %v2287 = vmul.f32 %v2249, %v2243
    %v2288 = vadd.f32 %v2284, %v2286
    %v2289 = vadd.f32 %v2285, %v2287
    %v2290 = vld [vmem:[%s159] sm:$0xff]
    %v2291 = vld [vmem:[%s159 + $0x8] sm:$0xff]
    %v2292 = vmul.f32 %v2290, %v2251
    %v2293 = vmul.f32 %v2291, %v2251
    %v2294 = vadd.f32 %v2288, %v2292
    %v2295 = vadd.f32 %v2289, %v2293
    %v2296 = vmax.f32 %v2254, %v2294
    %v2297 = vmax.f32 %v2255, %v2295
    %v2298 = vmul.f32 %v2208, %v2189
    %v2299 = vmul.f32 %v2209, %v2189
    %v2300 = vmul.f32 %v2216, %v2195
    %v2301 = vmul.f32 %v2217, %v2195
    %v2302 = vadd.f32 %v2298, %v2300
    %v2303 = vadd.f32 %v2299, %v2301
    %v2304 = vmul.f32 %v2224, %v2203
    %v2305 = vmul.f32 %v2225, %v2203
    %v2306 = vadd.f32 %v2302, %v2304
    %v2307 = vadd.f32 %v2303, %v2305
    %v2308 = vmul.f32 %v2232, %v2211
    %v2309 = vmul.f32 %v2233, %v2211
    %v2310 = vadd.f32 %v2306, %v2308
    %v2311 = vadd.f32 %v2307, %v2309
    %v2312 = vmul.f32 %v2240, %v2219
    %v2313 = vmul.f32 %v2241, %v2219
    %v2314 = vadd.f32 %v2310, %v2312
    %v2315 = vadd.f32 %v2311, %v2313
    %v2316 = vmul.f32 %v2248, %v2227
    %v2317 = vmul.f32 %v2249, %v2227
    %v2318 = vadd.f32 %v2314, %v2316
    %v2319 = vadd.f32 %v2315, %v2317
    %v2320 = vld [vmem:[%s190] sm:$0xff]
    %v2321 = vld [vmem:[%s190 + $0x8] sm:$0xff]
    %v2322 = vmul.f32 %v2320, %v2235
    %v2323 = vmul.f32 %v2321, %v2235
    %v2324 = vadd.f32 %v2318, %v2322
    %v2325 = vadd.f32 %v2319, %v2323
    %v2326 = vld [vmem:[%s197] sm:$0xff]
    %v2327 = vld [vmem:[%s197 + $0x8] sm:$0xff]
    %v2328 = vmul.f32 %v2326, %v2243
    %v2329 = vmul.f32 %v2327, %v2243
    %v2330 = vadd.f32 %v2324, %v2328
    %v2331 = vadd.f32 %v2325, %v2329
    %v2332 = vld [vmem:[%s204] sm:$0xff]
    %v2333 = vld [vmem:[%s204 + $0x8] sm:$0xff]
    %v2334 = vmul.f32 %v2332, %v2251
    %v2335 = vmul.f32 %v2333, %v2251
    %v2336 = vadd.f32 %v2330, %v2334
    %v2337 = vadd.f32 %v2331, %v2335
    %v2338 = vmax.f32 %v2296, %v2336
    %v2339 = vmax.f32 %v2297, %v2337
    %v2340 = vmul.f32 %v2216, %v2189
    %v2341 = vmul.f32 %v2217, %v2189
    %v2342 = vmul.f32 %v2224, %v2195
    %v2343 = vmul.f32 %v2225, %v2195
    %v2344 = vadd.f32 %v2340, %v2342
    %v2345 = vadd.f32 %v2341, %v2343
    %v2346 = vmul.f32 %v2276, %v2203
    %v2347 = vmul.f32 %v2277, %v2203
    %v2348 = vadd.f32 %v2344, %v2346
    %v2349 = vadd.f32 %v2345, %v2347
    %v2350 = vmul.f32 %v2240, %v2211
    %v2351 = vmul.f32 %v2241, %v2211
    %v2352 = vadd.f32 %v2348, %v2350
    %v2353 = vadd.f32 %v2349, %v2351
    %v2354 = vmul.f32 %v2248, %v2219
    %v2355 = vmul.f32 %v2249, %v2219
    %v2356 = vadd.f32 %v2352, %v2354
    %v2357 = vadd.f32 %v2353, %v2355
    %v2358 = vmul.f32 %v2290, %v2227
    %v2359 = vmul.f32 %v2291, %v2227
    %v2360 = vadd.f32 %v2356, %v2358
    %v2361 = vadd.f32 %v2357, %v2359
    %v2362 = vmul.f32 %v2326, %v2235
    %v2363 = vmul.f32 %v2327, %v2235
    %v2364 = vadd.f32 %v2360, %v2362
    %v2365 = vadd.f32 %v2361, %v2363
    %v2366 = vmul.f32 %v2332, %v2243
    %v2367 = vmul.f32 %v2333, %v2243
    %v2368 = vadd.f32 %v2364, %v2366
    %v2369 = vadd.f32 %v2365, %v2367
    %v2370 = vld [vmem:[%s243] sm:$0xff]
    %v2371 = vld [vmem:[%s243 + $0x8] sm:$0xff]
    %v2372 = vmul.f32 %v2370, %v2251
    %v2373 = vmul.f32 %v2371, %v2251
    %v2374 = vadd.f32 %v2368, %v2372
    %v2375 = vadd.f32 %v2369, %v2373
    %v2376 = vmax.f32 %v2338, %v2374
    %v2377 = vmax.f32 %v2339, %v2375
    %s2378 = sld [smem:[#allocation4 + $0x7]]
    %v2379 = vstv %s2378
    %v2380 = vadd.f32 %v2376, %v2379
    %v2381 = vadd.f32 %v2377, %v2379
    %v2382 = vmax.f32 %v2380, 0.0
    %v2383 = vmax.f32 %v2381, 0.0
    %v2384 = vld [vmem:[%s3 + $0x700] sm:$0xff]
    %v2385 = vld [vmem:[%s3 + $0x708] sm:$0xff]
    %v2386 = vld [vmem:[%s3 + $0x710] sm:$0xff]
    %v2387 = vld [vmem:[%s3 + $0x718] sm:$0xff]
    %v2388 = vld [vmem:[%s3 + $0x720] sm:$0xff]
    %v2389 = vld [vmem:[%s3 + $0x728] sm:$0xff]
    %v2390 = vld [vmem:[%s3 + $0x730] sm:$0xff]
    %v2391 = vld [vmem:[%s3 + $0x738] sm:$0xff]
    %v2392 = vld [vmem:[%s3 + $0x740] sm:$0xff]
    %v2393 = vld [vmem:[%s3 + $0x748] sm:$0xff]
    %v2394 = vld [vmem:[%s3 + $0x750] sm:$0xff]
    %v2395 = vld [vmem:[%s3 + $0x758] sm:$0xff]
    %v2396 = vld [vmem:[%s3 + $0x760] sm:$0xff]
    %v2397 = vld [vmem:[%s3 + $0x768] sm:$0xff]
    %v2398 = vld [vmem:[%s3 + $0x770] sm:$0xff]
    %v2399 = vld [vmem:[%s3 + $0x778] sm:$0xff]
    %v2400 = vld [vmem:[%s3 + $0x780] sm:$0xff]
    %v2401 = vld [vmem:[%s3 + $0x788] sm:$0xff]
    %v2402 = vld [vmem:[%s3 + $0x790] sm:$0xff]
    %v2403 = vld [vmem:[%s3 + $0x798] sm:$0xff]
    %v2404 = vld [vmem:[%s3 + $0x7a0] sm:$0xff]
    %v2405 = vld [vmem:[%s3 + $0x7a8] sm:$0xff]
    %v2406 = vld [vmem:[%s3 + $0x7b0] sm:$0xff]
    %v2407 = vld [vmem:[%s3 + $0x7b8] sm:$0xff]
    %v2408 = vld [vmem:[%s3 + $0x7c0] sm:$0xff]
    %v2409 = vld [vmem:[%s3 + $0x7c8] sm:$0xff]
    %v2410 = vld [vmem:[%s3 + $0x7d0] sm:$0xff]
    %v2411 = vld [vmem:[%s3 + $0x7d8] sm:$0xff]
    %v2412 = vld [vmem:[%s3 + $0x7e0] sm:$0xff]
    %v2413 = vld [vmem:[%s3 + $0x7e8] sm:$0xff]
    %v2414 = vld [vmem:[%s3 + $0x7f0] sm:$0xff]
    %v2415 = vld [vmem:[%s3 + $0x7f8] sm:$0xff]
    %2416 = vmatprep.subr.mxu0 0.0
    %2417 = vmatpush1.msra.mxu0 %v2384
    %2418 = vmatprep.subr.mxu0 0.0
    %2419 = vmatpush1.msra.mxu0 %v2385
    %2420 = vmatprep.subr.mxu0 0.0
    %2421 = vmatpush1.msra.mxu0 %v2386
    %2422 = vmatprep.subr.mxu0 0.0
    %2423 = vmatpush1.msra.mxu0 %v2387
    %2424 = vmatprep.subr.mxu0 0.0
    %2425 = vmatpush1.msra.mxu0 %v2388
    %2426 = vmatprep.subr.mxu0 0.0
    %2427 = vmatpush1.msra.mxu0 %v2389
    %2428 = vmatprep.subr.mxu0 0.0
    %2429 = vmatpush1.msra.mxu0 %v2390
    %2430 = vmatprep.subr.mxu0 0.0
    %2431 = vmatpush1.msra.mxu0 %v2391
    %2432 = vmatprep.subr.mxu0 0.0
    %2433 = vmatpush1.msra.mxu0 %v2392
    %2434 = vmatprep.subr.mxu0 0.0
    %2435 = vmatpush1.msra.mxu0 %v2393
    %2436 = vmatprep.subr.mxu0 0.0
    %2437 = vmatpush1.msra.mxu0 %v2394
    %2438 = vmatprep.subr.mxu0 0.0
    %2439 = vmatpush1.msra.mxu0 %v2395
    %2440 = vmatprep.subr.mxu0 0.0
    %2441 = vmatpush1.msra.mxu0 %v2396
    %2442 = vmatprep.subr.mxu0 0.0
    %2443 = vmatpush1.msra.mxu0 %v2397
    %2444 = vmatprep.subr.mxu0 0.0
    %2445 = vmatpush1.msra.mxu0 %v2398
    %2446 = vmatprep.subr.mxu0 0.0
    %2447 = vmatpush1.msra.mxu0 %v2399
    %2448 = vmatprep.subr.mxu0 0.0
    %2449 = vmatpush1.msra.mxu0 %v2400
    %2450 = vmatprep.subr.mxu0 0.0
    %2451 = vmatpush1.msra.mxu0 %v2401
    %2452 = vmatprep.subr.mxu0 0.0
    %2453 = vmatpush1.msra.mxu0 %v2402
    %2454 = vmatprep.subr.mxu0 0.0
    %2455 = vmatpush1.msra.mxu0 %v2403
    %2456 = vmatprep.subr.mxu0 0.0
    %2457 = vmatpush1.msra.mxu0 %v2404
    %2458 = vmatprep.subr.mxu0 0.0
    %2459 = vmatpush1.msra.mxu0 %v2405
    %2460 = vmatprep.subr.mxu0 0.0
    %2461 = vmatpush1.msra.mxu0 %v2406
    %2462 = vmatprep.subr.mxu0 0.0
    %2463 = vmatpush1.msra.mxu0 %v2407
    %2464 = vmatprep.subr.mxu0 0.0
    %2465 = vmatpush1.msra.mxu0 %v2408
    %2466 = vmatprep.subr.mxu0 0.0
    %2467 = vmatpush1.msra.mxu0 %v2409
    %2468 = vmatprep.subr.mxu0 0.0
    %2469 = vmatpush1.msra.mxu0 %v2410
    %2470 = vmatprep.subr.mxu0 0.0
    %2471 = vmatpush1.msra.mxu0 %v2411
    %2472 = vmatprep.subr.mxu0 0.0
    %2473 = vmatpush1.msra.mxu0 %v2412
    %2474 = vmatprep.subr.mxu0 0.0
    %2475 = vmatpush1.msra.mxu0 %v2413
    %2476 = vmatprep.subr.mxu0 0.0
    %2477 = vmatpush1.msra.mxu0 %v2414
    %2478 = vmatprep.subr.mxu0 0.0
    %2479 = vmatpush1.msra.mxu0 %v2415
    %2480 = vmatprep.mubr.f32.mxu0 %v2383
    %2481 = vmatmul.mubr.f32.gmra.mrb[0].mxu0 %v2382
    %v2482 = vpop.f32.mrb[0].mxu0
    %v2483 = vadd.f32 0.0, %v2482
    %v2484 = vpop.f32.mrb[0].mxu0
    %2485 = vdwg.mxu0
    %v2486 = vld [vmem:[%s5] sm:$0xff]
    %v2487 = vadd.f32 %v2486, %v2483
    %2488 = vst [vmem:[%s5] sm:$0xff] %v2487
    %v2489 = vld [vmem:[%s0] sm:$0xff]
    %v2490 = vld [vmem:[%s0 + $0x8] sm:$0xff]
    %s2491 = sld [smem:[#allocation2 + $0x48]]
    %v2492 = vstv %s2491
    %v2493 = vmul.f32 %v2489, %v2492
    %v2494 = vmul.f32 %v2490, %v2492
    %v2495 = vld [vmem:[%s51] sm:$0xff]
    %v2496 = vld [vmem:[%s51 + $0x8] sm:$0xff]
    %s2497 = sld [smem:[#allocation2 + $0x49]]
    %v2498 = vstv %s2497
    %v2499 = vmul.f32 %v2495, %v2498
    %v2500 = vmul.f32 %v2496, %v2498
    %v2501 = vadd.f32 %v2493, %v2499
    %v2502 = vadd.f32 %v2494, %v2500
    %v2503 = vld [vmem:[%s60] sm:$0xff]
    %v2504 = vld [vmem:[%s60 + $0x8] sm:$0xff]
    %s2505 = sld [smem:[#allocation2 + $0x4a]]
    %v2506 = vstv %s2505
    %v2507 = vmul.f32 %v2503, %v2506
    %v2508 = vmul.f32 %v2504, %v2506
    %v2509 = vadd.f32 %v2501, %v2507
    %v2510 = vadd.f32 %v2502, %v2508
    %v2511 = vld [vmem:[%s69] sm:$0xff]
    %v2512 = vld [vmem:[%s69 + $0x8] sm:$0xff]
    %s2513 = sld [smem:[#allocation2 + $0x4b]]
    %v2514 = vstv %s2513
    %v2515 = vmul.f32 %v2511, %v2514
    %v2516 = vmul.f32 %v2512, %v2514
    %v2517 = vadd.f32 %v2509, %v2515
    %v2518 = vadd.f32 %v2510, %v2516
    %v2519 = vld [vmem:[%s78] sm:$0xff]
    %v2520 = vld [vmem:[%s78 + $0x8] sm:$0xff]
    %s2521 = sld [smem:[#allocation2 + $0x4c]]
    %v2522 = vstv %s2521
    %v2523 = vmul.f32 %v2519, %v2522
    %v2524 = vmul.f32 %v2520, %v2522
    %v2525 = vadd.f32 %v2517, %v2523
    %v2526 = vadd.f32 %v2518, %v2524
    %v2527 = vld [vmem:[%s87] sm:$0xff]
    %v2528 = vld [vmem:[%s87 + $0x8] sm:$0xff]
    %s2529 = sld [smem:[#allocation2 + $0x4d]]
    %v2530 = vstv %s2529
    %v2531 = vmul.f32 %v2527, %v2530
    %v2532 = vmul.f32 %v2528, %v2530
    %v2533 = vadd.f32 %v2525, %v2531
    %v2534 = vadd.f32 %v2526, %v2532
    %v2535 = vld [vmem:[%s96] sm:$0xff]
    %v2536 = vld [vmem:[%s96 + $0x8] sm:$0xff]
    %s2537 = sld [smem:[#allocation2 + $0x4e]]
    %v2538 = vstv %s2537
    %v2539 = vmul.f32 %v2535, %v2538
    %v2540 = vmul.f32 %v2536, %v2538
    %v2541 = vadd.f32 %v2533, %v2539
    %v2542 = vadd.f32 %v2534, %v2540
    %v2543 = vld [vmem:[%s105] sm:$0xff]
    %v2544 = vld [vmem:[%s105 + $0x8] sm:$0xff]
    %s2545 = sld [smem:[#allocation2 + $0x4f]]
    %v2546 = vstv %s2545
    %v2547 = vmul.f32 %v2543, %v2546
    %v2548 = vmul.f32 %v2544, %v2546
    %v2549 = vadd.f32 %v2541, %v2547
    %v2550 = vadd.f32 %v2542, %v2548
    %v2551 = vld [vmem:[%s114] sm:$0xff]
    %v2552 = vld [vmem:[%s114 + $0x8] sm:$0xff]
    %s2553 = sld [smem:[#allocation2 + $0x50]]
    %v2554 = vstv %s2553
    %v2555 = vmul.f32 %v2551, %v2554
    %v2556 = vmul.f32 %v2552, %v2554
    %v2557 = vadd.f32 %v2549, %v2555
    %v2558 = vadd.f32 %v2550, %v2556
    %v2559 = vmul.f32 %v2495, %v2492
    %v2560 = vmul.f32 %v2496, %v2492
    %v2561 = vmul.f32 %v2503, %v2498
    %v2562 = vmul.f32 %v2504, %v2498
    %v2563 = vadd.f32 %v2559, %v2561
    %v2564 = vadd.f32 %v2560, %v2562
    %v2565 = vld [vmem:[%s129] sm:$0xff]
    %v2566 = vld [vmem:[%s129 + $0x8] sm:$0xff]
    %v2567 = vmul.f32 %v2565, %v2506
    %v2568 = vmul.f32 %v2566, %v2506
    %v2569 = vadd.f32 %v2563, %v2567
    %v2570 = vadd.f32 %v2564, %v2568
    %v2571 = vmul.f32 %v2519, %v2514
    %v2572 = vmul.f32 %v2520, %v2514
    %v2573 = vadd.f32 %v2569, %v2571
    %v2574 = vadd.f32 %v2570, %v2572
    %v2575 = vmul.f32 %v2527, %v2522
    %v2576 = vmul.f32 %v2528, %v2522
    %v2577 = vadd.f32 %v2573, %v2575
    %v2578 = vadd.f32 %v2574, %v2576
    %v2579 = vld [vmem:[%s144] sm:$0xff]
    %v2580 = vld [vmem:[%s144 + $0x8] sm:$0xff]
    %v2581 = vmul.f32 %v2579, %v2530
    %v2582 = vmul.f32 %v2580, %v2530
    %v2583 = vadd.f32 %v2577, %v2581
    %v2584 = vadd.f32 %v2578, %v2582
    %v2585 = vmul.f32 %v2543, %v2538
    %v2586 = vmul.f32 %v2544, %v2538
    %v2587 = vadd.f32 %v2583, %v2585
    %v2588 = vadd.f32 %v2584, %v2586
    %v2589 = vmul.f32 %v2551, %v2546
    %v2590 = vmul.f32 %v2552, %v2546
    %v2591 = vadd.f32 %v2587, %v2589
    %v2592 = vadd.f32 %v2588, %v2590
    %v2593 = vld [vmem:[%s159] sm:$0xff]
    %v2594 = vld [vmem:[%s159 + $0x8] sm:$0xff]
    %v2595 = vmul.f32 %v2593, %v2554
    %v2596 = vmul.f32 %v2594, %v2554
    %v2597 = vadd.f32 %v2591, %v2595
    %v2598 = vadd.f32 %v2592, %v2596
    %v2599 = vmax.f32 %v2557, %v2597
    %v2600 = vmax.f32 %v2558, %v2598
    %v2601 = vmul.f32 %v2511, %v2492
    %v2602 = vmul.f32 %v2512, %v2492
    %v2603 = vmul.f32 %v2519, %v2498
    %v2604 = vmul.f32 %v2520, %v2498
    %v2605 = vadd.f32 %v2601, %v2603
    %v2606 = vadd.f32 %v2602, %v2604
    %v2607 = vmul.f32 %v2527, %v2506
    %v2608 = vmul.f32 %v2528, %v2506
    %v2609 = vadd.f32 %v2605, %v2607
    %v2610 = vadd.f32 %v2606, %v2608
    %v2611 = vmul.f32 %v2535, %v2514
    %v2612 = vmul.f32 %v2536, %v2514
    %v2613 = vadd.f32 %v2609, %v2611
    %v2614 = vadd.f32 %v2610, %v2612
    %v2615 = vmul.f32 %v2543, %v2522
    %v2616 = vmul.f32 %v2544, %v2522
    %v2617 = vadd.f32 %v2613, %v2615
    %v2618 = vadd.f32 %v2614, %v2616
    %v2619 = vmul.f32 %v2551, %v2530
    %v2620 = vmul.f32 %v2552, %v2530
    %v2621 = vadd.f32 %v2617, %v2619
    %v2622 = vadd.f32 %v2618, %v2620
    %v2623 = vld [vmem:[%s190] sm:$0xff]
    %v2624 = vld [vmem:[%s190 + $0x8] sm:$0xff]
    %v2625 = vmul.f32 %v2623, %v2538
    %v2626 = vmul.f32 %v2624, %v2538
    %v2627 = vadd.f32 %v2621, %v2625
    %v2628 = vadd.f32 %v2622, %v2626
    %v2629 = vld [vmem:[%s197] sm:$0xff]
    %v2630 = vld [vmem:[%s197 + $0x8] sm:$0xff]
    %v2631 = vmul.f32 %v2629, %v2546
    %v2632 = vmul.f32 %v2630, %v2546
    %v2633 = vadd.f32 %v2627, %v2631
    %v2634 = vadd.f32 %v2628, %v2632
    %v2635 = vld [vmem:[%s204] sm:$0xff]
    %v2636 = vld [vmem:[%s204 + $0x8] sm:$0xff]
    %v2637 = vmul.f32 %v2635, %v2554
    %v2638 = vmul.f32 %v2636, %v2554
    %v2639 = vadd.f32 %v2633, %v2637
    %v2640 = vadd.f32 %v2634, %v2638
    %v2641 = vmax.f32 %v2599, %v2639
    %v2642 = vmax.f32 %v2600, %v2640
    %v2643 = vmul.f32 %v2519, %v2492
    %v2644 = vmul.f32 %v2520, %v2492
    %v2645 = vmul.f32 %v2527, %v2498
    %v2646 = vmul.f32 %v2528, %v2498
    %v2647 = vadd.f32 %v2643, %v2645
    %v2648 = vadd.f32 %v2644, %v2646
    %v2649 = vmul.f32 %v2579, %v2506
    %v2650 = vmul.f32 %v2580, %v2506
    %v2651 = vadd.f32 %v2647, %v2649
    %v2652 = vadd.f32 %v2648, %v2650
    %v2653 = vmul.f32 %v2543, %v2514
    %v2654 = vmul.f32 %v2544, %v2514
    %v2655 = vadd.f32 %v2651, %v2653
    %v2656 = vadd.f32 %v2652, %v2654
    %v2657 = vmul.f32 %v2551, %v2522
    %v2658 = vmul.f32 %v2552, %v2522
    %v2659 = vadd.f32 %v2655, %v2657
    %v2660 = vadd.f32 %v2656, %v2658
    %v2661 = vmul.f32 %v2593, %v2530
    %v2662 = vmul.f32 %v2594, %v2530
    %v2663 = vadd.f32 %v2659, %v2661
    %v2664 = vadd.f32 %v2660, %v2662
    %v2665 = vmul.f32 %v2629, %v2538
    %v2666 = vmul.f32 %v2630, %v2538
    %v2667 = vadd.f32 %v2663, %v2665
    %v2668 = vadd.f32 %v2664, %v2666
    %v2669 = vmul.f32 %v2635, %v2546
    %v2670 = vmul.f32 %v2636, %v2546
    %v2671 = vadd.f32 %v2667, %v2669
    %v2672 = vadd.f32 %v2668, %v2670
    %v2673 = vld [vmem:[%s243] sm:$0xff]
    %v2674 = vld [vmem:[%s243 + $0x8] sm:$0xff]
    %v2675 = vmul.f32 %v2673, %v2554
    %v2676 = vmul.f32 %v2674, %v2554
    %v2677 = vadd.f32 %v2671, %v2675
    %v2678 = vadd.f32 %v2672, %v2676
    %v2679 = vmax.f32 %v2641, %v2677
    %v2680 = vmax.f32 %v2642, %v2678
    %s2681 = sld [smem:[#allocation4 + $0x8]]
    %v2682 = vstv %s2681
    %v2683 = vadd.f32 %v2679, %v2682
    %v2684 = vadd.f32 %v2680, %v2682
    %v2685 = vmax.f32 %v2683, 0.0
    %v2686 = vmax.f32 %v2684, 0.0
    %v2687 = vld [vmem:[%s3 + $0x800] sm:$0xff]
    %v2688 = vld [vmem:[%s3 + $0x808] sm:$0xff]
    %v2689 = vld [vmem:[%s3 + $0x810] sm:$0xff]
    %v2690 = vld [vmem:[%s3 + $0x818] sm:$0xff]
    %v2691 = vld [vmem:[%s3 + $0x820] sm:$0xff]
    %v2692 = vld [vmem:[%s3 + $0x828] sm:$0xff]
    %v2693 = vld [vmem:[%s3 + $0x830] sm:$0xff]
    %v2694 = vld [vmem:[%s3 + $0x838] sm:$0xff]
    %v2695 = vld [vmem:[%s3 + $0x840] sm:$0xff]
    %v2696 = vld [vmem:[%s3 + $0x848] sm:$0xff]
    %v2697 = vld [vmem:[%s3 + $0x850] sm:$0xff]
    %v2698 = vld [vmem:[%s3 + $0x858] sm:$0xff]
    %v2699 = vld [vmem:[%s3 + $0x860] sm:$0xff]
    %v2700 = vld [vmem:[%s3 + $0x868] sm:$0xff]
    %v2701 = vld [vmem:[%s3 + $0x870] sm:$0xff]
    %v2702 = vld [vmem:[%s3 + $0x878] sm:$0xff]
    %v2703 = vld [vmem:[%s3 + $0x880] sm:$0xff]
    %v2704 = vld [vmem:[%s3 + $0x888] sm:$0xff]
    %v2705 = vld [vmem:[%s3 + $0x890] sm:$0xff]
    %v2706 = vld [vmem:[%s3 + $0x898] sm:$0xff]
    %v2707 = vld [vmem:[%s3 + $0x8a0] sm:$0xff]
    %v2708 = vld [vmem:[%s3 + $0x8a8] sm:$0xff]
    %v2709 = vld [vmem:[%s3 + $0x8b0] sm:$0xff]
    %v2710 = vld [vmem:[%s3 + $0x8b8] sm:$0xff]
    %v2711 = vld [vmem:[%s3 + $0x8c0] sm:$0xff]
    %v2712 = vld [vmem:[%s3 + $0x8c8] sm:$0xff]
    %v2713 = vld [vmem:[%s3 + $0x8d0] sm:$0xff]
    %v2714 = vld [vmem:[%s3 + $0x8d8] sm:$0xff]
    %v2715 = vld [vmem:[%s3 + $0x8e0] sm:$0xff]
    %v2716 = vld [vmem:[%s3 + $0x8e8] sm:$0xff]
    %v2717 = vld [vmem:[%s3 + $0x8f0] sm:$0xff]
    %v2718 = vld [vmem:[%s3 + $0x8f8] sm:$0xff]
    %2719 = vmatprep.subr.mxu0 0.0
    %2720 = vmatpush1.msra.mxu0 %v2687
    %2721 = vmatprep.subr.mxu0 0.0
    %2722 = vmatpush1.msra.mxu0 %v2688
    %2723 = vmatprep.subr.mxu0 0.0
    %2724 = vmatpush1.msra.mxu0 %v2689
    %2725 = vmatprep.subr.mxu0 0.0
    %2726 = vmatpush1.msra.mxu0 %v2690
    %2727 = vmatprep.subr.mxu0 0.0
    %2728 = vmatpush1.msra.mxu0 %v2691
    %2729 = vmatprep.subr.mxu0 0.0
    %2730 = vmatpush1.msra.mxu0 %v2692
    %2731 = vmatprep.subr.mxu0 0.0
    %2732 = vmatpush1.msra.mxu0 %v2693
    %2733 = vmatprep.subr.mxu0 0.0
    %2734 = vmatpush1.msra.mxu0 %v2694
    %2735 = vmatprep.subr.mxu0 0.0
    %2736 = vmatpush1.msra.mxu0 %v2695
    %2737 = vmatprep.subr.mxu0 0.0
    %2738 = vmatpush1.msra.mxu0 %v2696
    %2739 = vmatprep.subr.mxu0 0.0
    %2740 = vmatpush1.msra.mxu0 %v2697
    %2741 = vmatprep.subr.mxu0 0.0
    %2742 = vmatpush1.msra.mxu0 %v2698
    %2743 = vmatprep.subr.mxu0 0.0
    %2744 = vmatpush1.msra.mxu0 %v2699
    %2745 = vmatprep.subr.mxu0 0.0
    %2746 = vmatpush1.msra.mxu0 %v2700
    %2747 = vmatprep.subr.mxu0 0.0
    %2748 = vmatpush1.msra.mxu0 %v2701
    %2749 = vmatprep.subr.mxu0 0.0
    %2750 = vmatpush1.msra.mxu0 %v2702
    %2751 = vmatprep.subr.mxu0 0.0
    %2752 = vmatpush1.msra.mxu0 %v2703
    %2753 = vmatprep.subr.mxu0 0.0
    %2754 = vmatpush1.msra.mxu0 %v2704
    %2755 = vmatprep.subr.mxu0 0.0
    %2756 = vmatpush1.msra.mxu0 %v2705
    %2757 = vmatprep.subr.mxu0 0.0
    %2758 = vmatpush1.msra.mxu0 %v2706
    %2759 = vmatprep.subr.mxu0 0.0
    %2760 = vmatpush1.msra.mxu0 %v2707
    %2761 = vmatprep.subr.mxu0 0.0
    %2762 = vmatpush1.msra.mxu0 %v2708
    %2763 = vmatprep.subr.mxu0 0.0
    %2764 = vmatpush1.msra.mxu0 %v2709
    %2765 = vmatprep.subr.mxu0 0.0
    %2766 = vmatpush1.msra.mxu0 %v2710
    %2767 = vmatprep.subr.mxu0 0.0
    %2768 = vmatpush1.msra.mxu0 %v2711
    %2769 = vmatprep.subr.mxu0 0.0
    %2770 = vmatpush1.msra.mxu0 %v2712
    %2771 = vmatprep.subr.mxu0 0.0
    %2772 = vmatpush1.msra.mxu0 %v2713
    %2773 = vmatprep.subr.mxu0 0.0
    %2774 = vmatpush1.msra.mxu0 %v2714
    %2775 = vmatprep.subr.mxu0 0.0
    %2776 = vmatpush1.msra.mxu0 %v2715
    %2777 = vmatprep.subr.mxu0 0.0
    %2778 = vmatpush1.msra.mxu0 %v2716
    %2779 = vmatprep.subr.mxu0 0.0
    %2780 = vmatpush1.msra.mxu0 %v2717
    %2781 = vmatprep.subr.mxu0 0.0
    %2782 = vmatpush1.msra.mxu0 %v2718
    %2783 = vmatprep.mubr.f32.mxu0 %v2686
    %2784 = vmatmul.mubr.f32.gmra.mrb[0].mxu0 %v2685
    %v2785 = vpop.f32.mrb[0].mxu0
    %v2786 = vadd.f32 0.0, %v2785
    %v2787 = vpop.f32.mrb[0].mxu0
    %2788 = vdwg.mxu0
    %v2789 = vld [vmem:[%s5] sm:$0xff]
    %v2790 = vadd.f32 %v2789, %v2786
    %2791 = vst [vmem:[%s5] sm:$0xff] %v2790
    %v2792 = vld [vmem:[%s0] sm:$0xff]
    %v2793 = vld [vmem:[%s0 + $0x8] sm:$0xff]
    %s2794 = sld [smem:[#allocation2 + $0x51]]
    %v2795 = vstv %s2794
    %v2796 = vmul.f32 %v2792, %v2795
    %v2797 = vmul.f32 %v2793, %v2795
    %v2798 = vld [vmem:[%s51] sm:$0xff]
    %v2799 = vld [vmem:[%s51 + $0x8] sm:$0xff]
    %s2800 = sld [smem:[#allocation2 + $0x52]]
    %v2801 = vstv %s2800
    %v2802 = vmul.f32 %v2798, %v2801
    %v2803 = vmul.f32 %v2799, %v2801
    %v2804 = vadd.f32 %v2796, %v2802
    %v2805 = vadd.f32 %v2797, %v2803
    %v2806 = vld [vmem:[%s60] sm:$0xff]
    %v2807 = vld [vmem:[%s60 + $0x8] sm:$0xff]
    %s2808 = sld [smem:[#allocation2 + $0x53]]
    %v2809 = vstv %s2808
    %v2810 = vmul.f32 %v2806, %v2809
    %v2811 = vmul.f32 %v2807, %v2809
    %v2812 = vadd.f32 %v2804, %v2810
    %v2813 = vadd.f32 %v2805, %v2811
    %v2814 = vld [vmem:[%s69] sm:$0xff]
    %v2815 = vld [vmem:[%s69 + $0x8] sm:$0xff]
    %s2816 = sld [smem:[#allocation2 + $0x54]]
    %v2817 = vstv %s2816
    %v2818 = vmul.f32 %v2814, %v2817
    %v2819 = vmul.f32 %v2815, %v2817
    %v2820 = vadd.f32 %v2812, %v2818
    %v2821 = vadd.f32 %v2813, %v2819
    %v2822 = vld [vmem:[%s78] sm:$0xff]
    %v2823 = vld [vmem:[%s78 + $0x8] sm:$0xff]
    %s2824 = sld [smem:[#allocation2 + $0x55]]
    %v2825 = vstv %s2824
    %v2826 = vmul.f32 %v2822, %v2825
    %v2827 = vmul.f32 %v2823, %v2825
    %v2828 = vadd.f32 %v2820, %v2826
    %v2829 = vadd.f32 %v2821, %v2827
    %v2830 = vld [vmem:[%s87] sm:$0xff]
    %v2831 = vld [vmem:[%s87 + $0x8] sm:$0xff]
    %s2832 = sld [smem:[#allocation2 + $0x56]]
    %v2833 = vstv %s2832
    %v2834 = vmul.f32 %v2830, %v2833
    %v2835 = vmul.f32 %v2831, %v2833
    %v2836 = vadd.f32 %v2828, %v2834
    %v2837 = vadd.f32 %v2829, %v2835
    %v2838 = vld [vmem:[%s96] sm:$0xff]
    %v2839 = vld [vmem:[%s96 + $0x8] sm:$0xff]
    %s2840 = sld [smem:[#allocation2 + $0x57]]
    %v2841 = vstv %s2840
    %v2842 = vmul.f32 %v2838, %v2841
    %v2843 = vmul.f32 %v2839, %v2841
    %v2844 = vadd.f32 %v2836, %v2842
    %v2845 = vadd.f32 %v2837, %v2843
    %v2846 = vld [vmem:[%s105] sm:$0xff]
    %v2847 = vld [vmem:[%s105 + $0x8] sm:$0xff]
    %s2848 = sld [smem:[#allocation2 + $0x58]]
    %v2849 = vstv %s2848
    %v2850 = vmul.f32 %v2846, %v2849
    %v2851 = vmul.f32 %v2847, %v2849
    %v2852 = vadd.f32 %v2844, %v2850
    %v2853 = vadd.f32 %v2845, %v2851
    %v2854 = vld [vmem:[%s114] sm:$0xff]
    %v2855 = vld [vmem:[%s114 + $0x8] sm:$0xff]
    %s2856 = sld [smem:[#allocation2 + $0x59]]
    %v2857 = vstv %s2856
    %v2858 = vmul.f32 %v2854, %v2857
    %v2859 = vmul.f32 %v2855, %v2857
    %v2860 = vadd.f32 %v2852, %v2858
    %v2861 = vadd.f32 %v2853, %v2859
    %v2862 = vmul.f32 %v2798, %v2795
    %v2863 = vmul.f32 %v2799, %v2795
    %v2864 = vmul.f32 %v2806, %v2801
    %v2865 = vmul.f32 %v2807, %v2801
    %v2866 = vadd.f32 %v2862, %v2864
    %v2867 = vadd.f32 %v2863, %v2865
    %v2868 = vld [vmem:[%s129] sm:$0xff]
    %v2869 = vld [vmem:[%s129 + $0x8] sm:$0xff]
    %v2870 = vmul.f32 %v2868, %v2809
    %v2871 = vmul.f32 %v2869, %v2809
    %v2872 = vadd.f32 %v2866, %v2870
    %v2873 = vadd.f32 %v2867, %v2871
    %v2874 = vmul.f32 %v2822, %v2817
    %v2875 = vmul.f32 %v2823, %v2817
    %v2876 = vadd.f32 %v2872, %v2874
    %v2877 = vadd.f32 %v2873, %v2875
    %v2878 = vmul.f32 %v2830, %v2825
    %v2879 = vmul.f32 %v2831, %v2825
    %v2880 = vadd.f32 %v2876, %v2878
    %v2881 = vadd.f32 %v2877, %v2879
    %v2882 = vld [vmem:[%s144] sm:$0xff]
    %v2883 = vld [vmem:[%s144 + $0x8] sm:$0xff]
    %v2884 = vmul.f32 %v2882, %v2833
    %v2885 = vmul.f32 %v2883, %v2833
    %v2886 = vadd.f32 %v2880, %v2884
    %v2887 = vadd.f32 %v2881, %v2885
    %v2888 = vmul.f32 %v2846, %v2841
    %v2889 = vmul.f32 %v2847, %v2841
    %v2890 = vadd.f32 %v2886, %v2888
    %v2891 = vadd.f32 %v2887, %v2889
    %v2892 = vmul.f32 %v2854, %v2849
    %v2893 = vmul.f32 %v2855, %v2849
    %v2894 = vadd.f32 %v2890, %v2892
    %v2895 = vadd.f32 %v2891, %v2893
    %v2896 = vld [vmem:[%s159] sm:$0xff]
    %v2897 = vld [vmem:[%s159 + $0x8] sm:$0xff]
    %v2898 = vmul.f32 %v2896, %v2857
    %v2899 = vmul.f32 %v2897, %v2857
    %v2900 = vadd.f32 %v2894, %v2898
    %v2901 = vadd.f32 %v2895, %v2899
    %v2902 = vmax.f32 %v2860, %v2900
    %v2903 = vmax.f32 %v2861, %v2901
    %v2904 = vmul.f32 %v2814, %v2795
    %v2905 = vmul.f32 %v2815, %v2795
    %v2906 = vmul.f32 %v2822, %v2801
    %v2907 = vmul.f32 %v2823, %v2801
    %v2908 = vadd.f32 %v2904, %v2906
    %v2909 = vadd.f32 %v2905, %v2907
    %v2910 = vmul.f32 %v2830, %v2809
    %v2911 = vmul.f32 %v2831, %v2809
    %v2912 = vadd.f32 %v2908, %v2910
    %v2913 = vadd.f32 %v2909, %v2911
    %v2914 = vmul.f32 %v2838, %v2817
    %v2915 = vmul.f32 %v2839, %v2817
    %v2916 = vadd.f32 %v2912, %v2914
    %v2917 = vadd.f32 %v2913, %v2915
    %v2918 = vmul.f32 %v2846, %v2825
    %v2919 = vmul.f32 %v2847, %v2825
    %v2920 = vadd.f32 %v2916, %v2918
    %v2921 = vadd.f32 %v2917, %v2919
    %v2922 = vmul.f32 %v2854, %v2833
    %v2923 = vmul.f32 %v2855, %v2833
    %v2924 = vadd.f32 %v2920, %v2922
    %v2925 = vadd.f32 %v2921, %v2923
    %v2926 = vld [vmem:[%s190] sm:$0xff]
    %v2927 = vld [vmem:[%s190 + $0x8] sm:$0xff]
    %v2928 = vmul.f32 %v2926, %v2841
    %v2929 = vmul.f32 %v2927, %v2841
    %v2930 = vadd.f32 %v2924, %v2928
    %v2931 = vadd.f32 %v2925, %v2929
    %v2932 = vld [vmem:[%s197] sm:$0xff]
    %v2933 = vld [vmem:[%s197 + $0x8] sm:$0xff]
    %v2934 = vmul.f32 %v2932, %v2849
    %v2935 = vmul.f32 %v2933, %v2849
    %v2936 = vadd.f32 %v2930, %v2934
    %v2937 = vadd.f32 %v2931, %v2935
    %v2938 = vld [vmem:[%s204] sm:$0xff]
    %v2939 = vld [vmem:[%s204 + $0x8] sm:$0xff]
    %v2940 = vmul.f32 %v2938, %v2857
    %v2941 = vmul.f32 %v2939, %v2857
    %v2942 = vadd.f32 %v2936, %v2940
    %v2943 = vadd.f32 %v2937, %v2941
    %v2944 = vmax.f32 %v2902, %v2942
    %v2945 = vmax.f32 %v2903, %v2943
    %v2946 = vmul.f32 %v2822, %v2795
    %v2947 = vmul.f32 %v2823, %v2795
    %v2948 = vmul.f32 %v2830, %v2801
    %v2949 = vmul.f32 %v2831, %v2801
    %v2950 = vadd.f32 %v2946, %v2948
    %v2951 = vadd.f32 %v2947, %v2949
    %v2952 = vmul.f32 %v2882, %v2809
    %v2953 = vmul.f32 %v2883, %v2809
    %v2954 = vadd.f32 %v2950, %v2952
    %v2955 = vadd.f32 %v2951, %v2953
    %v2956 = vmul.f32 %v2846, %v2817
    %v2957 = vmul.f32 %v2847, %v2817
    %v2958 = vadd.f32 %v2954, %v2956
    %v2959 = vadd.f32 %v2955, %v2957
    %v2960 = vmul.f32 %v2854, %v2825
    %v2961 = vmul.f32 %v2855, %v2825
    %v2962 = vadd.f32 %v2958, %v2960
    %v2963 = vadd.f32 %v2959, %v2961
    %v2964 = vmul.f32 %v2896, %v2833
    %v2965 = vmul.f32 %v2897, %v2833
    %v2966 = vadd.f32 %v2962, %v2964
    %v2967 = vadd.f32 %v2963, %v2965
    %v2968 = vmul.f32 %v2932, %v2841
    %v2969 = vmul.f32 %v2933, %v2841
    %v2970 = vadd.f32 %v2966, %v2968
    %v2971 = vadd.f32 %v2967, %v2969
    %v2972 = vmul.f32 %v2938, %v2849
    %v2973 = vmul.f32 %v2939, %v2849
    %v2974 = vadd.f32 %v2970, %v2972
    %v2975 = vadd.f32 %v2971, %v2973
    %v2976 = vld [vmem:[%s243] sm:$0xff]
    %v2977 = vld [vmem:[%s243 + $0x8] sm:$0xff]
    %v2978 = vmul.f32 %v2976, %v2857
    %v2979 = vmul.f32 %v2977, %v2857
    %v2980 = vadd.f32 %v2974, %v2978
    %v2981 = vadd.f32 %v2975, %v2979
    %v2982 = vmax.f32 %v2944, %v2980
    %v2983 = vmax.f32 %v2945, %v2981
    %s2984 = sld [smem:[#allocation4 + $0x9]]
    %v2985 = vstv %s2984
    %v2986 = vadd.f32 %v2982, %v2985
    %v2987 = vadd.f32 %v2983, %v2985
    %v2988 = vmax.f32 %v2986, 0.0
    %v2989 = vmax.f32 %v2987, 0.0
    %v2990 = vld [vmem:[%s3 + $0x900] sm:$0xff]
    %v2991 = vld [vmem:[%s3 + $0x908] sm:$0xff]
    %v2992 = vld [vmem:[%s3 + $0x910] sm:$0xff]
    %v2993 = vld [vmem:[%s3 + $0x918] sm:$0xff]
    %v2994 = vld [vmem:[%s3 + $0x920] sm:$0xff]
    %v2995 = vld [vmem:[%s3 + $0x928] sm:$0xff]
    %v2996 = vld [vmem:[%s3 + $0x930] sm:$0xff]
    %v2997 = vld [vmem:[%s3 + $0x938] sm:$0xff]
    %v2998 = vld [vmem:[%s3 + $0x940] sm:$0xff]
    %v2999 = vld [vmem:[%s3 + $0x948] sm:$0xff]
    %v3000 = vld [vmem:[%s3 + $0x950] sm:$0xff]
    %v3001 = vld [vmem:[%s3 + $0x958] sm:$0xff]
    %v3002 = vld [vmem:[%s3 + $0x960] sm:$0xff]
    %v3003 = vld [vmem:[%s3 + $0x968] sm:$0xff]
    %v3004 = vld [vmem:[%s3 + $0x970] sm:$0xff]
    %v3005 = vld [vmem:[%s3 + $0x978] sm:$0xff]
    %v3006 = vld [vmem:[%s3 + $0x980] sm:$0xff]
    %v3007 = vld [vmem:[%s3 + $0x988] sm:$0xff]
    %v3008 = vld [vmem:[%s3 + $0x990] sm:$0xff]
    %v3009 = vld [vmem:[%s3 + $0x998] sm:$0xff]
    %v3010 = vld [vmem:[%s3 + $0x9a0] sm:$0xff]
    %v3011 = vld [vmem:[%s3 + $0x9a8] sm:$0xff]
    %v3012 = vld [vmem:[%s3 + $0x9b0] sm:$0xff]
    %v3013 = vld [vmem:[%s3 + $0x9b8] sm:$0xff]
    %v3014 = vld [vmem:[%s3 + $0x9c0] sm:$0xff]
    %v3015 = vld [vmem:[%s3 + $0x9c8] sm:$0xff]
    %v3016 = vld [vmem:[%s3 + $0x9d0] sm:$0xff]
    %v3017 = vld [vmem:[%s3 + $0x9d8] sm:$0xff]
    %v3018 = vld [vmem:[%s3 + $0x9e0] sm:$0xff]
    %v3019 = vld [vmem:[%s3 + $0x9e8] sm:$0xff]
    %v3020 = vld [vmem:[%s3 + $0x9f0] sm:$0xff]
    %v3021 = vld [vmem:[%s3 + $0x9f8] sm:$0xff]
    %3022 = vmatprep.subr.mxu0 0.0
    %3023 = vmatpush1.msra.mxu0 %v2990
    %3024 = vmatprep.subr.mxu0 0.0
    %3025 = vmatpush1.msra.mxu0 %v2991
    %3026 = vmatprep.subr.mxu0 0.0
    %3027 = vmatpush1.msra.mxu0 %v2992
    %3028 = vmatprep.subr.mxu0 0.0
    %3029 = vmatpush1.msra.mxu0 %v2993
    %3030 = vmatprep.subr.mxu0 0.0
    %3031 = vmatpush1.msra.mxu0 %v2994
    %3032 = vmatprep.subr.mxu0 0.0
    %3033 = vmatpush1.msra.mxu0 %v2995
    %3034 = vmatprep.subr.mxu0 0.0
    %3035 = vmatpush1.msra.mxu0 %v2996
    %3036 = vmatprep.subr.mxu0 0.0
    %3037 = vmatpush1.msra.mxu0 %v2997
    %3038 = vmatprep.subr.mxu0 0.0
    %3039 = vmatpush1.msra.mxu0 %v2998
    %3040 = vmatprep.subr.mxu0 0.0
    %3041 = vmatpush1.msra.mxu0 %v2999
    %3042 = vmatprep.subr.mxu0 0.0
    %3043 = vmatpush1.msra.mxu0 %v3000
    %3044 = vmatprep.subr.mxu0 0.0
    %3045 = vmatpush1.msra.mxu0 %v3001
    %3046 = vmatprep.subr.mxu0 0.0
    %3047 = vmatpush1.msra.mxu0 %v3002
    %3048 = vmatprep.subr.mxu0 0.0
    %3049 = vmatpush1.msra.mxu0 %v3003
    %3050 = vmatprep.subr.mxu0 0.0
    %3051 = vmatpush1.msra.mxu0 %v3004
    %3052 = vmatprep.subr.mxu0 0.0
    %3053 = vmatpush1.msra.mxu0 %v3005
    %3054 = vmatprep.subr.mxu0 0.0
    %3055 = vmatpush1.msra.mxu0 %v3006
    %3056 = vmatprep.subr.mxu0 0.0
    %3057 = vmatpush1.msra.mxu0 %v3007
    %3058 = vmatprep.subr.mxu0 0.0
    %3059 = vmatpush1.msra.mxu0 %v3008
    %3060 = vmatprep.subr.mxu0 0.0
    %3061 = vmatpush1.msra.mxu0 %v3009
    %3062 = vmatprep.subr.mxu0 0.0
    %3063 = vmatpush1.msra.mxu0 %v3010
    %3064 = vmatprep.subr.mxu0 0.0
    %3065 = vmatpush1.msra.mxu0 %v3011
    %3066 = vmatprep.subr.mxu0 0.0
    %3067 = vmatpush1.msra.mxu0 %v3012
    %3068 = vmatprep.subr.mxu0 0.0
    %3069 = vmatpush1.msra.mxu0 %v3013
    %3070 = vmatprep.subr.mxu0 0.0
    %3071 = vmatpush1.msra.mxu0 %v3014
    %3072 = vmatprep.subr.mxu0 0.0
    %3073 = vmatpush1.msra.mxu0 %v3015
    %3074 = vmatprep.subr.mxu0 0.0
    %3075 = vmatpush1.msra.mxu0 %v3016
    %3076 = vmatprep.subr.mxu0 0.0
    %3077 = vmatpush1.msra.mxu0 %v3017
    %3078 = vmatprep.subr.mxu0 0.0
    %3079 = vmatpush1.msra.mxu0 %v3018
    %3080 = vmatprep.subr.mxu0 0.0
    %3081 = vmatpush1.msra.mxu0 %v3019
    %3082 = vmatprep.subr.mxu0 0.0
    %3083 = vmatpush1.msra.mxu0 %v3020
    %3084 = vmatprep.subr.mxu0 0.0
    %3085 = vmatpush1.msra.mxu0 %v3021
    %3086 = vmatprep.mubr.f32.mxu0 %v2989
    %3087 = vmatmul.mubr.f32.gmra.mrb[0].mxu0 %v2988
    %v3088 = vpop.f32.mrb[0].mxu0
    %v3089 = vadd.f32 0.0, %v3088
    %v3090 = vpop.f32.mrb[0].mxu0
    %3091 = vdwg.mxu0
    %v3092 = vld [vmem:[%s5] sm:$0xff]
    %v3093 = vadd.f32 %v3092, %v3089
    %3094 = vst [vmem:[%s5] sm:$0xff] %v3093
    // Predicated region
    $region30: #{cnn_forward.1} parent=1 // pred_check
      _
    $region31: #{cnn_forward.1} parent=1 // pred_check_branch
      %3096 = sbr.rel (0) target = $region33
    $region32: #{cnn_forward.1} parent=1 // pred_region
      _
    $region33: #{cnn_forward.1} parent=1 // pred_fallthru
      _
    // Predicated region
    $region34: #{cnn_forward.1} parent=1 // pred_check
      _
    $region35: #{cnn_forward.1} parent=1 // pred_check_branch
      %3098 = sbr.rel (0) target = $region37
    $region36: #{cnn_forward.1} parent=1 // pred_region
      _
    $region37: #{cnn_forward.1} parent=1 // pred_fallthru
      _
    %3099 = vsyncpa [#allocation3], 1
    %3100 = vsyncpa [#allocation5], 1

</llo_original>
